<compile_context>
chip_gen: v5e
topology: v5e:2x2
jax: 0.10.0
libtpu: 0.0.40
codegen_flags: <defaults>
</compile_context>

<pallas_src>
import jax
import jax.numpy as jnp
from jax.experimental import pallas as pl
from jax.experimental.pallas import tpu as pltpu

_EPS = 1e-5


def _bn_relu(z, mask_row, g, be, inv_n, out_dtype):
    """Train-mode BatchNorm1d folded to per-column scale/shift, then ReLU.

    z        : (P, D) f32 linear output (Linear bias omitted - cancels under BN).
    mask_row : (1, P) f32 row-validity mask (all ones when no padding).
    g, be    : (1, D) f32 gamma / beta.
    inv_n    : python float, 1 / (number of real rows).
    Batch sums go through the MXU (mask-row matmuls), so the VPU only does the
    z*z square and one fused scale/shift/ReLU/cast pass.
    Note: single-pass variance E[z^2] - mu^2, clamped at 0 (adequate at f32 for
    these magnitudes; a shifted two-pass would be the fallback if needed).
    """
    s1 = jnp.dot(mask_row, z, preferred_element_type=jnp.float32)       # (1, D)
    s2 = jnp.dot(mask_row, z * z, preferred_element_type=jnp.float32)   # (1, D)
    mu = s1 * inv_n
    var = jnp.maximum(s2 * inv_n - mu * mu, 0.0)      # biased variance, clamped
    scale = g * jax.lax.rsqrt(var + _EPS)
    shift = be - mu * scale
    return jnp.maximum(z * scale + shift, 0.0).astype(out_dtype)


def _make_tnet_kernel(n_valid):
    inv_n = 1.0 / float(n_valid)

    def kernel(x_ref, mask_ref,
               w1, w2, w3, w4, w5, w6,
               gb1, gb2, gb3, gb4, gb5, b6,
               out_ref):
        x = x_ref[...].astype(jnp.float32)                 # (P, 3)
        m = mask_ref[...]                                  # (1, P) validity row

        # --- layer 1: Linear(3, 64) on the VPU (K=3 would waste the MXU) ---
        w1v = w1[...]                                      # (3, 64) f32
        z = (x[:, 0:1] * w1v[0:1, :]
             + x[:, 1:2] * w1v[1:2, :]
             + x[:, 2:3] * w1v[2:3, :])
        h = _bn_relu(z, m, gb1[0:1, :], gb1[1:2, :], inv_n, jnp.float32)

        # --- layer 2: Linear(64, 128), f32 MXU; epilogue casts to bf16 ---
        z = jnp.dot(h, w2[...], preferred_element_type=jnp.float32)
        h = _bn_relu(z, m, gb2[0:1, :], gb2[1:2, :], inv_n, jnp.bfloat16)

        # --- layers 3-5: big matmuls, bf16 inputs + f32 accumulation ---
        z = jnp.dot(h, w3[...], preferred_element_type=jnp.float32)
        h = _bn_relu(z, m, gb3[0:1, :], gb3[1:2, :], inv_n, jnp.bfloat16)

        z = jnp.dot(h, w4[...], preferred_element_type=jnp.float32)
        h = _bn_relu(z, m, gb4[0:1, :], gb4[1:2, :], inv_n, jnp.bfloat16)

        z = jnp.dot(h, w5[...], preferred_element_type=jnp.float32)
        h = _bn_relu(z, m, gb5[0:1, :], gb5[1:2, :], inv_n, jnp.float32)

        # --- layer 6: Linear(256, 9), f32 MXU ---
        t = jnp.dot(h, w6[...], preferred_element_type=jnp.float32) + b6[...]

        # --- x_t = t.view(P,3,3); out[n,j] = sum_k x[n,k] * x_t[n,k,j] ---
        out = (x[:, 0:1] * t[:, 0:3]
               + x[:, 1:2] * t[:, 3:6]
               + x[:, 2:3] * t[:, 6:9])                    # (P, 3)
        out_ref[...] = out.astype(out_ref.dtype)

    return kernel


def _prepare_inputs(x, params, pad_multiple):
    """Pad rows, build the (1,P) mask row, pack BN params, cast big weights."""
    _, n, _ = x.shape
    p = max(pad_multiple, pl.cdiv(n, pad_multiple) * pad_multiple)
    xp = jnp.pad(x.astype(jnp.float32), ((0, 0), (0, p - n), (0, 0)))
    mask_row = (jnp.arange(p, dtype=jnp.int32) < n).astype(jnp.float32)[None, :]

    (w1, b1, g1, be1, w2, b2, g2, be2, w3, b3, g3, be3,
     w4, b4, g4, be4, w5, b5, g5, be5, w6, b6) = params
    # Linear biases b1..b5 cancel exactly under train-mode BatchNorm -> unused.
    gb = [jnp.concatenate([g, be], axis=0).astype(jnp.float32)
          for g, be in ((g1, be1), (g2, be2), (g3, be3), (g4, be4), (g5, be5))]
    weights = (w1.astype(jnp.float32),
               w2.astype(jnp.float32),
               w3.astype(jnp.bfloat16),
               w4.astype(jnp.bfloat16),
               w5.astype(jnp.bfloat16),
               w6.astype(jnp.float32))
    return xp, mask_row, weights, gb, b6.astype(jnp.float32), n, p


def tnet_forward_batched(x, params, *, pad_multiple=16):
    """x: (B, N, 3) -> (B, N, 3).  BatchNorm statistics are per cloud (per
    leading-batch entry), i.e. each cloud is processed exactly like one call of
    the PyTorch module's forward on an (N, 3) input."""
    batch = x.shape[0]
    xp, mask_row, weights, gb, b6, n, p = _prepare_inputs(x, params, pad_multiple)
    w1, w2, w3, w4, w5, w6 = weights
    const_args = (mask_row, w1, w2, w3, w4, w5, w6, *gb, b6)

    def resident(a):
        nd = a.ndim
        return pl.BlockSpec(a.shape, lambda b, _nd=nd: (0,) * _nd)

    in_specs = ([pl.BlockSpec((None, p, 3), lambda b: (b, 0, 0))]   # x per cloud
                + [resident(a) for a in const_args])                 # VMEM-resident
    out_spec = pl.BlockSpec((None, p, 3), lambda b: (b, 0, 0))

    # VMEM budget from the real peak: resident weights (allow double buffering),
    # live activations around layers 3-4 (f32 (P,1024) + bf16 (P,1024) + f32
    # (P,512) + slack), x/out double buffers, plus fixed headroom.  Cap at
    # 40 MiB so v7x's 64 MiB physical VMEM keeps compiler scratch headroom.
    weight_bytes = sum(int(a.size) * a.dtype.itemsize for a in const_args)
    act_bytes = p * (1024 * 4 + 1024 * 2 + 512 * 4 + 2048)
    io_bytes = 2 * 2 * p * 3 * 4
    vmem_limit = int(min(2 * weight_bytes + act_bytes + io_bytes + (6 << 20),
                         40 << 20))

    out = pl.pallas_call(
        _make_tnet_kernel(n),
        grid=(batch,),
        in_specs=in_specs,
        out_specs=out_spec,
        out_shape=jax.ShapeDtypeStruct((batch, p, 3), jnp.float32),
        compiler_params=pltpu.CompilerParams(
            dimension_semantics=("parallel",),   # clouds are independent
            vmem_limit_bytes=vmem_limit),
    )(xp, *const_args)
    return out[:, :n, :]


def tnet_forward(x, params, **kwargs):
    """Single-cloud entry point matching the PyTorch module: (N, 3) -> (N, 3)."""
    return tnet_forward_batched(x[None], params, **kwargs)[0]


def init_params(key):
    """Deterministic synthetic parameters (PyTorch-like shapes, f32)."""
    dims = [(3, 64), (64, 128), (128, 1024), (1024, 512), (512, 256), (256, 9)]
    params = []
    for i, (din, dout) in enumerate(dims):
        key, kw, kb = jax.random.split(key, 3)
        scale = 1.0 / jnp.sqrt(jnp.float32(din))
        w = jax.random.uniform(kw, (din, dout), jnp.float32, -scale, scale)
        b = jax.random.uniform(kb, (1, dout), jnp.float32, -scale, scale)
        params.extend([w, b])
        if i < 5:  # BatchNorm after the first five linears
            params.extend([jnp.ones((1, dout), jnp.float32),
                           jnp.zeros((1, dout), jnp.float32)])
    return params


def tnet_reference(x, params, *, bf16_layers=()):
    """Pure-JAX single-cloud reference of the PyTorch module (train-mode BN).

    x: (N, 3).  `bf16_layers` lists layer indices (1-based) whose matmul inputs
    and weights are cast to bf16, mirroring the kernel's mixed precision."""
    (w1, b1, g1, be1, w2, b2, g2, be2, w3, b3, g3, be3,
     w4, b4, g4, be4, w5, b5, g5, be5, w6, b6) = params

    def mm(h, w, layer):
        if layer in bf16_layers:
            return jnp.dot(h.astype(jnp.bfloat16), w.astype(jnp.bfloat16),
                           preferred_element_type=jnp.float32)
        return jnp.dot(h, w, preferred_element_type=jnp.float32)

    def lbr(h, w, b, g, be, layer):
        h = mm(h, w, layer) + b
        mu = jnp.mean(h, axis=0, keepdims=True)
        var = jnp.mean((h - mu) ** 2, axis=0, keepdims=True)
        h = (h - mu) / jnp.sqrt(var + _EPS) * g + be
        return jnp.maximum(h, 0.0)

    h = lbr(x, w1, b1, g1, be1, 1)
    h = lbr(h, w2, b2, g2, be2, 2)
    h = lbr(h, w3, b3, g3, be3, 3)
    h = lbr(h, w4, b4, g4, be4, 4)
    h = lbr(h, w5, b5, g5, be5, 5)
    t = (mm(h, w6, 6) + b6).reshape(-1, 3, 3)
    return jnp.einsum('nk,nkj->nj', x, t)


if __name__ == "__main__":
    key = jax.random.PRNGKey(0)
    key, kx = jax.random.split(key)
    B, N = 2, 200                 # 2 point clouds, 200 points each (padded to 208 rows)
    x = jax.random.normal(kx, (B, N, 3), jnp.float32)
    params = init_params(key)

    out = jax.block_until_ready(tnet_forward_batched(x, params))
    assert out.shape == (B, N, 3)

    # Check vs. a reference that mirrors the kernel's mixed precision (bf16
    # matmul inputs/weights on layers 3-5, everything else f32).  bf16 rounding
    # differences get amplified through five BN layers, so agreement is ~1e-2.
    ref_mixed = jnp.stack([tnet_reference(x[i], params, bf16_layers=(3, 4, 5))
                           for i in range(B)])
    err_mixed = float(jnp.max(jnp.abs(out - ref_mixed)))
    assert err_mixed < 5e-2, (
        f"kernel vs mixed-precision reference: max abs diff {err_mixed}")

    # Loose sanity check vs. the exact f32 module semantics (bounds the
    # deliberate bf16-matmul approximation).
    ref_exact = jnp.stack([tnet_reference(x[i], params) for i in range(B)])
    err_exact = float(jnp.max(jnp.abs(out - ref_exact)))
    assert err_exact < 0.25, f"kernel vs f32 reference: max abs diff {err_exact}"

    print("KERNEL_OK")
</pallas_src>

<mosaic_0001>
module attributes {stable_mosaic.version = 11 : i64} {
  func.func @kernel(%arg0: i32, %arg1: memref<1x208x3xf32, #tpu.memory_space<vmem>>, %arg2: memref<1x208xf32, #tpu.memory_space<vmem>>, %arg3: memref<3x64xf32, #tpu.memory_space<vmem>>, %arg4: memref<64x128xf32, #tpu.memory_space<vmem>>, %arg5: memref<128x1024xbf16, #tpu.memory_space<vmem>>, %arg6: memref<1024x512xbf16, #tpu.memory_space<vmem>>, %arg7: memref<512x256xbf16, #tpu.memory_space<vmem>>, %arg8: memref<256x9xf32, #tpu.memory_space<vmem>>, %arg9: memref<2x64xf32, #tpu.memory_space<vmem>>, %arg10: memref<2x128xf32, #tpu.memory_space<vmem>>, %arg11: memref<2x1024xf32, #tpu.memory_space<vmem>>, %arg12: memref<2x512xf32, #tpu.memory_space<vmem>>, %arg13: memref<2x256xf32, #tpu.memory_space<vmem>>, %arg14: memref<1x9xf32, #tpu.memory_space<vmem>>, %arg15: memref<1x208x3xf32, #tpu.memory_space<vmem>>) attributes {dimension_semantics = [#tpu.dimension_semantics<parallel>], iteration_bounds = array<i64: 2>, scalar_prefetch = 0 : i64, scratch_operands = 0 : i64, tpu.core_type = #tpu.core_type<tc>, window_params = [{transform_indices = @transform_0, window_bounds = array<i64: 1, 208, 3>}, {pipeline_mode = #tpu.pipeline_mode<synchronous>, transform_indices = @transform_1, window_bounds = array<i64: 1, 208>}, {pipeline_mode = #tpu.pipeline_mode<synchronous>, transform_indices = @transform_2, window_bounds = array<i64: 3, 64>}, {pipeline_mode = #tpu.pipeline_mode<synchronous>, transform_indices = @transform_3, window_bounds = array<i64: 64, 128>}, {pipeline_mode = #tpu.pipeline_mode<synchronous>, transform_indices = @transform_4, window_bounds = array<i64: 128, 1024>}, {pipeline_mode = #tpu.pipeline_mode<synchronous>, transform_indices = @transform_5, window_bounds = array<i64: 1024, 512>}, {pipeline_mode = #tpu.pipeline_mode<synchronous>, transform_indices = @transform_6, window_bounds = array<i64: 512, 256>}, {pipeline_mode = #tpu.pipeline_mode<synchronous>, transform_indices = @transform_7, window_bounds = array<i64: 256, 9>}, {pipeline_mode = #tpu.pipeline_mode<synchronous>, transform_indices = @transform_8, window_bounds = array<i64: 2, 64>}, {pipeline_mode = #tpu.pipeline_mode<synchronous>, transform_indices = @transform_9, window_bounds = array<i64: 2, 128>}, {pipeline_mode = #tpu.pipeline_mode<synchronous>, transform_indices = @transform_10, window_bounds = array<i64: 2, 1024>}, {pipeline_mode = #tpu.pipeline_mode<synchronous>, transform_indices = @transform_11, window_bounds = array<i64: 2, 512>}, {pipeline_mode = #tpu.pipeline_mode<synchronous>, transform_indices = @transform_12, window_bounds = array<i64: 2, 256>}, {pipeline_mode = #tpu.pipeline_mode<synchronous>, transform_indices = @transform_13, window_bounds = array<i64: 1, 9>}, {transform_indices = @transform_14, window_bounds = array<i64: 1, 208, 3>}]} {
    %c0 = arith.constant 0 : index
    %c0_0 = arith.constant 0 : index
    %c0_1 = arith.constant 0 : index
    %0 = vector.load %arg1[%c0, %c0_0, %c0_1] : memref<1x208x3xf32, #tpu.memory_space<vmem>>, vector<1x208x3xf32>
    %1 = vector.shape_cast %0 : vector<1x208x3xf32> to vector<208x3xf32>
    %c0_2 = arith.constant 0 : index
    %c0_3 = arith.constant 0 : index
    %2 = vector.load %arg2[%c0_2, %c0_3] : memref<1x208xf32, #tpu.memory_space<vmem>>, vector<1x208xf32>
    %c0_4 = arith.constant 0 : index
    %c0_5 = arith.constant 0 : index
    %3 = vector.load %arg3[%c0_4, %c0_5] : memref<3x64xf32, #tpu.memory_space<vmem>>, vector<3x64xf32>
    %4 = vector.extract_strided_slice %1 {offsets = [0, 0], sizes = [208, 1], strides = [1, 1]} : vector<208x3xf32> to vector<208x1xf32>
    %5 = vector.extract_strided_slice %3 {offsets = [0, 0], sizes = [1, 64], strides = [1, 1]} : vector<3x64xf32> to vector<1x64xf32>
    %6 = vector.broadcast %4 : vector<208x1xf32> to vector<208x64xf32>
    %7 = vector.broadcast %5 : vector<1x64xf32> to vector<208x64xf32>
    %8 = arith.mulf %6, %7 : vector<208x64xf32>
    %9 = vector.extract_strided_slice %1 {offsets = [0, 1], sizes = [208, 1], strides = [1, 1]} : vector<208x3xf32> to vector<208x1xf32>
    %10 = vector.extract_strided_slice %3 {offsets = [1, 0], sizes = [1, 64], strides = [1, 1]} : vector<3x64xf32> to vector<1x64xf32>
    %11 = vector.broadcast %9 : vector<208x1xf32> to vector<208x64xf32>
    %12 = vector.broadcast %10 : vector<1x64xf32> to vector<208x64xf32>
    %13 = arith.mulf %11, %12 : vector<208x64xf32>
    %14 = arith.addf %8, %13 : vector<208x64xf32>
    %15 = vector.extract_strided_slice %1 {offsets = [0, 2], sizes = [208, 1], strides = [1, 1]} : vector<208x3xf32> to vector<208x1xf32>
    %16 = vector.extract_strided_slice %3 {offsets = [2, 0], sizes = [1, 64], strides = [1, 1]} : vector<3x64xf32> to vector<1x64xf32>
    %17 = vector.broadcast %15 : vector<208x1xf32> to vector<208x64xf32>
    %18 = vector.broadcast %16 : vector<1x64xf32> to vector<208x64xf32>
    %19 = arith.mulf %17, %18 : vector<208x64xf32>
    %20 = arith.addf %14, %19 : vector<208x64xf32>
    %c0_6 = arith.constant 0 : index
    %c0_7 = arith.constant 0 : index
    %21 = vector.load %arg9[%c0_6, %c0_7] : memref<2x64xf32, #tpu.memory_space<vmem>>, vector<1x64xf32>
    %c1 = arith.constant 1 : index
    %c0_8 = arith.constant 0 : index
    %22 = vector.load %arg9[%c1, %c0_8] : memref<2x64xf32, #tpu.memory_space<vmem>>, vector<1x64xf32>
    %cst = arith.constant dense<0.000000e+00> : vector<1x64xf32>
    %23 = tpu.matmul %2, %20, %cst {dimension_numbers = #tpu.dot_dimension_numbers<[1], [0], [0], [1], [0, 0, 1, 1], [], []>} : vector<1x208xf32>, vector<208x64xf32>, vector<1x64xf32> -> vector<1x64xf32>
    %24 = arith.mulf %20, %20 : vector<208x64xf32>
    %cst_9 = arith.constant dense<0.000000e+00> : vector<1x64xf32>
    %25 = tpu.matmul %2, %24, %cst_9 {dimension_numbers = #tpu.dot_dimension_numbers<[1], [0], [0], [1], [0, 0, 1, 1], [], []>} : vector<1x208xf32>, vector<208x64xf32>, vector<1x64xf32> -> vector<1x64xf32>
    %cst_10 = arith.constant 5.000000e-03 : f32
    %26 = vector.broadcast %cst_10 : f32 to vector<1x64xf32>
    %27 = arith.mulf %23, %26 : vector<1x64xf32>
    %cst_11 = arith.constant 5.000000e-03 : f32
    %28 = vector.broadcast %cst_11 : f32 to vector<1x64xf32>
    %29 = arith.mulf %25, %28 : vector<1x64xf32>
    %30 = arith.mulf %27, %27 : vector<1x64xf32>
    %31 = arith.subf %29, %30 : vector<1x64xf32>
    %cst_12 = arith.constant 0.000000e+00 : f32
    %32 = vector.broadcast %cst_12 : f32 to vector<1x64xf32>
    %33 = arith.maximumf %31, %32 : vector<1x64xf32>
    %cst_13 = arith.constant 9.99999974E-6 : f32
    %34 = vector.broadcast %cst_13 : f32 to vector<1x64xf32>
    %35 = arith.addf %33, %34 : vector<1x64xf32>
    %36 = math.rsqrt %35 : vector<1x64xf32>
    %37 = arith.mulf %21, %36 : vector<1x64xf32>
    %38 = arith.mulf %27, %37 : vector<1x64xf32>
    %39 = arith.subf %22, %38 : vector<1x64xf32>
    %40 = vector.broadcast %37 : vector<1x64xf32> to vector<208x64xf32>
    %41 = arith.mulf %20, %40 : vector<208x64xf32>
    %42 = vector.broadcast %39 : vector<1x64xf32> to vector<208x64xf32>
    %43 = arith.addf %41, %42 : vector<208x64xf32>
    %cst_14 = arith.constant 0.000000e+00 : f32
    %44 = vector.broadcast %cst_14 : f32 to vector<208x64xf32>
    %45 = arith.maximumf %43, %44 : vector<208x64xf32>
    %c0_15 = arith.constant 0 : index
    %c0_16 = arith.constant 0 : index
    %46 = vector.load %arg4[%c0_15, %c0_16] : memref<64x128xf32, #tpu.memory_space<vmem>>, vector<64x128xf32>
    %cst_17 = arith.constant dense<0.000000e+00> : vector<208x128xf32>
    %47 = tpu.matmul %45, %46, %cst_17 {dimension_numbers = #tpu.dot_dimension_numbers<[1], [0], [0], [1], [0, 0, 1, 1], [], []>} : vector<208x64xf32>, vector<64x128xf32>, vector<208x128xf32> -> vector<208x128xf32>
    %c0_18 = arith.constant 0 : index
    %c0_19 = arith.constant 0 : index
    %48 = vector.load %arg10[%c0_18, %c0_19] : memref<2x128xf32, #tpu.memory_space<vmem>>, vector<1x128xf32>
    %c1_20 = arith.constant 1 : index
    %c0_21 = arith.constant 0 : index
    %49 = vector.load %arg10[%c1_20, %c0_21] : memref<2x128xf32, #tpu.memory_space<vmem>>, vector<1x128xf32>
    %cst_22 = arith.constant dense<0.000000e+00> : vector<1x128xf32>
    %50 = tpu.matmul %2, %47, %cst_22 {dimension_numbers = #tpu.dot_dimension_numbers<[1], [0], [0], [1], [0, 0, 1, 1], [], []>} : vector<1x208xf32>, vector<208x128xf32>, vector<1x128xf32> -> vector<1x128xf32>
    %51 = arith.mulf %47, %47 : vector<208x128xf32>
    %cst_23 = arith.constant dense<0.000000e+00> : vector<1x128xf32>
    %52 = tpu.matmul %2, %51, %cst_23 {dimension_numbers = #tpu.dot_dimension_numbers<[1], [0], [0], [1], [0, 0, 1, 1], [], []>} : vector<1x208xf32>, vector<208x128xf32>, vector<1x128xf32> -> vector<1x128xf32>
    %cst_24 = arith.constant 5.000000e-03 : f32
    %53 = vector.broadcast %cst_24 : f32 to vector<1x128xf32>
    %54 = arith.mulf %50, %53 : vector<1x128xf32>
    %cst_25 = arith.constant 5.000000e-03 : f32
    %55 = vector.broadcast %cst_25 : f32 to vector<1x128xf32>
    %56 = arith.mulf %52, %55 : vector<1x128xf32>
    %57 = arith.mulf %54, %54 : vector<1x128xf32>
    %58 = arith.subf %56, %57 : vector<1x128xf32>
    %cst_26 = arith.constant 0.000000e+00 : f32
    %59 = vector.broadcast %cst_26 : f32 to vector<1x128xf32>
    %60 = arith.maximumf %58, %59 : vector<1x128xf32>
    %cst_27 = arith.constant 9.99999974E-6 : f32
    %61 = vector.broadcast %cst_27 : f32 to vector<1x128xf32>
    %62 = arith.addf %60, %61 : vector<1x128xf32>
    %63 = math.rsqrt %62 : vector<1x128xf32>
    %64 = arith.mulf %48, %63 : vector<1x128xf32>
    %65 = arith.mulf %54, %64 : vector<1x128xf32>
    %66 = arith.subf %49, %65 : vector<1x128xf32>
    %67 = vector.broadcast %64 : vector<1x128xf32> to vector<208x128xf32>
    %68 = arith.mulf %47, %67 : vector<208x128xf32>
    %69 = vector.broadcast %66 : vector<1x128xf32> to vector<208x128xf32>
    %70 = arith.addf %68, %69 : vector<208x128xf32>
    %cst_28 = arith.constant 0.000000e+00 : f32
    %71 = vector.broadcast %cst_28 : f32 to vector<208x128xf32>
    %72 = arith.maximumf %70, %71 : vector<208x128xf32>
    %73 = arith.truncf %72 : vector<208x128xf32> to vector<208x128xbf16>
    %c0_29 = arith.constant 0 : index
    %c0_30 = arith.constant 0 : index
    %74 = vector.load %arg5[%c0_29, %c0_30] : memref<128x1024xbf16, #tpu.memory_space<vmem>>, vector<128x1024xbf16>
    %cst_31 = arith.constant dense<0.000000e+00> : vector<208x1024xf32>
    %75 = tpu.matmul %73, %74, %cst_31 {dimension_numbers = #tpu.dot_dimension_numbers<[1], [0], [0], [1], [0, 0, 1, 1], [], []>} : vector<208x128xbf16>, vector<128x1024xbf16>, vector<208x1024xf32> -> vector<208x1024xf32>
    %c0_32 = arith.constant 0 : index
    %c0_33 = arith.constant 0 : index
    %76 = vector.load %arg11[%c0_32, %c0_33] : memref<2x1024xf32, #tpu.memory_space<vmem>>, vector<1x1024xf32>
    %c1_34 = arith.constant 1 : index
    %c0_35 = arith.constant 0 : index
    %77 = vector.load %arg11[%c1_34, %c0_35] : memref<2x1024xf32, #tpu.memory_space<vmem>>, vector<1x1024xf32>
    %cst_36 = arith.constant dense<0.000000e+00> : vector<1x1024xf32>
    %78 = tpu.matmul %2, %75, %cst_36 {dimension_numbers = #tpu.dot_dimension_numbers<[1], [0], [0], [1], [0, 0, 1, 1], [], []>} : vector<1x208xf32>, vector<208x1024xf32>, vector<1x1024xf32> -> vector<1x1024xf32>
    %79 = arith.mulf %75, %75 : vector<208x1024xf32>
    %cst_37 = arith.constant dense<0.000000e+00> : vector<1x1024xf32>
    %80 = tpu.matmul %2, %79, %cst_37 {dimension_numbers = #tpu.dot_dimension_numbers<[1], [0], [0], [1], [0, 0, 1, 1], [], []>} : vector<1x208xf32>, vector<208x1024xf32>, vector<1x1024xf32> -> vector<1x1024xf32>
    %cst_38 = arith.constant 5.000000e-03 : f32
    %81 = vector.broadcast %cst_38 : f32 to vector<1x1024xf32>
    %82 = arith.mulf %78, %81 : vector<1x1024xf32>
    %cst_39 = arith.constant 5.000000e-03 : f32
    %83 = vector.broadcast %cst_39 : f32 to vector<1x1024xf32>
    %84 = arith.mulf %80, %83 : vector<1x1024xf32>
    %85 = arith.mulf %82, %82 : vector<1x1024xf32>
    %86 = arith.subf %84, %85 : vector<1x1024xf32>
    %cst_40 = arith.constant 0.000000e+00 : f32
    %87 = vector.broadcast %cst_40 : f32 to vector<1x1024xf32>
    %88 = arith.maximumf %86, %87 : vector<1x1024xf32>
    %cst_41 = arith.constant 9.99999974E-6 : f32
    %89 = vector.broadcast %cst_41 : f32 to vector<1x1024xf32>
    %90 = arith.addf %88, %89 : vector<1x1024xf32>
    %91 = math.rsqrt %90 : vector<1x1024xf32>
    %92 = arith.mulf %76, %91 : vector<1x1024xf32>
    %93 = arith.mulf %82, %92 : vector<1x1024xf32>
    %94 = arith.subf %77, %93 : vector<1x1024xf32>
    %95 = vector.broadcast %92 : vector<1x1024xf32> to vector<208x1024xf32>
    %96 = arith.mulf %75, %95 : vector<208x1024xf32>
    %97 = vector.broadcast %94 : vector<1x1024xf32> to vector<208x1024xf32>
    %98 = arith.addf %96, %97 : vector<208x1024xf32>
    %cst_42 = arith.constant 0.000000e+00 : f32
    %99 = vector.broadcast %cst_42 : f32 to vector<208x1024xf32>
    %100 = arith.maximumf %98, %99 : vector<208x1024xf32>
    %101 = arith.truncf %100 : vector<208x1024xf32> to vector<208x1024xbf16>
    %c0_43 = arith.constant 0 : index
    %c0_44 = arith.constant 0 : index
    %102 = vector.load %arg6[%c0_43, %c0_44] : memref<1024x512xbf16, #tpu.memory_space<vmem>>, vector<1024x512xbf16>
    %cst_45 = arith.constant dense<0.000000e+00> : vector<208x512xf32>
    %103 = tpu.matmul %101, %102, %cst_45 {dimension_numbers = #tpu.dot_dimension_numbers<[1], [0], [0], [1], [0, 0, 1, 1], [], []>} : vector<208x1024xbf16>, vector<1024x512xbf16>, vector<208x512xf32> -> vector<208x512xf32>
    %c0_46 = arith.constant 0 : index
    %c0_47 = arith.constant 0 : index
    %104 = vector.load %arg12[%c0_46, %c0_47] : memref<2x512xf32, #tpu.memory_space<vmem>>, vector<1x512xf32>
    %c1_48 = arith.constant 1 : index
    %c0_49 = arith.constant 0 : index
    %105 = vector.load %arg12[%c1_48, %c0_49] : memref<2x512xf32, #tpu.memory_space<vmem>>, vector<1x512xf32>
    %cst_50 = arith.constant dense<0.000000e+00> : vector<1x512xf32>
    %106 = tpu.matmul %2, %103, %cst_50 {dimension_numbers = #tpu.dot_dimension_numbers<[1], [0], [0], [1], [0, 0, 1, 1], [], []>} : vector<1x208xf32>, vector<208x512xf32>, vector<1x512xf32> -> vector<1x512xf32>
    %107 = arith.mulf %103, %103 : vector<208x512xf32>
    %cst_51 = arith.constant dense<0.000000e+00> : vector<1x512xf32>
    %108 = tpu.matmul %2, %107, %cst_51 {dimension_numbers = #tpu.dot_dimension_numbers<[1], [0], [0], [1], [0, 0, 1, 1], [], []>} : vector<1x208xf32>, vector<208x512xf32>, vector<1x512xf32> -> vector<1x512xf32>
    %cst_52 = arith.constant 5.000000e-03 : f32
    %109 = vector.broadcast %cst_52 : f32 to vector<1x512xf32>
    %110 = arith.mulf %106, %109 : vector<1x512xf32>
    %cst_53 = arith.constant 5.000000e-03 : f32
    %111 = vector.broadcast %cst_53 : f32 to vector<1x512xf32>
    %112 = arith.mulf %108, %111 : vector<1x512xf32>
    %113 = arith.mulf %110, %110 : vector<1x512xf32>
    %114 = arith.subf %112, %113 : vector<1x512xf32>
    %cst_54 = arith.constant 0.000000e+00 : f32
    %115 = vector.broadcast %cst_54 : f32 to vector<1x512xf32>
    %116 = arith.maximumf %114, %115 : vector<1x512xf32>
    %cst_55 = arith.constant 9.99999974E-6 : f32
    %117 = vector.broadcast %cst_55 : f32 to vector<1x512xf32>
    %118 = arith.addf %116, %117 : vector<1x512xf32>
    %119 = math.rsqrt %118 : vector<1x512xf32>
    %120 = arith.mulf %104, %119 : vector<1x512xf32>
    %121 = arith.mulf %110, %120 : vector<1x512xf32>
    %122 = arith.subf %105, %121 : vector<1x512xf32>
    %123 = vector.broadcast %120 : vector<1x512xf32> to vector<208x512xf32>
    %124 = arith.mulf %103, %123 : vector<208x512xf32>
    %125 = vector.broadcast %122 : vector<1x512xf32> to vector<208x512xf32>
    %126 = arith.addf %124, %125 : vector<208x512xf32>
    %cst_56 = arith.constant 0.000000e+00 : f32
    %127 = vector.broadcast %cst_56 : f32 to vector<208x512xf32>
    %128 = arith.maximumf %126, %127 : vector<208x512xf32>
    %129 = arith.truncf %128 : vector<208x512xf32> to vector<208x512xbf16>
    %c0_57 = arith.constant 0 : index
    %c0_58 = arith.constant 0 : index
    %130 = vector.load %arg7[%c0_57, %c0_58] : memref<512x256xbf16, #tpu.memory_space<vmem>>, vector<512x256xbf16>
    %cst_59 = arith.constant dense<0.000000e+00> : vector<208x256xf32>
    %131 = tpu.matmul %129, %130, %cst_59 {dimension_numbers = #tpu.dot_dimension_numbers<[1], [0], [0], [1], [0, 0, 1, 1], [], []>} : vector<208x512xbf16>, vector<512x256xbf16>, vector<208x256xf32> -> vector<208x256xf32>
    %c0_60 = arith.constant 0 : index
    %c0_61 = arith.constant 0 : index
    %132 = vector.load %arg13[%c0_60, %c0_61] : memref<2x256xf32, #tpu.memory_space<vmem>>, vector<1x256xf32>
    %c1_62 = arith.constant 1 : index
    %c0_63 = arith.constant 0 : index
    %133 = vector.load %arg13[%c1_62, %c0_63] : memref<2x256xf32, #tpu.memory_space<vmem>>, vector<1x256xf32>
    %cst_64 = arith.constant dense<0.000000e+00> : vector<1x256xf32>
    %134 = tpu.matmul %2, %131, %cst_64 {dimension_numbers = #tpu.dot_dimension_numbers<[1], [0], [0], [1], [0, 0, 1, 1], [], []>} : vector<1x208xf32>, vector<208x256xf32>, vector<1x256xf32> -> vector<1x256xf32>
    %135 = arith.mulf %131, %131 : vector<208x256xf32>
    %cst_65 = arith.constant dense<0.000000e+00> : vector<1x256xf32>
    %136 = tpu.matmul %2, %135, %cst_65 {dimension_numbers = #tpu.dot_dimension_numbers<[1], [0], [0], [1], [0, 0, 1, 1], [], []>} : vector<1x208xf32>, vector<208x256xf32>, vector<1x256xf32> -> vector<1x256xf32>
    %cst_66 = arith.constant 5.000000e-03 : f32
    %137 = vector.broadcast %cst_66 : f32 to vector<1x256xf32>
    %138 = arith.mulf %134, %137 : vector<1x256xf32>
    %cst_67 = arith.constant 5.000000e-03 : f32
    %139 = vector.broadcast %cst_67 : f32 to vector<1x256xf32>
    %140 = arith.mulf %136, %139 : vector<1x256xf32>
    %141 = arith.mulf %138, %138 : vector<1x256xf32>
    %142 = arith.subf %140, %141 : vector<1x256xf32>
    %cst_68 = arith.constant 0.000000e+00 : f32
    %143 = vector.broadcast %cst_68 : f32 to vector<1x256xf32>
    %144 = arith.maximumf %142, %143 : vector<1x256xf32>
    %cst_69 = arith.constant 9.99999974E-6 : f32
    %145 = vector.broadcast %cst_69 : f32 to vector<1x256xf32>
    %146 = arith.addf %144, %145 : vector<1x256xf32>
    %147 = math.rsqrt %146 : vector<1x256xf32>
    %148 = arith.mulf %132, %147 : vector<1x256xf32>
    %149 = arith.mulf %138, %148 : vector<1x256xf32>
    %150 = arith.subf %133, %149 : vector<1x256xf32>
    %151 = vector.broadcast %148 : vector<1x256xf32> to vector<208x256xf32>
    %152 = arith.mulf %131, %151 : vector<208x256xf32>
    %153 = vector.broadcast %150 : vector<1x256xf32> to vector<208x256xf32>
    %154 = arith.addf %152, %153 : vector<208x256xf32>
    %cst_70 = arith.constant 0.000000e+00 : f32
    %155 = vector.broadcast %cst_70 : f32 to vector<208x256xf32>
    %156 = arith.maximumf %154, %155 : vector<208x256xf32>
    %c0_71 = arith.constant 0 : index
    %c0_72 = arith.constant 0 : index
    %157 = vector.load %arg8[%c0_71, %c0_72] : memref<256x9xf32, #tpu.memory_space<vmem>>, vector<256x9xf32>
    %cst_73 = arith.constant dense<0.000000e+00> : vector<208x9xf32>
    %158 = tpu.matmul %156, %157, %cst_73 {dimension_numbers = #tpu.dot_dimension_numbers<[1], [0], [0], [1], [0, 0, 1, 1], [], []>} : vector<208x256xf32>, vector<256x9xf32>, vector<208x9xf32> -> vector<208x9xf32>
    %c0_74 = arith.constant 0 : index
    %c0_75 = arith.constant 0 : index
    %159 = vector.load %arg14[%c0_74, %c0_75] : memref<1x9xf32, #tpu.memory_space<vmem>>, vector<1x9xf32>
    %160 = vector.broadcast %159 : vector<1x9xf32> to vector<208x9xf32>
    %161 = arith.addf %158, %160 : vector<208x9xf32>
    %162 = vector.extract_strided_slice %1 {offsets = [0, 0], sizes = [208, 1], strides = [1, 1]} : vector<208x3xf32> to vector<208x1xf32>
    %163 = vector.extract_strided_slice %161 {offsets = [0, 0], sizes = [208, 3], strides = [1, 1]} : vector<208x9xf32> to vector<208x3xf32>
    %164 = vector.broadcast %162 : vector<208x1xf32> to vector<208x3xf32>
    %165 = arith.mulf %164, %163 : vector<208x3xf32>
    %166 = vector.extract_strided_slice %1 {offsets = [0, 1], sizes = [208, 1], strides = [1, 1]} : vector<208x3xf32> to vector<208x1xf32>
    %167 = vector.extract_strided_slice %161 {offsets = [0, 3], sizes = [208, 3], strides = [1, 1]} : vector<208x9xf32> to vector<208x3xf32>
    %168 = vector.broadcast %166 : vector<208x1xf32> to vector<208x3xf32>
    %169 = arith.mulf %168, %167 : vector<208x3xf32>
    %170 = arith.addf %165, %169 : vector<208x3xf32>
    %171 = vector.extract_strided_slice %1 {offsets = [0, 2], sizes = [208, 1], strides = [1, 1]} : vector<208x3xf32> to vector<208x1xf32>
    %172 = vector.extract_strided_slice %161 {offsets = [0, 6], sizes = [208, 3], strides = [1, 1]} : vector<208x9xf32> to vector<208x3xf32>
    %173 = vector.broadcast %171 : vector<208x1xf32> to vector<208x3xf32>
    %174 = arith.mulf %173, %172 : vector<208x3xf32>
    %175 = arith.addf %170, %174 : vector<208x3xf32>
    %c0_76 = arith.constant 0 : index
    %c0_77 = arith.constant 0 : index
    %c0_78 = arith.constant 0 : index
    %176 = vector.load %arg15[%c0_76, %c0_77, %c0_78] : memref<1x208x3xf32, #tpu.memory_space<vmem>>, vector<1x208x3xf32>
    %177 = vector.shape_cast %176 : vector<1x208x3xf32> to vector<208x3xf32>
    %178 = vector.shape_cast %175 : vector<208x3xf32> to vector<1x208x3xf32>
    tpu.vector_store %arg15[%c0_76, %c0_77, %c0_78], %178 {strides = array<i32>} : memref<1x208x3xf32, #tpu.memory_space<vmem>>, vector<1x208x3xf32>,
    return
  }
  func.func @transform_0(%arg0: i32) -> (i32, i32, i32) {
    %c0_i32 = arith.constant 0 : i32
    %c0_i32_0 = arith.constant 0 : i32
    %c0_i32_1 = arith.constant 0 : i32
    return %arg0, %c0_i32, %c0_i32_0 : i32, i32, i32
  }
  func.func @transform_1(%arg0: i32) -> (i32, i32) {
    %c0_i32 = arith.constant 0 : i32
    %c0_i32_0 = arith.constant 0 : i32
    %c0_i32_1 = arith.constant 0 : i32
    return %c0_i32, %c0_i32_0 : i32, i32
  }
  func.func @transform_2(%arg0: i32) -> (i32, i32) {
    %c0_i32 = arith.constant 0 : i32
    %c0_i32_0 = arith.constant 0 : i32
    %c0_i32_1 = arith.constant 0 : i32
    return %c0_i32, %c0_i32_0 : i32, i32
  }
  func.func @transform_3(%arg0: i32) -> (i32, i32) {
    %c0_i32 = arith.constant 0 : i32
    %c0_i32_0 = arith.constant 0 : i32
    %c0_i32_1 = arith.constant 0 : i32
    return %c0_i32, %c0_i32_0 : i32, i32
  }
  func.func @transform_4(%arg0: i32) -> (i32, i32) {
    %c0_i32 = arith.constant 0 : i32
    %c0_i32_0 = arith.constant 0 : i32
    %c0_i32_1 = arith.constant 0 : i32
    return %c0_i32, %c0_i32_0 : i32, i32
  }
  func.func @transform_5(%arg0: i32) -> (i32, i32) {
    %c0_i32 = arith.constant 0 : i32
    %c0_i32_0 = arith.constant 0 : i32
    %c0_i32_1 = arith.constant 0 : i32
    return %c0_i32, %c0_i32_0 : i32, i32
  }
  func.func @transform_6(%arg0: i32) -> (i32, i32) {
    %c0_i32 = arith.constant 0 : i32
    %c0_i32_0 = arith.constant 0 : i32
    %c0_i32_1 = arith.constant 0 : i32
    return %c0_i32, %c0_i32_0 : i32, i32
  }
  func.func @transform_7(%arg0: i32) -> (i32, i32) {
    %c0_i32 = arith.constant 0 : i32
    %c0_i32_0 = arith.constant 0 : i32
    %c0_i32_1 = arith.constant 0 : i32
    return %c0_i32, %c0_i32_0 : i32, i32
  }
  func.func @transform_8(%arg0: i32) -> (i32, i32) {
    %c0_i32 = arith.constant 0 : i32
    %c0_i32_0 = arith.constant 0 : i32
    %c0_i32_1 = arith.constant 0 : i32
    return %c0_i32, %c0_i32_0 : i32, i32
  }
  func.func @transform_9(%arg0: i32) -> (i32, i32) {
    %c0_i32 = arith.constant 0 : i32
    %c0_i32_0 = arith.constant 0 : i32
    %c0_i32_1 = arith.constant 0 : i32
    return %c0_i32, %c0_i32_0 : i32, i32
  }
  func.func @transform_10(%arg0: i32) -> (i32, i32) {
    %c0_i32 = arith.constant 0 : i32
    %c0_i32_0 = arith.constant 0 : i32
    %c0_i32_1 = arith.constant 0 : i32
    return %c0_i32, %c0_i32_0 : i32, i32
  }
  func.func @transform_11(%arg0: i32) -> (i32, i32) {
    %c0_i32 = arith.constant 0 : i32
    %c0_i32_0 = arith.constant 0 : i32
    %c0_i32_1 = arith.constant 0 : i32
    return %c0_i32, %c0_i32_0 : i32, i32
  }
  func.func @transform_12(%arg0: i32) -> (i32, i32) {
    %c0_i32 = arith.constant 0 : i32
    %c0_i32_0 = arith.constant 0 : i32
    %c0_i32_1 = arith.constant 0 : i32
    return %c0_i32, %c0_i32_0 : i32, i32
  }
  func.func @transform_13(%arg0: i32) -> (i32, i32) {
    %c0_i32 = arith.constant 0 : i32
    %c0_i32_0 = arith.constant 0 : i32
    %c0_i32_1 = arith.constant 0 : i32
    return %c0_i32, %c0_i32_0 : i32, i32
  }
  func.func @transform_14(%arg0: i32) -> (i32, i32, i32) {
    %c0_i32 = arith.constant 0 : i32
    %c0_i32_0 = arith.constant 0 : i32
    %c0_i32_1 = arith.constant 0 : i32
    return %arg0, %c0_i32, %c0_i32_0 : i32, i32, i32
  }
}

</mosaic_0001>

<llo_original>
// kernel: tpu_custom_call.1
$region0: #{tpu_custom_call.1}
  #allocation0 [shape = 'u32[]', space=smem, size = 0x4, offset = 0x4, fixed_abs, tag = 'smem constant byte address 0x4 - core index']
  #allocation1 [shape = 'u32[72,128]{1,0:T(1,128)}', space=vmem, size = 0x9000, scoped, tag = 'internal scratch']
  %s0 = inlined_call_operand.vmem [shape: f32[2,208,3], index: 0, kind: input, shape index: {}]
  %s1 = inlined_call_operand.vmem [shape: f32[1,208], index: 1, kind: input, shape index: {}]
  %s2 = inlined_call_operand.vmem [shape: f32[3,64], index: 2, kind: input, shape index: {}]
  %s3 = inlined_call_operand.vmem [shape: f32[64,128], index: 3, kind: input, shape index: {}]
  %s4 = inlined_call_operand.vmem [shape: bf16[128,1024], index: 4, kind: input, shape index: {}]
  %s5 = inlined_call_operand.hbm [shape: bf16[1024,512], index: 5, kind: input, shape index: {}]
  %s6 = inlined_call_operand.hbm [shape: bf16[512,256], index: 6, kind: input, shape index: {}]
  %s7 = inlined_call_operand.vmem [shape: f32[256,9], index: 7, kind: input, shape index: {}]
  %s8 = inlined_call_operand.vmem [shape: f32[2,64], index: 8, kind: input, shape index: {}]
  %s9 = inlined_call_operand.vmem [shape: f32[2,128], index: 9, kind: input, shape index: {}]
  %s10 = inlined_call_operand.vmem [shape: f32[2,1024], index: 10, kind: input, shape index: {}]
  %s11 = inlined_call_operand.vmem [shape: f32[2,512], index: 11, kind: input, shape index: {}]
  %s12 = inlined_call_operand.vmem [shape: f32[2,256], index: 12, kind: input, shape index: {}]
  %s13 = inlined_call_operand.vmem [shape: f32[1,9], index: 13, kind: input, shape index: {}]
  %s14 = inlined_call_operand.vmem [shape: f32[2,208,3], index: 14, kind: output, shape index: {}]
  %s15 = sld [smem:[#allocation0]]
  $region97: #{tpu_custom_call.1} parent=0
    _
  %s17 = ssub.s32 1, %s15
  %s18 = scalar_select 0, %s17, %s15
  $region1: #{tpu_custom_call.1} parent=0
    #allocation2 [shape = 'u8[1048576]{0}', space=vmem, size = 0x100000, scoped, tag = 'input window, operand 5, single buffered']
    #allocation3 [shape = 's32[2]{0}', space=sflag, size = 0x8, scoped, tag = 'scoped memory for tpu_custom_call.1']
    #allocation4 [shape = 'u8[262144]{0}', space=vmem, size = 0x40000, scoped, tag = 'input window, operand 6, single buffered']
    #allocation5 [shape = 's32[1]{0}', space=sflag, size = 0x4, scoped, tag = 'scoped memory for tpu_custom_call.1']
    %19 = vsyncpa [#allocation3], 0
    %20 = vsyncpa [#allocation5], 0
    loop: start=0, step=1, limit=4
    $region2: #{tpu_custom_call.1} parent=1 // loop_pre_header
      _
    $region3: #{tpu_custom_call.1} parent=1 // loop_header
      %s22 = sphi 0, %s26
      %p23 = scmp.ge.s32.totalorder %s22, 4
      %s32 = sphi 0, %s34
      %s35 = sphi 0, %s32
      %s36 = sphi 0, %s35
      %s52 = sphi 0, %s36
      %s56 = sphi 0, %s56
      %s58 = sphi 0, %s56
      %s59 = sphi 0, %s58
      %s73 = sphi 0, %s59
      %s77 = sphi 0, %s77
      %s79 = sphi 0, %s77
      %s80 = sphi 0, %s79
      %s94 = sphi 0, %s80
      %s98 = sphi 0, %s98
      %s100 = sphi 0, %s98
      %s101 = sphi 0, %s100
      %s115 = sphi 0, %s101
      %s119 = sphi 0, %s119
      %s121 = sphi 0, %s119
      %s122 = sphi 0, %s121
      %s136 = sphi 0, %s122
      %s140 = sphi 0, %s140
      %s142 = sphi 0, %s140
      %s143 = sphi 0, %s142
      %s157 = sphi 0, %s143
      %s161 = sphi 0, %s161
      %s163 = sphi 0, %s161
      %s164 = sphi 0, %s163
      %s178 = sphi 0, %s164
      %s182 = sphi 0, %s182
      %s184 = sphi 0, %s182
      %s185 = sphi 0, %s184
      %s199 = sphi 0, %s185
      %s203 = sphi 0, %s203
      %s205 = sphi 0, %s203
      %s206 = sphi 0, %s205
      %s220 = sphi 0, %s206
      %s224 = sphi 0, %s224
      %s226 = sphi 0, %s224
      %s227 = sphi 0, %s226
      %s241 = sphi 0, %s227
      %s245 = sphi 0, %s245
      %s247 = sphi 0, %s245
      %s248 = sphi 0, %s247
      %s262 = sphi 0, %s248
      %s266 = sphi 0, %s266
      %s268 = sphi 0, %s266
      %s269 = sphi 0, %s268
      %s283 = sphi 0, %s269
      %s287 = sphi 0, %s287
      %s289 = sphi 0, %s287
      %s290 = sphi 0, %s289
      %s304 = sphi 0, %s290
      %s308 = sphi 0, %s308
      %s310 = sphi 0, %s308
      %s311 = sphi 0, %s310
      %s325 = sphi 0, %s311
      %s331 = sphi 0, %s333
      %s334 = sphi 0, %s331
      %s335 = sphi 0, %s334
      %s351 = sphi 0, %s335
    $region4: #{tpu_custom_call.1} parent=1 // loop_header_branch
      %25 = sbr.rel (%p23) target = $region8
    $region5: #{tpu_custom_call.1} parent=1 // loop_body
      %s27 = ssub.s32 %s22, 1
      %s28 = ssub.s32 %s22, 2
      %s29 = sadd.s32 %s22, 1
      %s30 = ssub.s32 %s22, %s29
      %p31 = scmp.eq.s32.totalorder %s30, 0
      %s33 = sadd.s32 %s32, 1
      %s34 = scalar_select %p31, %s32, %s33
      %p37 = pneg %p31
      %p38 = scmp.eq.s32.totalorder %s22, 1
      %p39 = por %p37, %p38
      %p40 = scmp.ne.s32.totalorder %s32, %s35
      %p41 = scmp.eq.s32.totalorder %s22, 0
      %p42 = por %p40, %p41
      %p43 = scmp.ne.s32.totalorder %s32, %s35
      %p44 = scmp.eq.s32.totalorder %s27, 1
      %p45 = por %p43, %p44
      %p46 = scmp.ne.s32.totalorder %s35, %s36
      %p47 = scmp.eq.s32.totalorder %s27, 0
      %p48 = por %p46, %p47
      %p49 = scmp.ne.s32.totalorder %s35, %s36
      %p50 = scmp.eq.s32.totalorder %s28, 1
      %p51 = por %p49, %p50
      %p53 = scmp.ne.s32.totalorder %s36, %s52
      %p54 = scmp.eq.s32.totalorder %s28, 0
      %p55 = por %p53, %p54
      %s57 = sadd.s32 %s56, 1
      %p60 = scmp.eq.s32.totalorder %s22, 1
      %p61 = scmp.ne.s32.totalorder %s56, %s58
      %p62 = scmp.eq.s32.totalorder %s22, 0
      %p63 = por %p61, %p62
      %p64 = scmp.ne.s32.totalorder %s56, %s58
      %p65 = scmp.eq.s32.totalorder %s27, 1
      %p66 = por %p64, %p65
      %p67 = scmp.ne.s32.totalorder %s58, %s59
      %p68 = scmp.eq.s32.totalorder %s27, 0
      %p69 = por %p67, %p68
      %p70 = scmp.ne.s32.totalorder %s58, %s59
      %p71 = scmp.eq.s32.totalorder %s28, 1
      %p72 = por %p70, %p71
      %p74 = scmp.ne.s32.totalorder %s59, %s73
      %p75 = scmp.eq.s32.totalorder %s28, 0
      %p76 = por %p74, %p75
      %s78 = sadd.s32 %s77, 1
      %p81 = scmp.eq.s32.totalorder %s22, 1
      %p82 = scmp.ne.s32.totalorder %s77, %s79
      %p83 = scmp.eq.s32.totalorder %s22, 0
      %p84 = por %p82, %p83
      %p85 = scmp.ne.s32.totalorder %s77, %s79
      %p86 = scmp.eq.s32.totalorder %s27, 1
      %p87 = por %p85, %p86
      %p88 = scmp.ne.s32.totalorder %s79, %s80
      %p89 = scmp.eq.s32.totalorder %s27, 0
      %p90 = por %p88, %p89
      %p91 = scmp.ne.s32.totalorder %s79, %s80
      %p92 = scmp.eq.s32.totalorder %s28, 1
      %p93 = por %p91, %p92
      %p95 = scmp.ne.s32.totalorder %s80, %s94
      %p96 = scmp.eq.s32.totalorder %s28, 0
      %p97 = por %p95, %p96
      %s99 = sadd.s32 %s98, 1
      %p102 = scmp.eq.s32.totalorder %s22, 1
      %p103 = scmp.ne.s32.totalorder %s98, %s100
      %p104 = scmp.eq.s32.totalorder %s22, 0
      %p105 = por %p103, %p104
      %p106 = scmp.ne.s32.totalorder %s98, %s100
      %p107 = scmp.eq.s32.totalorder %s27, 1
      %p108 = por %p106, %p107
      %p109 = scmp.ne.s32.totalorder %s100, %s101
      %p110 = scmp.eq.s32.totalorder %s27, 0
      %p111 = por %p109, %p110
      %p112 = scmp.ne.s32.totalorder %s100, %s101
      %p113 = scmp.eq.s32.totalorder %s28, 1
      %p114 = por %p112, %p113
      %p116 = scmp.ne.s32.totalorder %s101, %s115
      %p117 = scmp.eq.s32.totalorder %s28, 0
      %p118 = por %p116, %p117
      %s120 = sadd.s32 %s119, 1
      %p123 = scmp.eq.s32.totalorder %s22, 1
      %p124 = scmp.ne.s32.totalorder %s119, %s121
      %p125 = scmp.eq.s32.totalorder %s22, 0
      %p126 = por %p124, %p125
      %p127 = scmp.ne.s32.totalorder %s119, %s121
      %p128 = scmp.eq.s32.totalorder %s27, 1
      %p129 = por %p127, %p128
      %p130 = scmp.ne.s32.totalorder %s121, %s122
      %p131 = scmp.eq.s32.totalorder %s27, 0
      %p132 = por %p130, %p131
      %p133 = scmp.ne.s32.totalorder %s121, %s122
      %p134 = scmp.eq.s32.totalorder %s28, 1
      %p135 = por %p133, %p134
      %p137 = scmp.ne.s32.totalorder %s122, %s136
      %p138 = scmp.eq.s32.totalorder %s28, 0
      %p139 = por %p137, %p138
      %s141 = sadd.s32 %s140, 1
      %p144 = scmp.eq.s32.totalorder %s22, 1
      %p145 = scmp.ne.s32.totalorder %s140, %s142
      %p146 = scmp.eq.s32.totalorder %s22, 0
      %p147 = por %p145, %p146
      %p148 = scmp.ne.s32.totalorder %s140, %s142
      %p149 = scmp.eq.s32.totalorder %s27, 1
      %p150 = por %p148, %p149
      %p151 = scmp.ne.s32.totalorder %s142, %s143
      %p152 = scmp.eq.s32.totalorder %s27, 0
      %p153 = por %p151, %p152
      %p154 = scmp.ne.s32.totalorder %s142, %s143
      %p155 = scmp.eq.s32.totalorder %s28, 1
      %p156 = por %p154, %p155
      %p158 = scmp.ne.s32.totalorder %s143, %s157
      %p159 = scmp.eq.s32.totalorder %s28, 0
      %p160 = por %p158, %p159
      %s162 = sadd.s32 %s161, 1
      %p165 = scmp.eq.s32.totalorder %s22, 1
      %p166 = scmp.ne.s32.totalorder %s161, %s163
      %p167 = scmp.eq.s32.totalorder %s22, 0
      %p168 = por %p166, %p167
      %p169 = scmp.ne.s32.totalorder %s161, %s163
      %p170 = scmp.eq.s32.totalorder %s27, 1
      %p171 = por %p169, %p170
      %p172 = scmp.ne.s32.totalorder %s163, %s164
      %p173 = scmp.eq.s32.totalorder %s27, 0
      %p174 = por %p172, %p173
      %p175 = scmp.ne.s32.totalorder %s163, %s164
      %p176 = scmp.eq.s32.totalorder %s28, 1
      %p177 = por %p175, %p176
      %p179 = scmp.ne.s32.totalorder %s164, %s178
      %p180 = scmp.eq.s32.totalorder %s28, 0
      %p181 = por %p179, %p180
      %s183 = sadd.s32 %s182, 1
      %p186 = scmp.eq.s32.totalorder %s22, 1
      %p187 = scmp.ne.s32.totalorder %s182, %s184
      %p188 = scmp.eq.s32.totalorder %s22, 0
      %p189 = por %p187, %p188
      %p190 = scmp.ne.s32.totalorder %s182, %s184
      %p191 = scmp.eq.s32.totalorder %s27, 1
      %p192 = por %p190, %p191
      %p193 = scmp.ne.s32.totalorder %s184, %s185
      %p194 = scmp.eq.s32.totalorder %s27, 0
      %p195 = por %p193, %p194
      %p196 = scmp.ne.s32.totalorder %s184, %s185
      %p197 = scmp.eq.s32.totalorder %s28, 1
      %p198 = por %p196, %p197
      %p200 = scmp.ne.s32.totalorder %s185, %s199
      %p201 = scmp.eq.s32.totalorder %s28, 0
      %p202 = por %p200, %p201
      %s204 = sadd.s32 %s203, 1
      %p207 = scmp.eq.s32.totalorder %s22, 1
      %p208 = scmp.ne.s32.totalorder %s203, %s205
      %p209 = scmp.eq.s32.totalorder %s22, 0
      %p210 = por %p208, %p209
      %p211 = scmp.ne.s32.totalorder %s203, %s205
      %p212 = scmp.eq.s32.totalorder %s27, 1
      %p213 = por %p211, %p212
      %p214 = scmp.ne.s32.totalorder %s205, %s206
      %p215 = scmp.eq.s32.totalorder %s27, 0
      %p216 = por %p214, %p215
      %p217 = scmp.ne.s32.totalorder %s205, %s206
      %p218 = scmp.eq.s32.totalorder %s28, 1
      %p219 = por %p217, %p218
      %p221 = scmp.ne.s32.totalorder %s206, %s220
      %p222 = scmp.eq.s32.totalorder %s28, 0
      %p223 = por %p221, %p222
      %s225 = sadd.s32 %s224, 1
      %p228 = scmp.eq.s32.totalorder %s22, 1
      %p229 = scmp.ne.s32.totalorder %s224, %s226
      %p230 = scmp.eq.s32.totalorder %s22, 0
      %p231 = por %p229, %p230
      %p232 = scmp.ne.s32.totalorder %s224, %s226
      %p233 = scmp.eq.s32.totalorder %s27, 1
      %p234 = por %p232, %p233
      %p235 = scmp.ne.s32.totalorder %s226, %s227
      %p236 = scmp.eq.s32.totalorder %s27, 0
      %p237 = por %p235, %p236
      %p238 = scmp.ne.s32.totalorder %s226, %s227
      %p239 = scmp.eq.s32.totalorder %s28, 1
      %p240 = por %p238, %p239
      %p242 = scmp.ne.s32.totalorder %s227, %s241
      %p243 = scmp.eq.s32.totalorder %s28, 0
      %p244 = por %p242, %p243
      %s246 = sadd.s32 %s245, 1
      %p249 = scmp.eq.s32.totalorder %s22, 1
      %p250 = scmp.ne.s32.totalorder %s245, %s247
      %p251 = scmp.eq.s32.totalorder %s22, 0
      %p252 = por %p250, %p251
      %p253 = scmp.ne.s32.totalorder %s245, %s247
      %p254 = scmp.eq.s32.totalorder %s27, 1
      %p255 = por %p253, %p254
      %p256 = scmp.ne.s32.totalorder %s247, %s248
      %p257 = scmp.eq.s32.totalorder %s27, 0
      %p258 = por %p256, %p257
      %p259 = scmp.ne.s32.totalorder %s247, %s248
      %p260 = scmp.eq.s32.totalorder %s28, 1
      %p261 = por %p259, %p260
      %p263 = scmp.ne.s32.totalorder %s248, %s262
      %p264 = scmp.eq.s32.totalorder %s28, 0
      %p265 = por %p263, %p264
      %s267 = sadd.s32 %s266, 1
      %p270 = scmp.eq.s32.totalorder %s22, 1
      %p271 = scmp.ne.s32.totalorder %s266, %s268
      %p272 = scmp.eq.s32.totalorder %s22, 0
      %p273 = por %p271, %p272
      %p274 = scmp.ne.s32.totalorder %s266, %s268
      %p275 = scmp.eq.s32.totalorder %s27, 1
      %p276 = por %p274, %p275
      %p277 = scmp.ne.s32.totalorder %s268, %s269
      %p278 = scmp.eq.s32.totalorder %s27, 0
      %p279 = por %p277, %p278
      %p280 = scmp.ne.s32.totalorder %s268, %s269
      %p281 = scmp.eq.s32.totalorder %s28, 1
      %p282 = por %p280, %p281
      %p284 = scmp.ne.s32.totalorder %s269, %s283
      %p285 = scmp.eq.s32.totalorder %s28, 0
      %p286 = por %p284, %p285
      %s288 = sadd.s32 %s287, 1
      %p291 = scmp.eq.s32.totalorder %s22, 1
      %p292 = scmp.ne.s32.totalorder %s287, %s289
      %p293 = scmp.eq.s32.totalorder %s22, 0
      %p294 = por %p292, %p293
      %p295 = scmp.ne.s32.totalorder %s287, %s289
      %p296 = scmp.eq.s32.totalorder %s27, 1
      %p297 = por %p295, %p296
      %p298 = scmp.ne.s32.totalorder %s289, %s290
      %p299 = scmp.eq.s32.totalorder %s27, 0
      %p300 = por %p298, %p299
      %p301 = scmp.ne.s32.totalorder %s289, %s290
      %p302 = scmp.eq.s32.totalorder %s28, 1
      %p303 = por %p301, %p302
      %p305 = scmp.ne.s32.totalorder %s290, %s304
      %p306 = scmp.eq.s32.totalorder %s28, 0
      %p307 = por %p305, %p306
      %s309 = sadd.s32 %s308, 1
      %p312 = scmp.eq.s32.totalorder %s22, 1
      %p313 = scmp.ne.s32.totalorder %s308, %s310
      %p314 = scmp.eq.s32.totalorder %s22, 0
      %p315 = por %p313, %p314
      %p316 = scmp.ne.s32.totalorder %s308, %s310
      %p317 = scmp.eq.s32.totalorder %s27, 1
      %p318 = por %p316, %p317
      %p319 = scmp.ne.s32.totalorder %s310, %s311
      %p320 = scmp.eq.s32.totalorder %s27, 0
      %p321 = por %p319, %p320
      %p322 = scmp.ne.s32.totalorder %s310, %s311
      %p323 = scmp.eq.s32.totalorder %s28, 1
      %p324 = por %p322, %p323
      %p326 = scmp.ne.s32.totalorder %s311, %s325
      %p327 = scmp.eq.s32.totalorder %s28, 0
      %p328 = por %p326, %p327
      %s329 = ssub.s32 %s22, %s29
      %p330 = scmp.eq.s32.totalorder %s329, 0
      %s332 = sadd.s32 %s331, 1
      %s333 = scalar_select %p330, %s331, %s332
      %p336 = pneg %p330
      %p337 = scmp.eq.s32.totalorder %s22, 1
      %p338 = por %p336, %p337
      %p339 = scmp.ne.s32.totalorder %s331, %s334
      %p340 = scmp.eq.s32.totalorder %s22, 0
      %p341 = por %p339, %p340
      %p342 = scmp.ne.s32.totalorder %s331, %s334
      %p343 = scmp.eq.s32.totalorder %s27, 1
      %p344 = por %p342, %p343
      %p345 = scmp.ne.s32.totalorder %s334, %s335
      %p346 = scmp.eq.s32.totalorder %s27, 0
      %p347 = por %p345, %p346
      %p348 = scmp.ne.s32.totalorder %s334, %s335
      %p349 = scmp.eq.s32.totalorder %s28, 1
      %p350 = por %p348, %p349
      %p352 = scmp.ne.s32.totalorder %s335, %s351
      %p353 = scmp.eq.s32.totalorder %s28, 0
      %p354 = por %p352, %p353
      %p355 = scmp.le.s32.totalorder 1, %s22
      %p356 = scmp.lt.s32.totalorder %s22, 3
      %p357 = pnand %p355, %p356
      %p358 = pneg %p357
      // Predicated region
      $region9: #{tpu_custom_call.1} parent=5 // pred_check
        _
      $region10: #{tpu_custom_call.1} parent=5 // pred_check_branch
        %360 = sbr.rel (%p357) target = $region12
      $region11: #{tpu_custom_call.1} parent=5 // pred_region
        %s361 = ssub.s32 %s22, 1
        // Predicated region
        $region13: #{tpu_custom_call.1} parent=11 // pred_check
          %p362 = pneg %p69
        $region14: #{tpu_custom_call.1} parent=11 // pred_check_branch
          %364 = sbr.rel (%p362) target = $region16
        $region15: #{tpu_custom_call.1} parent=11 // pred_region
          _
        $region16: #{tpu_custom_call.1} parent=11 // pred_fallthru
          _
        // Predicated region
        $region17: #{tpu_custom_call.1} parent=11 // pred_check
          %p365 = pneg %p90
        $region18: #{tpu_custom_call.1} parent=11 // pred_check_branch
          %367 = sbr.rel (%p365) target = $region20
        $region19: #{tpu_custom_call.1} parent=11 // pred_region
          _
        $region20: #{tpu_custom_call.1} parent=11 // pred_fallthru
          _
        // Predicated region
        $region21: #{tpu_custom_call.1} parent=11 // pred_check
          %p368 = pneg %p111
        $region22: #{tpu_custom_call.1} parent=11 // pred_check_branch
          %370 = sbr.rel (%p368) target = $region24
        $region23: #{tpu_custom_call.1} parent=11 // pred_region
          _
        $region24: #{tpu_custom_call.1} parent=11 // pred_fallthru
          _
        // Predicated region
        $region25: #{tpu_custom_call.1} parent=11 // pred_check
          %p371 = pneg %p132
        $region26: #{tpu_custom_call.1} parent=11 // pred_check_branch
          %373 = sbr.rel (%p371) target = $region28
        $region27: #{tpu_custom_call.1} parent=11 // pred_region
          _
        $region28: #{tpu_custom_call.1} parent=11 // pred_fallthru
          _
        // Predicated region
        $region29: #{tpu_custom_call.1} parent=11 // pred_check
          %p374 = pneg %p153
        $region30: #{tpu_custom_call.1} parent=11 // pred_check_branch
          %376 = sbr.rel (%p374) target = $region32
        $region31: #{tpu_custom_call.1} parent=11 // pred_region
          %378 = vsyncadd [#allocation3], 0
          %s379 = sshll.u32 %s5, 4
          %s380 = int_to_ptr.hbm [resolvable:$true] %s379
          %s381 = sshll.u32 [#allocation2], 4
          %s382 = int_to_ptr.vmem [resolvable:$true] %s381
          %387 = dma.hbm_to_vmem [thread:$0]  %s380, 32768, %s382, [#allocation3], 256, 256, 16
        $region32: #{tpu_custom_call.1} parent=11 // pred_fallthru
          _
        // Predicated region
        $region33: #{tpu_custom_call.1} parent=11 // pred_check
          %p388 = pneg %p174
        $region34: #{tpu_custom_call.1} parent=11 // pred_check_branch
          %390 = sbr.rel (%p388) target = $region36
        $region35: #{tpu_custom_call.1} parent=11 // pred_region
          %392 = vsyncadd [#allocation5], 0
          %s393 = sshll.u32 %s6, 4
          %s394 = int_to_ptr.hbm [resolvable:$true] %s393
          %s395 = sshll.u32 [#allocation4], 4
          %s396 = int_to_ptr.vmem [resolvable:$true] %s395
          %401 = dma.hbm_to_vmem [thread:$0]  %s394, 8192, %s396, [#allocation5], 128, 128, 8
        $region36: #{tpu_custom_call.1} parent=11 // pred_fallthru
          _
        // Predicated region
        $region37: #{tpu_custom_call.1} parent=11 // pred_check
          %p402 = pneg %p195
        $region38: #{tpu_custom_call.1} parent=11 // pred_check_branch
          %404 = sbr.rel (%p402) target = $region40
        $region39: #{tpu_custom_call.1} parent=11 // pred_region
          _
        $region40: #{tpu_custom_call.1} parent=11 // pred_fallthru
          _
        // Predicated region
        $region41: #{tpu_custom_call.1} parent=11 // pred_check
          %p405 = pneg %p216
        $region42: #{tpu_custom_call.1} parent=11 // pred_check_branch
          %407 = sbr.rel (%p405) target = $region44
        $region43: #{tpu_custom_call.1} parent=11 // pred_region
          _
        $region44: #{tpu_custom_call.1} parent=11 // pred_fallthru
          _
        // Predicated region
        $region45: #{tpu_custom_call.1} parent=11 // pred_check
          %p408 = pneg %p237
        $region46: #{tpu_custom_call.1} parent=11 // pred_check_branch
          %410 = sbr.rel (%p408) target = $region48
        $region47: #{tpu_custom_call.1} parent=11 // pred_region
          _
        $region48: #{tpu_custom_call.1} parent=11 // pred_fallthru
          _
        // Predicated region
        $region49: #{tpu_custom_call.1} parent=11 // pred_check
          %p411 = pneg %p258
        $region50: #{tpu_custom_call.1} parent=11 // pred_check_branch
          %413 = sbr.rel (%p411) target = $region52
        $region51: #{tpu_custom_call.1} parent=11 // pred_region
          _
        $region52: #{tpu_custom_call.1} parent=11 // pred_fallthru
          _
        // Predicated region
        $region53: #{tpu_custom_call.1} parent=11 // pred_check
          %p414 = pneg %p279
        $region54: #{tpu_custom_call.1} parent=11 // pred_check_branch
          %416 = sbr.rel (%p414) target = $region56
        $region55: #{tpu_custom_call.1} parent=11 // pred_region
          _
        $region56: #{tpu_custom_call.1} parent=11 // pred_fallthru
          _
        // Predicated region
        $region57: #{tpu_custom_call.1} parent=11 // pred_check
          %p417 = pneg %p300
        $region58: #{tpu_custom_call.1} parent=11 // pred_check_branch
          %419 = sbr.rel (%p417) target = $region60
        $region59: #{tpu_custom_call.1} parent=11 // pred_region
          _
        $region60: #{tpu_custom_call.1} parent=11 // pred_fallthru
          _
        // Predicated region
        $region61: #{tpu_custom_call.1} parent=11 // pred_check
          %p420 = pneg %p321
        $region62: #{tpu_custom_call.1} parent=11 // pred_check_branch
          %422 = sbr.rel (%p420) target = $region64
        $region63: #{tpu_custom_call.1} parent=11 // pred_region
          _
        $region64: #{tpu_custom_call.1} parent=11 // pred_fallthru
          _
      $region12: #{tpu_custom_call.1} parent=5 // pred_fallthru
        _
      %p423 = scmp.lt.s32.totalorder %s22, 2
      // Predicated region
      $region65: #{tpu_custom_call.1} parent=5 // pred_check
        %p424 = pneg %p423
      $region66: #{tpu_custom_call.1} parent=5 // pred_check_branch
        %426 = sbr.rel (%p424) target = $region68
      $region67: #{tpu_custom_call.1} parent=5 // pred_region
        // Predicated region
        $region69: #{tpu_custom_call.1} parent=67 // pred_check
          %p427 = pneg %p42
        $region70: #{tpu_custom_call.1} parent=67 // pred_check_branch
          %429 = sbr.rel (%p427) target = $region72
        $region71: #{tpu_custom_call.1} parent=67 // pred_region
          %p430 = scmp.lt.s32.totalorder %s22, 1
          %s431 = scalar_select %p430, %s22, 1
          %s432 = smul.addr %s431, 26
          %s433 = smul.addr %s432, 8
          %s434 = scalar_lea.vmem %s0, %s433
        $region72: #{tpu_custom_call.1} parent=67 // pred_fallthru
          _
      $region68: #{tpu_custom_call.1} parent=5 // pred_fallthru
        _
      %p435 = scmp.le.s32.totalorder 1, %s22
      %p436 = scmp.lt.s32.totalorder %s22, 3
      %p437 = pnand %p435, %p436
      %p438 = pneg %p437
      // Predicated region
      $region73: #{tpu_custom_call.1} parent=5 // pred_check
        _
      $region74: #{tpu_custom_call.1} parent=5 // pred_check_branch
        %440 = sbr.rel (%p437) target = $region76
      $region75: #{tpu_custom_call.1} parent=5 // pred_region
        %s441 = ssub.s32 %s22, 1
        // Predicated region
        $region77: #{tpu_custom_call.1} parent=75 // pred_check
          %p442 = pneg %p153
        $region78: #{tpu_custom_call.1} parent=75 // pred_check_branch
          %444 = sbr.rel (%p442) target = $region80
        $region79: #{tpu_custom_call.1} parent=75 // pred_region
          %446 = dma.done [#allocation3], 32768
        $region80: #{tpu_custom_call.1} parent=75 // pred_fallthru
          _
        // Predicated region
        $region81: #{tpu_custom_call.1} parent=75 // pred_check
          %p447 = pneg %p174
        $region82: #{tpu_custom_call.1} parent=75 // pred_check_branch
          %449 = sbr.rel (%p447) target = $region84
        $region83: #{tpu_custom_call.1} parent=75 // pred_region
          %451 = dma.done [#allocation5], 8192
        $region84: #{tpu_custom_call.1} parent=75 // pred_fallthru
          _
        %p452 = scmp.lt.s32.totalorder %s27, 1
        %s453 = scalar_select %p452, %s27, 1
        %s454 = smul.addr %s453, 26
        %s455 = smul.addr %s454, 8
        %s456 = scalar_lea.vmem %s0, %s455
        %p457 = pneg %p48
        %p458 = pneg %p45
        %p459 = pneg %p69
        %p460 = pneg %p66
        %p461 = pneg %p90
        %p462 = pneg %p87
        %p463 = pneg %p111
        %p464 = pneg %p108
        %p465 = pneg %p132
        %p466 = pneg %p129
        %p467 = pneg %p153
        %p468 = pneg %p150
        %p469 = pneg %p174
        %p470 = pneg %p171
        %p471 = pneg %p195
        %p472 = pneg %p192
        %p473 = pneg %p216
        %p474 = pneg %p213
        %p475 = pneg %p237
        %p476 = pneg %p234
        %p477 = pneg %p258
        %p478 = pneg %p255
        %p479 = pneg %p279
        %p480 = pneg %p276
        %p481 = pneg %p300
        %p482 = pneg %p297
        %p483 = pneg %p321
        %p484 = pneg %p318
        %p485 = pneg %p347
        %p486 = pneg %p344
        %p487 = scmp.lt.s32.totalorder %s27, 1
        %s488 = scalar_select %p487, %s27, 1
        %s489 = smul.addr %s488, 26
        %s490 = smul.addr %s489, 8
        %s491 = scalar_lea.vmem %s14, %s490
        %p492 = scmp.lt.s32.totalorder %s27, 1
        %s493 = scalar_select %p492, %s27, 1
        %s494 = smul.addr %s493, 26
        %s495 = smul.addr %s494, 8
        %s496 = scalar_lea.vmem %s0, %s495
        %p497 = scmp.lt.s32.totalorder %s27, 1
        %s498 = scalar_select %p497, %s27, 1
        %s499 = smul.addr %s498, 26
        %s500 = smul.addr %s499, 8
        %s501 = scalar_lea.vmem %s14, %s500
        %v502 = vld [vmem:[%s496] sm:$0xff]
        %v503 = vld [vmem:[%s496 + $0x8] sm:$0xff]
        %v504 = vld [vmem:[%s496 + $0x10] sm:$0xff]
        %v505 = vld [vmem:[%s496 + $0x18] sm:$0xff]
        %v506 = vld [vmem:[%s496 + $0x20] sm:$0xff]
        %v507 = vld [vmem:[%s496 + $0x28] sm:$0xff]
        %v508 = vld [vmem:[%s496 + $0x30] sm:$0xff]
        %v509 = vld [vmem:[%s496 + $0x38] sm:$0xff]
        %v510 = vld [vmem:[%s496 + $0x40] sm:$0xff]
        %v511 = vld [vmem:[%s496 + $0x48] sm:$0xff]
        %v512 = vld [vmem:[%s496 + $0x50] sm:$0xff]
        %v513 = vld [vmem:[%s496 + $0x58] sm:$0xff]
        %v514 = vld [vmem:[%s496 + $0x60] sm:$0xff]
        %v515 = vld [vmem:[%s496 + $0x68] sm:$0xff]
        %v516 = vld [vmem:[%s496 + $0x70] sm:$0xff]
        %v517 = vld [vmem:[%s496 + $0x78] sm:$0xff]
        %v518 = vld [vmem:[%s496 + $0x80] sm:$0xff]
        %v519 = vld [vmem:[%s496 + $0x88] sm:$0xff]
        %v520 = vld [vmem:[%s496 + $0x90] sm:$0xff]
        %v521 = vld [vmem:[%s496 + $0x98] sm:$0xff]
        %v522 = vld [vmem:[%s496 + $0xa0] sm:$0xff]
        %v523 = vld [vmem:[%s496 + $0xa8] sm:$0xff]
        %v524 = vld [vmem:[%s496 + $0xb0] sm:$0xff]
        %v525 = vld [vmem:[%s496 + $0xb8] sm:$0xff]
        %v526 = vld [vmem:[%s496 + $0xc0] sm:$0xff]
        %v527 = vld [vmem:[%s496 + $0xc8] sm:$0xff]
        %v528 = vld [vmem:[%s1] sm:$0x3]
        %v529 = vld [vmem:[%s2] sm:$0x7]
        %531 = vset.pattern.permute.xlu0 0
        %532 = vperm.xlu0 %531, %v502
        %v533 = vpop.permute.xlu0 %532
        %536 = vset.pattern.permute.xlu0 0
        %537 = vperm.xlu0 %536, %v503
        %v538 = vpop.permute.xlu0 %537
        %541 = vset.pattern.permute.xlu0 0
        %542 = vperm.xlu0 %541, %v504
        %v543 = vpop.permute.xlu0 %542
        %546 = vset.pattern.permute.xlu0 0
        %547 = vperm.xlu0 %546, %v505
        %v548 = vpop.permute.xlu0 %547
        %551 = vset.pattern.permute.xlu0 0
        %552 = vperm.xlu0 %551, %v506
        %v553 = vpop.permute.xlu0 %552
        %556 = vset.pattern.permute.xlu0 0
        %557 = vperm.xlu0 %556, %v507
        %v558 = vpop.permute.xlu0 %557
        %561 = vset.pattern.permute.xlu0 0
        %562 = vperm.xlu0 %561, %v508
        %v563 = vpop.permute.xlu0 %562
        %566 = vset.pattern.permute.xlu0 0
        %567 = vperm.xlu0 %566, %v509
        %v568 = vpop.permute.xlu0 %567
        %571 = vset.pattern.permute.xlu0 0
        %572 = vperm.xlu0 %571, %v510
        %v573 = vpop.permute.xlu0 %572
        %576 = vset.pattern.permute.xlu0 0
        %577 = vperm.xlu0 %576, %v511
        %v578 = vpop.permute.xlu0 %577
        %581 = vset.pattern.permute.xlu0 0
        %582 = vperm.xlu0 %581, %v512
        %v583 = vpop.permute.xlu0 %582
        %586 = vset.pattern.permute.xlu0 0
        %587 = vperm.xlu0 %586, %v513
        %v588 = vpop.permute.xlu0 %587
        %591 = vset.pattern.permute.xlu0 0
        %592 = vperm.xlu0 %591, %v514
        %v593 = vpop.permute.xlu0 %592
        %596 = vset.pattern.permute.xlu0 0
        %597 = vperm.xlu0 %596, %v515
        %v598 = vpop.permute.xlu0 %597
        %601 = vset.pattern.permute.xlu0 0
        %602 = vperm.xlu0 %601, %v516
        %v603 = vpop.permute.xlu0 %602
        %606 = vset.pattern.permute.xlu0 0
        %607 = vperm.xlu0 %606, %v517
        %v608 = vpop.permute.xlu0 %607
        %611 = vset.pattern.permute.xlu0 0
        %612 = vperm.xlu0 %611, %v518
        %v613 = vpop.permute.xlu0 %612
        %616 = vset.pattern.permute.xlu0 0
        %617 = vperm.xlu0 %616, %v519
        %v618 = vpop.permute.xlu0 %617
        %621 = vset.pattern.permute.xlu0 0
        %622 = vperm.xlu0 %621, %v520
        %v623 = vpop.permute.xlu0 %622
        %626 = vset.pattern.permute.xlu0 0
        %627 = vperm.xlu0 %626, %v521
        %v628 = vpop.permute.xlu0 %627
        %631 = vset.pattern.permute.xlu0 0
        %632 = vperm.xlu0 %631, %v522
        %v633 = vpop.permute.xlu0 %632
        %636 = vset.pattern.permute.xlu0 0
        %637 = vperm.xlu0 %636, %v523
        %v638 = vpop.permute.xlu0 %637
        %641 = vset.pattern.permute.xlu0 0
        %642 = vperm.xlu0 %641, %v524
        %v643 = vpop.permute.xlu0 %642
        %646 = vset.pattern.permute.xlu0 0
        %647 = vperm.xlu0 %646, %v525
        %v648 = vpop.permute.xlu0 %647
        %651 = vset.pattern.permute.xlu0 0
        %652 = vperm.xlu0 %651, %v526
        %v653 = vpop.permute.xlu0 %652
        %656 = vset.pattern.permute.xlu0 0
        %657 = vperm.xlu0 %656, %v527
        %v658 = vpop.permute.xlu0 %657
        %v660 = vperm.slane %v529, 0
        %v661 = vmul.f32 %v533, %v660
        %v662 = vmul.f32 %v538, %v660
        %v663 = vmul.f32 %v543, %v660
        %v664 = vmul.f32 %v548, %v660
        %v665 = vmul.f32 %v553, %v660
        %v666 = vmul.f32 %v558, %v660
        %v667 = vmul.f32 %v563, %v660
        %v668 = vmul.f32 %v568, %v660
        %v669 = vmul.f32 %v573, %v660
        %v670 = vmul.f32 %v578, %v660
        %v671 = vmul.f32 %v583, %v660
        %v672 = vmul.f32 %v588, %v660
        %v673 = vmul.f32 %v593, %v660
        %v674 = vmul.f32 %v598, %v660
        %v675 = vmul.f32 %v603, %v660
        %v676 = vmul.f32 %v608, %v660
        %v677 = vmul.f32 %v613, %v660
        %v678 = vmul.f32 %v618, %v660
        %v679 = vmul.f32 %v623, %v660
        %v680 = vmul.f32 %v628, %v660
        %v681 = vmul.f32 %v633, %v660
        %v682 = vmul.f32 %v638, %v660
        %v683 = vmul.f32 %v643, %v660
        %v684 = vmul.f32 %v648, %v660
        %v685 = vmul.f32 %v653, %v660
        %v686 = vmul.f32 %v658, %v660
        %687 = vset.pattern.permute.xlu0 1
        %688 = vperm.xlu0 %687, %v502
        %v689 = vpop.permute.xlu0 %688
        %691 = vset.pattern.permute.xlu0 1
        %692 = vperm.xlu0 %691, %v503
        %v693 = vpop.permute.xlu0 %692
        %695 = vset.pattern.permute.xlu0 1
        %696 = vperm.xlu0 %695, %v504
        %v697 = vpop.permute.xlu0 %696
        %699 = vset.pattern.permute.xlu0 1
        %700 = vperm.xlu0 %699, %v505
        %v701 = vpop.permute.xlu0 %700
        %703 = vset.pattern.permute.xlu0 1
        %704 = vperm.xlu0 %703, %v506
        %v705 = vpop.permute.xlu0 %704
        %707 = vset.pattern.permute.xlu0 1
        %708 = vperm.xlu0 %707, %v507
        %v709 = vpop.permute.xlu0 %708
        %711 = vset.pattern.permute.xlu0 1
        %712 = vperm.xlu0 %711, %v508
        %v713 = vpop.permute.xlu0 %712
        %715 = vset.pattern.permute.xlu0 1
        %716 = vperm.xlu0 %715, %v509
        %v717 = vpop.permute.xlu0 %716
        %719 = vset.pattern.permute.xlu0 1
        %720 = vperm.xlu0 %719, %v510
        %v721 = vpop.permute.xlu0 %720
        %723 = vset.pattern.permute.xlu0 1
        %724 = vperm.xlu0 %723, %v511
        %v725 = vpop.permute.xlu0 %724
        %727 = vset.pattern.permute.xlu0 1
        %728 = vperm.xlu0 %727, %v512
        %v729 = vpop.permute.xlu0 %728
        %731 = vset.pattern.permute.xlu0 1
        %732 = vperm.xlu0 %731, %v513
        %v733 = vpop.permute.xlu0 %732
        %735 = vset.pattern.permute.xlu0 1
        %736 = vperm.xlu0 %735, %v514
        %v737 = vpop.permute.xlu0 %736
        %739 = vset.pattern.permute.xlu0 1
        %740 = vperm.xlu0 %739, %v515
        %v741 = vpop.permute.xlu0 %740
        %743 = vset.pattern.permute.xlu0 1
        %744 = vperm.xlu0 %743, %v516
        %v745 = vpop.permute.xlu0 %744
        %747 = vset.pattern.permute.xlu0 1
        %748 = vperm.xlu0 %747, %v517
        %v749 = vpop.permute.xlu0 %748
        %751 = vset.pattern.permute.xlu0 1
        %752 = vperm.xlu0 %751, %v518
        %v753 = vpop.permute.xlu0 %752
        %755 = vset.pattern.permute.xlu0 1
        %756 = vperm.xlu0 %755, %v519
        %v757 = vpop.permute.xlu0 %756
        %759 = vset.pattern.permute.xlu0 1
        %760 = vperm.xlu0 %759, %v520
        %v761 = vpop.permute.xlu0 %760
        %763 = vset.pattern.permute.xlu0 1
        %764 = vperm.xlu0 %763, %v521
        %v765 = vpop.permute.xlu0 %764
        %767 = vset.pattern.permute.xlu0 1
        %768 = vperm.xlu0 %767, %v522
        %v769 = vpop.permute.xlu0 %768
        %771 = vset.pattern.permute.xlu0 1
        %772 = vperm.xlu0 %771, %v523
        %v773 = vpop.permute.xlu0 %772
        %775 = vset.pattern.permute.xlu0 1
        %776 = vperm.xlu0 %775, %v524
        %v777 = vpop.permute.xlu0 %776
        %779 = vset.pattern.permute.xlu0 1
        %780 = vperm.xlu0 %779, %v525
        %v781 = vpop.permute.xlu0 %780
        %783 = vset.pattern.permute.xlu0 1
        %784 = vperm.xlu0 %783, %v526
        %v785 = vpop.permute.xlu0 %784
        %787 = vset.pattern.permute.xlu0 1
        %788 = vperm.xlu0 %787, %v527
        %v789 = vpop.permute.xlu0 %788
        %v791 = vperm.slane %v529, 1
        %v792 = vmul.f32 %v689, %v791
        %v793 = vmul.f32 %v693, %v791
        %v794 = vmul.f32 %v697, %v791
        %v795 = vmul.f32 %v701, %v791
        %v796 = vmul.f32 %v705, %v791
        %v797 = vmul.f32 %v709, %v791
        %v798 = vmul.f32 %v713, %v791
        %v799 = vmul.f32 %v717, %v791
        %v800 = vmul.f32 %v721, %v791
        %v801 = vmul.f32 %v725, %v791
        %v802 = vmul.f32 %v729, %v791
        %v803 = vmul.f32 %v733, %v791
        %v804 = vmul.f32 %v737, %v791
        %v805 = vmul.f32 %v741, %v791
        %v806 = vmul.f32 %v745, %v791
        %v807 = vmul.f32 %v749, %v791
        %v808 = vmul.f32 %v753, %v791
        %v809 = vmul.f32 %v757, %v791
        %v810 = vmul.f32 %v761, %v791
        %v811 = vmul.f32 %v765, %v791
        %v812 = vmul.f32 %v769, %v791
        %v813 = vmul.f32 %v773, %v791
        %v814 = vmul.f32 %v777, %v791
        %v815 = vmul.f32 %v781, %v791
        %v816 = vmul.f32 %v785, %v791
        %v817 = vmul.f32 %v789, %v791
        %v818 = vadd.f32 %v661, %v792
        %v819 = vadd.f32 %v662, %v793
        %v820 = vadd.f32 %v663, %v794
        %v821 = vadd.f32 %v664, %v795
        %v822 = vadd.f32 %v665, %v796
        %v823 = vadd.f32 %v666, %v797
        %v824 = vadd.f32 %v667, %v798
        %v825 = vadd.f32 %v668, %v799
        %v826 = vadd.f32 %v669, %v800
        %v827 = vadd.f32 %v670, %v801
        %v828 = vadd.f32 %v671, %v802
        %v829 = vadd.f32 %v672, %v803
        %v830 = vadd.f32 %v673, %v804
        %v831 = vadd.f32 %v674, %v805
        %v832 = vadd.f32 %v675, %v806
        %v833 = vadd.f32 %v676, %v807
        %v834 = vadd.f32 %v677, %v808
        %v835 = vadd.f32 %v678, %v809
        %v836 = vadd.f32 %v679, %v810
        %v837 = vadd.f32 %v680, %v811
        %v838 = vadd.f32 %v681, %v812
        %v839 = vadd.f32 %v682, %v813
        %v840 = vadd.f32 %v683, %v814
        %v841 = vadd.f32 %v684, %v815
        %v842 = vadd.f32 %v685, %v816
        %v843 = vadd.f32 %v686, %v817
        %844 = vset.pattern.permute.xlu0 2
        %845 = vperm.xlu0 %844, %v502
        %v846 = vpop.permute.xlu0 %845
        %848 = vset.pattern.permute.xlu0 2
        %849 = vperm.xlu0 %848, %v503
        %v850 = vpop.permute.xlu0 %849
        %852 = vset.pattern.permute.xlu0 2
        %853 = vperm.xlu0 %852, %v504
        %v854 = vpop.permute.xlu0 %853
        %856 = vset.pattern.permute.xlu0 2
        %857 = vperm.xlu0 %856, %v505
        %v858 = vpop.permute.xlu0 %857
        %860 = vset.pattern.permute.xlu0 2
        %861 = vperm.xlu0 %860, %v506
        %v862 = vpop.permute.xlu0 %861
        %864 = vset.pattern.permute.xlu0 2
        %865 = vperm.xlu0 %864, %v507
        %v866 = vpop.permute.xlu0 %865
        %868 = vset.pattern.permute.xlu0 2
        %869 = vperm.xlu0 %868, %v508
        %v870 = vpop.permute.xlu0 %869
        %872 = vset.pattern.permute.xlu0 2
        %873 = vperm.xlu0 %872, %v509
        %v874 = vpop.permute.xlu0 %873
        %876 = vset.pattern.permute.xlu0 2
        %877 = vperm.xlu0 %876, %v510
        %v878 = vpop.permute.xlu0 %877
        %880 = vset.pattern.permute.xlu0 2
        %881 = vperm.xlu0 %880, %v511
        %v882 = vpop.permute.xlu0 %881
        %884 = vset.pattern.permute.xlu0 2
        %885 = vperm.xlu0 %884, %v512
        %v886 = vpop.permute.xlu0 %885
        %888 = vset.pattern.permute.xlu0 2
        %889 = vperm.xlu0 %888, %v513
        %v890 = vpop.permute.xlu0 %889
        %892 = vset.pattern.permute.xlu0 2
        %893 = vperm.xlu0 %892, %v514
        %v894 = vpop.permute.xlu0 %893
        %896 = vset.pattern.permute.xlu0 2
        %897 = vperm.xlu0 %896, %v515
        %v898 = vpop.permute.xlu0 %897
        %900 = vset.pattern.permute.xlu0 2
        %901 = vperm.xlu0 %900, %v516
        %v902 = vpop.permute.xlu0 %901
        %904 = vset.pattern.permute.xlu0 2
        %905 = vperm.xlu0 %904, %v517
        %v906 = vpop.permute.xlu0 %905
        %908 = vset.pattern.permute.xlu0 2
        %909 = vperm.xlu0 %908, %v518
        %v910 = vpop.permute.xlu0 %909
        %912 = vset.pattern.permute.xlu0 2
        %913 = vperm.xlu0 %912, %v519
        %v914 = vpop.permute.xlu0 %913
        %916 = vset.pattern.permute.xlu0 2
        %917 = vperm.xlu0 %916, %v520
        %v918 = vpop.permute.xlu0 %917
        %920 = vset.pattern.permute.xlu0 2
        %921 = vperm.xlu0 %920, %v521
        %v922 = vpop.permute.xlu0 %921
        %924 = vset.pattern.permute.xlu0 2
        %925 = vperm.xlu0 %924, %v522
        %v926 = vpop.permute.xlu0 %925
        %928 = vset.pattern.permute.xlu0 2
        %929 = vperm.xlu0 %928, %v523
        %v930 = vpop.permute.xlu0 %929
        %932 = vset.pattern.permute.xlu0 2
        %933 = vperm.xlu0 %932, %v524
        %v934 = vpop.permute.xlu0 %933
        %936 = vset.pattern.permute.xlu0 2
        %937 = vperm.xlu0 %936, %v525
        %v938 = vpop.permute.xlu0 %937
        %940 = vset.pattern.permute.xlu0 2
        %941 = vperm.xlu0 %940, %v526
        %v942 = vpop.permute.xlu0 %941
        %944 = vset.pattern.permute.xlu0 2
        %945 = vperm.xlu0 %944, %v527
        %v946 = vpop.permute.xlu0 %945
        %v948 = vperm.slane %v529, 2
        %v949 = vmul.f32 %v846, %v948
        %v950 = vmul.f32 %v850, %v948
        %v951 = vmul.f32 %v854, %v948
        %v952 = vmul.f32 %v858, %v948
        %v953 = vmul.f32 %v862, %v948
        %v954 = vmul.f32 %v866, %v948
        %v955 = vmul.f32 %v870, %v948
        %v956 = vmul.f32 %v874, %v948
        %v957 = vmul.f32 %v878, %v948
        %v958 = vmul.f32 %v882, %v948
        %v959 = vmul.f32 %v886, %v948
        %v960 = vmul.f32 %v890, %v948
        %v961 = vmul.f32 %v894, %v948
        %v962 = vmul.f32 %v898, %v948
        %v963 = vmul.f32 %v902, %v948
        %v964 = vmul.f32 %v906, %v948
        %v965 = vmul.f32 %v910, %v948
        %v966 = vmul.f32 %v914, %v948
        %v967 = vmul.f32 %v918, %v948
        %v968 = vmul.f32 %v922, %v948
        %v969 = vmul.f32 %v926, %v948
        %v970 = vmul.f32 %v930, %v948
        %v971 = vmul.f32 %v934, %v948
        %v972 = vmul.f32 %v938, %v948
        %v973 = vmul.f32 %v942, %v948
        %v974 = vmul.f32 %v946, %v948
        %v975 = vadd.f32 %v818, %v949
        %v976 = vadd.f32 %v819, %v950
        %v977 = vadd.f32 %v820, %v951
        %v978 = vadd.f32 %v821, %v952
        %v979 = vadd.f32 %v822, %v953
        %v980 = vadd.f32 %v823, %v954
        %v981 = vadd.f32 %v824, %v955
        %v982 = vadd.f32 %v825, %v956
        %v983 = vadd.f32 %v826, %v957
        %v984 = vadd.f32 %v827, %v958
        %v985 = vadd.f32 %v828, %v959
        %v986 = vadd.f32 %v829, %v960
        %v987 = vadd.f32 %v830, %v961
        %v988 = vadd.f32 %v831, %v962
        %v989 = vadd.f32 %v832, %v963
        %v990 = vadd.f32 %v833, %v964
        %v991 = vadd.f32 %v834, %v965
        %v992 = vadd.f32 %v835, %v966
        %v993 = vadd.f32 %v836, %v967
        %v994 = vadd.f32 %v837, %v968
        %v995 = vadd.f32 %v838, %v969
        %v996 = vadd.f32 %v839, %v970
        %v997 = vadd.f32 %v840, %v971
        %v998 = vadd.f32 %v841, %v972
        %v999 = vadd.f32 %v842, %v973
        %v1000 = vadd.f32 %v843, %v974
        %v1001 = vld [vmem:[%s8] sm:$0x1]
        %v1002 = vld [vmem:[%s8 + $0x1] sm:$0x1]
        %v1004 = vperm.slane %v528, 0
        %v1005 = vperm.slane %v528, 1
        %vm1007 = vcmask 654336
        %v1008 = vsel %vm1007, %v1005, 0
        %1010 = vmatpush.msra.mxu0 %v990
        %1011 = vmatpush.msra.mxu0 %v989
        %1012 = vmatpush.msra.mxu0 %v988
        %1013 = vmatpush.msra.mxu0 %v987
        %1014 = vmatpush.msra.mxu0 %v986
        %1015 = vmatpush.msra.mxu0 %v985
        %1016 = vmatpush.msra.mxu0 %v984
        %1017 = vmatpush.msra.mxu0 %v983
        %1018 = vmatpush.msra.mxu0 %v982
        %1019 = vmatpush.msra.mxu0 %v981
        %1020 = vmatpush.msra.mxu0 %v980
        %1021 = vmatpush.msra.mxu0 %v979
        %1022 = vmatpush.msra.mxu0 %v978
        %1023 = vmatpush.msra.mxu0 %v977
        %1024 = vmatpush.msra.mxu0 %v976
        %1025 = vmatpush.msra.mxu0 %v975
        %1026 = vmatmul.f32.gmra.mxu0 %v1004
        %v1027 = vpop.f32.mrf.mxu0
        %v1028 = vadd.f32 0.0, %v1027
        %1029 = vdwg.mxu0
        %1030 = vmatpush.msra.mxu0 0.0
        %1031 = vmatpush.msra.mxu0 0.0
        %1032 = vmatpush.msra.mxu0 0.0
        %1033 = vmatpush.msra.mxu0 0.0
        %1034 = vmatpush.msra.mxu0 0.0
        %1035 = vmatpush.msra.mxu0 0.0
        %1036 = vmatpush.msra.mxu0 %v1000
        %1037 = vmatpush.msra.mxu0 %v999
        %1038 = vmatpush.msra.mxu0 %v998
        %1039 = vmatpush.msra.mxu0 %v997
        %1040 = vmatpush.msra.mxu0 %v996
        %1041 = vmatpush.msra.mxu0 %v995
        %1042 = vmatpush.msra.mxu0 %v994
        %1043 = vmatpush.msra.mxu0 %v993
        %1044 = vmatpush.msra.mxu0 %v992
        %1045 = vmatpush.msra.mxu0 %v991
        %1046 = vmatmul.f32.gmra.mxu0 %v1008
        %v1047 = vpop.f32.mrf.mxu0
        %v1048 = vadd.f32 %v1028, %v1047
        %1049 = vdwg.mxu0
        %v1050 = vmul.f32 %v975, %v975
        %v1051 = vmul.f32 %v976, %v976
        %v1052 = vmul.f32 %v977, %v977
        %v1053 = vmul.f32 %v978, %v978
        %v1054 = vmul.f32 %v979, %v979
        %v1055 = vmul.f32 %v980, %v980
        %v1056 = vmul.f32 %v981, %v981
        %v1057 = vmul.f32 %v982, %v982
        %v1058 = vmul.f32 %v983, %v983
        %v1059 = vmul.f32 %v984, %v984
        %v1060 = vmul.f32 %v985, %v985
        %v1061 = vmul.f32 %v986, %v986
        %v1062 = vmul.f32 %v987, %v987
        %v1063 = vmul.f32 %v988, %v988
        %v1064 = vmul.f32 %v989, %v989
        %v1065 = vmul.f32 %v990, %v990
        %v1066 = vmul.f32 %v991, %v991
        %v1067 = vmul.f32 %v992, %v992
        %v1068 = vmul.f32 %v993, %v993
        %v1069 = vmul.f32 %v994, %v994
        %v1070 = vmul.f32 %v995, %v995
        %v1071 = vmul.f32 %v996, %v996
        %v1072 = vmul.f32 %v997, %v997
        %v1073 = vmul.f32 %v998, %v998
        %v1074 = vmul.f32 %v999, %v999
        %v1075 = vmul.f32 %v1000, %v1000
        %1076 = vmatpush.msra.mxu0 %v1065
        %1077 = vmatpush.msra.mxu0 %v1064
        %1078 = vmatpush.msra.mxu0 %v1063
        %1079 = vmatpush.msra.mxu0 %v1062
        %1080 = vmatpush.msra.mxu0 %v1061
        %1081 = vmatpush.msra.mxu0 %v1060
        %1082 = vmatpush.msra.mxu0 %v1059
        %1083 = vmatpush.msra.mxu0 %v1058
        %1084 = vmatpush.msra.mxu0 %v1057
        %1085 = vmatpush.msra.mxu0 %v1056
        %1086 = vmatpush.msra.mxu0 %v1055
        %1087 = vmatpush.msra.mxu0 %v1054
        %1088 = vmatpush.msra.mxu0 %v1053
        %1089 = vmatpush.msra.mxu0 %v1052
        %1090 = vmatpush.msra.mxu0 %v1051
        %1091 = vmatpush.msra.mxu0 %v1050
        %1092 = vmatmul.f32.gmra.mxu0 %v1004
        %v1093 = vpop.f32.mrf.mxu0
        %v1094 = vadd.f32 0.0, %v1093
        %1095 = vdwg.mxu0
        %1096 = vmatpush.msra.mxu0 0.0
        %1097 = vmatpush.msra.mxu0 0.0
        %1098 = vmatpush.msra.mxu0 0.0
        %1099 = vmatpush.msra.mxu0 0.0
        %1100 = vmatpush.msra.mxu0 0.0
        %1101 = vmatpush.msra.mxu0 0.0
        %1102 = vmatpush.msra.mxu0 %v1075
        %1103 = vmatpush.msra.mxu0 %v1074
        %1104 = vmatpush.msra.mxu0 %v1073
        %1105 = vmatpush.msra.mxu0 %v1072
        %1106 = vmatpush.msra.mxu0 %v1071
        %1107 = vmatpush.msra.mxu0 %v1070
        %1108 = vmatpush.msra.mxu0 %v1069
        %1109 = vmatpush.msra.mxu0 %v1068
        %1110 = vmatpush.msra.mxu0 %v1067
        %1111 = vmatpush.msra.mxu0 %v1066
        %1112 = vmatmul.f32.gmra.mxu0 %v1008
        %v1113 = vpop.f32.mrf.mxu0
        %v1114 = vadd.f32 %v1094, %v1113
        %1115 = vdwg.mxu0
        %v1116 = vmul.f32 %v1048, 0.005
        %v1117 = vmul.f32 %v1114, 0.005
        %v1118 = vmul.f32 %v1116, %v1116
        %v1119 = vsub.f32 %v1117, %v1118
        %v1120 = vmax.f32 %v1119, 0.0
        %v1121 = vadd.f32 %v1120, 1e-05
        %v1122 = vrsqrt.pop %v1121
        %v1123 = vmul.f32 %v1122, %v1121
        %v1124 = vmul.f32 %v1123, %v1122
        %v1125 = vmul.f32 0.5, %v1124
        %v1126 = vsub.f32 1.5, %v1125
        %v1127 = vmul.f32 %v1122, %v1126
        %vm1128 = vweird.f32 %v1121
        %vm1129 = vweird.f32 %v1122
        %vm1130 = vmor %vm1128, %vm1129
        %v1131 = vsel %vm1130, %v1122, %v1127
        %v1132 = vmul.f32 %v1001, %v1131
        %v1133 = vmul.f32 %v1116, %v1132
        %v1134 = vsub.f32 %v1002, %v1133
        %v1135 = vperm.slane %v1132, 0
        %v1136 = vmul.f32 %v975, %v1135
        %v1137 = vmul.f32 %v976, %v1135
        %v1138 = vmul.f32 %v977, %v1135
        %v1139 = vmul.f32 %v978, %v1135
        %v1140 = vmul.f32 %v979, %v1135
        %v1141 = vmul.f32 %v980, %v1135
        %v1142 = vmul.f32 %v981, %v1135
        %v1143 = vmul.f32 %v982, %v1135
        %v1144 = vmul.f32 %v983, %v1135
        %v1145 = vmul.f32 %v984, %v1135
        %v1146 = vmul.f32 %v985, %v1135
        %v1147 = vmul.f32 %v986, %v1135
        %v1148 = vmul.f32 %v987, %v1135
        %v1149 = vmul.f32 %v988, %v1135
        %v1150 = vmul.f32 %v989, %v1135
        %v1151 = vmul.f32 %v990, %v1135
        %v1152 = vmul.f32 %v991, %v1135
        %v1153 = vmul.f32 %v992, %v1135
        %v1154 = vmul.f32 %v993, %v1135
        %v1155 = vmul.f32 %v994, %v1135
        %v1156 = vmul.f32 %v995, %v1135
        %v1157 = vmul.f32 %v996, %v1135
        %v1158 = vmul.f32 %v997, %v1135
        %v1159 = vmul.f32 %v998, %v1135
        %v1160 = vmul.f32 %v999, %v1135
        %v1161 = vmul.f32 %v1000, %v1135
        %v1162 = vperm.slane %v1134, 0
        %v1163 = vadd.f32 %v1136, %v1162
        %v1164 = vadd.f32 %v1137, %v1162
        %v1165 = vadd.f32 %v1138, %v1162
        %v1166 = vadd.f32 %v1139, %v1162
        %v1167 = vadd.f32 %v1140, %v1162
        %v1168 = vadd.f32 %v1141, %v1162
        %v1169 = vadd.f32 %v1142, %v1162
        %v1170 = vadd.f32 %v1143, %v1162
        %v1171 = vadd.f32 %v1144, %v1162
        %v1172 = vadd.f32 %v1145, %v1162
        %v1173 = vadd.f32 %v1146, %v1162
        %v1174 = vadd.f32 %v1147, %v1162
        %v1175 = vadd.f32 %v1148, %v1162
        %v1176 = vadd.f32 %v1149, %v1162
        %v1177 = vadd.f32 %v1150, %v1162
        %v1178 = vadd.f32 %v1151, %v1162
        %v1179 = vadd.f32 %v1152, %v1162
        %v1180 = vadd.f32 %v1153, %v1162
        %v1181 = vadd.f32 %v1154, %v1162
        %v1182 = vadd.f32 %v1155, %v1162
        %v1183 = vadd.f32 %v1156, %v1162
        %v1184 = vadd.f32 %v1157, %v1162
        %v1185 = vadd.f32 %v1158, %v1162
        %v1186 = vadd.f32 %v1159, %v1162
        %v1187 = vadd.f32 %v1160, %v1162
        %v1188 = vadd.f32 %v1161, %v1162
        %v1189 = vmax.f32 %v1163, 0.0
        %v1190 = vmax.f32 %v1164, 0.0
        %v1191 = vmax.f32 %v1165, 0.0
        %v1192 = vmax.f32 %v1166, 0.0
        %v1193 = vmax.f32 %v1167, 0.0
        %v1194 = vmax.f32 %v1168, 0.0
        %v1195 = vmax.f32 %v1169, 0.0
        %v1196 = vmax.f32 %v1170, 0.0
        %v1197 = vmax.f32 %v1171, 0.0
        %v1198 = vmax.f32 %v1172, 0.0
        %v1199 = vmax.f32 %v1173, 0.0
        %v1200 = vmax.f32 %v1174, 0.0
        %v1201 = vmax.f32 %v1175, 0.0
        %v1202 = vmax.f32 %v1176, 0.0
        %v1203 = vmax.f32 %v1177, 0.0
        %v1204 = vmax.f32 %v1178, 0.0
        %v1205 = vmax.f32 %v1179, 0.0
        %v1206 = vmax.f32 %v1180, 0.0
        %v1207 = vmax.f32 %v1181, 0.0
        %v1208 = vmax.f32 %v1182, 0.0
        %v1209 = vmax.f32 %v1183, 0.0
        %v1210 = vmax.f32 %v1184, 0.0
        %v1211 = vmax.f32 %v1185, 0.0
        %v1212 = vmax.f32 %v1186, 0.0
        %v1213 = vmax.f32 %v1187, 0.0
        %v1214 = vmax.f32 %v1188, 0.0
        %v1215 = vld [vmem:[%s3] sm:$0xff]
        %v1216 = vld [vmem:[%s3 + $0x8] sm:$0xff]
        %v1217 = vld [vmem:[%s3 + $0x10] sm:$0xff]
        %v1218 = vld [vmem:[%s3 + $0x18] sm:$0xff]
        %v1219 = vld [vmem:[%s3 + $0x20] sm:$0xff]
        %v1220 = vld [vmem:[%s3 + $0x28] sm:$0xff]
        %v1221 = vld [vmem:[%s3 + $0x30] sm:$0xff]
        %v1222 = vld [vmem:[%s3 + $0x38] sm:$0xff]
        %vm1223 = vcmask 523264
        %v1225 = vsel %vm1223, %v1189, 0
        %v1228 = vsel %vm1223, %v1190, 0
        %v1231 = vsel %vm1223, %v1191, 0
        %v1234 = vsel %vm1223, %v1192, 0
        %v1237 = vsel %vm1223, %v1193, 0
        %v1240 = vsel %vm1223, %v1194, 0
        %v1243 = vsel %vm1223, %v1195, 0
        %v1246 = vsel %vm1223, %v1196, 0
        %v1249 = vsel %vm1223, %v1197, 0
        %v1252 = vsel %vm1223, %v1198, 0
        %v1255 = vsel %vm1223, %v1199, 0
        %v1258 = vsel %vm1223, %v1200, 0
        %v1261 = vsel %vm1223, %v1201, 0
        %v1264 = vsel %vm1223, %v1202, 0
        %v1267 = vsel %vm1223, %v1203, 0
        %v1270 = vsel %vm1223, %v1204, 0
        %v1273 = vsel %vm1223, %v1205, 0
        %v1276 = vsel %vm1223, %v1206, 0
        %v1279 = vsel %vm1223, %v1207, 0
        %v1282 = vsel %vm1223, %v1208, 0
        %v1285 = vsel %vm1223, %v1209, 0
        %v1288 = vsel %vm1223, %v1210, 0
        %v1291 = vsel %vm1223, %v1211, 0
        %v1294 = vsel %vm1223, %v1212, 0
        %v1297 = vsel %vm1223, %v1213, 0
        %v1300 = vsel %vm1223, %v1214, 0
        %1302 = vmatpush.msra.mxu0 0.0
        %1303 = vmatpush.msra.mxu0 0.0
        %1304 = vmatpush.msra.mxu0 0.0
        %1305 = vmatpush.msra.mxu0 0.0
        %1306 = vmatpush.msra.mxu0 0.0
        %1307 = vmatpush.msra.mxu0 0.0
        %1308 = vmatpush.msra.mxu0 0.0
        %1309 = vmatpush.msra.mxu0 0.0
        %1310 = vmatpush.msra.mxu0 %v1222
        %1311 = vmatpush.msra.mxu0 %v1221
        %1312 = vmatpush.msra.mxu0 %v1220
        %1313 = vmatpush.msra.mxu0 %v1219
        %1314 = vmatpush.msra.mxu0 %v1218
        %1315 = vmatpush.msra.mxu0 %v1217
        %1316 = vmatpush.msra.mxu0 %v1216
        %1317 = vmatpush.msra.mxu0 %v1215
        %1318 = vmatmul.f32.gmra.mxu0 %v1225
        %v1319 = vpop.f32.mrf.mxu0
        %v1320 = vadd.f32 0.0, %v1319
        %1321 = vmatmul.f32.gmra.mxu0 %v1228
        %v1322 = vpop.f32.mrf.mxu0
        %v1323 = vadd.f32 0.0, %v1322
        %1324 = vmatmul.f32.gmra.mxu0 %v1231
        %v1325 = vpop.f32.mrf.mxu0
        %v1326 = vadd.f32 0.0, %v1325
        %1327 = vmatmul.f32.gmra.mxu0 %v1234
        %v1328 = vpop.f32.mrf.mxu0
        %v1329 = vadd.f32 0.0, %v1328
        %1330 = vmatmul.f32.gmra.mxu0 %v1237
        %v1331 = vpop.f32.mrf.mxu0
        %v1332 = vadd.f32 0.0, %v1331
        %1333 = vmatmul.f32.gmra.mxu0 %v1240
        %v1334 = vpop.f32.mrf.mxu0
        %v1335 = vadd.f32 0.0, %v1334
        %1336 = vmatmul.f32.gmra.mxu0 %v1243
        %v1337 = vpop.f32.mrf.mxu0
        %v1338 = vadd.f32 0.0, %v1337
        %1339 = vmatmul.f32.gmra.mxu0 %v1246
        %v1340 = vpop.f32.mrf.mxu0
        %v1341 = vadd.f32 0.0, %v1340
        %1342 = vmatmul.f32.gmra.mxu0 %v1249
        %v1343 = vpop.f32.mrf.mxu0
        %v1344 = vadd.f32 0.0, %v1343
        %1345 = vmatmul.f32.gmra.mxu0 %v1252
        %v1346 = vpop.f32.mrf.mxu0
        %v1347 = vadd.f32 0.0, %v1346
        %1348 = vmatmul.f32.gmra.mxu0 %v1255
        %v1349 = vpop.f32.mrf.mxu0
        %v1350 = vadd.f32 0.0, %v1349
        %1351 = vmatmul.f32.gmra.mxu0 %v1258
        %v1352 = vpop.f32.mrf.mxu0
        %v1353 = vadd.f32 0.0, %v1352
        %1354 = vmatmul.f32.gmra.mxu0 %v1261
        %v1355 = vpop.f32.mrf.mxu0
        %v1356 = vadd.f32 0.0, %v1355
        %1357 = vmatmul.f32.gmra.mxu0 %v1264
        %v1358 = vpop.f32.mrf.mxu0
        %v1359 = vadd.f32 0.0, %v1358
        %1360 = vmatmul.f32.gmra.mxu0 %v1267
        %v1361 = vpop.f32.mrf.mxu0
        %v1362 = vadd.f32 0.0, %v1361
        %1363 = vmatmul.f32.gmra.mxu0 %v1270
        %v1364 = vpop.f32.mrf.mxu0
        %v1365 = vadd.f32 0.0, %v1364
        %1366 = vmatmul.f32.gmra.mxu0 %v1273
        %v1367 = vpop.f32.mrf.mxu0
        %v1368 = vadd.f32 0.0, %v1367
        %1369 = vmatmul.f32.gmra.mxu0 %v1276
        %v1370 = vpop.f32.mrf.mxu0
        %v1371 = vadd.f32 0.0, %v1370
        %1372 = vmatmul.f32.gmra.mxu0 %v1279
        %v1373 = vpop.f32.mrf.mxu0
        %v1374 = vadd.f32 0.0, %v1373
        %1375 = vmatmul.f32.gmra.mxu0 %v1282
        %v1376 = vpop.f32.mrf.mxu0
        %v1377 = vadd.f32 0.0, %v1376
        %1378 = vmatmul.f32.gmra.mxu0 %v1285
        %v1379 = vpop.f32.mrf.mxu0
        %v1380 = vadd.f32 0.0, %v1379
        %1381 = vmatmul.f32.gmra.mxu0 %v1288
        %v1382 = vpop.f32.mrf.mxu0
        %v1383 = vadd.f32 0.0, %v1382
        %1384 = vmatmul.f32.gmra.mxu0 %v1291
        %v1385 = vpop.f32.mrf.mxu0
        %v1386 = vadd.f32 0.0, %v1385
        %1387 = vmatmul.f32.gmra.mxu0 %v1294
        %v1388 = vpop.f32.mrf.mxu0
        %v1389 = vadd.f32 0.0, %v1388
        %1390 = vmatmul.f32.gmra.mxu0 %v1297
        %v1391 = vpop.f32.mrf.mxu0
        %v1392 = vadd.f32 0.0, %v1391
        %1393 = vmatmul.f32.gmra.mxu0 %v1300
        %v1394 = vpop.f32.mrf.mxu0
        %v1395 = vadd.f32 0.0, %v1394
        %1396 = vdwg.mxu0
        %v1397 = vld [vmem:[%s9] sm:$0x1]
        %v1398 = vld [vmem:[%s9 + $0x1] sm:$0x1]
        %1399 = vmatpush.msra.mxu0 %v1365
        %1400 = vmatpush.msra.mxu0 %v1362
        %1401 = vmatpush.msra.mxu0 %v1359
        %1402 = vmatpush.msra.mxu0 %v1356
        %1403 = vmatpush.msra.mxu0 %v1353
        %1404 = vmatpush.msra.mxu0 %v1350
        %1405 = vmatpush.msra.mxu0 %v1347
        %1406 = vmatpush.msra.mxu0 %v1344
        %1407 = vmatpush.msra.mxu0 %v1341
        %1408 = vmatpush.msra.mxu0 %v1338
        %1409 = vmatpush.msra.mxu0 %v1335
        %1410 = vmatpush.msra.mxu0 %v1332
        %1411 = vmatpush.msra.mxu0 %v1329
        %1412 = vmatpush.msra.mxu0 %v1326
        %1413 = vmatpush.msra.mxu0 %v1323
        %1414 = vmatpush.msra.mxu0 %v1320
        %1415 = vmatmul.f32.gmra.mxu0 %v1004
        %v1416 = vpop.f32.mrf.mxu0
        %v1417 = vadd.f32 0.0, %v1416
        %1418 = vdwg.mxu0
        %1419 = vmatpush.msra.mxu0 0.0
        %1420 = vmatpush.msra.mxu0 0.0
        %1421 = vmatpush.msra.mxu0 0.0
        %1422 = vmatpush.msra.mxu0 0.0
        %1423 = vmatpush.msra.mxu0 0.0
        %1424 = vmatpush.msra.mxu0 0.0
        %1425 = vmatpush.msra.mxu0 %v1395
        %1426 = vmatpush.msra.mxu0 %v1392
        %1427 = vmatpush.msra.mxu0 %v1389
        %1428 = vmatpush.msra.mxu0 %v1386
        %1429 = vmatpush.msra.mxu0 %v1383
        %1430 = vmatpush.msra.mxu0 %v1380
        %1431 = vmatpush.msra.mxu0 %v1377
        %1432 = vmatpush.msra.mxu0 %v1374
        %1433 = vmatpush.msra.mxu0 %v1371
        %1434 = vmatpush.msra.mxu0 %v1368
        %1435 = vmatmul.f32.gmra.mxu0 %v1008
        %v1436 = vpop.f32.mrf.mxu0
        %v1437 = vadd.f32 %v1417, %v1436
        %1438 = vdwg.mxu0
        %v1439 = vmul.f32 %v1320, %v1320
        %v1440 = vmul.f32 %v1323, %v1323
        %v1441 = vmul.f32 %v1326, %v1326
        %v1442 = vmul.f32 %v1329, %v1329
        %v1443 = vmul.f32 %v1332, %v1332
        %v1444 = vmul.f32 %v1335, %v1335
        %v1445 = vmul.f32 %v1338, %v1338
        %v1446 = vmul.f32 %v1341, %v1341
        %v1447 = vmul.f32 %v1344, %v1344
        %v1448 = vmul.f32 %v1347, %v1347
        %v1449 = vmul.f32 %v1350, %v1350
        %v1450 = vmul.f32 %v1353, %v1353
        %v1451 = vmul.f32 %v1356, %v1356
        %v1452 = vmul.f32 %v1359, %v1359
        %v1453 = vmul.f32 %v1362, %v1362
        %v1454 = vmul.f32 %v1365, %v1365
        %v1455 = vmul.f32 %v1368, %v1368
        %v1456 = vmul.f32 %v1371, %v1371
        %v1457 = vmul.f32 %v1374, %v1374
        %v1458 = vmul.f32 %v1377, %v1377
        %v1459 = vmul.f32 %v1380, %v1380
        %v1460 = vmul.f32 %v1383, %v1383
        %v1461 = vmul.f32 %v1386, %v1386
        %v1462 = vmul.f32 %v1389, %v1389
        %v1463 = vmul.f32 %v1392, %v1392
        %v1464 = vmul.f32 %v1395, %v1395
        %1465 = vmatpush.msra.mxu0 %v1454
        %1466 = vmatpush.msra.mxu0 %v1453
        %1467 = vmatpush.msra.mxu0 %v1452
        %1468 = vmatpush.msra.mxu0 %v1451
        %1469 = vmatpush.msra.mxu0 %v1450
        %1470 = vmatpush.msra.mxu0 %v1449
        %1471 = vmatpush.msra.mxu0 %v1448
        %1472 = vmatpush.msra.mxu0 %v1447
        %1473 = vmatpush.msra.mxu0 %v1446
        %1474 = vmatpush.msra.mxu0 %v1445
        %1475 = vmatpush.msra.mxu0 %v1444
        %1476 = vmatpush.msra.mxu0 %v1443
        %1477 = vmatpush.msra.mxu0 %v1442
        %1478 = vmatpush.msra.mxu0 %v1441
        %1479 = vmatpush.msra.mxu0 %v1440
        %1480 = vmatpush.msra.mxu0 %v1439
        %1481 = vmatmul.f32.gmra.mxu0 %v1004
        %v1482 = vpop.f32.mrf.mxu0
        %v1483 = vadd.f32 0.0, %v1482
        %1484 = vdwg.mxu0
        %1485 = vmatpush.msra.mxu0 0.0
        %1486 = vmatpush.msra.mxu0 0.0
        %1487 = vmatpush.msra.mxu0 0.0
        %1488 = vmatpush.msra.mxu0 0.0
        %1489 = vmatpush.msra.mxu0 0.0
        %1490 = vmatpush.msra.mxu0 0.0
        %1491 = vmatpush.msra.mxu0 %v1464
        %1492 = vmatpush.msra.mxu0 %v1463
        %1493 = vmatpush.msra.mxu0 %v1462
        %1494 = vmatpush.msra.mxu0 %v1461
        %1495 = vmatpush.msra.mxu0 %v1460
        %1496 = vmatpush.msra.mxu0 %v1459
        %1497 = vmatpush.msra.mxu0 %v1458
        %1498 = vmatpush.msra.mxu0 %v1457
        %1499 = vmatpush.msra.mxu0 %v1456
        %1500 = vmatpush.msra.mxu0 %v1455
        %1501 = vmatmul.f32.gmra.mxu0 %v1008
        %v1502 = vpop.f32.mrf.mxu0
        %v1503 = vadd.f32 %v1483, %v1502
        %1504 = vdwg.mxu0
        %v1505 = vmul.f32 %v1437, 0.005
        %v1506 = vmul.f32 %v1503, 0.005
        %v1507 = vmul.f32 %v1505, %v1505
        %v1508 = vsub.f32 %v1506, %v1507
        %v1509 = vmax.f32 %v1508, 0.0
        %v1510 = vadd.f32 %v1509, 1e-05
        %v1511 = vrsqrt.pop %v1510
        %v1512 = vmul.f32 %v1511, %v1510
        %v1513 = vmul.f32 %v1512, %v1511
        %v1514 = vmul.f32 0.5, %v1513
        %v1515 = vsub.f32 1.5, %v1514
        %v1516 = vmul.f32 %v1511, %v1515
        %vm1517 = vweird.f32 %v1510
        %vm1518 = vweird.f32 %v1511
        %vm1519 = vmor %vm1517, %vm1518
        %v1520 = vsel %vm1519, %v1511, %v1516
        %v1521 = vmul.f32 %v1397, %v1520
        %v1522 = vmul.f32 %v1505, %v1521
        %v1523 = vsub.f32 %v1398, %v1522
        %v1524 = vperm.slane %v1521, 0
        %v1525 = vmul.f32 %v1320, %v1524
        %v1526 = vmul.f32 %v1323, %v1524
        %v1527 = vmul.f32 %v1326, %v1524
        %v1528 = vmul.f32 %v1329, %v1524
        %v1529 = vmul.f32 %v1332, %v1524
        %v1530 = vmul.f32 %v1335, %v1524
        %v1531 = vmul.f32 %v1338, %v1524
        %v1532 = vmul.f32 %v1341, %v1524
        %v1533 = vmul.f32 %v1344, %v1524
        %v1534 = vmul.f32 %v1347, %v1524
        %v1535 = vmul.f32 %v1350, %v1524
        %v1536 = vmul.f32 %v1353, %v1524
        %v1537 = vmul.f32 %v1356, %v1524
        %v1538 = vmul.f32 %v1359, %v1524
        %v1539 = vmul.f32 %v1362, %v1524
        %v1540 = vmul.f32 %v1365, %v1524
        %v1541 = vmul.f32 %v1368, %v1524
        %v1542 = vmul.f32 %v1371, %v1524
        %v1543 = vmul.f32 %v1374, %v1524
        %v1544 = vmul.f32 %v1377, %v1524
        %v1545 = vmul.f32 %v1380, %v1524
        %v1546 = vmul.f32 %v1383, %v1524
        %v1547 = vmul.f32 %v1386, %v1524
        %v1548 = vmul.f32 %v1389, %v1524
        %v1549 = vmul.f32 %v1392, %v1524
        %v1550 = vmul.f32 %v1395, %v1524
        %v1551 = vperm.slane %v1523, 0
        %v1552 = vadd.f32 %v1525, %v1551
        %v1553 = vadd.f32 %v1526, %v1551
        %v1554 = vadd.f32 %v1527, %v1551
        %v1555 = vadd.f32 %v1528, %v1551
        %v1556 = vadd.f32 %v1529, %v1551
        %v1557 = vadd.f32 %v1530, %v1551
        %v1558 = vadd.f32 %v1531, %v1551
        %v1559 = vadd.f32 %v1532, %v1551
        %v1560 = vadd.f32 %v1533, %v1551
        %v1561 = vadd.f32 %v1534, %v1551
        %v1562 = vadd.f32 %v1535, %v1551
        %v1563 = vadd.f32 %v1536, %v1551
        %v1564 = vadd.f32 %v1537, %v1551
        %v1565 = vadd.f32 %v1538, %v1551
        %v1566 = vadd.f32 %v1539, %v1551
        %v1567 = vadd.f32 %v1540, %v1551
        %v1568 = vadd.f32 %v1541, %v1551
        %v1569 = vadd.f32 %v1542, %v1551
        %v1570 = vadd.f32 %v1543, %v1551
        %v1571 = vadd.f32 %v1544, %v1551
        %v1572 = vadd.f32 %v1545, %v1551
        %v1573 = vadd.f32 %v1546, %v1551
        %v1574 = vadd.f32 %v1547, %v1551
        %v1575 = vadd.f32 %v1548, %v1551
        %v1576 = vadd.f32 %v1549, %v1551
        %v1577 = vadd.f32 %v1550, %v1551
        %v1578 = vmax.f32 %v1552, 0.0
        %v1579 = vmax.f32 %v1553, 0.0
        %v1580 = vmax.f32 %v1554, 0.0
        %v1581 = vmax.f32 %v1555, 0.0
        %v1582 = vmax.f32 %v1556, 0.0
        %v1583 = vmax.f32 %v1557, 0.0
        %v1584 = vmax.f32 %v1558, 0.0
        %v1585 = vmax.f32 %v1559, 0.0
        %v1586 = vmax.f32 %v1560, 0.0
        %v1587 = vmax.f32 %v1561, 0.0
        %v1588 = vmax.f32 %v1562, 0.0
        %v1589 = vmax.f32 %v1563, 0.0
        %v1590 = vmax.f32 %v1564, 0.0
        %v1591 = vmax.f32 %v1565, 0.0
        %v1592 = vmax.f32 %v1566, 0.0
        %v1593 = vmax.f32 %v1567, 0.0
        %v1594 = vmax.f32 %v1568, 0.0
        %v1595 = vmax.f32 %v1569, 0.0
        %v1596 = vmax.f32 %v1570, 0.0
        %v1597 = vmax.f32 %v1571, 0.0
        %v1598 = vmax.f32 %v1572, 0.0
        %v1599 = vmax.f32 %v1573, 0.0
        %v1600 = vmax.f32 %v1574, 0.0
        %v1601 = vmax.f32 %v1575, 0.0
        %v1602 = vmax.f32 %v1576, 0.0
        %v1603 = vmax.f32 %v1577, 0.0
        %v1604 = vpack.c.bf16 %v1579, %v1578
        %v1605 = vpack.c.bf16 %v1581, %v1580
        %v1606 = vpack.c.bf16 %v1583, %v1582
        %v1607 = vpack.c.bf16 %v1585, %v1584
        %v1608 = vpack.c.bf16 %v1587, %v1586
        %v1609 = vpack.c.bf16 %v1589, %v1588
        %v1610 = vpack.c.bf16 %v1591, %v1590
        %v1611 = vpack.c.bf16 %v1593, %v1592
        %v1612 = vpack.c.bf16 %v1595, %v1594
        %v1613 = vpack.c.bf16 %v1597, %v1596
        %v1614 = vpack.c.bf16 %v1599, %v1598
        %v1615 = vpack.c.bf16 %v1601, %v1600
        %v1616 = vpack.c.bf16 %v1603, %v1602
        %v1617 = vld [vmem:[%s4] sm:$0xff]
        %v1618 = vld [vmem:[%s4 + $0x8] sm:$0xff]
        %v1619 = vld [vmem:[%s4 + $0x10] sm:$0xff]
        %v1620 = vld [vmem:[%s4 + $0x18] sm:$0xff]
        %v1621 = vld [vmem:[%s4 + $0x20] sm:$0xff]
        %v1622 = vld [vmem:[%s4 + $0x28] sm:$0xff]
        %v1623 = vld [vmem:[%s4 + $0x30] sm:$0xff]
        %v1624 = vld [vmem:[%s4 + $0x38] sm:$0xff]
        %v1625 = vld [vmem:[%s4 + $0x40] sm:$0xff]
        %v1626 = vld [vmem:[%s4 + $0x48] sm:$0xff]
        %v1627 = vld [vmem:[%s4 + $0x50] sm:$0xff]
        %v1628 = vld [vmem:[%s4 + $0x58] sm:$0xff]
        %v1629 = vld [vmem:[%s4 + $0x60] sm:$0xff]
        %v1630 = vld [vmem:[%s4 + $0x68] sm:$0xff]
        %v1631 = vld [vmem:[%s4 + $0x70] sm:$0xff]
        %v1632 = vld [vmem:[%s4 + $0x78] sm:$0xff]
        %v1633 = vld [vmem:[%s4 + $0x80] sm:$0xff]
        %v1634 = vld [vmem:[%s4 + $0x88] sm:$0xff]
        %v1635 = vld [vmem:[%s4 + $0x90] sm:$0xff]
        %v1636 = vld [vmem:[%s4 + $0x98] sm:$0xff]
        %v1637 = vld [vmem:[%s4 + $0xa0] sm:$0xff]
        %v1638 = vld [vmem:[%s4 + $0xa8] sm:$0xff]
        %v1639 = vld [vmem:[%s4 + $0xb0] sm:$0xff]
        %v1640 = vld [vmem:[%s4 + $0xb8] sm:$0xff]
        %v1641 = vld [vmem:[%s4 + $0xc0] sm:$0xff]
        %v1642 = vld [vmem:[%s4 + $0xc8] sm:$0xff]
        %v1643 = vld [vmem:[%s4 + $0xd0] sm:$0xff]
        %v1644 = vld [vmem:[%s4 + $0xd8] sm:$0xff]
        %v1645 = vld [vmem:[%s4 + $0xe0] sm:$0xff]
        %v1646 = vld [vmem:[%s4 + $0xe8] sm:$0xff]
        %v1647 = vld [vmem:[%s4 + $0xf0] sm:$0xff]
        %v1648 = vld [vmem:[%s4 + $0xf8] sm:$0xff]
        %v1649 = vld [vmem:[%s4 + $0x100] sm:$0xff]
        %v1650 = vld [vmem:[%s4 + $0x108] sm:$0xff]
        %v1651 = vld [vmem:[%s4 + $0x110] sm:$0xff]
        %v1652 = vld [vmem:[%s4 + $0x118] sm:$0xff]
        %v1653 = vld [vmem:[%s4 + $0x120] sm:$0xff]
        %v1654 = vld [vmem:[%s4 + $0x128] sm:$0xff]
        %v1655 = vld [vmem:[%s4 + $0x130] sm:$0xff]
        %v1656 = vld [vmem:[%s4 + $0x138] sm:$0xff]
        %v1657 = vld [vmem:[%s4 + $0x140] sm:$0xff]
        %v1658 = vld [vmem:[%s4 + $0x148] sm:$0xff]
        %v1659 = vld [vmem:[%s4 + $0x150] sm:$0xff]
        %v1660 = vld [vmem:[%s4 + $0x158] sm:$0xff]
        %v1661 = vld [vmem:[%s4 + $0x160] sm:$0xff]
        %v1662 = vld [vmem:[%s4 + $0x168] sm:$0xff]
        %v1663 = vld [vmem:[%s4 + $0x170] sm:$0xff]
        %v1664 = vld [vmem:[%s4 + $0x178] sm:$0xff]
        %v1665 = vld [vmem:[%s4 + $0x180] sm:$0xff]
        %v1666 = vld [vmem:[%s4 + $0x188] sm:$0xff]
        %v1667 = vld [vmem:[%s4 + $0x190] sm:$0xff]
        %v1668 = vld [vmem:[%s4 + $0x198] sm:$0xff]
        %v1669 = vld [vmem:[%s4 + $0x1a0] sm:$0xff]
        %v1670 = vld [vmem:[%s4 + $0x1a8] sm:$0xff]
        %v1671 = vld [vmem:[%s4 + $0x1b0] sm:$0xff]
        %v1672 = vld [vmem:[%s4 + $0x1b8] sm:$0xff]
        %v1673 = vld [vmem:[%s4 + $0x1c0] sm:$0xff]
        %v1674 = vld [vmem:[%s4 + $0x1c8] sm:$0xff]
        %v1675 = vld [vmem:[%s4 + $0x1d0] sm:$0xff]
        %v1676 = vld [vmem:[%s4 + $0x1d8] sm:$0xff]
        %v1677 = vld [vmem:[%s4 + $0x1e0] sm:$0xff]
        %v1678 = vld [vmem:[%s4 + $0x1e8] sm:$0xff]
        %v1679 = vld [vmem:[%s4 + $0x1f0] sm:$0xff]
        %v1680 = vld [vmem:[%s4 + $0x1f8] sm:$0xff]
        %v1745 = vunpack.c.l.b16 %v1617
        %v1746 = vunpack.c.h.b16 %v1617
        %v1747 = vunpack.c.l.b16 %v1618
        %v1748 = vunpack.c.h.b16 %v1618
        %v1749 = vunpack.c.l.b16 %v1619
        %v1750 = vunpack.c.h.b16 %v1619
        %v1751 = vunpack.c.l.b16 %v1620
        %v1752 = vunpack.c.h.b16 %v1620
        %v1753 = vunpack.c.l.b16 %v1621
        %v1754 = vunpack.c.h.b16 %v1621
        %v1755 = vunpack.c.l.b16 %v1622
        %v1756 = vunpack.c.h.b16 %v1622
        %v1757 = vunpack.c.l.b16 %v1623
        %v1758 = vunpack.c.h.b16 %v1623
        %v1759 = vunpack.c.l.b16 %v1624
        %v1760 = vunpack.c.h.b16 %v1624
        %v1761 = vunpack.c.l.b16 %v1625
        %v1762 = vunpack.c.h.b16 %v1625
        %v1763 = vunpack.c.l.b16 %v1626
        %v1764 = vunpack.c.h.b16 %v1626
        %v1765 = vunpack.c.l.b16 %v1627
        %v1766 = vunpack.c.h.b16 %v1627
        %v1767 = vunpack.c.l.b16 %v1628
        %v1768 = vunpack.c.h.b16 %v1628
        %v1769 = vunpack.c.l.b16 %v1629
        %v1770 = vunpack.c.h.b16 %v1629
        %v1771 = vunpack.c.l.b16 %v1630
        %v1772 = vunpack.c.h.b16 %v1630
        %v1773 = vunpack.c.l.b16 %v1631
        %v1774 = vunpack.c.h.b16 %v1631
        %v1775 = vunpack.c.l.b16 %v1632
        %v1776 = vunpack.c.h.b16 %v1632
        %v1777 = vunpack.c.l.b16 %v1633
        %v1778 = vunpack.c.h.b16 %v1633
        %v1779 = vunpack.c.l.b16 %v1634
        %v1780 = vunpack.c.h.b16 %v1634
        %v1781 = vunpack.c.l.b16 %v1635
        %v1782 = vunpack.c.h.b16 %v1635
        %v1783 = vunpack.c.l.b16 %v1636
        %v1784 = vunpack.c.h.b16 %v1636
        %v1785 = vunpack.c.l.b16 %v1637
        %v1786 = vunpack.c.h.b16 %v1637
        %v1787 = vunpack.c.l.b16 %v1638
        %v1788 = vunpack.c.h.b16 %v1638
        %v1789 = vunpack.c.l.b16 %v1639
        %v1790 = vunpack.c.h.b16 %v1639
        %v1791 = vunpack.c.l.b16 %v1640
        %v1792 = vunpack.c.h.b16 %v1640
        %v1793 = vunpack.c.l.b16 %v1641
        %v1794 = vunpack.c.h.b16 %v1641
        %v1795 = vunpack.c.l.b16 %v1642
        %v1796 = vunpack.c.h.b16 %v1642
        %v1797 = vunpack.c.l.b16 %v1643
        %v1798 = vunpack.c.h.b16 %v1643
        %v1799 = vunpack.c.l.b16 %v1644
        %v1800 = vunpack.c.h.b16 %v1644
        %v1801 = vunpack.c.l.b16 %v1645
        %v1802 = vunpack.c.h.b16 %v1645
        %v1803 = vunpack.c.l.b16 %v1646
        %v1804 = vunpack.c.h.b16 %v1646
        %v1805 = vunpack.c.l.b16 %v1647
        %v1806 = vunpack.c.h.b16 %v1647
        %v1807 = vunpack.c.l.b16 %v1648
        %v1808 = vunpack.c.h.b16 %v1648
        %v1809 = vunpack.c.l.b16 %v1649
        %v1810 = vunpack.c.h.b16 %v1649
        %v1811 = vunpack.c.l.b16 %v1650
        %v1812 = vunpack.c.h.b16 %v1650
        %v1813 = vunpack.c.l.b16 %v1651
        %v1814 = vunpack.c.h.b16 %v1651
        %v1815 = vunpack.c.l.b16 %v1652
        %v1816 = vunpack.c.h.b16 %v1652
        %v1817 = vunpack.c.l.b16 %v1653
        %v1818 = vunpack.c.h.b16 %v1653
        %v1819 = vunpack.c.l.b16 %v1654
        %v1820 = vunpack.c.h.b16 %v1654
        %v1821 = vunpack.c.l.b16 %v1655
        %v1822 = vunpack.c.h.b16 %v1655
        %v1823 = vunpack.c.l.b16 %v1656
        %v1824 = vunpack.c.h.b16 %v1656
        %v1825 = vunpack.c.l.b16 %v1657
        %v1826 = vunpack.c.h.b16 %v1657
        %v1827 = vunpack.c.l.b16 %v1658
        %v1828 = vunpack.c.h.b16 %v1658
        %v1829 = vunpack.c.l.b16 %v1659
        %v1830 = vunpack.c.h.b16 %v1659
        %v1831 = vunpack.c.l.b16 %v1660
        %v1832 = vunpack.c.h.b16 %v1660
        %v1833 = vunpack.c.l.b16 %v1661
        %v1834 = vunpack.c.h.b16 %v1661
        %v1835 = vunpack.c.l.b16 %v1662
        %v1836 = vunpack.c.h.b16 %v1662
        %v1837 = vunpack.c.l.b16 %v1663
        %v1838 = vunpack.c.h.b16 %v1663
        %v1839 = vunpack.c.l.b16 %v1664
        %v1840 = vunpack.c.h.b16 %v1664
        %v1841 = vunpack.c.l.b16 %v1665
        %v1842 = vunpack.c.h.b16 %v1665
        %v1843 = vunpack.c.l.b16 %v1666
        %v1844 = vunpack.c.h.b16 %v1666
        %v1845 = vunpack.c.l.b16 %v1667
        %v1846 = vunpack.c.h.b16 %v1667
        %v1847 = vunpack.c.l.b16 %v1668
        %v1848 = vunpack.c.h.b16 %v1668
        %v1849 = vunpack.c.l.b16 %v1669
        %v1850 = vunpack.c.h.b16 %v1669
        %v1851 = vunpack.c.l.b16 %v1670
        %v1852 = vunpack.c.h.b16 %v1670
        %v1853 = vunpack.c.l.b16 %v1671
        %v1854 = vunpack.c.h.b16 %v1671
        %v1855 = vunpack.c.l.b16 %v1672
        %v1856 = vunpack.c.h.b16 %v1672
        %v1857 = vunpack.c.l.b16 %v1673
        %v1858 = vunpack.c.h.b16 %v1673
        %v1859 = vunpack.c.l.b16 %v1674
        %v1860 = vunpack.c.h.b16 %v1674
        %v1861 = vunpack.c.l.b16 %v1675
        %v1862 = vunpack.c.h.b16 %v1675
        %v1863 = vunpack.c.l.b16 %v1676
        %v1864 = vunpack.c.h.b16 %v1676
        %v1865 = vunpack.c.l.b16 %v1677
        %v1866 = vunpack.c.h.b16 %v1677
        %v1867 = vunpack.c.l.b16 %v1678
        %v1868 = vunpack.c.h.b16 %v1678
        %v1869 = vunpack.c.l.b16 %v1679
        %v1870 = vunpack.c.h.b16 %v1679
        %v1871 = vunpack.c.l.b16 %v1680
        %v1872 = vunpack.c.h.b16 %v1680
        %v1873 = vpack.c.b16 %v1753, %v1745
        %v1874 = vpack.c.b16 %v1754, %v1746
        %v1875 = vpack.c.b16 %v1755, %v1747
        %v1876 = vpack.c.b16 %v1756, %v1748
        %v1877 = vpack.c.b16 %v1757, %v1749
        %v1878 = vpack.c.b16 %v1758, %v1750
        %v1879 = vpack.c.b16 %v1759, %v1751
        %v1880 = vpack.c.b16 %v1760, %v1752
        %v1881 = vpack.c.b16 %v1769, %v1761
        %v1882 = vpack.c.b16 %v1770, %v1762
        %v1883 = vpack.c.b16 %v1771, %v1763
        %v1884 = vpack.c.b16 %v1772, %v1764
        %v1885 = vpack.c.b16 %v1773, %v1765
        %v1886 = vpack.c.b16 %v1774, %v1766
        %v1887 = vpack.c.b16 %v1775, %v1767
        %v1888 = vpack.c.b16 %v1776, %v1768
        %v1889 = vpack.c.b16 %v1785, %v1777
        %v1890 = vpack.c.b16 %v1786, %v1778
        %v1891 = vpack.c.b16 %v1787, %v1779
        %v1892 = vpack.c.b16 %v1788, %v1780
        %v1893 = vpack.c.b16 %v1789, %v1781
        %v1894 = vpack.c.b16 %v1790, %v1782
        %v1895 = vpack.c.b16 %v1791, %v1783
        %v1896 = vpack.c.b16 %v1792, %v1784
        %v1897 = vpack.c.b16 %v1801, %v1793
        %v1898 = vpack.c.b16 %v1802, %v1794
        %v1899 = vpack.c.b16 %v1803, %v1795
        %v1900 = vpack.c.b16 %v1804, %v1796
        %v1901 = vpack.c.b16 %v1805, %v1797
        %v1902 = vpack.c.b16 %v1806, %v1798
        %v1903 = vpack.c.b16 %v1807, %v1799
        %v1904 = vpack.c.b16 %v1808, %v1800
        %v1905 = vpack.c.b16 %v1817, %v1809
        %v1906 = vpack.c.b16 %v1818, %v1810
        %v1907 = vpack.c.b16 %v1819, %v1811
        %v1908 = vpack.c.b16 %v1820, %v1812
        %v1909 = vpack.c.b16 %v1821, %v1813
        %v1910 = vpack.c.b16 %v1822, %v1814
        %v1911 = vpack.c.b16 %v1823, %v1815
        %v1912 = vpack.c.b16 %v1824, %v1816
        %v1913 = vpack.c.b16 %v1833, %v1825
        %v1914 = vpack.c.b16 %v1834, %v1826
        %v1915 = vpack.c.b16 %v1835, %v1827
        %v1916 = vpack.c.b16 %v1836, %v1828
        %v1917 = vpack.c.b16 %v1837, %v1829
        %v1918 = vpack.c.b16 %v1838, %v1830
        %v1919 = vpack.c.b16 %v1839, %v1831
        %v1920 = vpack.c.b16 %v1840, %v1832
        %v1921 = vpack.c.b16 %v1849, %v1841
        %v1922 = vpack.c.b16 %v1850, %v1842
        %v1923 = vpack.c.b16 %v1851, %v1843
        %v1924 = vpack.c.b16 %v1852, %v1844
        %v1925 = vpack.c.b16 %v1853, %v1845
        %v1926 = vpack.c.b16 %v1854, %v1846
        %v1927 = vpack.c.b16 %v1855, %v1847
        %v1928 = vpack.c.b16 %v1856, %v1848
        %v1929 = vpack.c.b16 %v1865, %v1857
        %v1930 = vpack.c.b16 %v1866, %v1858
        %v1931 = vpack.c.b16 %v1867, %v1859
        %v1932 = vpack.c.b16 %v1868, %v1860
        %v1933 = vpack.c.b16 %v1869, %v1861
        %v1934 = vpack.c.b16 %v1870, %v1862
        %v1935 = vpack.c.b16 %v1871, %v1863
        %v1936 = vpack.c.b16 %v1872, %v1864
        %2001 = vmatpush.bf16.msra.mxu0 %v1929
        %2002 = vmatpush.bf16.msra.mxu0 %v1921
        %2003 = vmatpush.bf16.msra.mxu0 %v1913
        %2004 = vmatpush.bf16.msra.mxu0 %v1905
        %2005 = vmatpush.bf16.msra.mxu0 %v1897
        %2006 = vmatpush.bf16.msra.mxu0 %v1889
        %2007 = vmatpush.bf16.msra.mxu0 %v1881
        %2008 = vmatpush.bf16.msra.mxu0 %v1873
        %2009 = vmatmul.bf16.gmra.mxu0 %v1604
        %v2010 = vpop.f32.mrf.mxu0
        %v2011 = vadd.f32 0.0, %v2010
        %v2012 = vpop.f32.mrf.mxu0
        %v2013 = vadd.f32 0.0, %v2012
        %2014 = vmatmul.bf16.gmra.mxu0 %v1605
        %v2015 = vpop.f32.mrf.mxu0
        %v2016 = vadd.f32 0.0, %v2015
        %v2017 = vpop.f32.mrf.mxu0
        %v2018 = vadd.f32 0.0, %v2017
        %2019 = vmatmul.bf16.gmra.mxu0 %v1606
        %v2020 = vpop.f32.mrf.mxu0
        %v2021 = vadd.f32 0.0, %v2020
        %v2022 = vpop.f32.mrf.mxu0
        %v2023 = vadd.f32 0.0, %v2022
        %2024 = vmatmul.bf16.gmra.mxu0 %v1607
        %v2025 = vpop.f32.mrf.mxu0
        %v2026 = vadd.f32 0.0, %v2025
        %v2027 = vpop.f32.mrf.mxu0
        %v2028 = vadd.f32 0.0, %v2027
        %2029 = vmatmul.bf16.gmra.mxu0 %v1608
        %v2030 = vpop.f32.mrf.mxu0
        %v2031 = vadd.f32 0.0, %v2030
        %v2032 = vpop.f32.mrf.mxu0
        %v2033 = vadd.f32 0.0, %v2032
        %2034 = vmatmul.bf16.gmra.mxu0 %v1609
        %v2035 = vpop.f32.mrf.mxu0
        %v2036 = vadd.f32 0.0, %v2035
        %v2037 = vpop.f32.mrf.mxu0
        %v2038 = vadd.f32 0.0, %v2037
        %2039 = vmatmul.bf16.gmra.mxu0 %v1610
        %v2040 = vpop.f32.mrf.mxu0
        %v2041 = vadd.f32 0.0, %v2040
        %v2042 = vpop.f32.mrf.mxu0
        %v2043 = vadd.f32 0.0, %v2042
        %2044 = vmatmul.bf16.gmra.mxu0 %v1611
        %v2045 = vpop.f32.mrf.mxu0
        %v2046 = vadd.f32 0.0, %v2045
        %v2047 = vpop.f32.mrf.mxu0
        %v2048 = vadd.f32 0.0, %v2047
        %2049 = vmatmul.bf16.gmra.mxu0 %v1612
        %v2050 = vpop.f32.mrf.mxu0
        %v2051 = vadd.f32 0.0, %v2050
        %v2052 = vpop.f32.mrf.mxu0
        %v2053 = vadd.f32 0.0, %v2052
        %2054 = vmatmul.bf16.gmra.mxu0 %v1613
        %v2055 = vpop.f32.mrf.mxu0
        %v2056 = vadd.f32 0.0, %v2055
        %v2057 = vpop.f32.mrf.mxu0
        %v2058 = vadd.f32 0.0, %v2057
        %2059 = vmatmul.bf16.gmra.mxu0 %v1614
        %v2060 = vpop.f32.mrf.mxu0
        %v2061 = vadd.f32 0.0, %v2060
        %v2062 = vpop.f32.mrf.mxu0
        %v2063 = vadd.f32 0.0, %v2062
        %2064 = vmatmul.bf16.gmra.mxu0 %v1615
        %v2065 = vpop.f32.mrf.mxu0
        %v2066 = vadd.f32 0.0, %v2065
        %v2067 = vpop.f32.mrf.mxu0
        %v2068 = vadd.f32 0.0, %v2067
        %2069 = vmatmul.bf16.gmra.mxu0 %v1616
        %v2070 = vpop.f32.mrf.mxu0
        %v2071 = vadd.f32 0.0, %v2070
        %v2072 = vpop.f32.mrf.mxu0
        %v2073 = vadd.f32 0.0, %v2072
        %2074 = vdwg.mxu0
        %2075 = vmatpush.bf16.msra.mxu0 %v1930
        %2076 = vmatpush.bf16.msra.mxu0 %v1922
        %2077 = vmatpush.bf16.msra.mxu0 %v1914
        %2078 = vmatpush.bf16.msra.mxu0 %v1906
        %2079 = vmatpush.bf16.msra.mxu0 %v1898
        %2080 = vmatpush.bf16.msra.mxu0 %v1890
        %2081 = vmatpush.bf16.msra.mxu0 %v1882
        %2082 = vmatpush.bf16.msra.mxu0 %v1874
        %2083 = vmatmul.bf16.gmra.mxu0 %v1604
        %v2084 = vpop.f32.mrf.mxu0
        %v2085 = vadd.f32 0.0, %v2084
        %v2086 = vpop.f32.mrf.mxu0
        %v2087 = vadd.f32 0.0, %v2086
        %2088 = vmatmul.bf16.gmra.mxu0 %v1605
        %v2089 = vpop.f32.mrf.mxu0
        %v2090 = vadd.f32 0.0, %v2089
        %v2091 = vpop.f32.mrf.mxu0
        %v2092 = vadd.f32 0.0, %v2091
        %2093 = vmatmul.bf16.gmra.mxu0 %v1606
        %v2094 = vpop.f32.mrf.mxu0
        %v2095 = vadd.f32 0.0, %v2094
        %v2096 = vpop.f32.mrf.mxu0
        %v2097 = vadd.f32 0.0, %v2096
        %2098 = vmatmul.bf16.gmra.mxu0 %v1607
        %v2099 = vpop.f32.mrf.mxu0
        %v2100 = vadd.f32 0.0, %v2099
        %v2101 = vpop.f32.mrf.mxu0
        %v2102 = vadd.f32 0.0, %v2101
        %2103 = vmatmul.bf16.gmra.mxu0 %v1608
        %v2104 = vpop.f32.mrf.mxu0
        %v2105 = vadd.f32 0.0, %v2104
        %v2106 = vpop.f32.mrf.mxu0
        %v2107 = vadd.f32 0.0, %v2106
        %2108 = vmatmul.bf16.gmra.mxu0 %v1609
        %v2109 = vpop.f32.mrf.mxu0
        %v2110 = vadd.f32 0.0, %v2109
        %v2111 = vpop.f32.mrf.mxu0
        %v2112 = vadd.f32 0.0, %v2111
        %2113 = vmatmul.bf16.gmra.mxu0 %v1610
        %v2114 = vpop.f32.mrf.mxu0
        %v2115 = vadd.f32 0.0, %v2114
        %v2116 = vpop.f32.mrf.mxu0
        %v2117 = vadd.f32 0.0, %v2116
        %2118 = vmatmul.bf16.gmra.mxu0 %v1611
        %v2119 = vpop.f32.mrf.mxu0
        %v2120 = vadd.f32 0.0, %v2119
        %v2121 = vpop.f32.mrf.mxu0
        %v2122 = vadd.f32 0.0, %v2121
        %2123 = vmatmul.bf16.gmra.mxu0 %v1612
        %v2124 = vpop.f32.mrf.mxu0
        %v2125 = vadd.f32 0.0, %v2124
        %v2126 = vpop.f32.mrf.mxu0
        %v2127 = vadd.f32 0.0, %v2126
        %2128 = vmatmul.bf16.gmra.mxu0 %v1613
        %v2129 = vpop.f32.mrf.mxu0
        %v2130 = vadd.f32 0.0, %v2129
        %v2131 = vpop.f32.mrf.mxu0
        %v2132 = vadd.f32 0.0, %v2131
        %2133 = vmatmul.bf16.gmra.mxu0 %v1614
        %v2134 = vpop.f32.mrf.mxu0
        %v2135 = vadd.f32 0.0, %v2134
        %v2136 = vpop.f32.mrf.mxu0
        %v2137 = vadd.f32 0.0, %v2136
        %2138 = vmatmul.bf16.gmra.mxu0 %v1615
        %v2139 = vpop.f32.mrf.mxu0
        %v2140 = vadd.f32 0.0, %v2139
        %v2141 = vpop.f32.mrf.mxu0
        %v2142 = vadd.f32 0.0, %v2141
        %2143 = vmatmul.bf16.gmra.mxu0 %v1616
        %v2144 = vpop.f32.mrf.mxu0
        %v2145 = vadd.f32 0.0, %v2144
        %v2146 = vpop.f32.mrf.mxu0
        %v2147 = vadd.f32 0.0, %v2146
        %2148 = vdwg.mxu0
        %2149 = vmatpush.bf16.msra.mxu0 %v1931
        %2150 = vmatpush.bf16.msra.mxu0 %v1923
        %2151 = vmatpush.bf16.msra.mxu0 %v1915
        %2152 = vmatpush.bf16.msra.mxu0 %v1907
        %2153 = vmatpush.bf16.msra.mxu0 %v1899
        %2154 = vmatpush.bf16.msra.mxu0 %v1891
        %2155 = vmatpush.bf16.msra.mxu0 %v1883
        %2156 = vmatpush.bf16.msra.mxu0 %v1875
        %2157 = vmatmul.bf16.gmra.mxu0 %v1604
        %v2158 = vpop.f32.mrf.mxu0
        %v2159 = vadd.f32 0.0, %v2158
        %v2160 = vpop.f32.mrf.mxu0
        %v2161 = vadd.f32 0.0, %v2160
        %2162 = vmatmul.bf16.gmra.mxu0 %v1605
        %v2163 = vpop.f32.mrf.mxu0
        %v2164 = vadd.f32 0.0, %v2163
        %v2165 = vpop.f32.mrf.mxu0
        %v2166 = vadd.f32 0.0, %v2165
        %2167 = vmatmul.bf16.gmra.mxu0 %v1606
        %v2168 = vpop.f32.mrf.mxu0
        %v2169 = vadd.f32 0.0, %v2168
        %v2170 = vpop.f32.mrf.mxu0
        %v2171 = vadd.f32 0.0, %v2170
        %2172 = vmatmul.bf16.gmra.mxu0 %v1607
        %v2173 = vpop.f32.mrf.mxu0
        %v2174 = vadd.f32 0.0, %v2173
        %v2175 = vpop.f32.mrf.mxu0
        %v2176 = vadd.f32 0.0, %v2175
        %2177 = vmatmul.bf16.gmra.mxu0 %v1608
        %v2178 = vpop.f32.mrf.mxu0
        %v2179 = vadd.f32 0.0, %v2178
        %v2180 = vpop.f32.mrf.mxu0
        %v2181 = vadd.f32 0.0, %v2180
        %2182 = vmatmul.bf16.gmra.mxu0 %v1609
        %v2183 = vpop.f32.mrf.mxu0
        %v2184 = vadd.f32 0.0, %v2183
        %v2185 = vpop.f32.mrf.mxu0
        %v2186 = vadd.f32 0.0, %v2185
        %2187 = vmatmul.bf16.gmra.mxu0 %v1610
        %v2188 = vpop.f32.mrf.mxu0
        %v2189 = vadd.f32 0.0, %v2188
        %v2190 = vpop.f32.mrf.mxu0
        %v2191 = vadd.f32 0.0, %v2190
        %2192 = vmatmul.bf16.gmra.mxu0 %v1611
        %v2193 = vpop.f32.mrf.mxu0
        %v2194 = vadd.f32 0.0, %v2193
        %v2195 = vpop.f32.mrf.mxu0
        %v2196 = vadd.f32 0.0, %v2195
        %2197 = vmatmul.bf16.gmra.mxu0 %v1612
        %v2198 = vpop.f32.mrf.mxu0
        %v2199 = vadd.f32 0.0, %v2198
        %v2200 = vpop.f32.mrf.mxu0
        %v2201 = vadd.f32 0.0, %v2200
        %2202 = vmatmul.bf16.gmra.mxu0 %v1613
        %v2203 = vpop.f32.mrf.mxu0
        %v2204 = vadd.f32 0.0, %v2203
        %v2205 = vpop.f32.mrf.mxu0
        %v2206 = vadd.f32 0.0, %v2205
        %2207 = vmatmul.bf16.gmra.mxu0 %v1614
        %v2208 = vpop.f32.mrf.mxu0
        %v2209 = vadd.f32 0.0, %v2208
        %v2210 = vpop.f32.mrf.mxu0
        %v2211 = vadd.f32 0.0, %v2210
        %2212 = vmatmul.bf16.gmra.mxu0 %v1615
        %v2213 = vpop.f32.mrf.mxu0
        %v2214 = vadd.f32 0.0, %v2213
        %v2215 = vpop.f32.mrf.mxu0
        %v2216 = vadd.f32 0.0, %v2215
        %2217 = vmatmul.bf16.gmra.mxu0 %v1616
        %v2218 = vpop.f32.mrf.mxu0
        %v2219 = vadd.f32 0.0, %v2218
        %v2220 = vpop.f32.mrf.mxu0
        %v2221 = vadd.f32 0.0, %v2220
        %2222 = vdwg.mxu0
        %2223 = vmatpush.bf16.msra.mxu0 %v1932
        %2224 = vmatpush.bf16.msra.mxu0 %v1924
        %2225 = vmatpush.bf16.msra.mxu0 %v1916
        %2226 = vmatpush.bf16.msra.mxu0 %v1908
        %2227 = vmatpush.bf16.msra.mxu0 %v1900
        %2228 = vmatpush.bf16.msra.mxu0 %v1892
        %2229 = vmatpush.bf16.msra.mxu0 %v1884
        %2230 = vmatpush.bf16.msra.mxu0 %v1876
        %2231 = vmatmul.bf16.gmra.mxu0 %v1604
        %v2232 = vpop.f32.mrf.mxu0
        %v2233 = vadd.f32 0.0, %v2232
        %v2234 = vpop.f32.mrf.mxu0
        %v2235 = vadd.f32 0.0, %v2234
        %2236 = vmatmul.bf16.gmra.mxu0 %v1605
        %v2237 = vpop.f32.mrf.mxu0
        %v2238 = vadd.f32 0.0, %v2237
        %v2239 = vpop.f32.mrf.mxu0
        %v2240 = vadd.f32 0.0, %v2239
        %2241 = vmatmul.bf16.gmra.mxu0 %v1606
        %v2242 = vpop.f32.mrf.mxu0
        %v2243 = vadd.f32 0.0, %v2242
        %v2244 = vpop.f32.mrf.mxu0
        %v2245 = vadd.f32 0.0, %v2244
        %2246 = vmatmul.bf16.gmra.mxu0 %v1607
        %v2247 = vpop.f32.mrf.mxu0
        %v2248 = vadd.f32 0.0, %v2247
        %v2249 = vpop.f32.mrf.mxu0
        %v2250 = vadd.f32 0.0, %v2249
        %2251 = vmatmul.bf16.gmra.mxu0 %v1608
        %v2252 = vpop.f32.mrf.mxu0
        %v2253 = vadd.f32 0.0, %v2252
        %v2254 = vpop.f32.mrf.mxu0
        %v2255 = vadd.f32 0.0, %v2254
        %2256 = vmatmul.bf16.gmra.mxu0 %v1609
        %v2257 = vpop.f32.mrf.mxu0
        %v2258 = vadd.f32 0.0, %v2257
        %v2259 = vpop.f32.mrf.mxu0
        %v2260 = vadd.f32 0.0, %v2259
        %2261 = vmatmul.bf16.gmra.mxu0 %v1610
        %v2262 = vpop.f32.mrf.mxu0
        %v2263 = vadd.f32 0.0, %v2262
        %v2264 = vpop.f32.mrf.mxu0
        %v2265 = vadd.f32 0.0, %v2264
        %2266 = vmatmul.bf16.gmra.mxu0 %v1611
        %v2267 = vpop.f32.mrf.mxu0
        %v2268 = vadd.f32 0.0, %v2267
        %v2269 = vpop.f32.mrf.mxu0
        %v2270 = vadd.f32 0.0, %v2269
        %2271 = vmatmul.bf16.gmra.mxu0 %v1612
        %v2272 = vpop.f32.mrf.mxu0
        %v2273 = vadd.f32 0.0, %v2272
        %v2274 = vpop.f32.mrf.mxu0
        %v2275 = vadd.f32 0.0, %v2274
        %2276 = vmatmul.bf16.gmra.mxu0 %v1613
        %v2277 = vpop.f32.mrf.mxu0
        %v2278 = vadd.f32 0.0, %v2277
        %v2279 = vpop.f32.mrf.mxu0
        %v2280 = vadd.f32 0.0, %v2279
        %2281 = vmatmul.bf16.gmra.mxu0 %v1614
        %v2282 = vpop.f32.mrf.mxu0
        %v2283 = vadd.f32 0.0, %v2282
        %v2284 = vpop.f32.mrf.mxu0
        %v2285 = vadd.f32 0.0, %v2284
        %2286 = vmatmul.bf16.gmra.mxu0 %v1615
        %v2287 = vpop.f32.mrf.mxu0
        %v2288 = vadd.f32 0.0, %v2287
        %v2289 = vpop.f32.mrf.mxu0
        %v2290 = vadd.f32 0.0, %v2289
        %2291 = vmatmul.bf16.gmra.mxu0 %v1616
        %v2292 = vpop.f32.mrf.mxu0
        %v2293 = vadd.f32 0.0, %v2292
        %v2294 = vpop.f32.mrf.mxu0
        %v2295 = vadd.f32 0.0, %v2294
        %2296 = vdwg.mxu0
        %2297 = vmatpush.bf16.msra.mxu0 %v1933
        %2298 = vmatpush.bf16.msra.mxu0 %v1925
        %2299 = vmatpush.bf16.msra.mxu0 %v1917
        %2300 = vmatpush.bf16.msra.mxu0 %v1909
        %2301 = vmatpush.bf16.msra.mxu0 %v1901
        %2302 = vmatpush.bf16.msra.mxu0 %v1893
        %2303 = vmatpush.bf16.msra.mxu0 %v1885
        %2304 = vmatpush.bf16.msra.mxu0 %v1877
        %2305 = vmatmul.bf16.gmra.mxu0 %v1604
        %v2306 = vpop.f32.mrf.mxu0
        %v2307 = vadd.f32 0.0, %v2306
        %v2308 = vpop.f32.mrf.mxu0
        %v2309 = vadd.f32 0.0, %v2308
        %2310 = vmatmul.bf16.gmra.mxu0 %v1605
        %v2311 = vpop.f32.mrf.mxu0
        %v2312 = vadd.f32 0.0, %v2311
        %v2313 = vpop.f32.mrf.mxu0
        %v2314 = vadd.f32 0.0, %v2313
        %2315 = vmatmul.bf16.gmra.mxu0 %v1606
        %v2316 = vpop.f32.mrf.mxu0
        %v2317 = vadd.f32 0.0, %v2316
        %v2318 = vpop.f32.mrf.mxu0
        %v2319 = vadd.f32 0.0, %v2318
        %2320 = vmatmul.bf16.gmra.mxu0 %v1607
        %v2321 = vpop.f32.mrf.mxu0
        %v2322 = vadd.f32 0.0, %v2321
        %v2323 = vpop.f32.mrf.mxu0
        %v2324 = vadd.f32 0.0, %v2323
        %2325 = vmatmul.bf16.gmra.mxu0 %v1608
        %v2326 = vpop.f32.mrf.mxu0
        %v2327 = vadd.f32 0.0, %v2326
        %v2328 = vpop.f32.mrf.mxu0
        %v2329 = vadd.f32 0.0, %v2328
        %2330 = vmatmul.bf16.gmra.mxu0 %v1609
        %v2331 = vpop.f32.mrf.mxu0
        %v2332 = vadd.f32 0.0, %v2331
        %v2333 = vpop.f32.mrf.mxu0
        %v2334 = vadd.f32 0.0, %v2333
        %2335 = vmatmul.bf16.gmra.mxu0 %v1610
        %v2336 = vpop.f32.mrf.mxu0
        %v2337 = vadd.f32 0.0, %v2336
        %v2338 = vpop.f32.mrf.mxu0
        %v2339 = vadd.f32 0.0, %v2338
        %2340 = vmatmul.bf16.gmra.mxu0 %v1611
        %v2341 = vpop.f32.mrf.mxu0
        %v2342 = vadd.f32 0.0, %v2341
        %v2343 = vpop.f32.mrf.mxu0
        %v2344 = vadd.f32 0.0, %v2343
        %2345 = vmatmul.bf16.gmra.mxu0 %v1612
        %v2346 = vpop.f32.mrf.mxu0
        %v2347 = vadd.f32 0.0, %v2346
        %v2348 = vpop.f32.mrf.mxu0
        %v2349 = vadd.f32 0.0, %v2348
        %2350 = vmatmul.bf16.gmra.mxu0 %v1613
        %v2351 = vpop.f32.mrf.mxu0
        %v2352 = vadd.f32 0.0, %v2351
        %v2353 = vpop.f32.mrf.mxu0
        %v2354 = vadd.f32 0.0, %v2353
        %2355 = vmatmul.bf16.gmra.mxu0 %v1614
        %v2356 = vpop.f32.mrf.mxu0
        %v2357 = vadd.f32 0.0, %v2356
        %v2358 = vpop.f32.mrf.mxu0
        %v2359 = vadd.f32 0.0, %v2358
        %2360 = vmatmul.bf16.gmra.mxu0 %v1615
        %v2361 = vpop.f32.mrf.mxu0
        %v2362 = vadd.f32 0.0, %v2361
        %v2363 = vpop.f32.mrf.mxu0
        %v2364 = vadd.f32 0.0, %v2363
        %2365 = vmatmul.bf16.gmra.mxu0 %v1616
        %v2366 = vpop.f32.mrf.mxu0
        %v2367 = vadd.f32 0.0, %v2366
        %v2368 = vpop.f32.mrf.mxu0
        %v2369 = vadd.f32 0.0, %v2368
        %2370 = vdwg.mxu0
        %2371 = vmatpush.bf16.msra.mxu0 %v1934
        %2372 = vmatpush.bf16.msra.mxu0 %v1926
        %2373 = vmatpush.bf16.msra.mxu0 %v1918
        %2374 = vmatpush.bf16.msra.mxu0 %v1910
        %2375 = vmatpush.bf16.msra.mxu0 %v1902
        %2376 = vmatpush.bf16.msra.mxu0 %v1894
        %2377 = vmatpush.bf16.msra.mxu0 %v1886
        %2378 = vmatpush.bf16.msra.mxu0 %v1878
        %2379 = vmatmul.bf16.gmra.mxu0 %v1604
        %v2380 = vpop.f32.mrf.mxu0
        %v2381 = vadd.f32 0.0, %v2380
        %v2382 = vpop.f32.mrf.mxu0
        %v2383 = vadd.f32 0.0, %v2382
        %2384 = vmatmul.bf16.gmra.mxu0 %v1605
        %v2385 = vpop.f32.mrf.mxu0
        %v2386 = vadd.f32 0.0, %v2385
        %v2387 = vpop.f32.mrf.mxu0
        %v2388 = vadd.f32 0.0, %v2387
        %2389 = vmatmul.bf16.gmra.mxu0 %v1606
        %v2390 = vpop.f32.mrf.mxu0
        %v2391 = vadd.f32 0.0, %v2390
        %v2392 = vpop.f32.mrf.mxu0
        %v2393 = vadd.f32 0.0, %v2392
        %2394 = vmatmul.bf16.gmra.mxu0 %v1607
        %v2395 = vpop.f32.mrf.mxu0
        %v2396 = vadd.f32 0.0, %v2395
        %v2397 = vpop.f32.mrf.mxu0
        %v2398 = vadd.f32 0.0, %v2397
        %2399 = vmatmul.bf16.gmra.mxu0 %v1608
        %v2400 = vpop.f32.mrf.mxu0
        %v2401 = vadd.f32 0.0, %v2400
        %v2402 = vpop.f32.mrf.mxu0
        %v2403 = vadd.f32 0.0, %v2402
        %2404 = vmatmul.bf16.gmra.mxu0 %v1609
        %v2405 = vpop.f32.mrf.mxu0
        %v2406 = vadd.f32 0.0, %v2405
        %v2407 = vpop.f32.mrf.mxu0
        %v2408 = vadd.f32 0.0, %v2407
        %2409 = vmatmul.bf16.gmra.mxu0 %v1610
        %v2410 = vpop.f32.mrf.mxu0
        %v2411 = vadd.f32 0.0, %v2410
        %v2412 = vpop.f32.mrf.mxu0
        %v2413 = vadd.f32 0.0, %v2412
        %2414 = vmatmul.bf16.gmra.mxu0 %v1611
        %v2415 = vpop.f32.mrf.mxu0
        %v2416 = vadd.f32 0.0, %v2415
        %v2417 = vpop.f32.mrf.mxu0
        %v2418 = vadd.f32 0.0, %v2417
        %2419 = vmatmul.bf16.gmra.mxu0 %v1612
        %v2420 = vpop.f32.mrf.mxu0
        %v2421 = vadd.f32 0.0, %v2420
        %v2422 = vpop.f32.mrf.mxu0
        %v2423 = vadd.f32 0.0, %v2422
        %2424 = vmatmul.bf16.gmra.mxu0 %v1613
        %v2425 = vpop.f32.mrf.mxu0
        %v2426 = vadd.f32 0.0, %v2425
        %v2427 = vpop.f32.mrf.mxu0
        %v2428 = vadd.f32 0.0, %v2427
        %2429 = vmatmul.bf16.gmra.mxu0 %v1614
        %v2430 = vpop.f32.mrf.mxu0
        %v2431 = vadd.f32 0.0, %v2430
        %v2432 = vpop.f32.mrf.mxu0
        %v2433 = vadd.f32 0.0, %v2432
        %2434 = vmatmul.bf16.gmra.mxu0 %v1615
        %v2435 = vpop.f32.mrf.mxu0
        %v2436 = vadd.f32 0.0, %v2435
        %v2437 = vpop.f32.mrf.mxu0
        %v2438 = vadd.f32 0.0, %v2437
        %2439 = vmatmul.bf16.gmra.mxu0 %v1616
        %v2440 = vpop.f32.mrf.mxu0
        %v2441 = vadd.f32 0.0, %v2440
        %v2442 = vpop.f32.mrf.mxu0
        %v2443 = vadd.f32 0.0, %v2442
        %2444 = vdwg.mxu0
        %2445 = vmatpush.bf16.msra.mxu0 %v1935
        %2446 = vmatpush.bf16.msra.mxu0 %v1927
        %2447 = vmatpush.bf16.msra.mxu0 %v1919
        %2448 = vmatpush.bf16.msra.mxu0 %v1911
        %2449 = vmatpush.bf16.msra.mxu0 %v1903
        %2450 = vmatpush.bf16.msra.mxu0 %v1895
        %2451 = vmatpush.bf16.msra.mxu0 %v1887
        %2452 = vmatpush.bf16.msra.mxu0 %v1879
        %2453 = vmatmul.bf16.gmra.mxu0 %v1604
        %v2454 = vpop.f32.mrf.mxu0
        %v2455 = vadd.f32 0.0, %v2454
        %v2456 = vpop.f32.mrf.mxu0
        %v2457 = vadd.f32 0.0, %v2456
        %2458 = vmatmul.bf16.gmra.mxu0 %v1605
        %v2459 = vpop.f32.mrf.mxu0
        %v2460 = vadd.f32 0.0, %v2459
        %v2461 = vpop.f32.mrf.mxu0
        %v2462 = vadd.f32 0.0, %v2461
        %2463 = vmatmul.bf16.gmra.mxu0 %v1606
        %v2464 = vpop.f32.mrf.mxu0
        %v2465 = vadd.f32 0.0, %v2464
        %v2466 = vpop.f32.mrf.mxu0
        %v2467 = vadd.f32 0.0, %v2466
        %2468 = vmatmul.bf16.gmra.mxu0 %v1607
        %v2469 = vpop.f32.mrf.mxu0
        %v2470 = vadd.f32 0.0, %v2469
        %v2471 = vpop.f32.mrf.mxu0
        %v2472 = vadd.f32 0.0, %v2471
        %2473 = vmatmul.bf16.gmra.mxu0 %v1608
        %v2474 = vpop.f32.mrf.mxu0
        %v2475 = vadd.f32 0.0, %v2474
        %v2476 = vpop.f32.mrf.mxu0
        %v2477 = vadd.f32 0.0, %v2476
        %2478 = vmatmul.bf16.gmra.mxu0 %v1609
        %v2479 = vpop.f32.mrf.mxu0
        %v2480 = vadd.f32 0.0, %v2479
        %v2481 = vpop.f32.mrf.mxu0
        %v2482 = vadd.f32 0.0, %v2481
        %2483 = vmatmul.bf16.gmra.mxu0 %v1610
        %v2484 = vpop.f32.mrf.mxu0
        %v2485 = vadd.f32 0.0, %v2484
        %v2486 = vpop.f32.mrf.mxu0
        %v2487 = vadd.f32 0.0, %v2486
        %2488 = vmatmul.bf16.gmra.mxu0 %v1611
        %v2489 = vpop.f32.mrf.mxu0
        %v2490 = vadd.f32 0.0, %v2489
        %v2491 = vpop.f32.mrf.mxu0
        %v2492 = vadd.f32 0.0, %v2491
        %2493 = vmatmul.bf16.gmra.mxu0 %v1612
        %v2494 = vpop.f32.mrf.mxu0
        %v2495 = vadd.f32 0.0, %v2494
        %v2496 = vpop.f32.mrf.mxu0
        %v2497 = vadd.f32 0.0, %v2496
        %2498 = vmatmul.bf16.gmra.mxu0 %v1613
        %v2499 = vpop.f32.mrf.mxu0
        %v2500 = vadd.f32 0.0, %v2499
        %v2501 = vpop.f32.mrf.mxu0
        %v2502 = vadd.f32 0.0, %v2501
        %2503 = vmatmul.bf16.gmra.mxu0 %v1614
        %v2504 = vpop.f32.mrf.mxu0
        %v2505 = vadd.f32 0.0, %v2504
        %v2506 = vpop.f32.mrf.mxu0
        %v2507 = vadd.f32 0.0, %v2506
        %2508 = vmatmul.bf16.gmra.mxu0 %v1615
        %v2509 = vpop.f32.mrf.mxu0
        %v2510 = vadd.f32 0.0, %v2509
        %v2511 = vpop.f32.mrf.mxu0
        %v2512 = vadd.f32 0.0, %v2511
        %2513 = vmatmul.bf16.gmra.mxu0 %v1616
        %v2514 = vpop.f32.mrf.mxu0
        %v2515 = vadd.f32 0.0, %v2514
        %v2516 = vpop.f32.mrf.mxu0
        %v2517 = vadd.f32 0.0, %v2516
        %2518 = vdwg.mxu0
        %2519 = vmatpush.bf16.msra.mxu0 %v1936
        %2520 = vmatpush.bf16.msra.mxu0 %v1928
        %2521 = vmatpush.bf16.msra.mxu0 %v1920
        %2522 = vmatpush.bf16.msra.mxu0 %v1912
        %2523 = vmatpush.bf16.msra.mxu0 %v1904
        %2524 = vmatpush.bf16.msra.mxu0 %v1896
        %2525 = vmatpush.bf16.msra.mxu0 %v1888
        %2526 = vmatpush.bf16.msra.mxu0 %v1880
        %2527 = vmatmul.bf16.gmra.mxu0 %v1604
        %v2528 = vpop.f32.mrf.mxu0
        %v2529 = vadd.f32 0.0, %v2528
        %v2530 = vpop.f32.mrf.mxu0
        %v2531 = vadd.f32 0.0, %v2530
        %2532 = vmatmul.bf16.gmra.mxu0 %v1605
        %v2533 = vpop.f32.mrf.mxu0
        %v2534 = vadd.f32 0.0, %v2533
        %v2535 = vpop.f32.mrf.mxu0
        %v2536 = vadd.f32 0.0, %v2535
        %2537 = vmatmul.bf16.gmra.mxu0 %v1606
        %v2538 = vpop.f32.mrf.mxu0
        %v2539 = vadd.f32 0.0, %v2538
        %v2540 = vpop.f32.mrf.mxu0
        %v2541 = vadd.f32 0.0, %v2540
        %2542 = vmatmul.bf16.gmra.mxu0 %v1607
        %v2543 = vpop.f32.mrf.mxu0
        %v2544 = vadd.f32 0.0, %v2543
        %v2545 = vpop.f32.mrf.mxu0
        %v2546 = vadd.f32 0.0, %v2545
        %2547 = vmatmul.bf16.gmra.mxu0 %v1608
        %v2548 = vpop.f32.mrf.mxu0
        %v2549 = vadd.f32 0.0, %v2548
        %v2550 = vpop.f32.mrf.mxu0
        %v2551 = vadd.f32 0.0, %v2550
        %2552 = vmatmul.bf16.gmra.mxu0 %v1609
        %v2553 = vpop.f32.mrf.mxu0
        %v2554 = vadd.f32 0.0, %v2553
        %v2555 = vpop.f32.mrf.mxu0
        %v2556 = vadd.f32 0.0, %v2555
        %2557 = vmatmul.bf16.gmra.mxu0 %v1610
        %v2558 = vpop.f32.mrf.mxu0
        %v2559 = vadd.f32 0.0, %v2558
        %v2560 = vpop.f32.mrf.mxu0
        %v2561 = vadd.f32 0.0, %v2560
        %2562 = vmatmul.bf16.gmra.mxu0 %v1611
        %v2563 = vpop.f32.mrf.mxu0
        %v2564 = vadd.f32 0.0, %v2563
        %v2565 = vpop.f32.mrf.mxu0
        %v2566 = vadd.f32 0.0, %v2565
        %2567 = vmatmul.bf16.gmra.mxu0 %v1612
        %v2568 = vpop.f32.mrf.mxu0
        %v2569 = vadd.f32 0.0, %v2568
        %v2570 = vpop.f32.mrf.mxu0
        %v2571 = vadd.f32 0.0, %v2570
        %2572 = vmatmul.bf16.gmra.mxu0 %v1613
        %v2573 = vpop.f32.mrf.mxu0
        %v2574 = vadd.f32 0.0, %v2573
        %v2575 = vpop.f32.mrf.mxu0
        %v2576 = vadd.f32 0.0, %v2575
        %2577 = vmatmul.bf16.gmra.mxu0 %v1614
        %v2578 = vpop.f32.mrf.mxu0
        %v2579 = vadd.f32 0.0, %v2578
        %v2580 = vpop.f32.mrf.mxu0
        %v2581 = vadd.f32 0.0, %v2580
        %2582 = vmatmul.bf16.gmra.mxu0 %v1615
        %v2583 = vpop.f32.mrf.mxu0
        %v2584 = vadd.f32 0.0, %v2583
        %v2585 = vpop.f32.mrf.mxu0
        %v2586 = vadd.f32 0.0, %v2585
        %2587 = vmatmul.bf16.gmra.mxu0 %v1616
        %v2588 = vpop.f32.mrf.mxu0
        %v2589 = vadd.f32 0.0, %v2588
        %v2590 = vpop.f32.mrf.mxu0
        %v2591 = vadd.f32 0.0, %v2590
        %2592 = vdwg.mxu0
        %v2593 = vld [vmem:[%s10] ss:$2 sm:$0xff]
        %s2594 = scalar_lea.vmem %s10, 1
        %v2595 = vld [vmem:[%s2594] ss:$2 sm:$0xff]
        %2596 = vmatpush.msra.mxu0 %v2048
        %2597 = vmatpush.msra.mxu0 %v2046
        %2598 = vmatpush.msra.mxu0 %v2043
        %2599 = vmatpush.msra.mxu0 %v2041
        %2600 = vmatpush.msra.mxu0 %v2038
        %2601 = vmatpush.msra.mxu0 %v2036
        %2602 = vmatpush.msra.mxu0 %v2033
        %2603 = vmatpush.msra.mxu0 %v2031
        %2604 = vmatpush.msra.mxu0 %v2028
        %2605 = vmatpush.msra.mxu0 %v2026
        %2606 = vmatpush.msra.mxu0 %v2023
        %2607 = vmatpush.msra.mxu0 %v2021
        %2608 = vmatpush.msra.mxu0 %v2018
        %2609 = vmatpush.msra.mxu0 %v2016
        %2610 = vmatpush.msra.mxu0 %v2013
        %2611 = vmatpush.msra.mxu0 %v2011
        %2612 = vmatmul.f32.gmra.mxu0 %v1004
        %v2613 = vpop.f32.mrf.mxu0
        %v2614 = vadd.f32 0.0, %v2613
        %2615 = vdwg.mxu0
        %2616 = vmatpush.msra.mxu0 0.0
        %2617 = vmatpush.msra.mxu0 0.0
        %2618 = vmatpush.msra.mxu0 0.0
        %2619 = vmatpush.msra.mxu0 0.0
        %2620 = vmatpush.msra.mxu0 0.0
        %2621 = vmatpush.msra.mxu0 0.0
        %2622 = vmatpush.msra.mxu0 %v2073
        %2623 = vmatpush.msra.mxu0 %v2071
        %2624 = vmatpush.msra.mxu0 %v2068
        %2625 = vmatpush.msra.mxu0 %v2066
        %2626 = vmatpush.msra.mxu0 %v2063
        %2627 = vmatpush.msra.mxu0 %v2061
        %2628 = vmatpush.msra.mxu0 %v2058
        %2629 = vmatpush.msra.mxu0 %v2056
        %2630 = vmatpush.msra.mxu0 %v2053
        %2631 = vmatpush.msra.mxu0 %v2051
        %2632 = vmatmul.f32.gmra.mxu0 %v1008
        %v2633 = vpop.f32.mrf.mxu0
        %v2634 = vadd.f32 %v2614, %v2633
        %2635 = vdwg.mxu0
        %2636 = vmatpush.msra.mxu0 %v2122
        %2637 = vmatpush.msra.mxu0 %v2120
        %2638 = vmatpush.msra.mxu0 %v2117
        %2639 = vmatpush.msra.mxu0 %v2115
        %2640 = vmatpush.msra.mxu0 %v2112
        %2641 = vmatpush.msra.mxu0 %v2110
        %2642 = vmatpush.msra.mxu0 %v2107
        %2643 = vmatpush.msra.mxu0 %v2105
        %2644 = vmatpush.msra.mxu0 %v2102
        %2645 = vmatpush.msra.mxu0 %v2100
        %2646 = vmatpush.msra.mxu0 %v2097
        %2647 = vmatpush.msra.mxu0 %v2095
        %2648 = vmatpush.msra.mxu0 %v2092
        %2649 = vmatpush.msra.mxu0 %v2090
        %2650 = vmatpush.msra.mxu0 %v2087
        %2651 = vmatpush.msra.mxu0 %v2085
        %2652 = vmatmul.f32.gmra.mxu0 %v1004
        %v2653 = vpop.f32.mrf.mxu0
        %v2654 = vadd.f32 0.0, %v2653
        %2655 = vdwg.mxu0
        %2656 = vmatpush.msra.mxu0 0.0
        %2657 = vmatpush.msra.mxu0 0.0
        %2658 = vmatpush.msra.mxu0 0.0
        %2659 = vmatpush.msra.mxu0 0.0
        %2660 = vmatpush.msra.mxu0 0.0
        %2661 = vmatpush.msra.mxu0 0.0
        %2662 = vmatpush.msra.mxu0 %v2147
        %2663 = vmatpush.msra.mxu0 %v2145
        %2664 = vmatpush.msra.mxu0 %v2142
        %2665 = vmatpush.msra.mxu0 %v2140
        %2666 = vmatpush.msra.mxu0 %v2137
        %2667 = vmatpush.msra.mxu0 %v2135
        %2668 = vmatpush.msra.mxu0 %v2132
        %2669 = vmatpush.msra.mxu0 %v2130
        %2670 = vmatpush.msra.mxu0 %v2127
        %2671 = vmatpush.msra.mxu0 %v2125
        %2672 = vmatmul.f32.gmra.mxu0 %v1008
        %v2673 = vpop.f32.mrf.mxu0
        %v2674 = vadd.f32 %v2654, %v2673
        %2675 = vdwg.mxu0
        %2676 = vmatpush.msra.mxu0 %v2196
        %2677 = vmatpush.msra.mxu0 %v2194
        %2678 = vmatpush.msra.mxu0 %v2191
        %2679 = vmatpush.msra.mxu0 %v2189
        %2680 = vmatpush.msra.mxu0 %v2186
        %2681 = vmatpush.msra.mxu0 %v2184
        %2682 = vmatpush.msra.mxu0 %v2181
        %2683 = vmatpush.msra.mxu0 %v2179
        %2684 = vmatpush.msra.mxu0 %v2176
        %2685 = vmatpush.msra.mxu0 %v2174
        %2686 = vmatpush.msra.mxu0 %v2171
        %2687 = vmatpush.msra.mxu0 %v2169
        %2688 = vmatpush.msra.mxu0 %v2166
        %2689 = vmatpush.msra.mxu0 %v2164
        %2690 = vmatpush.msra.mxu0 %v2161
        %2691 = vmatpush.msra.mxu0 %v2159
        %2692 = vmatmul.f32.gmra.mxu0 %v1004
        %v2693 = vpop.f32.mrf.mxu0
        %v2694 = vadd.f32 0.0, %v2693
        %2695 = vdwg.mxu0
        %2696 = vmatpush.msra.mxu0 0.0
        %2697 = vmatpush.msra.mxu0 0.0
        %2698 = vmatpush.msra.mxu0 0.0
        %2699 = vmatpush.msra.mxu0 0.0
        %2700 = vmatpush.msra.mxu0 0.0
        %2701 = vmatpush.msra.mxu0 0.0
        %2702 = vmatpush.msra.mxu0 %v2221
        %2703 = vmatpush.msra.mxu0 %v2219
        %2704 = vmatpush.msra.mxu0 %v2216
        %2705 = vmatpush.msra.mxu0 %v2214
        %2706 = vmatpush.msra.mxu0 %v2211
        %2707 = vmatpush.msra.mxu0 %v2209
        %2708 = vmatpush.msra.mxu0 %v2206
        %2709 = vmatpush.msra.mxu0 %v2204
        %2710 = vmatpush.msra.mxu0 %v2201
        %2711 = vmatpush.msra.mxu0 %v2199
        %2712 = vmatmul.f32.gmra.mxu0 %v1008
        %v2713 = vpop.f32.mrf.mxu0
        %v2714 = vadd.f32 %v2694, %v2713
        %2715 = vdwg.mxu0
        %2716 = vmatpush.msra.mxu0 %v2270
        %2717 = vmatpush.msra.mxu0 %v2268
        %2718 = vmatpush.msra.mxu0 %v2265
        %2719 = vmatpush.msra.mxu0 %v2263
        %2720 = vmatpush.msra.mxu0 %v2260
        %2721 = vmatpush.msra.mxu0 %v2258
        %2722 = vmatpush.msra.mxu0 %v2255
        %2723 = vmatpush.msra.mxu0 %v2253
        %2724 = vmatpush.msra.mxu0 %v2250
        %2725 = vmatpush.msra.mxu0 %v2248
        %2726 = vmatpush.msra.mxu0 %v2245
        %2727 = vmatpush.msra.mxu0 %v2243
        %2728 = vmatpush.msra.mxu0 %v2240
        %2729 = vmatpush.msra.mxu0 %v2238
        %2730 = vmatpush.msra.mxu0 %v2235
        %2731 = vmatpush.msra.mxu0 %v2233
        %2732 = vmatmul.f32.gmra.mxu0 %v1004
        %v2733 = vpop.f32.mrf.mxu0
        %v2734 = vadd.f32 0.0, %v2733
        %2735 = vdwg.mxu0
        %2736 = vmatpush.msra.mxu0 0.0
        %2737 = vmatpush.msra.mxu0 0.0
        %2738 = vmatpush.msra.mxu0 0.0
        %2739 = vmatpush.msra.mxu0 0.0
        %2740 = vmatpush.msra.mxu0 0.0
        %2741 = vmatpush.msra.mxu0 0.0
        %2742 = vmatpush.msra.mxu0 %v2295
        %2743 = vmatpush.msra.mxu0 %v2293
        %2744 = vmatpush.msra.mxu0 %v2290
        %2745 = vmatpush.msra.mxu0 %v2288
        %2746 = vmatpush.msra.mxu0 %v2285
        %2747 = vmatpush.msra.mxu0 %v2283
        %2748 = vmatpush.msra.mxu0 %v2280
        %2749 = vmatpush.msra.mxu0 %v2278
        %2750 = vmatpush.msra.mxu0 %v2275
        %2751 = vmatpush.msra.mxu0 %v2273
        %2752 = vmatmul.f32.gmra.mxu0 %v1008
        %v2753 = vpop.f32.mrf.mxu0
        %v2754 = vadd.f32 %v2734, %v2753
        %2755 = vdwg.mxu0
        %2756 = vmatpush.msra.mxu0 %v2344
        %2757 = vmatpush.msra.mxu0 %v2342
        %2758 = vmatpush.msra.mxu0 %v2339
        %2759 = vmatpush.msra.mxu0 %v2337
        %2760 = vmatpush.msra.mxu0 %v2334
        %2761 = vmatpush.msra.mxu0 %v2332
        %2762 = vmatpush.msra.mxu0 %v2329
        %2763 = vmatpush.msra.mxu0 %v2327
        %2764 = vmatpush.msra.mxu0 %v2324
        %2765 = vmatpush.msra.mxu0 %v2322
        %2766 = vmatpush.msra.mxu0 %v2319
        %2767 = vmatpush.msra.mxu0 %v2317
        %2768 = vmatpush.msra.mxu0 %v2314
        %2769 = vmatpush.msra.mxu0 %v2312
        %2770 = vmatpush.msra.mxu0 %v2309
        %2771 = vmatpush.msra.mxu0 %v2307
        %2772 = vmatmul.f32.gmra.mxu0 %v1004
        %v2773 = vpop.f32.mrf.mxu0
        %v2774 = vadd.f32 0.0, %v2773
        %2775 = vdwg.mxu0
        %2776 = vmatpush.msra.mxu0 0.0
        %2777 = vmatpush.msra.mxu0 0.0
        %2778 = vmatpush.msra.mxu0 0.0
        %2779 = vmatpush.msra.mxu0 0.0
        %2780 = vmatpush.msra.mxu0 0.0
        %2781 = vmatpush.msra.mxu0 0.0
        %2782 = vmatpush.msra.mxu0 %v2369
        %2783 = vmatpush.msra.mxu0 %v2367
        %2784 = vmatpush.msra.mxu0 %v2364
        %2785 = vmatpush.msra.mxu0 %v2362
        %2786 = vmatpush.msra.mxu0 %v2359
        %2787 = vmatpush.msra.mxu0 %v2357
        %2788 = vmatpush.msra.mxu0 %v2354
        %2789 = vmatpush.msra.mxu0 %v2352
        %2790 = vmatpush.msra.mxu0 %v2349
        %2791 = vmatpush.msra.mxu0 %v2347
        %2792 = vmatmul.f32.gmra.mxu0 %v1008
        %v2793 = vpop.f32.mrf.mxu0
        %v2794 = vadd.f32 %v2774, %v2793
        %2795 = vdwg.mxu0
        %2796 = vmatpush.msra.mxu0 %v2418
        %2797 = vmatpush.msra.mxu0 %v2416
        %2798 = vmatpush.msra.mxu0 %v2413
        %2799 = vmatpush.msra.mxu0 %v2411
        %2800 = vmatpush.msra.mxu0 %v2408
        %2801 = vmatpush.msra.mxu0 %v2406
        %2802 = vmatpush.msra.mxu0 %v2403
        %2803 = vmatpush.msra.mxu0 %v2401
        %2804 = vmatpush.msra.mxu0 %v2398
        %2805 = vmatpush.msra.mxu0 %v2396
        %2806 = vmatpush.msra.mxu0 %v2393
        %2807 = vmatpush.msra.mxu0 %v2391
        %2808 = vmatpush.msra.mxu0 %v2388
        %2809 = vmatpush.msra.mxu0 %v2386
        %2810 = vmatpush.msra.mxu0 %v2383
        %2811 = vmatpush.msra.mxu0 %v2381
        %2812 = vmatmul.f32.gmra.mxu0 %v1004
        %v2813 = vpop.f32.mrf.mxu0
        %v2814 = vadd.f32 0.0, %v2813
        %2815 = vdwg.mxu0
        %2816 = vmatpush.msra.mxu0 0.0
        %2817 = vmatpush.msra.mxu0 0.0
        %2818 = vmatpush.msra.mxu0 0.0
        %2819 = vmatpush.msra.mxu0 0.0
        %2820 = vmatpush.msra.mxu0 0.0
        %2821 = vmatpush.msra.mxu0 0.0
        %2822 = vmatpush.msra.mxu0 %v2443
        %2823 = vmatpush.msra.mxu0 %v2441
        %2824 = vmatpush.msra.mxu0 %v2438
        %2825 = vmatpush.msra.mxu0 %v2436
        %2826 = vmatpush.msra.mxu0 %v2433
        %2827 = vmatpush.msra.mxu0 %v2431
        %2828 = vmatpush.msra.mxu0 %v2428
        %2829 = vmatpush.msra.mxu0 %v2426
        %2830 = vmatpush.msra.mxu0 %v2423
        %2831 = vmatpush.msra.mxu0 %v2421
        %2832 = vmatmul.f32.gmra.mxu0 %v1008
        %v2833 = vpop.f32.mrf.mxu0
        %v2834 = vadd.f32 %v2814, %v2833
        %2835 = vdwg.mxu0
        %2836 = vmatpush.msra.mxu0 %v2492
        %2837 = vmatpush.msra.mxu0 %v2490
        %2838 = vmatpush.msra.mxu0 %v2487
        %2839 = vmatpush.msra.mxu0 %v2485
        %2840 = vmatpush.msra.mxu0 %v2482
        %2841 = vmatpush.msra.mxu0 %v2480
        %2842 = vmatpush.msra.mxu0 %v2477
        %2843 = vmatpush.msra.mxu0 %v2475
        %2844 = vmatpush.msra.mxu0 %v2472
        %2845 = vmatpush.msra.mxu0 %v2470
        %2846 = vmatpush.msra.mxu0 %v2467
        %2847 = vmatpush.msra.mxu0 %v2465
        %2848 = vmatpush.msra.mxu0 %v2462
        %2849 = vmatpush.msra.mxu0 %v2460
        %2850 = vmatpush.msra.mxu0 %v2457
        %2851 = vmatpush.msra.mxu0 %v2455
        %2852 = vmatmul.f32.gmra.mxu0 %v1004
        %v2853 = vpop.f32.mrf.mxu0
        %v2854 = vadd.f32 0.0, %v2853
        %2855 = vdwg.mxu0
        %2856 = vmatpush.msra.mxu0 0.0
        %2857 = vmatpush.msra.mxu0 0.0
        %2858 = vmatpush.msra.mxu0 0.0
        %2859 = vmatpush.msra.mxu0 0.0
        %2860 = vmatpush.msra.mxu0 0.0
        %2861 = vmatpush.msra.mxu0 0.0
        %2862 = vmatpush.msra.mxu0 %v2517
        %2863 = vmatpush.msra.mxu0 %v2515
        %2864 = vmatpush.msra.mxu0 %v2512
        %2865 = vmatpush.msra.mxu0 %v2510
        %2866 = vmatpush.msra.mxu0 %v2507
        %2867 = vmatpush.msra.mxu0 %v2505
        %2868 = vmatpush.msra.mxu0 %v2502
        %2869 = vmatpush.msra.mxu0 %v2500
        %2870 = vmatpush.msra.mxu0 %v2497
        %2871 = vmatpush.msra.mxu0 %v2495
        %2872 = vmatmul.f32.gmra.mxu0 %v1008
        %v2873 = vpop.f32.mrf.mxu0
        %v2874 = vadd.f32 %v2854, %v2873
        %2875 = vdwg.mxu0
        %2876 = vmatpush.msra.mxu0 %v2566
        %2877 = vmatpush.msra.mxu0 %v2564
        %2878 = vmatpush.msra.mxu0 %v2561
        %2879 = vmatpush.msra.mxu0 %v2559
        %2880 = vmatpush.msra.mxu0 %v2556
        %2881 = vmatpush.msra.mxu0 %v2554
        %2882 = vmatpush.msra.mxu0 %v2551
        %2883 = vmatpush.msra.mxu0 %v2549
        %2884 = vmatpush.msra.mxu0 %v2546
        %2885 = vmatpush.msra.mxu0 %v2544
        %2886 = vmatpush.msra.mxu0 %v2541
        %2887 = vmatpush.msra.mxu0 %v2539
        %2888 = vmatpush.msra.mxu0 %v2536
        %2889 = vmatpush.msra.mxu0 %v2534
        %2890 = vmatpush.msra.mxu0 %v2531
        %2891 = vmatpush.msra.mxu0 %v2529
        %2892 = vmatmul.f32.gmra.mxu0 %v1004
        %v2893 = vpop.f32.mrf.mxu0
        %v2894 = vadd.f32 0.0, %v2893
        %2895 = vdwg.mxu0
        %2896 = vmatpush.msra.mxu0 0.0
        %2897 = vmatpush.msra.mxu0 0.0
        %2898 = vmatpush.msra.mxu0 0.0
        %2899 = vmatpush.msra.mxu0 0.0
        %2900 = vmatpush.msra.mxu0 0.0
        %2901 = vmatpush.msra.mxu0 0.0
        %2902 = vmatpush.msra.mxu0 %v2591
        %2903 = vmatpush.msra.mxu0 %v2589
        %2904 = vmatpush.msra.mxu0 %v2586
        %2905 = vmatpush.msra.mxu0 %v2584
        %2906 = vmatpush.msra.mxu0 %v2581
        %2907 = vmatpush.msra.mxu0 %v2579
        %2908 = vmatpush.msra.mxu0 %v2576
        %2909 = vmatpush.msra.mxu0 %v2574
        %2910 = vmatpush.msra.mxu0 %v2571
        %2911 = vmatpush.msra.mxu0 %v2569
        %2912 = vmatmul.f32.gmra.mxu0 %v1008
        %v2913 = vpop.f32.mrf.mxu0
        %v2914 = vadd.f32 %v2894, %v2913
        %2915 = vdwg.mxu0
        %v2916 = vmul.f32 %v2011, %v2011
        %v2917 = vmul.f32 %v2085, %v2085
        %v2918 = vmul.f32 %v2159, %v2159
        %v2919 = vmul.f32 %v2233, %v2233
        %v2920 = vmul.f32 %v2307, %v2307
        %v2921 = vmul.f32 %v2381, %v2381
        %v2922 = vmul.f32 %v2455, %v2455
        %v2923 = vmul.f32 %v2529, %v2529
        %v2924 = vmul.f32 %v2013, %v2013
        %v2925 = vmul.f32 %v2087, %v2087
        %v2926 = vmul.f32 %v2161, %v2161
        %v2927 = vmul.f32 %v2235, %v2235
        %v2928 = vmul.f32 %v2309, %v2309
        %v2929 = vmul.f32 %v2383, %v2383
        %v2930 = vmul.f32 %v2457, %v2457
        %v2931 = vmul.f32 %v2531, %v2531
        %v2932 = vmul.f32 %v2016, %v2016
        %v2933 = vmul.f32 %v2090, %v2090
        %v2934 = vmul.f32 %v2164, %v2164
        %v2935 = vmul.f32 %v2238, %v2238
        %v2936 = vmul.f32 %v2312, %v2312
        %v2937 = vmul.f32 %v2386, %v2386
        %v2938 = vmul.f32 %v2460, %v2460
        %v2939 = vmul.f32 %v2534, %v2534
        %v2940 = vmul.f32 %v2018, %v2018
        %v2941 = vmul.f32 %v2092, %v2092
        %v2942 = vmul.f32 %v2166, %v2166
        %v2943 = vmul.f32 %v2240, %v2240
        %v2944 = vmul.f32 %v2314, %v2314
        %v2945 = vmul.f32 %v2388, %v2388
        %v2946 = vmul.f32 %v2462, %v2462
        %v2947 = vmul.f32 %v2536, %v2536
        %v2948 = vmul.f32 %v2021, %v2021
        %v2949 = vmul.f32 %v2095, %v2095
        %v2950 = vmul.f32 %v2169, %v2169
        %v2951 = vmul.f32 %v2243, %v2243
        %v2952 = vmul.f32 %v2317, %v2317
        %v2953 = vmul.f32 %v2391, %v2391
        %v2954 = vmul.f32 %v2465, %v2465
        %v2955 = vmul.f32 %v2539, %v2539
        %v2956 = vmul.f32 %v2023, %v2023
        %v2957 = vmul.f32 %v2097, %v2097
        %v2958 = vmul.f32 %v2171, %v2171
        %v2959 = vmul.f32 %v2245, %v2245
        %v2960 = vmul.f32 %v2319, %v2319
        %v2961 = vmul.f32 %v2393, %v2393
        %v2962 = vmul.f32 %v2467, %v2467
        %v2963 = vmul.f32 %v2541, %v2541
        %v2964 = vmul.f32 %v2026, %v2026
        %v2965 = vmul.f32 %v2100, %v2100
        %v2966 = vmul.f32 %v2174, %v2174
        %v2967 = vmul.f32 %v2248, %v2248
        %v2968 = vmul.f32 %v2322, %v2322
        %v2969 = vmul.f32 %v2396, %v2396
        %v2970 = vmul.f32 %v2470, %v2470
        %v2971 = vmul.f32 %v2544, %v2544
        %v2972 = vmul.f32 %v2028, %v2028
        %v2973 = vmul.f32 %v2102, %v2102
        %v2974 = vmul.f32 %v2176, %v2176
        %v2975 = vmul.f32 %v2250, %v2250
        %v2976 = vmul.f32 %v2324, %v2324
        %v2977 = vmul.f32 %v2398, %v2398
        %v2978 = vmul.f32 %v2472, %v2472
        %v2979 = vmul.f32 %v2546, %v2546
        %v2980 = vmul.f32 %v2031, %v2031
        %v2981 = vmul.f32 %v2105, %v2105
        %v2982 = vmul.f32 %v2179, %v2179
        %v2983 = vmul.f32 %v2253, %v2253
        %v2984 = vmul.f32 %v2327, %v2327
        %v2985 = vmul.f32 %v2401, %v2401
        %v2986 = vmul.f32 %v2475, %v2475
        %v2987 = vmul.f32 %v2549, %v2549
        %v2988 = vmul.f32 %v2033, %v2033
        %v2989 = vmul.f32 %v2107, %v2107
        %v2990 = vmul.f32 %v2181, %v2181
        %v2991 = vmul.f32 %v2255, %v2255
        %v2992 = vmul.f32 %v2329, %v2329
        %v2993 = vmul.f32 %v2403, %v2403
        %v2994 = vmul.f32 %v2477, %v2477
        %v2995 = vmul.f32 %v2551, %v2551
        %v2996 = vmul.f32 %v2036, %v2036
        %v2997 = vmul.f32 %v2110, %v2110
        %v2998 = vmul.f32 %v2184, %v2184
        %v2999 = vmul.f32 %v2258, %v2258
        %v3000 = vmul.f32 %v2332, %v2332
        %v3001 = vmul.f32 %v2406, %v2406
        %v3002 = vmul.f32 %v2480, %v2480
        %v3003 = vmul.f32 %v2554, %v2554
        %v3004 = vmul.f32 %v2038, %v2038
        %v3005 = vmul.f32 %v2112, %v2112
        %v3006 = vmul.f32 %v2186, %v2186
        %v3007 = vmul.f32 %v2260, %v2260
        %v3008 = vmul.f32 %v2334, %v2334
        %v3009 = vmul.f32 %v2408, %v2408
        %v3010 = vmul.f32 %v2482, %v2482
        %v3011 = vmul.f32 %v2556, %v2556
        %v3012 = vmul.f32 %v2041, %v2041
        %v3013 = vmul.f32 %v2115, %v2115
        %v3014 = vmul.f32 %v2189, %v2189
        %v3015 = vmul.f32 %v2263, %v2263
        %v3016 = vmul.f32 %v2337, %v2337
        %v3017 = vmul.f32 %v2411, %v2411
        %v3018 = vmul.f32 %v2485, %v2485
        %v3019 = vmul.f32 %v2559, %v2559
        %v3020 = vmul.f32 %v2043, %v2043
        %v3021 = vmul.f32 %v2117, %v2117
        %v3022 = vmul.f32 %v2191, %v2191
        %v3023 = vmul.f32 %v2265, %v2265
        %v3024 = vmul.f32 %v2339, %v2339
        %v3025 = vmul.f32 %v2413, %v2413
        %v3026 = vmul.f32 %v2487, %v2487
        %v3027 = vmul.f32 %v2561, %v2561
        %v3028 = vmul.f32 %v2046, %v2046
        %v3029 = vmul.f32 %v2120, %v2120
        %v3030 = vmul.f32 %v2194, %v2194
        %v3031 = vmul.f32 %v2268, %v2268
        %v3032 = vmul.f32 %v2342, %v2342
        %v3033 = vmul.f32 %v2416, %v2416
        %v3034 = vmul.f32 %v2490, %v2490
        %v3035 = vmul.f32 %v2564, %v2564
        %v3036 = vmul.f32 %v2048, %v2048
        %v3037 = vmul.f32 %v2122, %v2122
        %v3038 = vmul.f32 %v2196, %v2196
        %v3039 = vmul.f32 %v2270, %v2270
        %v3040 = vmul.f32 %v2344, %v2344
        %v3041 = vmul.f32 %v2418, %v2418
        %v3042 = vmul.f32 %v2492, %v2492
        %v3043 = vmul.f32 %v2566, %v2566
        %v3044 = vmul.f32 %v2051, %v2051
        %v3045 = vmul.f32 %v2125, %v2125
        %v3046 = vmul.f32 %v2199, %v2199
        %v3047 = vmul.f32 %v2273, %v2273
        %v3048 = vmul.f32 %v2347, %v2347
        %v3049 = vmul.f32 %v2421, %v2421
        %v3050 = vmul.f32 %v2495, %v2495
        %v3051 = vmul.f32 %v2569, %v2569
        %v3052 = vmul.f32 %v2053, %v2053
        %v3053 = vmul.f32 %v2127, %v2127
        %v3054 = vmul.f32 %v2201, %v2201
        %v3055 = vmul.f32 %v2275, %v2275
        %v3056 = vmul.f32 %v2349, %v2349
        %v3057 = vmul.f32 %v2423, %v2423
        %v3058 = vmul.f32 %v2497, %v2497
        %v3059 = vmul.f32 %v2571, %v2571
        %v3060 = vmul.f32 %v2056, %v2056
        %v3061 = vmul.f32 %v2130, %v2130
        %v3062 = vmul.f32 %v2204, %v2204
        %v3063 = vmul.f32 %v2278, %v2278
        %v3064 = vmul.f32 %v2352, %v2352
        %v3065 = vmul.f32 %v2426, %v2426
        %v3066 = vmul.f32 %v2500, %v2500
        %v3067 = vmul.f32 %v2574, %v2574
        %v3068 = vmul.f32 %v2058, %v2058
        %v3069 = vmul.f32 %v2132, %v2132
        %v3070 = vmul.f32 %v2206, %v2206
        %v3071 = vmul.f32 %v2280, %v2280
        %v3072 = vmul.f32 %v2354, %v2354
        %v3073 = vmul.f32 %v2428, %v2428
        %v3074 = vmul.f32 %v2502, %v2502
        %v3075 = vmul.f32 %v2576, %v2576
        %v3076 = vmul.f32 %v2061, %v2061
        %v3077 = vmul.f32 %v2135, %v2135
        %v3078 = vmul.f32 %v2209, %v2209
        %v3079 = vmul.f32 %v2283, %v2283
        %v3080 = vmul.f32 %v2357, %v2357
        %v3081 = vmul.f32 %v2431, %v2431
        %v3082 = vmul.f32 %v2505, %v2505
        %v3083 = vmul.f32 %v2579, %v2579
        %v3084 = vmul.f32 %v2063, %v2063
        %v3085 = vmul.f32 %v2137, %v2137
        %v3086 = vmul.f32 %v2211, %v2211
        %v3087 = vmul.f32 %v2285, %v2285
        %v3088 = vmul.f32 %v2359, %v2359
        %v3089 = vmul.f32 %v2433, %v2433
        %v3090 = vmul.f32 %v2507, %v2507
        %v3091 = vmul.f32 %v2581, %v2581
        %v3092 = vmul.f32 %v2066, %v2066
        %v3093 = vmul.f32 %v2140, %v2140
        %v3094 = vmul.f32 %v2214, %v2214
        %v3095 = vmul.f32 %v2288, %v2288
        %v3096 = vmul.f32 %v2362, %v2362
        %v3097 = vmul.f32 %v2436, %v2436
        %v3098 = vmul.f32 %v2510, %v2510
        %v3099 = vmul.f32 %v2584, %v2584
        %v3100 = vmul.f32 %v2068, %v2068
        %v3101 = vmul.f32 %v2142, %v2142
        %v3102 = vmul.f32 %v2216, %v2216
        %v3103 = vmul.f32 %v2290, %v2290
        %v3104 = vmul.f32 %v2364, %v2364
        %v3105 = vmul.f32 %v2438, %v2438
        %v3106 = vmul.f32 %v2512, %v2512
        %v3107 = vmul.f32 %v2586, %v2586
        %v3108 = vmul.f32 %v2071, %v2071
        %v3109 = vmul.f32 %v2145, %v2145
        %v3110 = vmul.f32 %v2219, %v2219
        %v3111 = vmul.f32 %v2293, %v2293
        %v3112 = vmul.f32 %v2367, %v2367
        %v3113 = vmul.f32 %v2441, %v2441
        %v3114 = vmul.f32 %v2515, %v2515
        %v3115 = vmul.f32 %v2589, %v2589
        %v3116 = vmul.f32 %v2073, %v2073
        %v3117 = vmul.f32 %v2147, %v2147
        %v3118 = vmul.f32 %v2221, %v2221
        %v3119 = vmul.f32 %v2295, %v2295
        %v3120 = vmul.f32 %v2369, %v2369
        %v3121 = vmul.f32 %v2443, %v2443
        %v3122 = vmul.f32 %v2517, %v2517
        %v3123 = vmul.f32 %v2591, %v2591
        %3124 = vmatpush.msra.mxu0 %v3036
        %3125 = vmatpush.msra.mxu0 %v3028
        %3126 = vmatpush.msra.mxu0 %v3020
        %3127 = vmatpush.msra.mxu0 %v3012
        %3128 = vmatpush.msra.mxu0 %v3004
        %3129 = vmatpush.msra.mxu0 %v2996
        %3130 = vmatpush.msra.mxu0 %v2988
        %3131 = vmatpush.msra.mxu0 %v2980
        %3132 = vmatpush.msra.mxu0 %v2972
        %3133 = vmatpush.msra.mxu0 %v2964
        %3134 = vmatpush.msra.mxu0 %v2956
        %3135 = vmatpush.msra.mxu0 %v2948
        %3136 = vmatpush.msra.mxu0 %v2940
        %3137 = vmatpush.msra.mxu0 %v2932
        %3138 = vmatpush.msra.mxu0 %v2924
        %3139 = vmatpush.msra.mxu0 %v2916
        %3140 = vmatmul.f32.gmra.mxu0 %v1004
        %v3141 = vpop.f32.mrf.mxu0
        %v3142 = vadd.f32 0.0, %v3141
        %3143 = vdwg.mxu0
        %3144 = vmatpush.msra.mxu0 0.0
        %3145 = vmatpush.msra.mxu0 0.0
        %3146 = vmatpush.msra.mxu0 0.0
        %3147 = vmatpush.msra.mxu0 0.0
        %3148 = vmatpush.msra.mxu0 0.0
        %3149 = vmatpush.msra.mxu0 0.0
        %3150 = vmatpush.msra.mxu0 %v3116
        %3151 = vmatpush.msra.mxu0 %v3108
        %3152 = vmatpush.msra.mxu0 %v3100
        %3153 = vmatpush.msra.mxu0 %v3092
        %3154 = vmatpush.msra.mxu0 %v3084
        %3155 = vmatpush.msra.mxu0 %v3076
        %3156 = vmatpush.msra.mxu0 %v3068
        %3157 = vmatpush.msra.mxu0 %v3060
        %3158 = vmatpush.msra.mxu0 %v3052
        %3159 = vmatpush.msra.mxu0 %v3044
        %3160 = vmatmul.f32.gmra.mxu0 %v1008
        %v3161 = vpop.f32.mrf.mxu0
        %v3162 = vadd.f32 %v3142, %v3161
        %3163 = vdwg.mxu0
        %3164 = vmatpush.msra.mxu0 %v3037
        %3165 = vmatpush.msra.mxu0 %v3029
        %3166 = vmatpush.msra.mxu0 %v3021
        %3167 = vmatpush.msra.mxu0 %v3013
        %3168 = vmatpush.msra.mxu0 %v3005
        %3169 = vmatpush.msra.mxu0 %v2997
        %3170 = vmatpush.msra.mxu0 %v2989
        %3171 = vmatpush.msra.mxu0 %v2981
        %3172 = vmatpush.msra.mxu0 %v2973
        %3173 = vmatpush.msra.mxu0 %v2965
        %3174 = vmatpush.msra.mxu0 %v2957
        %3175 = vmatpush.msra.mxu0 %v2949
        %3176 = vmatpush.msra.mxu0 %v2941
        %3177 = vmatpush.msra.mxu0 %v2933
        %3178 = vmatpush.msra.mxu0 %v2925
        %3179 = vmatpush.msra.mxu0 %v2917
        %3180 = vmatmul.f32.gmra.mxu0 %v1004
        %v3181 = vpop.f32.mrf.mxu0
        %v3182 = vadd.f32 0.0, %v3181
        %3183 = vdwg.mxu0
        %3184 = vmatpush.msra.mxu0 0.0
        %3185 = vmatpush.msra.mxu0 0.0
        %3186 = vmatpush.msra.mxu0 0.0
        %3187 = vmatpush.msra.mxu0 0.0
        %3188 = vmatpush.msra.mxu0 0.0
        %3189 = vmatpush.msra.mxu0 0.0
        %3190 = vmatpush.msra.mxu0 %v3117
        %3191 = vmatpush.msra.mxu0 %v3109
        %3192 = vmatpush.msra.mxu0 %v3101
        %3193 = vmatpush.msra.mxu0 %v3093
        %3194 = vmatpush.msra.mxu0 %v3085
        %3195 = vmatpush.msra.mxu0 %v3077
        %3196 = vmatpush.msra.mxu0 %v3069
        %3197 = vmatpush.msra.mxu0 %v3061
        %3198 = vmatpush.msra.mxu0 %v3053
        %3199 = vmatpush.msra.mxu0 %v3045
        %3200 = vmatmul.f32.gmra.mxu0 %v1008
        %v3201 = vpop.f32.mrf.mxu0
        %v3202 = vadd.f32 %v3182, %v3201
        %3203 = vdwg.mxu0
        %3204 = vmatpush.msra.mxu0 %v3038
        %3205 = vmatpush.msra.mxu0 %v3030
        %3206 = vmatpush.msra.mxu0 %v3022
        %3207 = vmatpush.msra.mxu0 %v3014
        %3208 = vmatpush.msra.mxu0 %v3006
        %3209 = vmatpush.msra.mxu0 %v2998
        %3210 = vmatpush.msra.mxu0 %v2990
        %3211 = vmatpush.msra.mxu0 %v2982
        %3212 = vmatpush.msra.mxu0 %v2974
        %3213 = vmatpush.msra.mxu0 %v2966
        %3214 = vmatpush.msra.mxu0 %v2958
        %3215 = vmatpush.msra.mxu0 %v2950
        %3216 = vmatpush.msra.mxu0 %v2942
        %3217 = vmatpush.msra.mxu0 %v2934
        %3218 = vmatpush.msra.mxu0 %v2926
        %3219 = vmatpush.msra.mxu0 %v2918
        %3220 = vmatmul.f32.gmra.mxu0 %v1004
        %v3221 = vpop.f32.mrf.mxu0
        %v3222 = vadd.f32 0.0, %v3221
        %3223 = vdwg.mxu0
        %3224 = vmatpush.msra.mxu0 0.0
        %3225 = vmatpush.msra.mxu0 0.0
        %3226 = vmatpush.msra.mxu0 0.0
        %3227 = vmatpush.msra.mxu0 0.0
        %3228 = vmatpush.msra.mxu0 0.0
        %3229 = vmatpush.msra.mxu0 0.0
        %3230 = vmatpush.msra.mxu0 %v3118
        %3231 = vmatpush.msra.mxu0 %v3110
        %3232 = vmatpush.msra.mxu0 %v3102
        %3233 = vmatpush.msra.mxu0 %v3094
        %3234 = vmatpush.msra.mxu0 %v3086
        %3235 = vmatpush.msra.mxu0 %v3078
        %3236 = vmatpush.msra.mxu0 %v3070
        %3237 = vmatpush.msra.mxu0 %v3062
        %3238 = vmatpush.msra.mxu0 %v3054
        %3239 = vmatpush.msra.mxu0 %v3046
        %3240 = vmatmul.f32.gmra.mxu0 %v1008
        %v3241 = vpop.f32.mrf.mxu0
        %v3242 = vadd.f32 %v3222, %v3241
        %3243 = vdwg.mxu0
        %3244 = vmatpush.msra.mxu0 %v3039
        %3245 = vmatpush.msra.mxu0 %v3031
        %3246 = vmatpush.msra.mxu0 %v3023
        %3247 = vmatpush.msra.mxu0 %v3015
        %3248 = vmatpush.msra.mxu0 %v3007
        %3249 = vmatpush.msra.mxu0 %v2999
        %3250 = vmatpush.msra.mxu0 %v2991
        %3251 = vmatpush.msra.mxu0 %v2983
        %3252 = vmatpush.msra.mxu0 %v2975
        %3253 = vmatpush.msra.mxu0 %v2967
        %3254 = vmatpush.msra.mxu0 %v2959
        %3255 = vmatpush.msra.mxu0 %v2951
        %3256 = vmatpush.msra.mxu0 %v2943
        %3257 = vmatpush.msra.mxu0 %v2935
        %3258 = vmatpush.msra.mxu0 %v2927
        %3259 = vmatpush.msra.mxu0 %v2919
        %3260 = vmatmul.f32.gmra.mxu0 %v1004
        %v3261 = vpop.f32.mrf.mxu0
        %v3262 = vadd.f32 0.0, %v3261
        %3263 = vdwg.mxu0
        %3264 = vmatpush.msra.mxu0 0.0
        %3265 = vmatpush.msra.mxu0 0.0
        %3266 = vmatpush.msra.mxu0 0.0
        %3267 = vmatpush.msra.mxu0 0.0
        %3268 = vmatpush.msra.mxu0 0.0
        %3269 = vmatpush.msra.mxu0 0.0
        %3270 = vmatpush.msra.mxu0 %v3119
        %3271 = vmatpush.msra.mxu0 %v3111
        %3272 = vmatpush.msra.mxu0 %v3103
        %3273 = vmatpush.msra.mxu0 %v3095
        %3274 = vmatpush.msra.mxu0 %v3087
        %3275 = vmatpush.msra.mxu0 %v3079
        %3276 = vmatpush.msra.mxu0 %v3071
        %3277 = vmatpush.msra.mxu0 %v3063
        %3278 = vmatpush.msra.mxu0 %v3055
        %3279 = vmatpush.msra.mxu0 %v3047
        %3280 = vmatmul.f32.gmra.mxu0 %v1008
        %v3281 = vpop.f32.mrf.mxu0
        %v3282 = vadd.f32 %v3262, %v3281
        %3283 = vdwg.mxu0
        %3284 = vmatpush.msra.mxu0 %v3040
        %3285 = vmatpush.msra.mxu0 %v3032
        %3286 = vmatpush.msra.mxu0 %v3024
        %3287 = vmatpush.msra.mxu0 %v3016
        %3288 = vmatpush.msra.mxu0 %v3008
        %3289 = vmatpush.msra.mxu0 %v3000
        %3290 = vmatpush.msra.mxu0 %v2992
        %3291 = vmatpush.msra.mxu0 %v2984
        %3292 = vmatpush.msra.mxu0 %v2976
        %3293 = vmatpush.msra.mxu0 %v2968
        %3294 = vmatpush.msra.mxu0 %v2960
        %3295 = vmatpush.msra.mxu0 %v2952
        %3296 = vmatpush.msra.mxu0 %v2944
        %3297 = vmatpush.msra.mxu0 %v2936
        %3298 = vmatpush.msra.mxu0 %v2928
        %3299 = vmatpush.msra.mxu0 %v2920
        %3300 = vmatmul.f32.gmra.mxu0 %v1004
        %v3301 = vpop.f32.mrf.mxu0
        %v3302 = vadd.f32 0.0, %v3301
        %3303 = vdwg.mxu0
        %3304 = vmatpush.msra.mxu0 0.0
        %3305 = vmatpush.msra.mxu0 0.0
        %3306 = vmatpush.msra.mxu0 0.0
        %3307 = vmatpush.msra.mxu0 0.0
        %3308 = vmatpush.msra.mxu0 0.0
        %3309 = vmatpush.msra.mxu0 0.0
        %3310 = vmatpush.msra.mxu0 %v3120
        %3311 = vmatpush.msra.mxu0 %v3112
        %3312 = vmatpush.msra.mxu0 %v3104
        %3313 = vmatpush.msra.mxu0 %v3096
        %3314 = vmatpush.msra.mxu0 %v3088
        %3315 = vmatpush.msra.mxu0 %v3080
        %3316 = vmatpush.msra.mxu0 %v3072
        %3317 = vmatpush.msra.mxu0 %v3064
        %3318 = vmatpush.msra.mxu0 %v3056
        %3319 = vmatpush.msra.mxu0 %v3048
        %3320 = vmatmul.f32.gmra.mxu0 %v1008
        %v3321 = vpop.f32.mrf.mxu0
        %v3322 = vadd.f32 %v3302, %v3321
        %3323 = vdwg.mxu0
        %3324 = vmatpush.msra.mxu0 %v3041
        %3325 = vmatpush.msra.mxu0 %v3033
        %3326 = vmatpush.msra.mxu0 %v3025
        %3327 = vmatpush.msra.mxu0 %v3017
        %3328 = vmatpush.msra.mxu0 %v3009
        %3329 = vmatpush.msra.mxu0 %v3001
        %3330 = vmatpush.msra.mxu0 %v2993
        %3331 = vmatpush.msra.mxu0 %v2985
        %3332 = vmatpush.msra.mxu0 %v2977
        %3333 = vmatpush.msra.mxu0 %v2969
        %3334 = vmatpush.msra.mxu0 %v2961
        %3335 = vmatpush.msra.mxu0 %v2953
        %3336 = vmatpush.msra.mxu0 %v2945
        %3337 = vmatpush.msra.mxu0 %v2937
        %3338 = vmatpush.msra.mxu0 %v2929
        %3339 = vmatpush.msra.mxu0 %v2921
        %3340 = vmatmul.f32.gmra.mxu0 %v1004
        %v3341 = vpop.f32.mrf.mxu0
        %v3342 = vadd.f32 0.0, %v3341
        %3343 = vdwg.mxu0
        %3344 = vmatpush.msra.mxu0 0.0
        %3345 = vmatpush.msra.mxu0 0.0
        %3346 = vmatpush.msra.mxu0 0.0
        %3347 = vmatpush.msra.mxu0 0.0
        %3348 = vmatpush.msra.mxu0 0.0
        %3349 = vmatpush.msra.mxu0 0.0
        %3350 = vmatpush.msra.mxu0 %v3121
        %3351 = vmatpush.msra.mxu0 %v3113
        %3352 = vmatpush.msra.mxu0 %v3105
        %3353 = vmatpush.msra.mxu0 %v3097
        %3354 = vmatpush.msra.mxu0 %v3089
        %3355 = vmatpush.msra.mxu0 %v3081
        %3356 = vmatpush.msra.mxu0 %v3073
        %3357 = vmatpush.msra.mxu0 %v3065
        %3358 = vmatpush.msra.mxu0 %v3057
        %3359 = vmatpush.msra.mxu0 %v3049
        %3360 = vmatmul.f32.gmra.mxu0 %v1008
        %v3361 = vpop.f32.mrf.mxu0
        %v3362 = vadd.f32 %v3342, %v3361
        %3363 = vdwg.mxu0
        %3364 = vmatpush.msra.mxu0 %v3042
        %3365 = vmatpush.msra.mxu0 %v3034
        %3366 = vmatpush.msra.mxu0 %v3026
        %3367 = vmatpush.msra.mxu0 %v3018
        %3368 = vmatpush.msra.mxu0 %v3010
        %3369 = vmatpush.msra.mxu0 %v3002
        %3370 = vmatpush.msra.mxu0 %v2994
        %3371 = vmatpush.msra.mxu0 %v2986
        %3372 = vmatpush.msra.mxu0 %v2978
        %3373 = vmatpush.msra.mxu0 %v2970
        %3374 = vmatpush.msra.mxu0 %v2962
        %3375 = vmatpush.msra.mxu0 %v2954
        %3376 = vmatpush.msra.mxu0 %v2946
        %3377 = vmatpush.msra.mxu0 %v2938
        %3378 = vmatpush.msra.mxu0 %v2930
        %3379 = vmatpush.msra.mxu0 %v2922
        %3380 = vmatmul.f32.gmra.mxu0 %v1004
        %v3381 = vpop.f32.mrf.mxu0
        %v3382 = vadd.f32 0.0, %v3381
        %3383 = vdwg.mxu0
        %3384 = vmatpush.msra.mxu0 0.0
        %3385 = vmatpush.msra.mxu0 0.0
        %3386 = vmatpush.msra.mxu0 0.0
        %3387 = vmatpush.msra.mxu0 0.0
        %3388 = vmatpush.msra.mxu0 0.0
        %3389 = vmatpush.msra.mxu0 0.0
        %3390 = vmatpush.msra.mxu0 %v3122
        %3391 = vmatpush.msra.mxu0 %v3114
        %3392 = vmatpush.msra.mxu0 %v3106
        %3393 = vmatpush.msra.mxu0 %v3098
        %3394 = vmatpush.msra.mxu0 %v3090
        %3395 = vmatpush.msra.mxu0 %v3082
        %3396 = vmatpush.msra.mxu0 %v3074
        %3397 = vmatpush.msra.mxu0 %v3066
        %3398 = vmatpush.msra.mxu0 %v3058
        %3399 = vmatpush.msra.mxu0 %v3050
        %3400 = vmatmul.f32.gmra.mxu0 %v1008
        %v3401 = vpop.f32.mrf.mxu0
        %v3402 = vadd.f32 %v3382, %v3401
        %3403 = vdwg.mxu0
        %3404 = vmatpush.msra.mxu0 %v3043
        %3405 = vmatpush.msra.mxu0 %v3035
        %3406 = vmatpush.msra.mxu0 %v3027
        %3407 = vmatpush.msra.mxu0 %v3019
        %3408 = vmatpush.msra.mxu0 %v3011
        %3409 = vmatpush.msra.mxu0 %v3003
        %3410 = vmatpush.msra.mxu0 %v2995
        %3411 = vmatpush.msra.mxu0 %v2987
        %3412 = vmatpush.msra.mxu0 %v2979
        %3413 = vmatpush.msra.mxu0 %v2971
        %3414 = vmatpush.msra.mxu0 %v2963
        %3415 = vmatpush.msra.mxu0 %v2955
        %3416 = vmatpush.msra.mxu0 %v2947
        %3417 = vmatpush.msra.mxu0 %v2939
        %3418 = vmatpush.msra.mxu0 %v2931
        %3419 = vmatpush.msra.mxu0 %v2923
        %3420 = vmatmul.f32.gmra.mxu0 %v1004
        %v3421 = vpop.f32.mrf.mxu0
        %v3422 = vadd.f32 0.0, %v3421
        %3423 = vdwg.mxu0
        %3424 = vmatpush.msra.mxu0 0.0
        %3425 = vmatpush.msra.mxu0 0.0
        %3426 = vmatpush.msra.mxu0 0.0
        %3427 = vmatpush.msra.mxu0 0.0
        %3428 = vmatpush.msra.mxu0 0.0
        %3429 = vmatpush.msra.mxu0 0.0
        %3430 = vmatpush.msra.mxu0 %v3123
        %3431 = vmatpush.msra.mxu0 %v3115
        %3432 = vmatpush.msra.mxu0 %v3107
        %3433 = vmatpush.msra.mxu0 %v3099
        %3434 = vmatpush.msra.mxu0 %v3091
        %3435 = vmatpush.msra.mxu0 %v3083
        %3436 = vmatpush.msra.mxu0 %v3075
        %3437 = vmatpush.msra.mxu0 %v3067
        %3438 = vmatpush.msra.mxu0 %v3059
        %3439 = vmatpush.msra.mxu0 %v3051
        %3440 = vmatmul.f32.gmra.mxu0 %v1008
        %v3441 = vpop.f32.mrf.mxu0
        %v3442 = vadd.f32 %v3422, %v3441
        %3443 = vdwg.mxu0
        %v3444 = vmul.f32 %v2634, 0.005
        %v3445 = vmul.f32 %v2674, 0.005
        %v3446 = vmul.f32 %v2714, 0.005
        %v3447 = vmul.f32 %v2754, 0.005
        %v3448 = vmul.f32 %v2794, 0.005
        %v3449 = vmul.f32 %v2834, 0.005
        %v3450 = vmul.f32 %v2874, 0.005
        %v3451 = vmul.f32 %v2914, 0.005
        %v3452 = vmul.f32 %v3162, 0.005
        %v3453 = vmul.f32 %v3202, 0.005
        %v3454 = vmul.f32 %v3242, 0.005
        %v3455 = vmul.f32 %v3282, 0.005
        %v3456 = vmul.f32 %v3322, 0.005
        %v3457 = vmul.f32 %v3362, 0.005
        %v3458 = vmul.f32 %v3402, 0.005
        %v3459 = vmul.f32 %v3442, 0.005
        %v3460 = vmul.f32 %v3444, %v3444
        %v3461 = vmul.f32 %v3445, %v3445
        %v3462 = vmul.f32 %v3446, %v3446
        %v3463 = vmul.f32 %v3447, %v3447
        %v3464 = vmul.f32 %v3448, %v3448
        %v3465 = vmul.f32 %v3449, %v3449
        %v3466 = vmul.f32 %v3450, %v3450
        %v3467 = vmul.f32 %v3451, %v3451
        %v3468 = vsub.f32 %v3452, %v3460
        %v3469 = vsub.f32 %v3453, %v3461
        %v3470 = vsub.f32 %v3454, %v3462
        %v3471 = vsub.f32 %v3455, %v3463
        %v3472 = vsub.f32 %v3456, %v3464
        %v3473 = vsub.f32 %v3457, %v3465
        %v3474 = vsub.f32 %v3458, %v3466
        %v3475 = vsub.f32 %v3459, %v3467
        %v3476 = vmax.f32 %v3468, 0.0
        %v3477 = vmax.f32 %v3469, 0.0
        %v3478 = vmax.f32 %v3470, 0.0
        %v3479 = vmax.f32 %v3471, 0.0
        %v3480 = vmax.f32 %v3472, 0.0
        %v3481 = vmax.f32 %v3473, 0.0
        %v3482 = vmax.f32 %v3474, 0.0
        %v3483 = vmax.f32 %v3475, 0.0
        %v3484 = vadd.f32 %v3476, 1e-05
        %v3485 = vadd.f32 %v3477, 1e-05
        %v3486 = vadd.f32 %v3478, 1e-05
        %v3487 = vadd.f32 %v3479, 1e-05
        %v3488 = vadd.f32 %v3480, 1e-05
        %v3489 = vadd.f32 %v3481, 1e-05
        %v3490 = vadd.f32 %v3482, 1e-05
        %v3491 = vadd.f32 %v3483, 1e-05
        %v3492 = vrsqrt.pop %v3484
        %v3493 = vmul.f32 %v3492, %v3484
        %v3494 = vmul.f32 %v3493, %v3492
        %v3495 = vmul.f32 0.5, %v3494
        %v3496 = vsub.f32 1.5, %v3495
        %v3497 = vmul.f32 %v3492, %v3496
        %vm3498 = vweird.f32 %v3484
        %vm3499 = vweird.f32 %v3492
        %vm3500 = vmor %vm3498, %vm3499
        %v3501 = vsel %vm3500, %v3492, %v3497
        %v3502 = vrsqrt.pop %v3485
        %v3503 = vmul.f32 %v3502, %v3485
        %v3504 = vmul.f32 %v3503, %v3502
        %v3505 = vmul.f32 0.5, %v3504
        %v3506 = vsub.f32 1.5, %v3505
        %v3507 = vmul.f32 %v3502, %v3506
        %vm3508 = vweird.f32 %v3485
        %vm3509 = vweird.f32 %v3502
        %vm3510 = vmor %vm3508, %vm3509
        %v3511 = vsel %vm3510, %v3502, %v3507
        %v3512 = vrsqrt.pop %v3486
        %v3513 = vmul.f32 %v3512, %v3486
        %v3514 = vmul.f32 %v3513, %v3512
        %v3515 = vmul.f32 0.5, %v3514
        %v3516 = vsub.f32 1.5, %v3515
        %v3517 = vmul.f32 %v3512, %v3516
        %vm3518 = vweird.f32 %v3486
        %vm3519 = vweird.f32 %v3512
        %vm3520 = vmor %vm3518, %vm3519
        %v3521 = vsel %vm3520, %v3512, %v3517
        %v3522 = vrsqrt.pop %v3487
        %v3523 = vmul.f32 %v3522, %v3487
        %v3524 = vmul.f32 %v3523, %v3522
        %v3525 = vmul.f32 0.5, %v3524
        %v3526 = vsub.f32 1.5, %v3525
        %v3527 = vmul.f32 %v3522, %v3526
        %vm3528 = vweird.f32 %v3487
        %vm3529 = vweird.f32 %v3522
        %vm3530 = vmor %vm3528, %vm3529
        %v3531 = vsel %vm3530, %v3522, %v3527
        %v3532 = vrsqrt.pop %v3488
        %v3533 = vmul.f32 %v3532, %v3488
        %v3534 = vmul.f32 %v3533, %v3532
        %v3535 = vmul.f32 0.5, %v3534
        %v3536 = vsub.f32 1.5, %v3535
        %v3537 = vmul.f32 %v3532, %v3536
        %vm3538 = vweird.f32 %v3488
        %vm3539 = vweird.f32 %v3532
        %vm3540 = vmor %vm3538, %vm3539
        %v3541 = vsel %vm3540, %v3532, %v3537
        %v3542 = vrsqrt.pop %v3489
        %v3543 = vmul.f32 %v3542, %v3489
        %v3544 = vmul.f32 %v3543, %v3542
        %v3545 = vmul.f32 0.5, %v3544
        %v3546 = vsub.f32 1.5, %v3545
        %v3547 = vmul.f32 %v3542, %v3546
        %vm3548 = vweird.f32 %v3489
        %vm3549 = vweird.f32 %v3542
        %vm3550 = vmor %vm3548, %vm3549
        %v3551 = vsel %vm3550, %v3542, %v3547
        %v3552 = vrsqrt.pop %v3490
        %v3553 = vmul.f32 %v3552, %v3490
        %v3554 = vmul.f32 %v3553, %v3552
        %v3555 = vmul.f32 0.5, %v3554
        %v3556 = vsub.f32 1.5, %v3555
        %v3557 = vmul.f32 %v3552, %v3556
        %vm3558 = vweird.f32 %v3490
        %vm3559 = vweird.f32 %v3552
        %vm3560 = vmor %vm3558, %vm3559
        %v3561 = vsel %vm3560, %v3552, %v3557
        %v3562 = vrsqrt.pop %v3491
        %v3563 = vmul.f32 %v3562, %v3491
        %v3564 = vmul.f32 %v3563, %v3562
        %v3565 = vmul.f32 0.5, %v3564
        %v3566 = vsub.f32 1.5, %v3565
        %v3567 = vmul.f32 %v3562, %v3566
        %vm3568 = vweird.f32 %v3491
        %vm3569 = vweird.f32 %v3562
        %vm3570 = vmor %vm3568, %vm3569
        %v3571 = vsel %vm3570, %v3562, %v3567
        %v3580 = vrot.slane %v3511, 7
        %v3581 = vrot.slane %v3521, 6
        %v3582 = vrot.slane %v3531, 5
        %v3583 = vrot.slane %v3541, 4
        %v3584 = vrot.slane %v3551, 3
        %v3585 = vrot.slane %v3561, 2
        %v3586 = vrot.slane %v3571, 1
        %vm3587 = vcmask 1040384
        %v3588 = vsel %vm3587, %v3501, %v3580
        %vm3589 = vcmask 1042434
        %v3590 = vsel %vm3589, %v3581, %v3582
        %vm3591 = vcmask 1041408
        %v3592 = vsel %vm3591, %v3588, %v3590
        %vm3593 = vcmask 1044484
        %v3594 = vsel %vm3593, %v3583, %v3584
        %vm3595 = vcmask 1046534
        %v3596 = vsel %vm3595, %v3585, %v3586
        %vm3597 = vcmask 1045508
        %v3598 = vsel %vm3597, %v3594, %v3596
        %vm3599 = vcmask 1043456
        %v3600 = vsel %vm3599, %v3592, %v3598
        %v3602 = vmul.f32 %v2593, %v3600
        %v3604 = vperm.slane %v3602, 0
        %v3605 = vperm.slane %v3602, 1
        %v3606 = vperm.slane %v3602, 2
        %v3607 = vperm.slane %v3602, 3
        %v3608 = vperm.slane %v3602, 4
        %v3609 = vperm.slane %v3602, 5
        %v3610 = vperm.slane %v3602, 6
        %v3611 = vperm.slane %v3602, 7
        %v3620 = vmul.f32 %v3444, %v3604
        %v3621 = vmul.f32 %v3445, %v3605
        %v3622 = vmul.f32 %v3446, %v3606
        %v3623 = vmul.f32 %v3447, %v3607
        %v3624 = vmul.f32 %v3448, %v3608
        %v3625 = vmul.f32 %v3449, %v3609
        %v3626 = vmul.f32 %v3450, %v3610
        %v3627 = vmul.f32 %v3451, %v3611
        %v3636 = vrot.slane %v3621, 7
        %v3637 = vrot.slane %v3622, 6
        %v3638 = vrot.slane %v3623, 5
        %v3639 = vrot.slane %v3624, 4
        %v3640 = vrot.slane %v3625, 3
        %v3641 = vrot.slane %v3626, 2
        %v3642 = vrot.slane %v3627, 1
        %v3643 = vsel %vm3587, %v3620, %v3636
        %v3644 = vsel %vm3589, %v3637, %v3638
        %v3645 = vsel %vm3591, %v3643, %v3644
        %v3646 = vsel %vm3593, %v3639, %v3640
        %v3647 = vsel %vm3595, %v3641, %v3642
        %v3648 = vsel %vm3597, %v3646, %v3647
        %v3649 = vsel %vm3599, %v3645, %v3648
        %v3651 = vsub.f32 %v2595, %v3649
        %v3652 = vmul.f32 %v2011, %v3604
        %v3653 = vmul.f32 %v2085, %v3605
        %v3654 = vmul.f32 %v2159, %v3606
        %v3655 = vmul.f32 %v2233, %v3607
        %v3656 = vmul.f32 %v2307, %v3608
        %v3657 = vmul.f32 %v2381, %v3609
        %v3658 = vmul.f32 %v2455, %v3610
        %v3659 = vmul.f32 %v2529, %v3611
        %v3660 = vmul.f32 %v2013, %v3604
        %v3661 = vmul.f32 %v2087, %v3605
        %v3662 = vmul.f32 %v2161, %v3606
        %v3663 = vmul.f32 %v2235, %v3607
        %v3664 = vmul.f32 %v2309, %v3608
        %v3665 = vmul.f32 %v2383, %v3609
        %v3666 = vmul.f32 %v2457, %v3610
        %v3667 = vmul.f32 %v2531, %v3611
        %v3668 = vmul.f32 %v2016, %v3604
        %v3669 = vmul.f32 %v2090, %v3605
        %v3670 = vmul.f32 %v2164, %v3606
        %v3671 = vmul.f32 %v2238, %v3607
        %v3672 = vmul.f32 %v2312, %v3608
        %v3673 = vmul.f32 %v2386, %v3609
        %v3674 = vmul.f32 %v2460, %v3610
        %v3675 = vmul.f32 %v2534, %v3611
        %v3676 = vmul.f32 %v2018, %v3604
        %v3677 = vmul.f32 %v2092, %v3605
        %v3678 = vmul.f32 %v2166, %v3606
        %v3679 = vmul.f32 %v2240, %v3607
        %v3680 = vmul.f32 %v2314, %v3608
        %v3681 = vmul.f32 %v2388, %v3609
        %v3682 = vmul.f32 %v2462, %v3610
        %v3683 = vmul.f32 %v2536, %v3611
        %v3684 = vmul.f32 %v2021, %v3604
        %v3685 = vmul.f32 %v2095, %v3605
        %v3686 = vmul.f32 %v2169, %v3606
        %v3687 = vmul.f32 %v2243, %v3607
        %v3688 = vmul.f32 %v2317, %v3608
        %v3689 = vmul.f32 %v2391, %v3609
        %v3690 = vmul.f32 %v2465, %v3610
        %v3691 = vmul.f32 %v2539, %v3611
        %v3692 = vmul.f32 %v2023, %v3604
        %v3693 = vmul.f32 %v2097, %v3605
        %v3694 = vmul.f32 %v2171, %v3606
        %v3695 = vmul.f32 %v2245, %v3607
        %v3696 = vmul.f32 %v2319, %v3608
        %v3697 = vmul.f32 %v2393, %v3609
        %v3698 = vmul.f32 %v2467, %v3610
        %v3699 = vmul.f32 %v2541, %v3611
        %v3700 = vmul.f32 %v2026, %v3604
        %v3701 = vmul.f32 %v2100, %v3605
        %v3702 = vmul.f32 %v2174, %v3606
        %v3703 = vmul.f32 %v2248, %v3607
        %v3704 = vmul.f32 %v2322, %v3608
        %v3705 = vmul.f32 %v2396, %v3609
        %v3706 = vmul.f32 %v2470, %v3610
        %v3707 = vmul.f32 %v2544, %v3611
        %v3708 = vmul.f32 %v2028, %v3604
        %v3709 = vmul.f32 %v2102, %v3605
        %v3710 = vmul.f32 %v2176, %v3606
        %v3711 = vmul.f32 %v2250, %v3607
        %v3712 = vmul.f32 %v2324, %v3608
        %v3713 = vmul.f32 %v2398, %v3609
        %v3714 = vmul.f32 %v2472, %v3610
        %v3715 = vmul.f32 %v2546, %v3611
        %v3716 = vmul.f32 %v2031, %v3604
        %v3717 = vmul.f32 %v2105, %v3605
        %v3718 = vmul.f32 %v2179, %v3606
        %v3719 = vmul.f32 %v2253, %v3607
        %v3720 = vmul.f32 %v2327, %v3608
        %v3721 = vmul.f32 %v2401, %v3609
        %v3722 = vmul.f32 %v2475, %v3610
        %v3723 = vmul.f32 %v2549, %v3611
        %v3724 = vmul.f32 %v2033, %v3604
        %v3725 = vmul.f32 %v2107, %v3605
        %v3726 = vmul.f32 %v2181, %v3606
        %v3727 = vmul.f32 %v2255, %v3607
        %v3728 = vmul.f32 %v2329, %v3608
        %v3729 = vmul.f32 %v2403, %v3609
        %v3730 = vmul.f32 %v2477, %v3610
        %v3731 = vmul.f32 %v2551, %v3611
        %v3732 = vmul.f32 %v2036, %v3604
        %v3733 = vmul.f32 %v2110, %v3605
        %v3734 = vmul.f32 %v2184, %v3606
        %v3735 = vmul.f32 %v2258, %v3607
        %v3736 = vmul.f32 %v2332, %v3608
        %v3737 = vmul.f32 %v2406, %v3609
        %v3738 = vmul.f32 %v2480, %v3610
        %v3739 = vmul.f32 %v2554, %v3611
        %v3740 = vmul.f32 %v2038, %v3604
        %v3741 = vmul.f32 %v2112, %v3605
        %v3742 = vmul.f32 %v2186, %v3606
        %v3743 = vmul.f32 %v2260, %v3607
        %v3744 = vmul.f32 %v2334, %v3608
        %v3745 = vmul.f32 %v2408, %v3609
        %v3746 = vmul.f32 %v2482, %v3610
        %v3747 = vmul.f32 %v2556, %v3611
        %v3748 = vmul.f32 %v2041, %v3604
        %v3749 = vmul.f32 %v2115, %v3605
        %v3750 = vmul.f32 %v2189, %v3606
        %v3751 = vmul.f32 %v2263, %v3607
        %v3752 = vmul.f32 %v2337, %v3608
        %v3753 = vmul.f32 %v2411, %v3609
        %v3754 = vmul.f32 %v2485, %v3610
        %v3755 = vmul.f32 %v2559, %v3611
        %v3756 = vmul.f32 %v2043, %v3604
        %v3757 = vmul.f32 %v2117, %v3605
        %v3758 = vmul.f32 %v2191, %v3606
        %v3759 = vmul.f32 %v2265, %v3607
        %v3760 = vmul.f32 %v2339, %v3608
        %v3761 = vmul.f32 %v2413, %v3609
        %v3762 = vmul.f32 %v2487, %v3610
        %v3763 = vmul.f32 %v2561, %v3611
        %v3764 = vmul.f32 %v2046, %v3604
        %v3765 = vmul.f32 %v2120, %v3605
        %v3766 = vmul.f32 %v2194, %v3606
        %v3767 = vmul.f32 %v2268, %v3607
        %v3768 = vmul.f32 %v2342, %v3608
        %v3769 = vmul.f32 %v2416, %v3609
        %v3770 = vmul.f32 %v2490, %v3610
        %v3771 = vmul.f32 %v2564, %v3611
        %v3772 = vmul.f32 %v2048, %v3604
        %v3773 = vmul.f32 %v2122, %v3605
        %v3774 = vmul.f32 %v2196, %v3606
        %v3775 = vmul.f32 %v2270, %v3607
        %v3776 = vmul.f32 %v2344, %v3608
        %v3777 = vmul.f32 %v2418, %v3609
        %v3778 = vmul.f32 %v2492, %v3610
        %v3779 = vmul.f32 %v2566, %v3611
        %v3780 = vmul.f32 %v2051, %v3604
        %v3781 = vmul.f32 %v2125, %v3605
        %v3782 = vmul.f32 %v2199, %v3606
        %v3783 = vmul.f32 %v2273, %v3607
        %v3784 = vmul.f32 %v2347, %v3608
        %v3785 = vmul.f32 %v2421, %v3609
        %v3786 = vmul.f32 %v2495, %v3610
        %v3787 = vmul.f32 %v2569, %v3611
        %v3788 = vmul.f32 %v2053, %v3604
        %v3789 = vmul.f32 %v2127, %v3605
        %v3790 = vmul.f32 %v2201, %v3606
        %v3791 = vmul.f32 %v2275, %v3607
        %v3792 = vmul.f32 %v2349, %v3608
        %v3793 = vmul.f32 %v2423, %v3609
        %v3794 = vmul.f32 %v2497, %v3610
        %v3795 = vmul.f32 %v2571, %v3611
        %v3796 = vmul.f32 %v2056, %v3604
        %v3797 = vmul.f32 %v2130, %v3605
        %v3798 = vmul.f32 %v2204, %v3606
        %v3799 = vmul.f32 %v2278, %v3607
        %v3800 = vmul.f32 %v2352, %v3608
        %v3801 = vmul.f32 %v2426, %v3609
        %v3802 = vmul.f32 %v2500, %v3610
        %v3803 = vmul.f32 %v2574, %v3611
        %v3804 = vmul.f32 %v2058, %v3604
        %v3805 = vmul.f32 %v2132, %v3605
        %v3806 = vmul.f32 %v2206, %v3606
        %v3807 = vmul.f32 %v2280, %v3607
        %v3808 = vmul.f32 %v2354, %v3608
        %v3809 = vmul.f32 %v2428, %v3609
        %v3810 = vmul.f32 %v2502, %v3610
        %v3811 = vmul.f32 %v2576, %v3611
        %v3812 = vmul.f32 %v2061, %v3604
        %v3813 = vmul.f32 %v2135, %v3605
        %v3814 = vmul.f32 %v2209, %v3606
        %v3815 = vmul.f32 %v2283, %v3607
        %v3816 = vmul.f32 %v2357, %v3608
        %v3817 = vmul.f32 %v2431, %v3609
        %v3818 = vmul.f32 %v2505, %v3610
        %v3819 = vmul.f32 %v2579, %v3611
        %v3820 = vmul.f32 %v2063, %v3604
        %v3821 = vmul.f32 %v2137, %v3605
        %v3822 = vmul.f32 %v2211, %v3606
        %v3823 = vmul.f32 %v2285, %v3607
        %v3824 = vmul.f32 %v2359, %v3608
        %v3825 = vmul.f32 %v2433, %v3609
        %v3826 = vmul.f32 %v2507, %v3610
        %v3827 = vmul.f32 %v2581, %v3611
        %v3828 = vmul.f32 %v2066, %v3604
        %v3829 = vmul.f32 %v2140, %v3605
        %v3830 = vmul.f32 %v2214, %v3606
        %v3831 = vmul.f32 %v2288, %v3607
        %v3832 = vmul.f32 %v2362, %v3608
        %v3833 = vmul.f32 %v2436, %v3609
        %v3834 = vmul.f32 %v2510, %v3610
        %v3835 = vmul.f32 %v2584, %v3611
        %v3836 = vmul.f32 %v2068, %v3604
        %v3837 = vmul.f32 %v2142, %v3605
        %v3838 = vmul.f32 %v2216, %v3606
        %v3839 = vmul.f32 %v2290, %v3607
        %v3840 = vmul.f32 %v2364, %v3608
        %v3841 = vmul.f32 %v2438, %v3609
        %v3842 = vmul.f32 %v2512, %v3610
        %v3843 = vmul.f32 %v2586, %v3611
        %v3844 = vmul.f32 %v2071, %v3604
        %v3845 = vmul.f32 %v2145, %v3605
        %v3846 = vmul.f32 %v2219, %v3606
        %v3847 = vmul.f32 %v2293, %v3607
        %v3848 = vmul.f32 %v2367, %v3608
        %v3849 = vmul.f32 %v2441, %v3609
        %v3850 = vmul.f32 %v2515, %v3610
        %v3851 = vmul.f32 %v2589, %v3611
        %v3852 = vmul.f32 %v2073, %v3604
        %v3853 = vmul.f32 %v2147, %v3605
        %v3854 = vmul.f32 %v2221, %v3606
        %v3855 = vmul.f32 %v2295, %v3607
        %v3856 = vmul.f32 %v2369, %v3608
        %v3857 = vmul.f32 %v2443, %v3609
        %v3858 = vmul.f32 %v2517, %v3610
        %v3859 = vmul.f32 %v2591, %v3611
        %v3861 = vperm.slane %v3651, 0
        %v3862 = vperm.slane %v3651, 1
        %v3863 = vperm.slane %v3651, 2
        %v3864 = vperm.slane %v3651, 3
        %v3865 = vperm.slane %v3651, 4
        %v3866 = vperm.slane %v3651, 5
        %v3867 = vperm.slane %v3651, 6
        %v3868 = vperm.slane %v3651, 7
        %v3877 = vadd.f32 %v3652, %v3861
        %v3878 = vadd.f32 %v3653, %v3862
        %v3879 = vadd.f32 %v3654, %v3863
        %v3880 = vadd.f32 %v3655, %v3864
        %v3881 = vadd.f32 %v3656, %v3865
        %v3882 = vadd.f32 %v3657, %v3866
        %v3883 = vadd.f32 %v3658, %v3867
        %v3884 = vadd.f32 %v3659, %v3868
        %v3885 = vadd.f32 %v3660, %v3861
        %v3886 = vadd.f32 %v3661, %v3862
        %v3887 = vadd.f32 %v3662, %v3863
        %v3888 = vadd.f32 %v3663, %v3864
        %v3889 = vadd.f32 %v3664, %v3865
        %v3890 = vadd.f32 %v3665, %v3866
        %v3891 = vadd.f32 %v3666, %v3867
        %v3892 = vadd.f32 %v3667, %v3868
        %v3893 = vadd.f32 %v3668, %v3861
        %v3894 = vadd.f32 %v3669, %v3862
        %v3895 = vadd.f32 %v3670, %v3863
        %v3896 = vadd.f32 %v3671, %v3864
        %v3897 = vadd.f32 %v3672, %v3865
        %v3898 = vadd.f32 %v3673, %v3866
        %v3899 = vadd.f32 %v3674, %v3867
        %v3900 = vadd.f32 %v3675, %v3868
        %v3901 = vadd.f32 %v3676, %v3861
        %v3902 = vadd.f32 %v3677, %v3862
        %v3903 = vadd.f32 %v3678, %v3863
        %v3904 = vadd.f32 %v3679, %v3864
        %v3905 = vadd.f32 %v3680, %v3865
        %v3906 = vadd.f32 %v3681, %v3866
        %v3907 = vadd.f32 %v3682, %v3867
        %v3908 = vadd.f32 %v3683, %v3868
        %v3909 = vadd.f32 %v3684, %v3861
        %v3910 = vadd.f32 %v3685, %v3862
        %v3911 = vadd.f32 %v3686, %v3863
        %v3912 = vadd.f32 %v3687, %v3864
        %v3913 = vadd.f32 %v3688, %v3865
        %v3914 = vadd.f32 %v3689, %v3866
        %v3915 = vadd.f32 %v3690, %v3867
        %v3916 = vadd.f32 %v3691, %v3868
        %v3917 = vadd.f32 %v3692, %v3861
        %v3918 = vadd.f32 %v3693, %v3862
        %v3919 = vadd.f32 %v3694, %v3863
        %v3920 = vadd.f32 %v3695, %v3864
        %v3921 = vadd.f32 %v3696, %v3865
        %v3922 = vadd.f32 %v3697, %v3866
        %v3923 = vadd.f32 %v3698, %v3867
        %v3924 = vadd.f32 %v3699, %v3868
        %v3925 = vadd.f32 %v3700, %v3861
        %v3926 = vadd.f32 %v3701, %v3862
        %v3927 = vadd.f32 %v3702, %v3863
        %v3928 = vadd.f32 %v3703, %v3864
        %v3929 = vadd.f32 %v3704, %v3865
        %v3930 = vadd.f32 %v3705, %v3866
        %v3931 = vadd.f32 %v3706, %v3867
        %v3932 = vadd.f32 %v3707, %v3868
        %v3933 = vadd.f32 %v3708, %v3861
        %v3934 = vadd.f32 %v3709, %v3862
        %v3935 = vadd.f32 %v3710, %v3863
        %v3936 = vadd.f32 %v3711, %v3864
        %v3937 = vadd.f32 %v3712, %v3865
        %v3938 = vadd.f32 %v3713, %v3866
        %v3939 = vadd.f32 %v3714, %v3867
        %v3940 = vadd.f32 %v3715, %v3868
        %v3941 = vadd.f32 %v3716, %v3861
        %v3942 = vadd.f32 %v3717, %v3862
        %v3943 = vadd.f32 %v3718, %v3863
        %v3944 = vadd.f32 %v3719, %v3864
        %v3945 = vadd.f32 %v3720, %v3865
        %v3946 = vadd.f32 %v3721, %v3866
        %v3947 = vadd.f32 %v3722, %v3867
        %v3948 = vadd.f32 %v3723, %v3868
        %v3949 = vadd.f32 %v3724, %v3861
        %v3950 = vadd.f32 %v3725, %v3862
        %v3951 = vadd.f32 %v3726, %v3863
        %v3952 = vadd.f32 %v3727, %v3864
        %v3953 = vadd.f32 %v3728, %v3865
        %v3954 = vadd.f32 %v3729, %v3866
        %v3955 = vadd.f32 %v3730, %v3867
        %v3956 = vadd.f32 %v3731, %v3868
        %v3957 = vadd.f32 %v3732, %v3861
        %v3958 = vadd.f32 %v3733, %v3862
        %v3959 = vadd.f32 %v3734, %v3863
        %v3960 = vadd.f32 %v3735, %v3864
        %v3961 = vadd.f32 %v3736, %v3865
        %v3962 = vadd.f32 %v3737, %v3866
        %v3963 = vadd.f32 %v3738, %v3867
        %v3964 = vadd.f32 %v3739, %v3868
        %v3965 = vadd.f32 %v3740, %v3861
        %v3966 = vadd.f32 %v3741, %v3862
        %v3967 = vadd.f32 %v3742, %v3863
        %v3968 = vadd.f32 %v3743, %v3864
        %v3969 = vadd.f32 %v3744, %v3865
        %v3970 = vadd.f32 %v3745, %v3866
        %v3971 = vadd.f32 %v3746, %v3867
        %v3972 = vadd.f32 %v3747, %v3868
        %v3973 = vadd.f32 %v3748, %v3861
        %v3974 = vadd.f32 %v3749, %v3862
        %v3975 = vadd.f32 %v3750, %v3863
        %v3976 = vadd.f32 %v3751, %v3864
        %v3977 = vadd.f32 %v3752, %v3865
        %v3978 = vadd.f32 %v3753, %v3866
        %v3979 = vadd.f32 %v3754, %v3867
        %v3980 = vadd.f32 %v3755, %v3868
        %v3981 = vadd.f32 %v3756, %v3861
        %v3982 = vadd.f32 %v3757, %v3862
        %v3983 = vadd.f32 %v3758, %v3863
        %v3984 = vadd.f32 %v3759, %v3864
        %v3985 = vadd.f32 %v3760, %v3865
        %v3986 = vadd.f32 %v3761, %v3866
        %v3987 = vadd.f32 %v3762, %v3867
        %v3988 = vadd.f32 %v3763, %v3868
        %v3989 = vadd.f32 %v3764, %v3861
        %v3990 = vadd.f32 %v3765, %v3862
        %v3991 = vadd.f32 %v3766, %v3863
        %v3992 = vadd.f32 %v3767, %v3864
        %v3993 = vadd.f32 %v3768, %v3865
        %v3994 = vadd.f32 %v3769, %v3866
        %v3995 = vadd.f32 %v3770, %v3867
        %v3996 = vadd.f32 %v3771, %v3868
        %v3997 = vadd.f32 %v3772, %v3861
        %v3998 = vadd.f32 %v3773, %v3862
        %v3999 = vadd.f32 %v3774, %v3863
        %v4000 = vadd.f32 %v3775, %v3864
        %v4001 = vadd.f32 %v3776, %v3865
        %v4002 = vadd.f32 %v3777, %v3866
        %v4003 = vadd.f32 %v3778, %v3867
        %v4004 = vadd.f32 %v3779, %v3868
        %v4005 = vadd.f32 %v3780, %v3861
        %v4006 = vadd.f32 %v3781, %v3862
        %v4007 = vadd.f32 %v3782, %v3863
        %v4008 = vadd.f32 %v3783, %v3864
        %v4009 = vadd.f32 %v3784, %v3865
        %v4010 = vadd.f32 %v3785, %v3866
        %v4011 = vadd.f32 %v3786, %v3867
        %v4012 = vadd.f32 %v3787, %v3868
        %v4013 = vadd.f32 %v3788, %v3861
        %v4014 = vadd.f32 %v3789, %v3862
        %v4015 = vadd.f32 %v3790, %v3863
        %v4016 = vadd.f32 %v3791, %v3864
        %v4017 = vadd.f32 %v3792, %v3865
        %v4018 = vadd.f32 %v3793, %v3866
        %v4019 = vadd.f32 %v3794, %v3867
        %v4020 = vadd.f32 %v3795, %v3868
        %v4021 = vadd.f32 %v3796, %v3861
        %v4022 = vadd.f32 %v3797, %v3862
        %v4023 = vadd.f32 %v3798, %v3863
        %v4024 = vadd.f32 %v3799, %v3864
        %v4025 = vadd.f32 %v3800, %v3865
        %v4026 = vadd.f32 %v3801, %v3866
        %v4027 = vadd.f32 %v3802, %v3867
        %v4028 = vadd.f32 %v3803, %v3868
        %v4029 = vadd.f32 %v3804, %v3861
        %v4030 = vadd.f32 %v3805, %v3862
        %v4031 = vadd.f32 %v3806, %v3863
        %v4032 = vadd.f32 %v3807, %v3864
        %v4033 = vadd.f32 %v3808, %v3865
        %v4034 = vadd.f32 %v3809, %v3866
        %v4035 = vadd.f32 %v3810, %v3867
        %v4036 = vadd.f32 %v3811, %v3868
        %v4037 = vadd.f32 %v3812, %v3861
        %v4038 = vadd.f32 %v3813, %v3862
        %v4039 = vadd.f32 %v3814, %v3863
        %v4040 = vadd.f32 %v3815, %v3864
        %v4041 = vadd.f32 %v3816, %v3865
        %v4042 = vadd.f32 %v3817, %v3866
        %v4043 = vadd.f32 %v3818, %v3867
        %v4044 = vadd.f32 %v3819, %v3868
        %v4045 = vadd.f32 %v3820, %v3861
        %v4046 = vadd.f32 %v3821, %v3862
        %v4047 = vadd.f32 %v3822, %v3863
        %v4048 = vadd.f32 %v3823, %v3864
        %v4049 = vadd.f32 %v3824, %v3865
        %v4050 = vadd.f32 %v3825, %v3866
        %v4051 = vadd.f32 %v3826, %v3867
        %v4052 = vadd.f32 %v3827, %v3868
        %v4053 = vadd.f32 %v3828, %v3861
        %v4054 = vadd.f32 %v3829, %v3862
        %v4055 = vadd.f32 %v3830, %v3863
        %v4056 = vadd.f32 %v3831, %v3864
        %v4057 = vadd.f32 %v3832, %v3865
        %v4058 = vadd.f32 %v3833, %v3866
        %v4059 = vadd.f32 %v3834, %v3867
        %v4060 = vadd.f32 %v3835, %v3868
        %v4061 = vadd.f32 %v3836, %v3861
        %v4062 = vadd.f32 %v3837, %v3862
        %v4063 = vadd.f32 %v3838, %v3863
        %v4064 = vadd.f32 %v3839, %v3864
        %v4065 = vadd.f32 %v3840, %v3865
        %v4066 = vadd.f32 %v3841, %v3866
        %v4067 = vadd.f32 %v3842, %v3867
        %v4068 = vadd.f32 %v3843, %v3868
        %v4069 = vadd.f32 %v3844, %v3861
        %v4070 = vadd.f32 %v3845, %v3862
        %v4071 = vadd.f32 %v3846, %v3863
        %v4072 = vadd.f32 %v3847, %v3864
        %v4073 = vadd.f32 %v3848, %v3865
        %v4074 = vadd.f32 %v3849, %v3866
        %v4075 = vadd.f32 %v3850, %v3867
        %v4076 = vadd.f32 %v3851, %v3868
        %v4077 = vadd.f32 %v3852, %v3861
        %v4078 = vadd.f32 %v3853, %v3862
        %v4079 = vadd.f32 %v3854, %v3863
        %v4080 = vadd.f32 %v3855, %v3864
        %v4081 = vadd.f32 %v3856, %v3865
        %v4082 = vadd.f32 %v3857, %v3866
        %v4083 = vadd.f32 %v3858, %v3867
        %v4084 = vadd.f32 %v3859, %v3868
        %v4085 = vmax.f32 %v3877, 0.0
        %v4086 = vmax.f32 %v3878, 0.0
        %v4087 = vmax.f32 %v3879, 0.0
        %v4088 = vmax.f32 %v3880, 0.0
        %v4089 = vmax.f32 %v3881, 0.0
        %v4090 = vmax.f32 %v3882, 0.0
        %v4091 = vmax.f32 %v3883, 0.0
        %v4092 = vmax.f32 %v3884, 0.0
        %v4093 = vmax.f32 %v3885, 0.0
        %v4094 = vmax.f32 %v3886, 0.0
        %v4095 = vmax.f32 %v3887, 0.0
        %v4096 = vmax.f32 %v3888, 0.0
        %v4097 = vmax.f32 %v3889, 0.0
        %v4098 = vmax.f32 %v3890, 0.0
        %v4099 = vmax.f32 %v3891, 0.0
        %v4100 = vmax.f32 %v3892, 0.0
        %v4101 = vmax.f32 %v3893, 0.0
        %v4102 = vmax.f32 %v3894, 0.0
        %v4103 = vmax.f32 %v3895, 0.0
        %v4104 = vmax.f32 %v3896, 0.0
        %v4105 = vmax.f32 %v3897, 0.0
        %v4106 = vmax.f32 %v3898, 0.0
        %v4107 = vmax.f32 %v3899, 0.0
        %v4108 = vmax.f32 %v3900, 0.0
        %v4109 = vmax.f32 %v3901, 0.0
        %v4110 = vmax.f32 %v3902, 0.0
        %v4111 = vmax.f32 %v3903, 0.0
        %v4112 = vmax.f32 %v3904, 0.0
        %v4113 = vmax.f32 %v3905, 0.0
        %v4114 = vmax.f32 %v3906, 0.0
        %v4115 = vmax.f32 %v3907, 0.0
        %v4116 = vmax.f32 %v3908, 0.0
        %v4117 = vmax.f32 %v3909, 0.0
        %v4118 = vmax.f32 %v3910, 0.0
        %v4119 = vmax.f32 %v3911, 0.0
        %v4120 = vmax.f32 %v3912, 0.0
        %v4121 = vmax.f32 %v3913, 0.0
        %v4122 = vmax.f32 %v3914, 0.0
        %v4123 = vmax.f32 %v3915, 0.0
        %v4124 = vmax.f32 %v3916, 0.0
        %v4125 = vmax.f32 %v3917, 0.0
        %v4126 = vmax.f32 %v3918, 0.0
        %v4127 = vmax.f32 %v3919, 0.0
        %v4128 = vmax.f32 %v3920, 0.0
        %v4129 = vmax.f32 %v3921, 0.0
        %v4130 = vmax.f32 %v3922, 0.0
        %v4131 = vmax.f32 %v3923, 0.0
        %v4132 = vmax.f32 %v3924, 0.0
        %v4133 = vmax.f32 %v3925, 0.0
        %v4134 = vmax.f32 %v3926, 0.0
        %v4135 = vmax.f32 %v3927, 0.0
        %v4136 = vmax.f32 %v3928, 0.0
        %v4137 = vmax.f32 %v3929, 0.0
        %v4138 = vmax.f32 %v3930, 0.0
        %v4139 = vmax.f32 %v3931, 0.0
        %v4140 = vmax.f32 %v3932, 0.0
        %v4141 = vmax.f32 %v3933, 0.0
        %v4142 = vmax.f32 %v3934, 0.0
        %v4143 = vmax.f32 %v3935, 0.0
        %v4144 = vmax.f32 %v3936, 0.0
        %v4145 = vmax.f32 %v3937, 0.0
        %v4146 = vmax.f32 %v3938, 0.0
        %v4147 = vmax.f32 %v3939, 0.0
        %v4148 = vmax.f32 %v3940, 0.0
        %v4149 = vmax.f32 %v3941, 0.0
        %v4150 = vmax.f32 %v3942, 0.0
        %v4151 = vmax.f32 %v3943, 0.0
        %v4152 = vmax.f32 %v3944, 0.0
        %v4153 = vmax.f32 %v3945, 0.0
        %v4154 = vmax.f32 %v3946, 0.0
        %v4155 = vmax.f32 %v3947, 0.0
        %v4156 = vmax.f32 %v3948, 0.0
        %v4157 = vmax.f32 %v3949, 0.0
        %v4158 = vmax.f32 %v3950, 0.0
        %v4159 = vmax.f32 %v3951, 0.0
        %v4160 = vmax.f32 %v3952, 0.0
        %v4161 = vmax.f32 %v3953, 0.0
        %v4162 = vmax.f32 %v3954, 0.0
        %v4163 = vmax.f32 %v3955, 0.0
        %v4164 = vmax.f32 %v3956, 0.0
        %v4165 = vmax.f32 %v3957, 0.0
        %v4166 = vmax.f32 %v3958, 0.0
        %v4167 = vmax.f32 %v3959, 0.0
        %v4168 = vmax.f32 %v3960, 0.0
        %v4169 = vmax.f32 %v3961, 0.0
        %v4170 = vmax.f32 %v3962, 0.0
        %v4171 = vmax.f32 %v3963, 0.0
        %v4172 = vmax.f32 %v3964, 0.0
        %v4173 = vmax.f32 %v3965, 0.0
        %v4174 = vmax.f32 %v3966, 0.0
        %v4175 = vmax.f32 %v3967, 0.0
        %v4176 = vmax.f32 %v3968, 0.0
        %v4177 = vmax.f32 %v3969, 0.0
        %v4178 = vmax.f32 %v3970, 0.0
        %v4179 = vmax.f32 %v3971, 0.0
        %v4180 = vmax.f32 %v3972, 0.0
        %v4181 = vmax.f32 %v3973, 0.0
        %v4182 = vmax.f32 %v3974, 0.0
        %v4183 = vmax.f32 %v3975, 0.0
        %v4184 = vmax.f32 %v3976, 0.0
        %v4185 = vmax.f32 %v3977, 0.0
        %v4186 = vmax.f32 %v3978, 0.0
        %v4187 = vmax.f32 %v3979, 0.0
        %v4188 = vmax.f32 %v3980, 0.0
        %v4189 = vmax.f32 %v3981, 0.0
        %v4190 = vmax.f32 %v3982, 0.0
        %v4191 = vmax.f32 %v3983, 0.0
        %v4192 = vmax.f32 %v3984, 0.0
        %v4193 = vmax.f32 %v3985, 0.0
        %v4194 = vmax.f32 %v3986, 0.0
        %v4195 = vmax.f32 %v3987, 0.0
        %v4196 = vmax.f32 %v3988, 0.0
        %v4197 = vmax.f32 %v3989, 0.0
        %v4198 = vmax.f32 %v3990, 0.0
        %v4199 = vmax.f32 %v3991, 0.0
        %v4200 = vmax.f32 %v3992, 0.0
        %v4201 = vmax.f32 %v3993, 0.0
        %v4202 = vmax.f32 %v3994, 0.0
        %v4203 = vmax.f32 %v3995, 0.0
        %v4204 = vmax.f32 %v3996, 0.0
        %v4205 = vmax.f32 %v3997, 0.0
        %v4206 = vmax.f32 %v3998, 0.0
        %v4207 = vmax.f32 %v3999, 0.0
        %v4208 = vmax.f32 %v4000, 0.0
        %v4209 = vmax.f32 %v4001, 0.0
        %v4210 = vmax.f32 %v4002, 0.0
        %v4211 = vmax.f32 %v4003, 0.0
        %v4212 = vmax.f32 %v4004, 0.0
        %v4213 = vmax.f32 %v4005, 0.0
        %v4214 = vmax.f32 %v4006, 0.0
        %v4215 = vmax.f32 %v4007, 0.0
        %v4216 = vmax.f32 %v4008, 0.0
        %v4217 = vmax.f32 %v4009, 0.0
        %v4218 = vmax.f32 %v4010, 0.0
        %v4219 = vmax.f32 %v4011, 0.0
        %v4220 = vmax.f32 %v4012, 0.0
        %v4221 = vmax.f32 %v4013, 0.0
        %v4222 = vmax.f32 %v4014, 0.0
        %v4223 = vmax.f32 %v4015, 0.0
        %v4224 = vmax.f32 %v4016, 0.0
        %v4225 = vmax.f32 %v4017, 0.0
        %v4226 = vmax.f32 %v4018, 0.0
        %v4227 = vmax.f32 %v4019, 0.0
        %v4228 = vmax.f32 %v4020, 0.0
        %v4229 = vmax.f32 %v4021, 0.0
        %v4230 = vmax.f32 %v4022, 0.0
        %v4231 = vmax.f32 %v4023, 0.0
        %v4232 = vmax.f32 %v4024, 0.0
        %v4233 = vmax.f32 %v4025, 0.0
        %v4234 = vmax.f32 %v4026, 0.0
        %v4235 = vmax.f32 %v4027, 0.0
        %v4236 = vmax.f32 %v4028, 0.0
        %v4237 = vmax.f32 %v4029, 0.0
        %v4238 = vmax.f32 %v4030, 0.0
        %v4239 = vmax.f32 %v4031, 0.0
        %v4240 = vmax.f32 %v4032, 0.0
        %v4241 = vmax.f32 %v4033, 0.0
        %v4242 = vmax.f32 %v4034, 0.0
        %v4243 = vmax.f32 %v4035, 0.0
        %v4244 = vmax.f32 %v4036, 0.0
        %v4245 = vmax.f32 %v4037, 0.0
        %v4246 = vmax.f32 %v4038, 0.0
        %v4247 = vmax.f32 %v4039, 0.0
        %v4248 = vmax.f32 %v4040, 0.0
        %v4249 = vmax.f32 %v4041, 0.0
        %v4250 = vmax.f32 %v4042, 0.0
        %v4251 = vmax.f32 %v4043, 0.0
        %v4252 = vmax.f32 %v4044, 0.0
        %v4253 = vmax.f32 %v4045, 0.0
        %v4254 = vmax.f32 %v4046, 0.0
        %v4255 = vmax.f32 %v4047, 0.0
        %v4256 = vmax.f32 %v4048, 0.0
        %v4257 = vmax.f32 %v4049, 0.0
        %v4258 = vmax.f32 %v4050, 0.0
        %v4259 = vmax.f32 %v4051, 0.0
        %v4260 = vmax.f32 %v4052, 0.0
        %v4261 = vmax.f32 %v4053, 0.0
        %v4262 = vmax.f32 %v4054, 0.0
        %v4263 = vmax.f32 %v4055, 0.0
        %v4264 = vmax.f32 %v4056, 0.0
        %v4265 = vmax.f32 %v4057, 0.0
        %v4266 = vmax.f32 %v4058, 0.0
        %v4267 = vmax.f32 %v4059, 0.0
        %v4268 = vmax.f32 %v4060, 0.0
        %v4269 = vmax.f32 %v4061, 0.0
        %v4270 = vmax.f32 %v4062, 0.0
        %v4271 = vmax.f32 %v4063, 0.0
        %v4272 = vmax.f32 %v4064, 0.0
        %v4273 = vmax.f32 %v4065, 0.0
        %v4274 = vmax.f32 %v4066, 0.0
        %v4275 = vmax.f32 %v4067, 0.0
        %v4276 = vmax.f32 %v4068, 0.0
        %v4277 = vmax.f32 %v4069, 0.0
        %v4278 = vmax.f32 %v4070, 0.0
        %v4279 = vmax.f32 %v4071, 0.0
        %v4280 = vmax.f32 %v4072, 0.0
        %v4281 = vmax.f32 %v4073, 0.0
        %v4282 = vmax.f32 %v4074, 0.0
        %v4283 = vmax.f32 %v4075, 0.0
        %v4284 = vmax.f32 %v4076, 0.0
        %v4285 = vmax.f32 %v4077, 0.0
        %v4286 = vmax.f32 %v4078, 0.0
        %v4287 = vmax.f32 %v4079, 0.0
        %v4288 = vmax.f32 %v4080, 0.0
        %v4289 = vmax.f32 %v4081, 0.0
        %v4290 = vmax.f32 %v4082, 0.0
        %v4291 = vmax.f32 %v4083, 0.0
        %v4292 = vmax.f32 %v4084, 0.0
        %v4293 = vpack.c.bf16 %v4093, %v4085
        %v4294 = vpack.c.bf16 %v4094, %v4086
        %v4295 = vpack.c.bf16 %v4095, %v4087
        %v4296 = vpack.c.bf16 %v4096, %v4088
        %v4297 = vpack.c.bf16 %v4097, %v4089
        %v4298 = vpack.c.bf16 %v4098, %v4090
        %v4299 = vpack.c.bf16 %v4099, %v4091
        %v4300 = vpack.c.bf16 %v4100, %v4092
        %v4301 = vpack.c.bf16 %v4109, %v4101
        %v4302 = vpack.c.bf16 %v4110, %v4102
        %v4303 = vpack.c.bf16 %v4111, %v4103
        %v4304 = vpack.c.bf16 %v4112, %v4104
        %v4305 = vpack.c.bf16 %v4113, %v4105
        %v4306 = vpack.c.bf16 %v4114, %v4106
        %v4307 = vpack.c.bf16 %v4115, %v4107
        %v4308 = vpack.c.bf16 %v4116, %v4108
        %v4309 = vpack.c.bf16 %v4125, %v4117
        %v4310 = vpack.c.bf16 %v4126, %v4118
        %v4311 = vpack.c.bf16 %v4127, %v4119
        %v4312 = vpack.c.bf16 %v4128, %v4120
        %v4313 = vpack.c.bf16 %v4129, %v4121
        %v4314 = vpack.c.bf16 %v4130, %v4122
        %v4315 = vpack.c.bf16 %v4131, %v4123
        %v4316 = vpack.c.bf16 %v4132, %v4124
        %v4317 = vpack.c.bf16 %v4141, %v4133
        %v4318 = vpack.c.bf16 %v4142, %v4134
        %v4319 = vpack.c.bf16 %v4143, %v4135
        %v4320 = vpack.c.bf16 %v4144, %v4136
        %v4321 = vpack.c.bf16 %v4145, %v4137
        %v4322 = vpack.c.bf16 %v4146, %v4138
        %v4323 = vpack.c.bf16 %v4147, %v4139
        %v4324 = vpack.c.bf16 %v4148, %v4140
        %v4325 = vpack.c.bf16 %v4157, %v4149
        %v4326 = vpack.c.bf16 %v4158, %v4150
        %v4327 = vpack.c.bf16 %v4159, %v4151
        %v4328 = vpack.c.bf16 %v4160, %v4152
        %v4329 = vpack.c.bf16 %v4161, %v4153
        %v4330 = vpack.c.bf16 %v4162, %v4154
        %v4331 = vpack.c.bf16 %v4163, %v4155
        %v4332 = vpack.c.bf16 %v4164, %v4156
        %v4333 = vpack.c.bf16 %v4173, %v4165
        %v4334 = vpack.c.bf16 %v4174, %v4166
        %v4335 = vpack.c.bf16 %v4175, %v4167
        %v4336 = vpack.c.bf16 %v4176, %v4168
        %v4337 = vpack.c.bf16 %v4177, %v4169
        %v4338 = vpack.c.bf16 %v4178, %v4170
        %v4339 = vpack.c.bf16 %v4179, %v4171
        %v4340 = vpack.c.bf16 %v4180, %v4172
        %v4341 = vpack.c.bf16 %v4189, %v4181
        %v4342 = vpack.c.bf16 %v4190, %v4182
        %v4343 = vpack.c.bf16 %v4191, %v4183
        %v4344 = vpack.c.bf16 %v4192, %v4184
        %v4345 = vpack.c.bf16 %v4193, %v4185
        %v4346 = vpack.c.bf16 %v4194, %v4186
        %v4347 = vpack.c.bf16 %v4195, %v4187
        %v4348 = vpack.c.bf16 %v4196, %v4188
        %v4349 = vpack.c.bf16 %v4205, %v4197
        %v4350 = vpack.c.bf16 %v4206, %v4198
        %v4351 = vpack.c.bf16 %v4207, %v4199
        %v4352 = vpack.c.bf16 %v4208, %v4200
        %v4353 = vpack.c.bf16 %v4209, %v4201
        %v4354 = vpack.c.bf16 %v4210, %v4202
        %v4355 = vpack.c.bf16 %v4211, %v4203
        %v4356 = vpack.c.bf16 %v4212, %v4204
        %v4357 = vpack.c.bf16 %v4221, %v4213
        %v4358 = vpack.c.bf16 %v4222, %v4214
        %v4359 = vpack.c.bf16 %v4223, %v4215
        %v4360 = vpack.c.bf16 %v4224, %v4216
        %v4361 = vpack.c.bf16 %v4225, %v4217
        %v4362 = vpack.c.bf16 %v4226, %v4218
        %v4363 = vpack.c.bf16 %v4227, %v4219
        %v4364 = vpack.c.bf16 %v4228, %v4220
        %v4365 = vpack.c.bf16 %v4237, %v4229
        %v4366 = vpack.c.bf16 %v4238, %v4230
        %v4367 = vpack.c.bf16 %v4239, %v4231
        %v4368 = vpack.c.bf16 %v4240, %v4232
        %v4369 = vpack.c.bf16 %v4241, %v4233
        %v4370 = vpack.c.bf16 %v4242, %v4234
        %v4371 = vpack.c.bf16 %v4243, %v4235
        %v4372 = vpack.c.bf16 %v4244, %v4236
        %v4373 = vpack.c.bf16 %v4253, %v4245
        %v4374 = vpack.c.bf16 %v4254, %v4246
        %v4375 = vpack.c.bf16 %v4255, %v4247
        %v4376 = vpack.c.bf16 %v4256, %v4248
        %v4377 = vpack.c.bf16 %v4257, %v4249
        %v4378 = vpack.c.bf16 %v4258, %v4250
        %v4379 = vpack.c.bf16 %v4259, %v4251
        %v4380 = vpack.c.bf16 %v4260, %v4252
        %v4381 = vpack.c.bf16 %v4269, %v4261
        %v4382 = vpack.c.bf16 %v4270, %v4262
        %v4383 = vpack.c.bf16 %v4271, %v4263
        %v4384 = vpack.c.bf16 %v4272, %v4264
        %v4385 = vpack.c.bf16 %v4273, %v4265
        %v4386 = vpack.c.bf16 %v4274, %v4266
        %v4387 = vpack.c.bf16 %v4275, %v4267
        %v4388 = vpack.c.bf16 %v4276, %v4268
        %v4389 = vpack.c.bf16 %v4285, %v4277
        %v4390 = vpack.c.bf16 %v4286, %v4278
        %v4391 = vpack.c.bf16 %v4287, %v4279
        %v4392 = vpack.c.bf16 %v4288, %v4280
        %v4393 = vpack.c.bf16 %v4289, %v4281
        %v4394 = vpack.c.bf16 %v4290, %v4282
        %v4395 = vpack.c.bf16 %v4291, %v4283
        %v4396 = vpack.c.bf16 %v4292, %v4284
        %v4397 = vld [vmem:[#allocation2] sm:$0xff]
        %v4398 = vld [vmem:[#allocation2 + $0x8] sm:$0xff]
        %v4399 = vld [vmem:[#allocation2 + $0x10] sm:$0xff]
        %v4400 = vld [vmem:[#allocation2 + $0x18] sm:$0xff]
        %v4401 = vld [vmem:[#allocation2 + $0x20] sm:$0xff]
        %v4402 = vld [vmem:[#allocation2 + $0x28] sm:$0xff]
        %v4403 = vld [vmem:[#allocation2 + $0x30] sm:$0xff]
        %v4404 = vld [vmem:[#allocation2 + $0x38] sm:$0xff]
        %v4405 = vld [vmem:[#allocation2 + $0x40] sm:$0xff]
        %v4406 = vld [vmem:[#allocation2 + $0x48] sm:$0xff]
        %v4407 = vld [vmem:[#allocation2 + $0x50] sm:$0xff]
        %v4408 = vld [vmem:[#allocation2 + $0x58] sm:$0xff]
        %v4409 = vld [vmem:[#allocation2 + $0x60] sm:$0xff]
        %v4410 = vld [vmem:[#allocation2 + $0x68] sm:$0xff]
        %v4411 = vld [vmem:[#allocation2 + $0x70] sm:$0xff]
        %v4412 = vld [vmem:[#allocation2 + $0x78] sm:$0xff]
        %v4413 = vld [vmem:[#allocation2 + $0x80] sm:$0xff]
        %v4414 = vld [vmem:[#allocation2 + $0x88] sm:$0xff]
        %v4415 = vld [vmem:[#allocation2 + $0x90] sm:$0xff]
        %v4416 = vld [vmem:[#allocation2 + $0x98] sm:$0xff]
        %v4417 = vld [vmem:[#allocation2 + $0xa0] sm:$0xff]
        %v4418 = vld [vmem:[#allocation2 + $0xa8] sm:$0xff]
        %v4419 = vld [vmem:[#allocation2 + $0xb0] sm:$0xff]
        %v4420 = vld [vmem:[#allocation2 + $0xb8] sm:$0xff]
        %v4421 = vld [vmem:[#allocation2 + $0xc0] sm:$0xff]
        %v4422 = vld [vmem:[#allocation2 + $0xc8] sm:$0xff]
        %v4423 = vld [vmem:[#allocation2 + $0xd0] sm:$0xff]
        %v4424 = vld [vmem:[#allocation2 + $0xd8] sm:$0xff]
        %v4425 = vld [vmem:[#allocation2 + $0xe0] sm:$0xff]
        %v4426 = vld [vmem:[#allocation2 + $0xe8] sm:$0xff]
        %v4427 = vld [vmem:[#allocation2 + $0xf0] sm:$0xff]
        %v4428 = vld [vmem:[#allocation2 + $0xf8] sm:$0xff]
        %v4429 = vld [vmem:[#allocation2 + $0x100] sm:$0xff]
        %v4430 = vld [vmem:[#allocation2 + $0x108] sm:$0xff]
        %v4431 = vld [vmem:[#allocation2 + $0x110] sm:$0xff]
        %v4432 = vld [vmem:[#allocation2 + $0x118] sm:$0xff]
        %v4433 = vld [vmem:[#allocation2 + $0x120] sm:$0xff]
        %v4434 = vld [vmem:[#allocation2 + $0x128] sm:$0xff]
        %v4435 = vld [vmem:[#allocation2 + $0x130] sm:$0xff]
        %v4436 = vld [vmem:[#allocation2 + $0x138] sm:$0xff]
        %v4437 = vld [vmem:[#allocation2 + $0x140] sm:$0xff]
        %v4438 = vld [vmem:[#allocation2 + $0x148] sm:$0xff]
        %v4439 = vld [vmem:[#allocation2 + $0x150] sm:$0xff]
        %v4440 = vld [vmem:[#allocation2 + $0x158] sm:$0xff]
        %v4441 = vld [vmem:[#allocation2 + $0x160] sm:$0xff]
        %v4442 = vld [vmem:[#allocation2 + $0x168] sm:$0xff]
        %v4443 = vld [vmem:[#allocation2 + $0x170] sm:$0xff]
        %v4444 = vld [vmem:[#allocation2 + $0x178] sm:$0xff]
        %v4445 = vld [vmem:[#allocation2 + $0x180] sm:$0xff]
        %v4446 = vld [vmem:[#allocation2 + $0x188] sm:$0xff]
        %v4447 = vld [vmem:[#allocation2 + $0x190] sm:$0xff]
        %v4448 = vld [vmem:[#allocation2 + $0x198] sm:$0xff]
        %v4449 = vld [vmem:[#allocation2 + $0x1a0] sm:$0xff]
        %v4450 = vld [vmem:[#allocation2 + $0x1a8] sm:$0xff]
        %v4451 = vld [vmem:[#allocation2 + $0x1b0] sm:$0xff]
        %v4452 = vld [vmem:[#allocation2 + $0x1b8] sm:$0xff]
        %v4453 = vld [vmem:[#allocation2 + $0x1c0] sm:$0xff]
        %v4454 = vld [vmem:[#allocation2 + $0x1c8] sm:$0xff]
        %v4455 = vld [vmem:[#allocation2 + $0x1d0] sm:$0xff]
        %v4456 = vld [vmem:[#allocation2 + $0x1d8] sm:$0xff]
        %v4457 = vld [vmem:[#allocation2 + $0x1e0] sm:$0xff]
        %v4458 = vld [vmem:[#allocation2 + $0x1e8] sm:$0xff]
        %v4459 = vld [vmem:[#allocation2 + $0x1f0] sm:$0xff]
        %v4460 = vld [vmem:[#allocation2 + $0x1f8] sm:$0xff]
        %v4461 = vld [vmem:[#allocation2 + $0x200] sm:$0xff]
        %v4462 = vld [vmem:[#allocation2 + $0x208] sm:$0xff]
        %v4463 = vld [vmem:[#allocation2 + $0x210] sm:$0xff]
        %v4464 = vld [vmem:[#allocation2 + $0x218] sm:$0xff]
        %v4465 = vld [vmem:[#allocation2 + $0x220] sm:$0xff]
        %v4466 = vld [vmem:[#allocation2 + $0x228] sm:$0xff]
        %v4467 = vld [vmem:[#allocation2 + $0x230] sm:$0xff]
        %v4468 = vld [vmem:[#allocation2 + $0x238] sm:$0xff]
        %v4469 = vld [vmem:[#allocation2 + $0x240] sm:$0xff]
        %v4470 = vld [vmem:[#allocation2 + $0x248] sm:$0xff]
        %v4471 = vld [vmem:[#allocation2 + $0x250] sm:$0xff]
        %v4472 = vld [vmem:[#allocation2 + $0x258] sm:$0xff]
        %v4473 = vld [vmem:[#allocation2 + $0x260] sm:$0xff]
        %v4474 = vld [vmem:[#allocation2 + $0x268] sm:$0xff]
        %v4475 = vld [vmem:[#allocation2 + $0x270] sm:$0xff]
        %v4476 = vld [vmem:[#allocation2 + $0x278] sm:$0xff]
        %v4477 = vld [vmem:[#allocation2 + $0x280] sm:$0xff]
        %v4478 = vld [vmem:[#allocation2 + $0x288] sm:$0xff]
        %v4479 = vld [vmem:[#allocation2 + $0x290] sm:$0xff]
        %v4480 = vld [vmem:[#allocation2 + $0x298] sm:$0xff]
        %v4481 = vld [vmem:[#allocation2 + $0x2a0] sm:$0xff]
        %v4482 = vld [vmem:[#allocation2 + $0x2a8] sm:$0xff]
        %v4483 = vld [vmem:[#allocation2 + $0x2b0] sm:$0xff]
        %v4484 = vld [vmem:[#allocation2 + $0x2b8] sm:$0xff]
        %v4485 = vld [vmem:[#allocation2 + $0x2c0] sm:$0xff]
        %v4486 = vld [vmem:[#allocation2 + $0x2c8] sm:$0xff]
        %v4487 = vld [vmem:[#allocation2 + $0x2d0] sm:$0xff]
        %v4488 = vld [vmem:[#allocation2 + $0x2d8] sm:$0xff]
        %v4489 = vld [vmem:[#allocation2 + $0x2e0] sm:$0xff]
        %v4490 = vld [vmem:[#allocation2 + $0x2e8] sm:$0xff]
        %v4491 = vld [vmem:[#allocation2 + $0x2f0] sm:$0xff]
        %v4492 = vld [vmem:[#allocation2 + $0x2f8] sm:$0xff]
        %v4493 = vld [vmem:[#allocation2 + $0x300] sm:$0xff]
        %v4494 = vld [vmem:[#allocation2 + $0x308] sm:$0xff]
        %v4495 = vld [vmem:[#allocation2 + $0x310] sm:$0xff]
        %v4496 = vld [vmem:[#allocation2 + $0x318] sm:$0xff]
        %v4497 = vld [vmem:[#allocation2 + $0x320] sm:$0xff]
        %v4498 = vld [vmem:[#allocation2 + $0x328] sm:$0xff]
        %v4499 = vld [vmem:[#allocation2 + $0x330] sm:$0xff]
        %v4500 = vld [vmem:[#allocation2 + $0x338] sm:$0xff]
        %v4501 = vld [vmem:[#allocation2 + $0x340] sm:$0xff]
        %v4502 = vld [vmem:[#allocation2 + $0x348] sm:$0xff]
        %v4503 = vld [vmem:[#allocation2 + $0x350] sm:$0xff]
        %v4504 = vld [vmem:[#allocation2 + $0x358] sm:$0xff]
        %v4505 = vld [vmem:[#allocation2 + $0x360] sm:$0xff]
        %v4506 = vld [vmem:[#allocation2 + $0x368] sm:$0xff]
        %v4507 = vld [vmem:[#allocation2 + $0x370] sm:$0xff]
        %v4508 = vld [vmem:[#allocation2 + $0x378] sm:$0xff]
        %v4509 = vld [vmem:[#allocation2 + $0x380] sm:$0xff]
        %v4510 = vld [vmem:[#allocation2 + $0x388] sm:$0xff]
        %v4511 = vld [vmem:[#allocation2 + $0x390] sm:$0xff]
        %v4512 = vld [vmem:[#allocation2 + $0x398] sm:$0xff]
        %v4513 = vld [vmem:[#allocation2 + $0x3a0] sm:$0xff]
        %v4514 = vld [vmem:[#allocation2 + $0x3a8] sm:$0xff]
        %v4515 = vld [vmem:[#allocation2 + $0x3b0] sm:$0xff]
        %v4516 = vld [vmem:[#allocation2 + $0x3b8] sm:$0xff]
        %v4517 = vld [vmem:[#allocation2 + $0x3c0] sm:$0xff]
        %v4518 = vld [vmem:[#allocation2 + $0x3c8] sm:$0xff]
        %v4519 = vld [vmem:[#allocation2 + $0x3d0] sm:$0xff]
        %v4520 = vld [vmem:[#allocation2 + $0x3d8] sm:$0xff]
        %v4521 = vld [vmem:[#allocation2 + $0x3e0] sm:$0xff]
        %v4522 = vld [vmem:[#allocation2 + $0x3e8] sm:$0xff]
        %v4523 = vld [vmem:[#allocation2 + $0x3f0] sm:$0xff]
        %v4524 = vld [vmem:[#allocation2 + $0x3f8] sm:$0xff]
        %v4525 = vld [vmem:[#allocation2 + $0x400] sm:$0xff]
        %v4526 = vld [vmem:[#allocation2 + $0x408] sm:$0xff]
        %v4527 = vld [vmem:[#allocation2 + $0x410] sm:$0xff]
        %v4528 = vld [vmem:[#allocation2 + $0x418] sm:$0xff]
        %v4529 = vld [vmem:[#allocation2 + $0x420] sm:$0xff]
        %v4530 = vld [vmem:[#allocation2 + $0x428] sm:$0xff]
        %v4531 = vld [vmem:[#allocation2 + $0x430] sm:$0xff]
        %v4532 = vld [vmem:[#allocation2 + $0x438] sm:$0xff]
        %v4533 = vld [vmem:[#allocation2 + $0x440] sm:$0xff]
        %v4534 = vld [vmem:[#allocation2 + $0x448] sm:$0xff]
        %v4535 = vld [vmem:[#allocation2 + $0x450] sm:$0xff]
        %v4536 = vld [vmem:[#allocation2 + $0x458] sm:$0xff]
        %v4537 = vld [vmem:[#allocation2 + $0x460] sm:$0xff]
        %v4538 = vld [vmem:[#allocation2 + $0x468] sm:$0xff]
        %v4539 = vld [vmem:[#allocation2 + $0x470] sm:$0xff]
        %v4540 = vld [vmem:[#allocation2 + $0x478] sm:$0xff]
        %v4541 = vld [vmem:[#allocation2 + $0x480] sm:$0xff]
        %v4542 = vld [vmem:[#allocation2 + $0x488] sm:$0xff]
        %v4543 = vld [vmem:[#allocation2 + $0x490] sm:$0xff]
        %v4544 = vld [vmem:[#allocation2 + $0x498] sm:$0xff]
        %v4545 = vld [vmem:[#allocation2 + $0x4a0] sm:$0xff]
        %v4546 = vld [vmem:[#allocation2 + $0x4a8] sm:$0xff]
        %v4547 = vld [vmem:[#allocation2 + $0x4b0] sm:$0xff]
        %v4548 = vld [vmem:[#allocation2 + $0x4b8] sm:$0xff]
        %v4549 = vld [vmem:[#allocation2 + $0x4c0] sm:$0xff]
        %v4550 = vld [vmem:[#allocation2 + $0x4c8] sm:$0xff]
        %v4551 = vld [vmem:[#allocation2 + $0x4d0] sm:$0xff]
        %v4552 = vld [vmem:[#allocation2 + $0x4d8] sm:$0xff]
        %v4553 = vld [vmem:[#allocation2 + $0x4e0] sm:$0xff]
        %v4554 = vld [vmem:[#allocation2 + $0x4e8] sm:$0xff]
        %v4555 = vld [vmem:[#allocation2 + $0x4f0] sm:$0xff]
        %v4556 = vld [vmem:[#allocation2 + $0x4f8] sm:$0xff]
        %v4557 = vld [vmem:[#allocation2 + $0x500] sm:$0xff]
        %v4558 = vld [vmem:[#allocation2 + $0x508] sm:$0xff]
        %v4559 = vld [vmem:[#allocation2 + $0x510] sm:$0xff]
        %v4560 = vld [vmem:[#allocation2 + $0x518] sm:$0xff]
        %v4561 = vld [vmem:[#allocation2 + $0x520] sm:$0xff]
        %v4562 = vld [vmem:[#allocation2 + $0x528] sm:$0xff]
        %v4563 = vld [vmem:[#allocation2 + $0x530] sm:$0xff]
        %v4564 = vld [vmem:[#allocation2 + $0x538] sm:$0xff]
        %v4565 = vld [vmem:[#allocation2 + $0x540] sm:$0xff]
        %v4566 = vld [vmem:[#allocation2 + $0x548] sm:$0xff]
        %v4567 = vld [vmem:[#allocation2 + $0x550] sm:$0xff]
        %v4568 = vld [vmem:[#allocation2 + $0x558] sm:$0xff]
        %v4569 = vld [vmem:[#allocation2 + $0x560] sm:$0xff]
        %v4570 = vld [vmem:[#allocation2 + $0x568] sm:$0xff]
        %v4571 = vld [vmem:[#allocation2 + $0x570] sm:$0xff]
        %v4572 = vld [vmem:[#allocation2 + $0x578] sm:$0xff]
        %v4573 = vld [vmem:[#allocation2 + $0x580] sm:$0xff]
        %v4574 = vld [vmem:[#allocation2 + $0x588] sm:$0xff]
        %v4575 = vld [vmem:[#allocation2 + $0x590] sm:$0xff]
        %v4576 = vld [vmem:[#allocation2 + $0x598] sm:$0xff]
        %v4577 = vld [vmem:[#allocation2 + $0x5a0] sm:$0xff]
        %v4578 = vld [vmem:[#allocation2 + $0x5a8] sm:$0xff]
        %v4579 = vld [vmem:[#allocation2 + $0x5b0] sm:$0xff]
        %v4580 = vld [vmem:[#allocation2 + $0x5b8] sm:$0xff]
        %v4581 = vld [vmem:[#allocation2 + $0x5c0] sm:$0xff]
        %v4582 = vld [vmem:[#allocation2 + $0x5c8] sm:$0xff]
        %v4583 = vld [vmem:[#allocation2 + $0x5d0] sm:$0xff]
        %v4584 = vld [vmem:[#allocation2 + $0x5d8] sm:$0xff]
        %v4585 = vld [vmem:[#allocation2 + $0x5e0] sm:$0xff]
        %v4586 = vld [vmem:[#allocation2 + $0x5e8] sm:$0xff]
        %v4587 = vld [vmem:[#allocation2 + $0x5f0] sm:$0xff]
        %v4588 = vld [vmem:[#allocation2 + $0x5f8] sm:$0xff]
        %v4589 = vld [vmem:[#allocation2 + $0x600] sm:$0xff]
        %v4590 = vld [vmem:[#allocation2 + $0x608] sm:$0xff]
        %v4591 = vld [vmem:[#allocation2 + $0x610] sm:$0xff]
        %v4592 = vld [vmem:[#allocation2 + $0x618] sm:$0xff]
        %v4593 = vld [vmem:[#allocation2 + $0x620] sm:$0xff]
        %v4594 = vld [vmem:[#allocation2 + $0x628] sm:$0xff]
        %v4595 = vld [vmem:[#allocation2 + $0x630] sm:$0xff]
        %v4596 = vld [vmem:[#allocation2 + $0x638] sm:$0xff]
        %v4597 = vld [vmem:[#allocation2 + $0x640] sm:$0xff]
        %v4598 = vld [vmem:[#allocation2 + $0x648] sm:$0xff]
        %v4599 = vld [vmem:[#allocation2 + $0x650] sm:$0xff]
        %v4600 = vld [vmem:[#allocation2 + $0x658] sm:$0xff]
        %v4601 = vld [vmem:[#allocation2 + $0x660] sm:$0xff]
        %v4602 = vld [vmem:[#allocation2 + $0x668] sm:$0xff]
        %v4603 = vld [vmem:[#allocation2 + $0x670] sm:$0xff]
        %v4604 = vld [vmem:[#allocation2 + $0x678] sm:$0xff]
        %v4605 = vld [vmem:[#allocation2 + $0x680] sm:$0xff]
        %v4606 = vld [vmem:[#allocation2 + $0x688] sm:$0xff]
        %v4607 = vld [vmem:[#allocation2 + $0x690] sm:$0xff]
        %v4608 = vld [vmem:[#allocation2 + $0x698] sm:$0xff]
        %v4609 = vld [vmem:[#allocation2 + $0x6a0] sm:$0xff]
        %v4610 = vld [vmem:[#allocation2 + $0x6a8] sm:$0xff]
        %v4611 = vld [vmem:[#allocation2 + $0x6b0] sm:$0xff]
        %v4612 = vld [vmem:[#allocation2 + $0x6b8] sm:$0xff]
        %v4613 = vld [vmem:[#allocation2 + $0x6c0] sm:$0xff]
        %v4614 = vld [vmem:[#allocation2 + $0x6c8] sm:$0xff]
        %v4615 = vld [vmem:[#allocation2 + $0x6d0] sm:$0xff]
        %v4616 = vld [vmem:[#allocation2 + $0x6d8] sm:$0xff]
        %v4617 = vld [vmem:[#allocation2 + $0x6e0] sm:$0xff]
        %v4618 = vld [vmem:[#allocation2 + $0x6e8] sm:$0xff]
        %v4619 = vld [vmem:[#allocation2 + $0x6f0] sm:$0xff]
        %v4620 = vld [vmem:[#allocation2 + $0x6f8] sm:$0xff]
        %v4621 = vld [vmem:[#allocation2 + $0x700] sm:$0xff]
        %v4622 = vld [vmem:[#allocation2 + $0x708] sm:$0xff]
        %v4623 = vld [vmem:[#allocation2 + $0x710] sm:$0xff]
        %v4624 = vld [vmem:[#allocation2 + $0x718] sm:$0xff]
        %v4625 = vld [vmem:[#allocation2 + $0x720] sm:$0xff]
        %v4626 = vld [vmem:[#allocation2 + $0x728] sm:$0xff]
        %v4627 = vld [vmem:[#allocation2 + $0x730] sm:$0xff]
        %v4628 = vld [vmem:[#allocation2 + $0x738] sm:$0xff]
        %v4629 = vld [vmem:[#allocation2 + $0x740] sm:$0xff]
        %v4630 = vld [vmem:[#allocation2 + $0x748] sm:$0xff]
        %v4631 = vld [vmem:[#allocation2 + $0x750] sm:$0xff]
        %v4632 = vld [vmem:[#allocation2 + $0x758] sm:$0xff]
        %v4633 = vld [vmem:[#allocation2 + $0x760] sm:$0xff]
        %v4634 = vld [vmem:[#allocation2 + $0x768] sm:$0xff]
        %v4635 = vld [vmem:[#allocation2 + $0x770] sm:$0xff]
        %v4636 = vld [vmem:[#allocation2 + $0x778] sm:$0xff]
        %v4637 = vld [vmem:[#allocation2 + $0x780] sm:$0xff]
        %v4638 = vld [vmem:[#allocation2 + $0x788] sm:$0xff]
        %v4639 = vld [vmem:[#allocation2 + $0x790] sm:$0xff]
        %v4640 = vld [vmem:[#allocation2 + $0x798] sm:$0xff]
        %v4641 = vld [vmem:[#allocation2 + $0x7a0] sm:$0xff]
        %v4642 = vld [vmem:[#allocation2 + $0x7a8] sm:$0xff]
        %v4643 = vld [vmem:[#allocation2 + $0x7b0] sm:$0xff]
        %v4644 = vld [vmem:[#allocation2 + $0x7b8] sm:$0xff]
        %v4645 = vld [vmem:[#allocation2 + $0x7c0] sm:$0xff]
        %v4646 = vld [vmem:[#allocation2 + $0x7c8] sm:$0xff]
        %v4647 = vld [vmem:[#allocation2 + $0x7d0] sm:$0xff]
        %v4648 = vld [vmem:[#allocation2 + $0x7d8] sm:$0xff]
        %v4649 = vld [vmem:[#allocation2 + $0x7e0] sm:$0xff]
        %v4650 = vld [vmem:[#allocation2 + $0x7e8] sm:$0xff]
        %v4651 = vld [vmem:[#allocation2 + $0x7f0] sm:$0xff]
        %v4652 = vld [vmem:[#allocation2 + $0x7f8] sm:$0xff]
        %v4909 = vunpack.c.l.b16 %v4397
        %v4910 = vunpack.c.h.b16 %v4397
        %v4911 = vunpack.c.l.b16 %v4398
        %v4912 = vunpack.c.h.b16 %v4398
        %v4913 = vunpack.c.l.b16 %v4399
        %v4914 = vunpack.c.h.b16 %v4399
        %v4915 = vunpack.c.l.b16 %v4400
        %v4916 = vunpack.c.h.b16 %v4400
        %v4917 = vunpack.c.l.b16 %v4401
        %v4918 = vunpack.c.h.b16 %v4401
        %v4919 = vunpack.c.l.b16 %v4402
        %v4920 = vunpack.c.h.b16 %v4402
        %v4921 = vunpack.c.l.b16 %v4403
        %v4922 = vunpack.c.h.b16 %v4403
        %v4923 = vunpack.c.l.b16 %v4404
        %v4924 = vunpack.c.h.b16 %v4404
        %v4925 = vunpack.c.l.b16 %v4405
        %v4926 = vunpack.c.h.b16 %v4405
        %v4927 = vunpack.c.l.b16 %v4406
        %v4928 = vunpack.c.h.b16 %v4406
        %v4929 = vunpack.c.l.b16 %v4407
        %v4930 = vunpack.c.h.b16 %v4407
        %v4931 = vunpack.c.l.b16 %v4408
        %v4932 = vunpack.c.h.b16 %v4408
        %v4933 = vunpack.c.l.b16 %v4409
        %v4934 = vunpack.c.h.b16 %v4409
        %v4935 = vunpack.c.l.b16 %v4410
        %v4936 = vunpack.c.h.b16 %v4410
        %v4937 = vunpack.c.l.b16 %v4411
        %v4938 = vunpack.c.h.b16 %v4411
        %v4939 = vunpack.c.l.b16 %v4412
        %v4940 = vunpack.c.h.b16 %v4412
        %v4941 = vunpack.c.l.b16 %v4413
        %v4942 = vunpack.c.h.b16 %v4413
        %v4943 = vunpack.c.l.b16 %v4414
        %v4944 = vunpack.c.h.b16 %v4414
        %v4945 = vunpack.c.l.b16 %v4415
        %v4946 = vunpack.c.h.b16 %v4415
        %v4947 = vunpack.c.l.b16 %v4416
        %v4948 = vunpack.c.h.b16 %v4416
        %v4949 = vunpack.c.l.b16 %v4417
        %v4950 = vunpack.c.h.b16 %v4417
        %v4951 = vunpack.c.l.b16 %v4418
        %v4952 = vunpack.c.h.b16 %v4418
        %v4953 = vunpack.c.l.b16 %v4419
        %v4954 = vunpack.c.h.b16 %v4419
        %v4955 = vunpack.c.l.b16 %v4420
        %v4956 = vunpack.c.h.b16 %v4420
        %v4957 = vunpack.c.l.b16 %v4421
        %v4958 = vunpack.c.h.b16 %v4421
        %v4959 = vunpack.c.l.b16 %v4422
        %v4960 = vunpack.c.h.b16 %v4422
        %v4961 = vunpack.c.l.b16 %v4423
        %v4962 = vunpack.c.h.b16 %v4423
        %v4963 = vunpack.c.l.b16 %v4424
        %v4964 = vunpack.c.h.b16 %v4424
        %v4965 = vunpack.c.l.b16 %v4425
        %v4966 = vunpack.c.h.b16 %v4425
        %v4967 = vunpack.c.l.b16 %v4426
        %v4968 = vunpack.c.h.b16 %v4426
        %v4969 = vunpack.c.l.b16 %v4427
        %v4970 = vunpack.c.h.b16 %v4427
        %v4971 = vunpack.c.l.b16 %v4428
        %v4972 = vunpack.c.h.b16 %v4428
        %v4973 = vunpack.c.l.b16 %v4429
        %v4974 = vunpack.c.h.b16 %v4429
        %v4975 = vunpack.c.l.b16 %v4430
        %v4976 = vunpack.c.h.b16 %v4430
        %v4977 = vunpack.c.l.b16 %v4431
        %v4978 = vunpack.c.h.b16 %v4431
        %v4979 = vunpack.c.l.b16 %v4432
        %v4980 = vunpack.c.h.b16 %v4432
        %v4981 = vunpack.c.l.b16 %v4433
        %v4982 = vunpack.c.h.b16 %v4433
        %v4983 = vunpack.c.l.b16 %v4434
        %v4984 = vunpack.c.h.b16 %v4434
        %v4985 = vunpack.c.l.b16 %v4435
        %v4986 = vunpack.c.h.b16 %v4435
        %v4987 = vunpack.c.l.b16 %v4436
        %v4988 = vunpack.c.h.b16 %v4436
        %v4989 = vunpack.c.l.b16 %v4437
        %v4990 = vunpack.c.h.b16 %v4437
        %v4991 = vunpack.c.l.b16 %v4438
        %v4992 = vunpack.c.h.b16 %v4438
        %v4993 = vunpack.c.l.b16 %v4439
        %v4994 = vunpack.c.h.b16 %v4439
        %v4995 = vunpack.c.l.b16 %v4440
        %v4996 = vunpack.c.h.b16 %v4440
        %v4997 = vunpack.c.l.b16 %v4441
        %v4998 = vunpack.c.h.b16 %v4441
        %v4999 = vunpack.c.l.b16 %v4442
        %v5000 = vunpack.c.h.b16 %v4442
        %v5001 = vunpack.c.l.b16 %v4443
        %v5002 = vunpack.c.h.b16 %v4443
        %v5003 = vunpack.c.l.b16 %v4444
        %v5004 = vunpack.c.h.b16 %v4444
        %v5005 = vunpack.c.l.b16 %v4445
        %v5006 = vunpack.c.h.b16 %v4445
        %v5007 = vunpack.c.l.b16 %v4446
        %v5008 = vunpack.c.h.b16 %v4446
        %v5009 = vunpack.c.l.b16 %v4447
        %v5010 = vunpack.c.h.b16 %v4447
        %v5011 = vunpack.c.l.b16 %v4448
        %v5012 = vunpack.c.h.b16 %v4448
        %v5013 = vunpack.c.l.b16 %v4449
        %v5014 = vunpack.c.h.b16 %v4449
        %v5015 = vunpack.c.l.b16 %v4450
        %v5016 = vunpack.c.h.b16 %v4450
        %v5017 = vunpack.c.l.b16 %v4451
        %v5018 = vunpack.c.h.b16 %v4451
        %v5019 = vunpack.c.l.b16 %v4452
        %v5020 = vunpack.c.h.b16 %v4452
        %v5021 = vunpack.c.l.b16 %v4453
        %v5022 = vunpack.c.h.b16 %v4453
        %v5023 = vunpack.c.l.b16 %v4454
        %v5024 = vunpack.c.h.b16 %v4454
        %v5025 = vunpack.c.l.b16 %v4455
        %v5026 = vunpack.c.h.b16 %v4455
        %v5027 = vunpack.c.l.b16 %v4456
        %v5028 = vunpack.c.h.b16 %v4456
        %v5029 = vunpack.c.l.b16 %v4457
        %v5030 = vunpack.c.h.b16 %v4457
        %v5031 = vunpack.c.l.b16 %v4458
        %v5032 = vunpack.c.h.b16 %v4458
        %v5033 = vunpack.c.l.b16 %v4459
        %v5034 = vunpack.c.h.b16 %v4459
        %v5035 = vunpack.c.l.b16 %v4460
        %v5036 = vunpack.c.h.b16 %v4460
        %v5037 = vunpack.c.l.b16 %v4461
        %v5038 = vunpack.c.h.b16 %v4461
        %v5039 = vunpack.c.l.b16 %v4462
        %v5040 = vunpack.c.h.b16 %v4462
        %v5041 = vunpack.c.l.b16 %v4463
        %v5042 = vunpack.c.h.b16 %v4463
        %v5043 = vunpack.c.l.b16 %v4464
        %v5044 = vunpack.c.h.b16 %v4464
        %v5045 = vunpack.c.l.b16 %v4465
        %v5046 = vunpack.c.h.b16 %v4465
        %v5047 = vunpack.c.l.b16 %v4466
        %v5048 = vunpack.c.h.b16 %v4466
        %v5049 = vunpack.c.l.b16 %v4467
        %v5050 = vunpack.c.h.b16 %v4467
        %v5051 = vunpack.c.l.b16 %v4468
        %v5052 = vunpack.c.h.b16 %v4468
        %v5053 = vunpack.c.l.b16 %v4469
        %v5054 = vunpack.c.h.b16 %v4469
        %v5055 = vunpack.c.l.b16 %v4470
        %v5056 = vunpack.c.h.b16 %v4470
        %v5057 = vunpack.c.l.b16 %v4471
        %v5058 = vunpack.c.h.b16 %v4471
        %v5059 = vunpack.c.l.b16 %v4472
        %v5060 = vunpack.c.h.b16 %v4472
        %v5061 = vunpack.c.l.b16 %v4473
        %v5062 = vunpack.c.h.b16 %v4473
        %v5063 = vunpack.c.l.b16 %v4474
        %v5064 = vunpack.c.h.b16 %v4474
        %v5065 = vunpack.c.l.b16 %v4475
        %v5066 = vunpack.c.h.b16 %v4475
        %v5067 = vunpack.c.l.b16 %v4476
        %v5068 = vunpack.c.h.b16 %v4476
        %v5069 = vunpack.c.l.b16 %v4477
        %v5070 = vunpack.c.h.b16 %v4477
        %v5071 = vunpack.c.l.b16 %v4478
        %v5072 = vunpack.c.h.b16 %v4478
        %v5073 = vunpack.c.l.b16 %v4479
        %v5074 = vunpack.c.h.b16 %v4479
        %v5075 = vunpack.c.l.b16 %v4480
        %v5076 = vunpack.c.h.b16 %v4480
        %v5077 = vunpack.c.l.b16 %v4481
        %v5078 = vunpack.c.h.b16 %v4481
        %v5079 = vunpack.c.l.b16 %v4482
        %v5080 = vunpack.c.h.b16 %v4482
        %v5081 = vunpack.c.l.b16 %v4483
        %v5082 = vunpack.c.h.b16 %v4483
        %v5083 = vunpack.c.l.b16 %v4484
        %v5084 = vunpack.c.h.b16 %v4484
        %v5085 = vunpack.c.l.b16 %v4485
        %v5086 = vunpack.c.h.b16 %v4485
        %v5087 = vunpack.c.l.b16 %v4486
        %v5088 = vunpack.c.h.b16 %v4486
        %v5089 = vunpack.c.l.b16 %v4487
        %v5090 = vunpack.c.h.b16 %v4487
        %v5091 = vunpack.c.l.b16 %v4488
        %v5092 = vunpack.c.h.b16 %v4488
        %v5093 = vunpack.c.l.b16 %v4489
        %v5094 = vunpack.c.h.b16 %v4489
        %v5095 = vunpack.c.l.b16 %v4490
        %v5096 = vunpack.c.h.b16 %v4490
        %v5097 = vunpack.c.l.b16 %v4491
        %v5098 = vunpack.c.h.b16 %v4491
        %v5099 = vunpack.c.l.b16 %v4492
        %v5100 = vunpack.c.h.b16 %v4492
        %v5101 = vunpack.c.l.b16 %v4493
        %v5102 = vunpack.c.h.b16 %v4493
        %v5103 = vunpack.c.l.b16 %v4494
        %v5104 = vunpack.c.h.b16 %v4494
        %v5105 = vunpack.c.l.b16 %v4495
        %v5106 = vunpack.c.h.b16 %v4495
        %v5107 = vunpack.c.l.b16 %v4496
        %v5108 = vunpack.c.h.b16 %v4496
        %v5109 = vunpack.c.l.b16 %v4497
        %v5110 = vunpack.c.h.b16 %v4497
        %v5111 = vunpack.c.l.b16 %v4498
        %v5112 = vunpack.c.h.b16 %v4498
        %v5113 = vunpack.c.l.b16 %v4499
        %v5114 = vunpack.c.h.b16 %v4499
        %v5115 = vunpack.c.l.b16 %v4500
        %v5116 = vunpack.c.h.b16 %v4500
        %v5117 = vunpack.c.l.b16 %v4501
        %v5118 = vunpack.c.h.b16 %v4501
        %v5119 = vunpack.c.l.b16 %v4502
        %v5120 = vunpack.c.h.b16 %v4502
        %v5121 = vunpack.c.l.b16 %v4503
        %v5122 = vunpack.c.h.b16 %v4503
        %v5123 = vunpack.c.l.b16 %v4504
        %v5124 = vunpack.c.h.b16 %v4504
        %v5125 = vunpack.c.l.b16 %v4505
        %v5126 = vunpack.c.h.b16 %v4505
        %v5127 = vunpack.c.l.b16 %v4506
        %v5128 = vunpack.c.h.b16 %v4506
        %v5129 = vunpack.c.l.b16 %v4507
        %v5130 = vunpack.c.h.b16 %v4507
        %v5131 = vunpack.c.l.b16 %v4508
        %v5132 = vunpack.c.h.b16 %v4508
        %v5133 = vunpack.c.l.b16 %v4509
        %v5134 = vunpack.c.h.b16 %v4509
        %v5135 = vunpack.c.l.b16 %v4510
        %v5136 = vunpack.c.h.b16 %v4510
        %v5137 = vunpack.c.l.b16 %v4511
        %v5138 = vunpack.c.h.b16 %v4511
        %v5139 = vunpack.c.l.b16 %v4512
        %v5140 = vunpack.c.h.b16 %v4512
        %v5141 = vunpack.c.l.b16 %v4513
        %v5142 = vunpack.c.h.b16 %v4513
        %v5143 = vunpack.c.l.b16 %v4514
        %v5144 = vunpack.c.h.b16 %v4514
        %v5145 = vunpack.c.l.b16 %v4515
        %v5146 = vunpack.c.h.b16 %v4515
        %v5147 = vunpack.c.l.b16 %v4516
        %v5148 = vunpack.c.h.b16 %v4516
        %v5149 = vunpack.c.l.b16 %v4517
        %v5150 = vunpack.c.h.b16 %v4517
        %v5151 = vunpack.c.l.b16 %v4518
        %v5152 = vunpack.c.h.b16 %v4518
        %v5153 = vunpack.c.l.b16 %v4519
        %v5154 = vunpack.c.h.b16 %v4519
        %v5155 = vunpack.c.l.b16 %v4520
        %v5156 = vunpack.c.h.b16 %v4520
        %v5157 = vunpack.c.l.b16 %v4521
        %v5158 = vunpack.c.h.b16 %v4521
        %v5159 = vunpack.c.l.b16 %v4522
        %v5160 = vunpack.c.h.b16 %v4522
        %v5161 = vunpack.c.l.b16 %v4523
        %v5162 = vunpack.c.h.b16 %v4523
        %v5163 = vunpack.c.l.b16 %v4524
        %v5164 = vunpack.c.h.b16 %v4524
        %v5165 = vunpack.c.l.b16 %v4525
        %v5166 = vunpack.c.h.b16 %v4525
        %v5167 = vunpack.c.l.b16 %v4526
        %v5168 = vunpack.c.h.b16 %v4526
        %v5169 = vunpack.c.l.b16 %v4527
        %v5170 = vunpack.c.h.b16 %v4527
        %v5171 = vunpack.c.l.b16 %v4528
        %v5172 = vunpack.c.h.b16 %v4528
        %v5173 = vunpack.c.l.b16 %v4529
        %v5174 = vunpack.c.h.b16 %v4529
        %v5175 = vunpack.c.l.b16 %v4530
        %v5176 = vunpack.c.h.b16 %v4530
        %v5177 = vunpack.c.l.b16 %v4531
        %v5178 = vunpack.c.h.b16 %v4531
        %v5179 = vunpack.c.l.b16 %v4532
        %v5180 = vunpack.c.h.b16 %v4532
        %v5181 = vunpack.c.l.b16 %v4533
        %v5182 = vunpack.c.h.b16 %v4533
        %v5183 = vunpack.c.l.b16 %v4534
        %v5184 = vunpack.c.h.b16 %v4534
        %v5185 = vunpack.c.l.b16 %v4535
        %v5186 = vunpack.c.h.b16 %v4535
        %v5187 = vunpack.c.l.b16 %v4536
        %v5188 = vunpack.c.h.b16 %v4536
        %v5189 = vunpack.c.l.b16 %v4537
        %v5190 = vunpack.c.h.b16 %v4537
        %v5191 = vunpack.c.l.b16 %v4538
        %v5192 = vunpack.c.h.b16 %v4538
        %v5193 = vunpack.c.l.b16 %v4539
        %v5194 = vunpack.c.h.b16 %v4539
        %v5195 = vunpack.c.l.b16 %v4540
        %v5196 = vunpack.c.h.b16 %v4540
        %v5197 = vunpack.c.l.b16 %v4541
        %v5198 = vunpack.c.h.b16 %v4541
        %v5199 = vunpack.c.l.b16 %v4542
        %v5200 = vunpack.c.h.b16 %v4542
        %v5201 = vunpack.c.l.b16 %v4543
        %v5202 = vunpack.c.h.b16 %v4543
        %v5203 = vunpack.c.l.b16 %v4544
        %v5204 = vunpack.c.h.b16 %v4544
        %v5205 = vunpack.c.l.b16 %v4545
        %v5206 = vunpack.c.h.b16 %v4545
        %v5207 = vunpack.c.l.b16 %v4546
        %v5208 = vunpack.c.h.b16 %v4546
        %v5209 = vunpack.c.l.b16 %v4547
        %v5210 = vunpack.c.h.b16 %v4547
        %v5211 = vunpack.c.l.b16 %v4548
        %v5212 = vunpack.c.h.b16 %v4548
        %v5213 = vunpack.c.l.b16 %v4549
        %v5214 = vunpack.c.h.b16 %v4549
        %v5215 = vunpack.c.l.b16 %v4550
        %v5216 = vunpack.c.h.b16 %v4550
        %v5217 = vunpack.c.l.b16 %v4551
        %v5218 = vunpack.c.h.b16 %v4551
        %v5219 = vunpack.c.l.b16 %v4552
        %v5220 = vunpack.c.h.b16 %v4552
        %v5221 = vunpack.c.l.b16 %v4553
        %v5222 = vunpack.c.h.b16 %v4553
        %v5223 = vunpack.c.l.b16 %v4554
        %v5224 = vunpack.c.h.b16 %v4554
        %v5225 = vunpack.c.l.b16 %v4555
        %v5226 = vunpack.c.h.b16 %v4555
        %v5227 = vunpack.c.l.b16 %v4556
        %v5228 = vunpack.c.h.b16 %v4556
        %v5229 = vunpack.c.l.b16 %v4557
        %v5230 = vunpack.c.h.b16 %v4557
        %v5231 = vunpack.c.l.b16 %v4558
        %v5232 = vunpack.c.h.b16 %v4558
        %v5233 = vunpack.c.l.b16 %v4559
        %v5234 = vunpack.c.h.b16 %v4559
        %v5235 = vunpack.c.l.b16 %v4560
        %v5236 = vunpack.c.h.b16 %v4560
        %v5237 = vunpack.c.l.b16 %v4561
        %v5238 = vunpack.c.h.b16 %v4561
        %v5239 = vunpack.c.l.b16 %v4562
        %v5240 = vunpack.c.h.b16 %v4562
        %v5241 = vunpack.c.l.b16 %v4563
        %v5242 = vunpack.c.h.b16 %v4563
        %v5243 = vunpack.c.l.b16 %v4564
        %v5244 = vunpack.c.h.b16 %v4564
        %v5245 = vunpack.c.l.b16 %v4565
        %v5246 = vunpack.c.h.b16 %v4565
        %v5247 = vunpack.c.l.b16 %v4566
        %v5248 = vunpack.c.h.b16 %v4566
        %v5249 = vunpack.c.l.b16 %v4567
        %v5250 = vunpack.c.h.b16 %v4567
        %v5251 = vunpack.c.l.b16 %v4568
        %v5252 = vunpack.c.h.b16 %v4568
        %v5253 = vunpack.c.l.b16 %v4569
        %v5254 = vunpack.c.h.b16 %v4569
        %v5255 = vunpack.c.l.b16 %v4570
        %v5256 = vunpack.c.h.b16 %v4570
        %v5257 = vunpack.c.l.b16 %v4571
        %v5258 = vunpack.c.h.b16 %v4571
        %v5259 = vunpack.c.l.b16 %v4572
        %v5260 = vunpack.c.h.b16 %v4572
        %v5261 = vunpack.c.l.b16 %v4573
        %v5262 = vunpack.c.h.b16 %v4573
        %v5263 = vunpack.c.l.b16 %v4574
        %v5264 = vunpack.c.h.b16 %v4574
        %v5265 = vunpack.c.l.b16 %v4575
        %v5266 = vunpack.c.h.b16 %v4575
        %v5267 = vunpack.c.l.b16 %v4576
        %v5268 = vunpack.c.h.b16 %v4576
        %v5269 = vunpack.c.l.b16 %v4577
        %v5270 = vunpack.c.h.b16 %v4577
        %v5271 = vunpack.c.l.b16 %v4578
        %v5272 = vunpack.c.h.b16 %v4578
        %v5273 = vunpack.c.l.b16 %v4579
        %v5274 = vunpack.c.h.b16 %v4579
        %v5275 = vunpack.c.l.b16 %v4580
        %v5276 = vunpack.c.h.b16 %v4580
        %v5277 = vunpack.c.l.b16 %v4581
        %v5278 = vunpack.c.h.b16 %v4581
        %v5279 = vunpack.c.l.b16 %v4582
        %v5280 = vunpack.c.h.b16 %v4582
        %v5281 = vunpack.c.l.b16 %v4583
        %v5282 = vunpack.c.h.b16 %v4583
        %v5283 = vunpack.c.l.b16 %v4584
        %v5284 = vunpack.c.h.b16 %v4584
        %v5285 = vunpack.c.l.b16 %v4585
        %v5286 = vunpack.c.h.b16 %v4585
        %v5287 = vunpack.c.l.b16 %v4586
        %v5288 = vunpack.c.h.b16 %v4586
        %v5289 = vunpack.c.l.b16 %v4587
        %v5290 = vunpack.c.h.b16 %v4587
        %v5291 = vunpack.c.l.b16 %v4588
        %v5292 = vunpack.c.h.b16 %v4588
        %v5293 = vunpack.c.l.b16 %v4589
        %v5294 = vunpack.c.h.b16 %v4589
        %v5295 = vunpack.c.l.b16 %v4590
        %v5296 = vunpack.c.h.b16 %v4590
        %v5297 = vunpack.c.l.b16 %v4591
        %v5298 = vunpack.c.h.b16 %v4591
        %v5299 = vunpack.c.l.b16 %v4592
        %v5300 = vunpack.c.h.b16 %v4592
        %v5301 = vunpack.c.l.b16 %v4593
        %v5302 = vunpack.c.h.b16 %v4593
        %v5303 = vunpack.c.l.b16 %v4594
        %v5304 = vunpack.c.h.b16 %v4594
        %v5305 = vunpack.c.l.b16 %v4595
        %v5306 = vunpack.c.h.b16 %v4595
        %v5307 = vunpack.c.l.b16 %v4596
        %v5308 = vunpack.c.h.b16 %v4596
        %v5309 = vunpack.c.l.b16 %v4597
        %v5310 = vunpack.c.h.b16 %v4597
        %v5311 = vunpack.c.l.b16 %v4598
        %v5312 = vunpack.c.h.b16 %v4598
        %v5313 = vunpack.c.l.b16 %v4599
        %v5314 = vunpack.c.h.b16 %v4599
        %v5315 = vunpack.c.l.b16 %v4600
        %v5316 = vunpack.c.h.b16 %v4600
        %v5317 = vunpack.c.l.b16 %v4601
        %v5318 = vunpack.c.h.b16 %v4601
        %v5319 = vunpack.c.l.b16 %v4602
        %v5320 = vunpack.c.h.b16 %v4602
        %v5321 = vunpack.c.l.b16 %v4603
        %v5322 = vunpack.c.h.b16 %v4603
        %v5323 = vunpack.c.l.b16 %v4604
        %v5324 = vunpack.c.h.b16 %v4604
        %v5325 = vunpack.c.l.b16 %v4605
        %v5326 = vunpack.c.h.b16 %v4605
        %v5327 = vunpack.c.l.b16 %v4606
        %v5328 = vunpack.c.h.b16 %v4606
        %v5329 = vunpack.c.l.b16 %v4607
        %v5330 = vunpack.c.h.b16 %v4607
        %v5331 = vunpack.c.l.b16 %v4608
        %v5332 = vunpack.c.h.b16 %v4608
        %v5333 = vunpack.c.l.b16 %v4609
        %v5334 = vunpack.c.h.b16 %v4609
        %v5335 = vunpack.c.l.b16 %v4610
        %v5336 = vunpack.c.h.b16 %v4610
        %v5337 = vunpack.c.l.b16 %v4611
        %v5338 = vunpack.c.h.b16 %v4611
        %v5339 = vunpack.c.l.b16 %v4612
        %v5340 = vunpack.c.h.b16 %v4612
        %v5341 = vunpack.c.l.b16 %v4613
        %v5342 = vunpack.c.h.b16 %v4613
        %v5343 = vunpack.c.l.b16 %v4614
        %v5344 = vunpack.c.h.b16 %v4614
        %v5345 = vunpack.c.l.b16 %v4615
        %v5346 = vunpack.c.h.b16 %v4615
        %v5347 = vunpack.c.l.b16 %v4616
        %v5348 = vunpack.c.h.b16 %v4616
        %v5349 = vunpack.c.l.b16 %v4617
        %v5350 = vunpack.c.h.b16 %v4617
        %v5351 = vunpack.c.l.b16 %v4618
        %v5352 = vunpack.c.h.b16 %v4618
        %v5353 = vunpack.c.l.b16 %v4619
        %v5354 = vunpack.c.h.b16 %v4619
        %v5355 = vunpack.c.l.b16 %v4620
        %v5356 = vunpack.c.h.b16 %v4620
        %v5357 = vunpack.c.l.b16 %v4621
        %v5358 = vunpack.c.h.b16 %v4621
        %v5359 = vunpack.c.l.b16 %v4622
        %v5360 = vunpack.c.h.b16 %v4622
        %v5361 = vunpack.c.l.b16 %v4623
        %v5362 = vunpack.c.h.b16 %v4623
        %v5363 = vunpack.c.l.b16 %v4624
        %v5364 = vunpack.c.h.b16 %v4624
        %v5365 = vunpack.c.l.b16 %v4625
        %v5366 = vunpack.c.h.b16 %v4625
        %v5367 = vunpack.c.l.b16 %v4626
        %v5368 = vunpack.c.h.b16 %v4626
        %v5369 = vunpack.c.l.b16 %v4627
        %v5370 = vunpack.c.h.b16 %v4627
        %v5371 = vunpack.c.l.b16 %v4628
        %v5372 = vunpack.c.h.b16 %v4628
        %v5373 = vunpack.c.l.b16 %v4629
        %v5374 = vunpack.c.h.b16 %v4629
        %v5375 = vunpack.c.l.b16 %v4630
        %v5376 = vunpack.c.h.b16 %v4630
        %v5377 = vunpack.c.l.b16 %v4631
        %v5378 = vunpack.c.h.b16 %v4631
        %v5379 = vunpack.c.l.b16 %v4632
        %v5380 = vunpack.c.h.b16 %v4632
        %v5381 = vunpack.c.l.b16 %v4633
        %v5382 = vunpack.c.h.b16 %v4633
        %v5383 = vunpack.c.l.b16 %v4634
        %v5384 = vunpack.c.h.b16 %v4634
        %v5385 = vunpack.c.l.b16 %v4635
        %v5386 = vunpack.c.h.b16 %v4635
        %v5387 = vunpack.c.l.b16 %v4636
        %v5388 = vunpack.c.h.b16 %v4636
        %v5389 = vunpack.c.l.b16 %v4637
        %v5390 = vunpack.c.h.b16 %v4637
        %v5391 = vunpack.c.l.b16 %v4638
        %v5392 = vunpack.c.h.b16 %v4638
        %v5393 = vunpack.c.l.b16 %v4639
        %v5394 = vunpack.c.h.b16 %v4639
        %v5395 = vunpack.c.l.b16 %v4640
        %v5396 = vunpack.c.h.b16 %v4640
        %v5397 = vunpack.c.l.b16 %v4641
        %v5398 = vunpack.c.h.b16 %v4641
        %v5399 = vunpack.c.l.b16 %v4642
        %v5400 = vunpack.c.h.b16 %v4642
        %v5401 = vunpack.c.l.b16 %v4643
        %v5402 = vunpack.c.h.b16 %v4643
        %v5403 = vunpack.c.l.b16 %v4644
        %v5404 = vunpack.c.h.b16 %v4644
        %v5405 = vunpack.c.l.b16 %v4645
        %v5406 = vunpack.c.h.b16 %v4645
        %v5407 = vunpack.c.l.b16 %v4646
        %v5408 = vunpack.c.h.b16 %v4646
        %v5409 = vunpack.c.l.b16 %v4647
        %v5410 = vunpack.c.h.b16 %v4647
        %v5411 = vunpack.c.l.b16 %v4648
        %v5412 = vunpack.c.h.b16 %v4648
        %v5413 = vunpack.c.l.b16 %v4649
        %v5414 = vunpack.c.h.b16 %v4649
        %v5415 = vunpack.c.l.b16 %v4650
        %v5416 = vunpack.c.h.b16 %v4650
        %v5417 = vunpack.c.l.b16 %v4651
        %v5418 = vunpack.c.h.b16 %v4651
        %v5419 = vunpack.c.l.b16 %v4652
        %v5420 = vunpack.c.h.b16 %v4652
        %v5421 = vpack.c.b16 %v4913, %v4909
        %v5422 = vpack.c.b16 %v4914, %v4910
        %v5423 = vpack.c.b16 %v4915, %v4911
        %v5424 = vpack.c.b16 %v4916, %v4912
        %v5425 = vpack.c.b16 %v4921, %v4917
        %v5426 = vpack.c.b16 %v4922, %v4918
        %v5427 = vpack.c.b16 %v4923, %v4919
        %v5428 = vpack.c.b16 %v4924, %v4920
        %v5429 = vpack.c.b16 %v4929, %v4925
        %v5430 = vpack.c.b16 %v4930, %v4926
        %v5431 = vpack.c.b16 %v4931, %v4927
        %v5432 = vpack.c.b16 %v4932, %v4928
        %v5433 = vpack.c.b16 %v4937, %v4933
        %v5434 = vpack.c.b16 %v4938, %v4934
        %v5435 = vpack.c.b16 %v4939, %v4935
        %v5436 = vpack.c.b16 %v4940, %v4936
        %v5437 = vpack.c.b16 %v4945, %v4941
        %v5438 = vpack.c.b16 %v4946, %v4942
        %v5439 = vpack.c.b16 %v4947, %v4943
        %v5440 = vpack.c.b16 %v4948, %v4944
        %v5441 = vpack.c.b16 %v4953, %v4949
        %v5442 = vpack.c.b16 %v4954, %v4950
        %v5443 = vpack.c.b16 %v4955, %v4951
        %v5444 = vpack.c.b16 %v4956, %v4952
        %v5445 = vpack.c.b16 %v4961, %v4957
        %v5446 = vpack.c.b16 %v4962, %v4958
        %v5447 = vpack.c.b16 %v4963, %v4959
        %v5448 = vpack.c.b16 %v4964, %v4960
        %v5449 = vpack.c.b16 %v4969, %v4965
        %v5450 = vpack.c.b16 %v4970, %v4966
        %v5451 = vpack.c.b16 %v4971, %v4967
        %v5452 = vpack.c.b16 %v4972, %v4968
        %v5453 = vpack.c.b16 %v4977, %v4973
        %v5454 = vpack.c.b16 %v4978, %v4974
        %v5455 = vpack.c.b16 %v4979, %v4975
        %v5456 = vpack.c.b16 %v4980, %v4976
        %v5457 = vpack.c.b16 %v4985, %v4981
        %v5458 = vpack.c.b16 %v4986, %v4982
        %v5459 = vpack.c.b16 %v4987, %v4983
        %v5460 = vpack.c.b16 %v4988, %v4984
        %v5461 = vpack.c.b16 %v4993, %v4989
        %v5462 = vpack.c.b16 %v4994, %v4990
        %v5463 = vpack.c.b16 %v4995, %v4991
        %v5464 = vpack.c.b16 %v4996, %v4992
        %v5465 = vpack.c.b16 %v5001, %v4997
        %v5466 = vpack.c.b16 %v5002, %v4998
        %v5467 = vpack.c.b16 %v5003, %v4999
        %v5468 = vpack.c.b16 %v5004, %v5000
        %v5469 = vpack.c.b16 %v5009, %v5005
        %v5470 = vpack.c.b16 %v5010, %v5006
        %v5471 = vpack.c.b16 %v5011, %v5007
        %v5472 = vpack.c.b16 %v5012, %v5008
        %v5473 = vpack.c.b16 %v5017, %v5013
        %v5474 = vpack.c.b16 %v5018, %v5014
        %v5475 = vpack.c.b16 %v5019, %v5015
        %v5476 = vpack.c.b16 %v5020, %v5016
        %v5477 = vpack.c.b16 %v5025, %v5021
        %v5478 = vpack.c.b16 %v5026, %v5022
        %v5479 = vpack.c.b16 %v5027, %v5023
        %v5480 = vpack.c.b16 %v5028, %v5024
        %v5481 = vpack.c.b16 %v5033, %v5029
        %v5482 = vpack.c.b16 %v5034, %v5030
        %v5483 = vpack.c.b16 %v5035, %v5031
        %v5484 = vpack.c.b16 %v5036, %v5032
        %v5485 = vpack.c.b16 %v5041, %v5037
        %v5486 = vpack.c.b16 %v5042, %v5038
        %v5487 = vpack.c.b16 %v5043, %v5039
        %v5488 = vpack.c.b16 %v5044, %v5040
        %v5489 = vpack.c.b16 %v5049, %v5045
        %v5490 = vpack.c.b16 %v5050, %v5046
        %v5491 = vpack.c.b16 %v5051, %v5047
        %v5492 = vpack.c.b16 %v5052, %v5048
        %v5493 = vpack.c.b16 %v5057, %v5053
        %v5494 = vpack.c.b16 %v5058, %v5054
        %v5495 = vpack.c.b16 %v5059, %v5055
        %v5496 = vpack.c.b16 %v5060, %v5056
        %v5497 = vpack.c.b16 %v5065, %v5061
        %v5498 = vpack.c.b16 %v5066, %v5062
        %v5499 = vpack.c.b16 %v5067, %v5063
        %v5500 = vpack.c.b16 %v5068, %v5064
        %v5501 = vpack.c.b16 %v5073, %v5069
        %v5502 = vpack.c.b16 %v5074, %v5070
        %v5503 = vpack.c.b16 %v5075, %v5071
        %v5504 = vpack.c.b16 %v5076, %v5072
        %v5505 = vpack.c.b16 %v5081, %v5077
        %v5506 = vpack.c.b16 %v5082, %v5078
        %v5507 = vpack.c.b16 %v5083, %v5079
        %v5508 = vpack.c.b16 %v5084, %v5080
        %v5509 = vpack.c.b16 %v5089, %v5085
        %v5510 = vpack.c.b16 %v5090, %v5086
        %v5511 = vpack.c.b16 %v5091, %v5087
        %v5512 = vpack.c.b16 %v5092, %v5088
        %v5513 = vpack.c.b16 %v5097, %v5093
        %v5514 = vpack.c.b16 %v5098, %v5094
        %v5515 = vpack.c.b16 %v5099, %v5095
        %v5516 = vpack.c.b16 %v5100, %v5096
        %v5517 = vpack.c.b16 %v5105, %v5101
        %v5518 = vpack.c.b16 %v5106, %v5102
        %v5519 = vpack.c.b16 %v5107, %v5103
        %v5520 = vpack.c.b16 %v5108, %v5104
        %v5521 = vpack.c.b16 %v5113, %v5109
        %v5522 = vpack.c.b16 %v5114, %v5110
        %v5523 = vpack.c.b16 %v5115, %v5111
        %v5524 = vpack.c.b16 %v5116, %v5112
        %v5525 = vpack.c.b16 %v5121, %v5117
        %v5526 = vpack.c.b16 %v5122, %v5118
        %v5527 = vpack.c.b16 %v5123, %v5119
        %v5528 = vpack.c.b16 %v5124, %v5120
        %v5529 = vpack.c.b16 %v5129, %v5125
        %v5530 = vpack.c.b16 %v5130, %v5126
        %v5531 = vpack.c.b16 %v5131, %v5127
        %v5532 = vpack.c.b16 %v5132, %v5128
        %v5533 = vpack.c.b16 %v5137, %v5133
        %v5534 = vpack.c.b16 %v5138, %v5134
        %v5535 = vpack.c.b16 %v5139, %v5135
        %v5536 = vpack.c.b16 %v5140, %v5136
        %v5537 = vpack.c.b16 %v5145, %v5141
        %v5538 = vpack.c.b16 %v5146, %v5142
        %v5539 = vpack.c.b16 %v5147, %v5143
        %v5540 = vpack.c.b16 %v5148, %v5144
        %v5541 = vpack.c.b16 %v5153, %v5149
        %v5542 = vpack.c.b16 %v5154, %v5150
        %v5543 = vpack.c.b16 %v5155, %v5151
        %v5544 = vpack.c.b16 %v5156, %v5152
        %v5545 = vpack.c.b16 %v5161, %v5157
        %v5546 = vpack.c.b16 %v5162, %v5158
        %v5547 = vpack.c.b16 %v5163, %v5159
        %v5548 = vpack.c.b16 %v5164, %v5160
        %v5549 = vpack.c.b16 %v5169, %v5165
        %v5550 = vpack.c.b16 %v5170, %v5166
        %v5551 = vpack.c.b16 %v5171, %v5167
        %v5552 = vpack.c.b16 %v5172, %v5168
        %v5553 = vpack.c.b16 %v5177, %v5173
        %v5554 = vpack.c.b16 %v5178, %v5174
        %v5555 = vpack.c.b16 %v5179, %v5175
        %v5556 = vpack.c.b16 %v5180, %v5176
        %v5557 = vpack.c.b16 %v5185, %v5181
        %v5558 = vpack.c.b16 %v5186, %v5182
        %v5559 = vpack.c.b16 %v5187, %v5183
        %v5560 = vpack.c.b16 %v5188, %v5184
        %v5561 = vpack.c.b16 %v5193, %v5189
        %v5562 = vpack.c.b16 %v5194, %v5190
        %v5563 = vpack.c.b16 %v5195, %v5191
        %v5564 = vpack.c.b16 %v5196, %v5192
        %v5565 = vpack.c.b16 %v5201, %v5197
        %v5566 = vpack.c.b16 %v5202, %v5198
        %v5567 = vpack.c.b16 %v5203, %v5199
        %v5568 = vpack.c.b16 %v5204, %v5200
        %v5569 = vpack.c.b16 %v5209, %v5205
        %v5570 = vpack.c.b16 %v5210, %v5206
        %v5571 = vpack.c.b16 %v5211, %v5207
        %v5572 = vpack.c.b16 %v5212, %v5208
        %v5573 = vpack.c.b16 %v5217, %v5213
        %v5574 = vpack.c.b16 %v5218, %v5214
        %v5575 = vpack.c.b16 %v5219, %v5215
        %v5576 = vpack.c.b16 %v5220, %v5216
        %v5577 = vpack.c.b16 %v5225, %v5221
        %v5578 = vpack.c.b16 %v5226, %v5222
        %v5579 = vpack.c.b16 %v5227, %v5223
        %v5580 = vpack.c.b16 %v5228, %v5224
        %v5581 = vpack.c.b16 %v5233, %v5229
        %v5582 = vpack.c.b16 %v5234, %v5230
        %v5583 = vpack.c.b16 %v5235, %v5231
        %v5584 = vpack.c.b16 %v5236, %v5232
        %v5585 = vpack.c.b16 %v5241, %v5237
        %v5586 = vpack.c.b16 %v5242, %v5238
        %v5587 = vpack.c.b16 %v5243, %v5239
        %v5588 = vpack.c.b16 %v5244, %v5240
        %v5589 = vpack.c.b16 %v5249, %v5245
        %v5590 = vpack.c.b16 %v5250, %v5246
        %v5591 = vpack.c.b16 %v5251, %v5247
        %v5592 = vpack.c.b16 %v5252, %v5248
        %v5593 = vpack.c.b16 %v5257, %v5253
        %v5594 = vpack.c.b16 %v5258, %v5254
        %v5595 = vpack.c.b16 %v5259, %v5255
        %v5596 = vpack.c.b16 %v5260, %v5256
        %v5597 = vpack.c.b16 %v5265, %v5261
        %v5598 = vpack.c.b16 %v5266, %v5262
        %v5599 = vpack.c.b16 %v5267, %v5263
        %v5600 = vpack.c.b16 %v5268, %v5264
        %v5601 = vpack.c.b16 %v5273, %v5269
        %v5602 = vpack.c.b16 %v5274, %v5270
        %v5603 = vpack.c.b16 %v5275, %v5271
        %v5604 = vpack.c.b16 %v5276, %v5272
        %v5605 = vpack.c.b16 %v5281, %v5277
        %v5606 = vpack.c.b16 %v5282, %v5278
        %v5607 = vpack.c.b16 %v5283, %v5279
        %v5608 = vpack.c.b16 %v5284, %v5280
        %v5609 = vpack.c.b16 %v5289, %v5285
        %v5610 = vpack.c.b16 %v5290, %v5286
        %v5611 = vpack.c.b16 %v5291, %v5287
        %v5612 = vpack.c.b16 %v5292, %v5288
        %v5613 = vpack.c.b16 %v5297, %v5293
        %v5614 = vpack.c.b16 %v5298, %v5294
        %v5615 = vpack.c.b16 %v5299, %v5295
        %v5616 = vpack.c.b16 %v5300, %v5296
        %v5617 = vpack.c.b16 %v5305, %v5301
        %v5618 = vpack.c.b16 %v5306, %v5302
        %v5619 = vpack.c.b16 %v5307, %v5303
        %v5620 = vpack.c.b16 %v5308, %v5304
        %v5621 = vpack.c.b16 %v5313, %v5309
        %v5622 = vpack.c.b16 %v5314, %v5310
        %v5623 = vpack.c.b16 %v5315, %v5311
        %v5624 = vpack.c.b16 %v5316, %v5312
        %v5625 = vpack.c.b16 %v5321, %v5317
        %v5626 = vpack.c.b16 %v5322, %v5318
        %v5627 = vpack.c.b16 %v5323, %v5319
        %v5628 = vpack.c.b16 %v5324, %v5320
        %v5629 = vpack.c.b16 %v5329, %v5325
        %v5630 = vpack.c.b16 %v5330, %v5326
        %v5631 = vpack.c.b16 %v5331, %v5327
        %v5632 = vpack.c.b16 %v5332, %v5328
        %v5633 = vpack.c.b16 %v5337, %v5333
        %v5634 = vpack.c.b16 %v5338, %v5334
        %v5635 = vpack.c.b16 %v5339, %v5335
        %v5636 = vpack.c.b16 %v5340, %v5336
        %v5637 = vpack.c.b16 %v5345, %v5341
        %v5638 = vpack.c.b16 %v5346, %v5342
        %v5639 = vpack.c.b16 %v5347, %v5343
        %v5640 = vpack.c.b16 %v5348, %v5344
        %v5641 = vpack.c.b16 %v5353, %v5349
        %v5642 = vpack.c.b16 %v5354, %v5350
        %v5643 = vpack.c.b16 %v5355, %v5351
        %v5644 = vpack.c.b16 %v5356, %v5352
        %v5645 = vpack.c.b16 %v5361, %v5357
        %v5646 = vpack.c.b16 %v5362, %v5358
        %v5647 = vpack.c.b16 %v5363, %v5359
        %v5648 = vpack.c.b16 %v5364, %v5360
        %v5649 = vpack.c.b16 %v5369, %v5365
        %v5650 = vpack.c.b16 %v5370, %v5366
        %v5651 = vpack.c.b16 %v5371, %v5367
        %v5652 = vpack.c.b16 %v5372, %v5368
        %v5653 = vpack.c.b16 %v5377, %v5373
        %v5654 = vpack.c.b16 %v5378, %v5374
        %v5655 = vpack.c.b16 %v5379, %v5375
        %v5656 = vpack.c.b16 %v5380, %v5376
        %v5657 = vpack.c.b16 %v5385, %v5381
        %v5658 = vpack.c.b16 %v5386, %v5382
        %v5659 = vpack.c.b16 %v5387, %v5383
        %v5660 = vpack.c.b16 %v5388, %v5384
        %v5661 = vpack.c.b16 %v5393, %v5389
        %v5662 = vpack.c.b16 %v5394, %v5390
        %v5663 = vpack.c.b16 %v5395, %v5391
        %v5664 = vpack.c.b16 %v5396, %v5392
        %v5665 = vpack.c.b16 %v5401, %v5397
        %v5666 = vpack.c.b16 %v5402, %v5398
        %v5667 = vpack.c.b16 %v5403, %v5399
        %v5668 = vpack.c.b16 %v5404, %v5400
        %v5669 = vpack.c.b16 %v5409, %v5405
        %v5670 = vpack.c.b16 %v5410, %v5406
        %v5671 = vpack.c.b16 %v5411, %v5407
        %v5672 = vpack.c.b16 %v5412, %v5408
        %v5673 = vpack.c.b16 %v5417, %v5413
        %v5674 = vpack.c.b16 %v5418, %v5414
        %v5675 = vpack.c.b16 %v5419, %v5415
        %v5676 = vpack.c.b16 %v5420, %v5416
        %5933 = vmatpush.bf16.msra.mxu0 %v5449
        %5934 = vmatpush.bf16.msra.mxu0 %v5445
        %5935 = vmatpush.bf16.msra.mxu0 %v5441
        %5936 = vmatpush.bf16.msra.mxu0 %v5437
        %5937 = vmatpush.bf16.msra.mxu0 %v5433
        %5938 = vmatpush.bf16.msra.mxu0 %v5429
        %5939 = vmatpush.bf16.msra.mxu0 %v5425
        %5940 = vmatpush.bf16.msra.mxu0 %v5421
        %5941 = vmatmul.bf16.gmra.mxu0 %v4293
        %v5942 = vpop.f32.mrf.mxu0
        %v5943 = vadd.f32 0.0, %v5942
        %v5944 = vpop.f32.mrf.mxu0
        %v5945 = vadd.f32 0.0, %v5944
        %5946 = vmatmul.bf16.gmra.mxu0 %v4301
        %v5947 = vpop.f32.mrf.mxu0
        %v5948 = vadd.f32 0.0, %v5947
        %v5949 = vpop.f32.mrf.mxu0
        %v5950 = vadd.f32 0.0, %v5949
        %5951 = vmatmul.bf16.gmra.mxu0 %v4309
        %v5952 = vpop.f32.mrf.mxu0
        %v5953 = vadd.f32 0.0, %v5952
        %v5954 = vpop.f32.mrf.mxu0
        %v5955 = vadd.f32 0.0, %v5954
        %5956 = vmatmul.bf16.gmra.mxu0 %v4317
        %v5957 = vpop.f32.mrf.mxu0
        %v5958 = vadd.f32 0.0, %v5957
        %v5959 = vpop.f32.mrf.mxu0
        %v5960 = vadd.f32 0.0, %v5959
        %5961 = vmatmul.bf16.gmra.mxu0 %v4325
        %v5962 = vpop.f32.mrf.mxu0
        %v5963 = vadd.f32 0.0, %v5962
        %v5964 = vpop.f32.mrf.mxu0
        %v5965 = vadd.f32 0.0, %v5964
        %5966 = vmatmul.bf16.gmra.mxu0 %v4333
        %v5967 = vpop.f32.mrf.mxu0
        %v5968 = vadd.f32 0.0, %v5967
        %v5969 = vpop.f32.mrf.mxu0
        %v5970 = vadd.f32 0.0, %v5969
        %5971 = vmatmul.bf16.gmra.mxu0 %v4341
        %v5972 = vpop.f32.mrf.mxu0
        %v5973 = vadd.f32 0.0, %v5972
        %v5974 = vpop.f32.mrf.mxu0
        %v5975 = vadd.f32 0.0, %v5974
        %5976 = vmatmul.bf16.gmra.mxu0 %v4349
        %v5977 = vpop.f32.mrf.mxu0
        %v5978 = vadd.f32 0.0, %v5977
        %v5979 = vpop.f32.mrf.mxu0
        %v5980 = vadd.f32 0.0, %v5979
        %5981 = vmatmul.bf16.gmra.mxu0 %v4357
        %v5982 = vpop.f32.mrf.mxu0
        %v5983 = vadd.f32 0.0, %v5982
        %v5984 = vpop.f32.mrf.mxu0
        %v5985 = vadd.f32 0.0, %v5984
        %5986 = vmatmul.bf16.gmra.mxu0 %v4365
        %v5987 = vpop.f32.mrf.mxu0
        %v5988 = vadd.f32 0.0, %v5987
        %v5989 = vpop.f32.mrf.mxu0
        %v5990 = vadd.f32 0.0, %v5989
        %5991 = vmatmul.bf16.gmra.mxu0 %v4373
        %v5992 = vpop.f32.mrf.mxu0
        %v5993 = vadd.f32 0.0, %v5992
        %v5994 = vpop.f32.mrf.mxu0
        %v5995 = vadd.f32 0.0, %v5994
        %5996 = vmatmul.bf16.gmra.mxu0 %v4381
        %v5997 = vpop.f32.mrf.mxu0
        %v5998 = vadd.f32 0.0, %v5997
        %v5999 = vpop.f32.mrf.mxu0
        %v6000 = vadd.f32 0.0, %v5999
        %6001 = vmatmul.bf16.gmra.mxu0 %v4389
        %v6002 = vpop.f32.mrf.mxu0
        %v6003 = vadd.f32 0.0, %v6002
        %v6004 = vpop.f32.mrf.mxu0
        %v6005 = vadd.f32 0.0, %v6004
        %6006 = vdwg.mxu0
        %6007 = vmatpush.bf16.msra.mxu0 %v5481
        %6008 = vmatpush.bf16.msra.mxu0 %v5477
        %6009 = vmatpush.bf16.msra.mxu0 %v5473
        %6010 = vmatpush.bf16.msra.mxu0 %v5469
        %6011 = vmatpush.bf16.msra.mxu0 %v5465
        %6012 = vmatpush.bf16.msra.mxu0 %v5461
        %6013 = vmatpush.bf16.msra.mxu0 %v5457
        %6014 = vmatpush.bf16.msra.mxu0 %v5453
        %6015 = vmatmul.bf16.gmra.mxu0 %v4294
        %v6016 = vpop.f32.mrf.mxu0
        %v6017 = vadd.f32 %v5943, %v6016
        %v6018 = vpop.f32.mrf.mxu0
        %v6019 = vadd.f32 %v5945, %v6018
        %6020 = vmatmul.bf16.gmra.mxu0 %v4302
        %v6021 = vpop.f32.mrf.mxu0
        %v6022 = vadd.f32 %v5948, %v6021
        %v6023 = vpop.f32.mrf.mxu0
        %v6024 = vadd.f32 %v5950, %v6023
        %6025 = vmatmul.bf16.gmra.mxu0 %v4310
        %v6026 = vpop.f32.mrf.mxu0
        %v6027 = vadd.f32 %v5953, %v6026
        %v6028 = vpop.f32.mrf.mxu0
        %v6029 = vadd.f32 %v5955, %v6028
        %6030 = vmatmul.bf16.gmra.mxu0 %v4318
        %v6031 = vpop.f32.mrf.mxu0
        %v6032 = vadd.f32 %v5958, %v6031
        %v6033 = vpop.f32.mrf.mxu0
        %v6034 = vadd.f32 %v5960, %v6033
        %6035 = vmatmul.bf16.gmra.mxu0 %v4326
        %v6036 = vpop.f32.mrf.mxu0
        %v6037 = vadd.f32 %v5963, %v6036
        %v6038 = vpop.f32.mrf.mxu0
        %v6039 = vadd.f32 %v5965, %v6038
        %6040 = vmatmul.bf16.gmra.mxu0 %v4334
        %v6041 = vpop.f32.mrf.mxu0
        %v6042 = vadd.f32 %v5968, %v6041
        %v6043 = vpop.f32.mrf.mxu0
        %v6044 = vadd.f32 %v5970, %v6043
        %6045 = vmatmul.bf16.gmra.mxu0 %v4342
        %v6046 = vpop.f32.mrf.mxu0
        %v6047 = vadd.f32 %v5973, %v6046
        %v6048 = vpop.f32.mrf.mxu0
        %v6049 = vadd.f32 %v5975, %v6048
        %6050 = vmatmul.bf16.gmra.mxu0 %v4350
        %v6051 = vpop.f32.mrf.mxu0
        %v6052 = vadd.f32 %v5978, %v6051
        %v6053 = vpop.f32.mrf.mxu0
        %v6054 = vadd.f32 %v5980, %v6053
        %6055 = vmatmul.bf16.gmra.mxu0 %v4358
        %v6056 = vpop.f32.mrf.mxu0
        %v6057 = vadd.f32 %v5983, %v6056
        %v6058 = vpop.f32.mrf.mxu0
        %v6059 = vadd.f32 %v5985, %v6058
        %6060 = vmatmul.bf16.gmra.mxu0 %v4366
        %v6061 = vpop.f32.mrf.mxu0
        %v6062 = vadd.f32 %v5988, %v6061
        %v6063 = vpop.f32.mrf.mxu0
        %v6064 = vadd.f32 %v5990, %v6063
        %6065 = vmatmul.bf16.gmra.mxu0 %v4374
        %v6066 = vpop.f32.mrf.mxu0
        %v6067 = vadd.f32 %v5993, %v6066
        %v6068 = vpop.f32.mrf.mxu0
        %v6069 = vadd.f32 %v5995, %v6068
        %6070 = vmatmul.bf16.gmra.mxu0 %v4382
        %v6071 = vpop.f32.mrf.mxu0
        %v6072 = vadd.f32 %v5998, %v6071
        %v6073 = vpop.f32.mrf.mxu0
        %v6074 = vadd.f32 %v6000, %v6073
        %6075 = vmatmul.bf16.gmra.mxu0 %v4390
        %v6076 = vpop.f32.mrf.mxu0
        %v6077 = vadd.f32 %v6003, %v6076
        %v6078 = vpop.f32.mrf.mxu0
        %v6079 = vadd.f32 %v6005, %v6078
        %6080 = vdwg.mxu0
        %6081 = vmatpush.bf16.msra.mxu0 %v5513
        %6082 = vmatpush.bf16.msra.mxu0 %v5509
        %6083 = vmatpush.bf16.msra.mxu0 %v5505
        %6084 = vmatpush.bf16.msra.mxu0 %v5501
        %6085 = vmatpush.bf16.msra.mxu0 %v5497
        %6086 = vmatpush.bf16.msra.mxu0 %v5493
        %6087 = vmatpush.bf16.msra.mxu0 %v5489
        %6088 = vmatpush.bf16.msra.mxu0 %v5485
        %6089 = vmatmul.bf16.gmra.mxu0 %v4295
        %v6090 = vpop.f32.mrf.mxu0
        %v6091 = vadd.f32 %v6017, %v6090
        %v6092 = vpop.f32.mrf.mxu0
        %v6093 = vadd.f32 %v6019, %v6092
        %6094 = vmatmul.bf16.gmra.mxu0 %v4303
        %v6095 = vpop.f32.mrf.mxu0
        %v6096 = vadd.f32 %v6022, %v6095
        %v6097 = vpop.f32.mrf.mxu0
        %v6098 = vadd.f32 %v6024, %v6097
        %6099 = vmatmul.bf16.gmra.mxu0 %v4311
        %v6100 = vpop.f32.mrf.mxu0
        %v6101 = vadd.f32 %v6027, %v6100
        %v6102 = vpop.f32.mrf.mxu0
        %v6103 = vadd.f32 %v6029, %v6102
        %6104 = vmatmul.bf16.gmra.mxu0 %v4319
        %v6105 = vpop.f32.mrf.mxu0
        %v6106 = vadd.f32 %v6032, %v6105
        %v6107 = vpop.f32.mrf.mxu0
        %v6108 = vadd.f32 %v6034, %v6107
        %6109 = vmatmul.bf16.gmra.mxu0 %v4327
        %v6110 = vpop.f32.mrf.mxu0
        %v6111 = vadd.f32 %v6037, %v6110
        %v6112 = vpop.f32.mrf.mxu0
        %v6113 = vadd.f32 %v6039, %v6112
        %6114 = vmatmul.bf16.gmra.mxu0 %v4335
        %v6115 = vpop.f32.mrf.mxu0
        %v6116 = vadd.f32 %v6042, %v6115
        %v6117 = vpop.f32.mrf.mxu0
        %v6118 = vadd.f32 %v6044, %v6117
        %6119 = vmatmul.bf16.gmra.mxu0 %v4343
        %v6120 = vpop.f32.mrf.mxu0
        %v6121 = vadd.f32 %v6047, %v6120
        %v6122 = vpop.f32.mrf.mxu0
        %v6123 = vadd.f32 %v6049, %v6122
        %6124 = vmatmul.bf16.gmra.mxu0 %v4351
        %v6125 = vpop.f32.mrf.mxu0
        %v6126 = vadd.f32 %v6052, %v6125
        %v6127 = vpop.f32.mrf.mxu0
        %v6128 = vadd.f32 %v6054, %v6127
        %6129 = vmatmul.bf16.gmra.mxu0 %v4359
        %v6130 = vpop.f32.mrf.mxu0
        %v6131 = vadd.f32 %v6057, %v6130
        %v6132 = vpop.f32.mrf.mxu0
        %v6133 = vadd.f32 %v6059, %v6132
        %6134 = vmatmul.bf16.gmra.mxu0 %v4367
        %v6135 = vpop.f32.mrf.mxu0
        %v6136 = vadd.f32 %v6062, %v6135
        %v6137 = vpop.f32.mrf.mxu0
        %v6138 = vadd.f32 %v6064, %v6137
        %6139 = vmatmul.bf16.gmra.mxu0 %v4375
        %v6140 = vpop.f32.mrf.mxu0
        %v6141 = vadd.f32 %v6067, %v6140
        %v6142 = vpop.f32.mrf.mxu0
        %v6143 = vadd.f32 %v6069, %v6142
        %6144 = vmatmul.bf16.gmra.mxu0 %v4383
        %v6145 = vpop.f32.mrf.mxu0
        %v6146 = vadd.f32 %v6072, %v6145
        %v6147 = vpop.f32.mrf.mxu0
        %v6148 = vadd.f32 %v6074, %v6147
        %6149 = vmatmul.bf16.gmra.mxu0 %v4391
        %v6150 = vpop.f32.mrf.mxu0
        %v6151 = vadd.f32 %v6077, %v6150
        %v6152 = vpop.f32.mrf.mxu0
        %v6153 = vadd.f32 %v6079, %v6152
        %6154 = vdwg.mxu0
        %6155 = vmatpush.bf16.msra.mxu0 %v5545
        %6156 = vmatpush.bf16.msra.mxu0 %v5541
        %6157 = vmatpush.bf16.msra.mxu0 %v5537
        %6158 = vmatpush.bf16.msra.mxu0 %v5533
        %6159 = vmatpush.bf16.msra.mxu0 %v5529
        %6160 = vmatpush.bf16.msra.mxu0 %v5525
        %6161 = vmatpush.bf16.msra.mxu0 %v5521
        %6162 = vmatpush.bf16.msra.mxu0 %v5517
        %6163 = vmatmul.bf16.gmra.mxu0 %v4296
        %v6164 = vpop.f32.mrf.mxu0
        %v6165 = vadd.f32 %v6091, %v6164
        %v6166 = vpop.f32.mrf.mxu0
        %v6167 = vadd.f32 %v6093, %v6166
        %6168 = vmatmul.bf16.gmra.mxu0 %v4304
        %v6169 = vpop.f32.mrf.mxu0
        %v6170 = vadd.f32 %v6096, %v6169
        %v6171 = vpop.f32.mrf.mxu0
        %v6172 = vadd.f32 %v6098, %v6171
        %6173 = vmatmul.bf16.gmra.mxu0 %v4312
        %v6174 = vpop.f32.mrf.mxu0
        %v6175 = vadd.f32 %v6101, %v6174
        %v6176 = vpop.f32.mrf.mxu0
        %v6177 = vadd.f32 %v6103, %v6176
        %6178 = vmatmul.bf16.gmra.mxu0 %v4320
        %v6179 = vpop.f32.mrf.mxu0
        %v6180 = vadd.f32 %v6106, %v6179
        %v6181 = vpop.f32.mrf.mxu0
        %v6182 = vadd.f32 %v6108, %v6181
        %6183 = vmatmul.bf16.gmra.mxu0 %v4328
        %v6184 = vpop.f32.mrf.mxu0
        %v6185 = vadd.f32 %v6111, %v6184
        %v6186 = vpop.f32.mrf.mxu0
        %v6187 = vadd.f32 %v6113, %v6186
        %6188 = vmatmul.bf16.gmra.mxu0 %v4336
        %v6189 = vpop.f32.mrf.mxu0
        %v6190 = vadd.f32 %v6116, %v6189
        %v6191 = vpop.f32.mrf.mxu0
        %v6192 = vadd.f32 %v6118, %v6191
        %6193 = vmatmul.bf16.gmra.mxu0 %v4344
        %v6194 = vpop.f32.mrf.mxu0
        %v6195 = vadd.f32 %v6121, %v6194
        %v6196 = vpop.f32.mrf.mxu0
        %v6197 = vadd.f32 %v6123, %v6196
        %6198 = vmatmul.bf16.gmra.mxu0 %v4352
        %v6199 = vpop.f32.mrf.mxu0
        %v6200 = vadd.f32 %v6126, %v6199
        %v6201 = vpop.f32.mrf.mxu0
        %v6202 = vadd.f32 %v6128, %v6201
        %6203 = vmatmul.bf16.gmra.mxu0 %v4360
        %v6204 = vpop.f32.mrf.mxu0
        %v6205 = vadd.f32 %v6131, %v6204
        %v6206 = vpop.f32.mrf.mxu0
        %v6207 = vadd.f32 %v6133, %v6206
        %6208 = vmatmul.bf16.gmra.mxu0 %v4368
        %v6209 = vpop.f32.mrf.mxu0
        %v6210 = vadd.f32 %v6136, %v6209
        %v6211 = vpop.f32.mrf.mxu0
        %v6212 = vadd.f32 %v6138, %v6211
        %6213 = vmatmul.bf16.gmra.mxu0 %v4376
        %v6214 = vpop.f32.mrf.mxu0
        %v6215 = vadd.f32 %v6141, %v6214
        %v6216 = vpop.f32.mrf.mxu0
        %v6217 = vadd.f32 %v6143, %v6216
        %6218 = vmatmul.bf16.gmra.mxu0 %v4384
        %v6219 = vpop.f32.mrf.mxu0
        %v6220 = vadd.f32 %v6146, %v6219
        %v6221 = vpop.f32.mrf.mxu0
        %v6222 = vadd.f32 %v6148, %v6221
        %6223 = vmatmul.bf16.gmra.mxu0 %v4392
        %v6224 = vpop.f32.mrf.mxu0
        %v6225 = vadd.f32 %v6151, %v6224
        %v6226 = vpop.f32.mrf.mxu0
        %v6227 = vadd.f32 %v6153, %v6226
        %6228 = vdwg.mxu0
        %6229 = vmatpush.bf16.msra.mxu0 %v5577
        %6230 = vmatpush.bf16.msra.mxu0 %v5573
        %6231 = vmatpush.bf16.msra.mxu0 %v5569
        %6232 = vmatpush.bf16.msra.mxu0 %v5565
        %6233 = vmatpush.bf16.msra.mxu0 %v5561
        %6234 = vmatpush.bf16.msra.mxu0 %v5557
        %6235 = vmatpush.bf16.msra.mxu0 %v5553
        %6236 = vmatpush.bf16.msra.mxu0 %v5549
        %6237 = vmatmul.bf16.gmra.mxu0 %v4297
        %v6238 = vpop.f32.mrf.mxu0
        %v6239 = vadd.f32 %v6165, %v6238
        %v6240 = vpop.f32.mrf.mxu0
        %v6241 = vadd.f32 %v6167, %v6240
        %6242 = vmatmul.bf16.gmra.mxu0 %v4305
        %v6243 = vpop.f32.mrf.mxu0
        %v6244 = vadd.f32 %v6170, %v6243
        %v6245 = vpop.f32.mrf.mxu0
        %v6246 = vadd.f32 %v6172, %v6245
        %6247 = vmatmul.bf16.gmra.mxu0 %v4313
        %v6248 = vpop.f32.mrf.mxu0
        %v6249 = vadd.f32 %v6175, %v6248
        %v6250 = vpop.f32.mrf.mxu0
        %v6251 = vadd.f32 %v6177, %v6250
        %6252 = vmatmul.bf16.gmra.mxu0 %v4321
        %v6253 = vpop.f32.mrf.mxu0
        %v6254 = vadd.f32 %v6180, %v6253
        %v6255 = vpop.f32.mrf.mxu0
        %v6256 = vadd.f32 %v6182, %v6255
        %6257 = vmatmul.bf16.gmra.mxu0 %v4329
        %v6258 = vpop.f32.mrf.mxu0
        %v6259 = vadd.f32 %v6185, %v6258
        %v6260 = vpop.f32.mrf.mxu0
        %v6261 = vadd.f32 %v6187, %v6260
        %6262 = vmatmul.bf16.gmra.mxu0 %v4337
        %v6263 = vpop.f32.mrf.mxu0
        %v6264 = vadd.f32 %v6190, %v6263
        %v6265 = vpop.f32.mrf.mxu0
        %v6266 = vadd.f32 %v6192, %v6265
        %6267 = vmatmul.bf16.gmra.mxu0 %v4345
        %v6268 = vpop.f32.mrf.mxu0
        %v6269 = vadd.f32 %v6195, %v6268
        %v6270 = vpop.f32.mrf.mxu0
        %v6271 = vadd.f32 %v6197, %v6270
        %6272 = vmatmul.bf16.gmra.mxu0 %v4353
        %v6273 = vpop.f32.mrf.mxu0
        %v6274 = vadd.f32 %v6200, %v6273
        %v6275 = vpop.f32.mrf.mxu0
        %v6276 = vadd.f32 %v6202, %v6275
        %6277 = vmatmul.bf16.gmra.mxu0 %v4361
        %v6278 = vpop.f32.mrf.mxu0
        %v6279 = vadd.f32 %v6205, %v6278
        %v6280 = vpop.f32.mrf.mxu0
        %v6281 = vadd.f32 %v6207, %v6280
        %6282 = vmatmul.bf16.gmra.mxu0 %v4369
        %v6283 = vpop.f32.mrf.mxu0
        %v6284 = vadd.f32 %v6210, %v6283
        %v6285 = vpop.f32.mrf.mxu0
        %v6286 = vadd.f32 %v6212, %v6285
        %6287 = vmatmul.bf16.gmra.mxu0 %v4377
        %v6288 = vpop.f32.mrf.mxu0
        %v6289 = vadd.f32 %v6215, %v6288
        %v6290 = vpop.f32.mrf.mxu0
        %v6291 = vadd.f32 %v6217, %v6290
        %6292 = vmatmul.bf16.gmra.mxu0 %v4385
        %v6293 = vpop.f32.mrf.mxu0
        %v6294 = vadd.f32 %v6220, %v6293
        %v6295 = vpop.f32.mrf.mxu0
        %v6296 = vadd.f32 %v6222, %v6295
        %6297 = vmatmul.bf16.gmra.mxu0 %v4393
        %v6298 = vpop.f32.mrf.mxu0
        %v6299 = vadd.f32 %v6225, %v6298
        %v6300 = vpop.f32.mrf.mxu0
        %v6301 = vadd.f32 %v6227, %v6300
        %6302 = vdwg.mxu0
        %6303 = vmatpush.bf16.msra.mxu0 %v5609
        %6304 = vmatpush.bf16.msra.mxu0 %v5605
        %6305 = vmatpush.bf16.msra.mxu0 %v5601
        %6306 = vmatpush.bf16.msra.mxu0 %v5597
        %6307 = vmatpush.bf16.msra.mxu0 %v5593
        %6308 = vmatpush.bf16.msra.mxu0 %v5589
        %6309 = vmatpush.bf16.msra.mxu0 %v5585
        %6310 = vmatpush.bf16.msra.mxu0 %v5581
        %6311 = vmatmul.bf16.gmra.mxu0 %v4298
        %v6312 = vpop.f32.mrf.mxu0
        %v6313 = vadd.f32 %v6239, %v6312
        %v6314 = vpop.f32.mrf.mxu0
        %v6315 = vadd.f32 %v6241, %v6314
        %6316 = vmatmul.bf16.gmra.mxu0 %v4306
        %v6317 = vpop.f32.mrf.mxu0
        %v6318 = vadd.f32 %v6244, %v6317
        %v6319 = vpop.f32.mrf.mxu0
        %v6320 = vadd.f32 %v6246, %v6319
        %6321 = vmatmul.bf16.gmra.mxu0 %v4314
        %v6322 = vpop.f32.mrf.mxu0
        %v6323 = vadd.f32 %v6249, %v6322
        %v6324 = vpop.f32.mrf.mxu0
        %v6325 = vadd.f32 %v6251, %v6324
        %6326 = vmatmul.bf16.gmra.mxu0 %v4322
        %v6327 = vpop.f32.mrf.mxu0
        %v6328 = vadd.f32 %v6254, %v6327
        %v6329 = vpop.f32.mrf.mxu0
        %v6330 = vadd.f32 %v6256, %v6329
        %6331 = vmatmul.bf16.gmra.mxu0 %v4330
        %v6332 = vpop.f32.mrf.mxu0
        %v6333 = vadd.f32 %v6259, %v6332
        %v6334 = vpop.f32.mrf.mxu0
        %v6335 = vadd.f32 %v6261, %v6334
        %6336 = vmatmul.bf16.gmra.mxu0 %v4338
        %v6337 = vpop.f32.mrf.mxu0
        %v6338 = vadd.f32 %v6264, %v6337
        %v6339 = vpop.f32.mrf.mxu0
        %v6340 = vadd.f32 %v6266, %v6339
        %6341 = vmatmul.bf16.gmra.mxu0 %v4346
        %v6342 = vpop.f32.mrf.mxu0
        %v6343 = vadd.f32 %v6269, %v6342
        %v6344 = vpop.f32.mrf.mxu0
        %v6345 = vadd.f32 %v6271, %v6344
        %6346 = vmatmul.bf16.gmra.mxu0 %v4354
        %v6347 = vpop.f32.mrf.mxu0
        %v6348 = vadd.f32 %v6274, %v6347
        %v6349 = vpop.f32.mrf.mxu0
        %v6350 = vadd.f32 %v6276, %v6349
        %6351 = vmatmul.bf16.gmra.mxu0 %v4362
        %v6352 = vpop.f32.mrf.mxu0
        %v6353 = vadd.f32 %v6279, %v6352
        %v6354 = vpop.f32.mrf.mxu0
        %v6355 = vadd.f32 %v6281, %v6354
        %6356 = vmatmul.bf16.gmra.mxu0 %v4370
        %v6357 = vpop.f32.mrf.mxu0
        %v6358 = vadd.f32 %v6284, %v6357
        %v6359 = vpop.f32.mrf.mxu0
        %v6360 = vadd.f32 %v6286, %v6359
        %6361 = vmatmul.bf16.gmra.mxu0 %v4378
        %v6362 = vpop.f32.mrf.mxu0
        %v6363 = vadd.f32 %v6289, %v6362
        %v6364 = vpop.f32.mrf.mxu0
        %v6365 = vadd.f32 %v6291, %v6364
        %6366 = vmatmul.bf16.gmra.mxu0 %v4386
        %v6367 = vpop.f32.mrf.mxu0
        %v6368 = vadd.f32 %v6294, %v6367
        %v6369 = vpop.f32.mrf.mxu0
        %v6370 = vadd.f32 %v6296, %v6369
        %6371 = vmatmul.bf16.gmra.mxu0 %v4394
        %v6372 = vpop.f32.mrf.mxu0
        %v6373 = vadd.f32 %v6299, %v6372
        %v6374 = vpop.f32.mrf.mxu0
        %v6375 = vadd.f32 %v6301, %v6374
        %6376 = vdwg.mxu0
        %6377 = vmatpush.bf16.msra.mxu0 %v5641
        %6378 = vmatpush.bf16.msra.mxu0 %v5637
        %6379 = vmatpush.bf16.msra.mxu0 %v5633
        %6380 = vmatpush.bf16.msra.mxu0 %v5629
        %6381 = vmatpush.bf16.msra.mxu0 %v5625
        %6382 = vmatpush.bf16.msra.mxu0 %v5621
        %6383 = vmatpush.bf16.msra.mxu0 %v5617
        %6384 = vmatpush.bf16.msra.mxu0 %v5613
        %6385 = vmatmul.bf16.gmra.mxu0 %v4299
        %v6386 = vpop.f32.mrf.mxu0
        %v6387 = vadd.f32 %v6313, %v6386
        %v6388 = vpop.f32.mrf.mxu0
        %v6389 = vadd.f32 %v6315, %v6388
        %6390 = vmatmul.bf16.gmra.mxu0 %v4307
        %v6391 = vpop.f32.mrf.mxu0
        %v6392 = vadd.f32 %v6318, %v6391
        %v6393 = vpop.f32.mrf.mxu0
        %v6394 = vadd.f32 %v6320, %v6393
        %6395 = vmatmul.bf16.gmra.mxu0 %v4315
        %v6396 = vpop.f32.mrf.mxu0
        %v6397 = vadd.f32 %v6323, %v6396
        %v6398 = vpop.f32.mrf.mxu0
        %v6399 = vadd.f32 %v6325, %v6398
        %6400 = vmatmul.bf16.gmra.mxu0 %v4323
        %v6401 = vpop.f32.mrf.mxu0
        %v6402 = vadd.f32 %v6328, %v6401
        %v6403 = vpop.f32.mrf.mxu0
        %v6404 = vadd.f32 %v6330, %v6403
        %6405 = vmatmul.bf16.gmra.mxu0 %v4331
        %v6406 = vpop.f32.mrf.mxu0
        %v6407 = vadd.f32 %v6333, %v6406
        %v6408 = vpop.f32.mrf.mxu0
        %v6409 = vadd.f32 %v6335, %v6408
        %6410 = vmatmul.bf16.gmra.mxu0 %v4339
        %v6411 = vpop.f32.mrf.mxu0
        %v6412 = vadd.f32 %v6338, %v6411
        %v6413 = vpop.f32.mrf.mxu0
        %v6414 = vadd.f32 %v6340, %v6413
        %6415 = vmatmul.bf16.gmra.mxu0 %v4347
        %v6416 = vpop.f32.mrf.mxu0
        %v6417 = vadd.f32 %v6343, %v6416
        %v6418 = vpop.f32.mrf.mxu0
        %v6419 = vadd.f32 %v6345, %v6418
        %6420 = vmatmul.bf16.gmra.mxu0 %v4355
        %v6421 = vpop.f32.mrf.mxu0
        %v6422 = vadd.f32 %v6348, %v6421
        %v6423 = vpop.f32.mrf.mxu0
        %v6424 = vadd.f32 %v6350, %v6423
        %6425 = vmatmul.bf16.gmra.mxu0 %v4363
        %v6426 = vpop.f32.mrf.mxu0
        %v6427 = vadd.f32 %v6353, %v6426
        %v6428 = vpop.f32.mrf.mxu0
        %v6429 = vadd.f32 %v6355, %v6428
        %6430 = vmatmul.bf16.gmra.mxu0 %v4371
        %v6431 = vpop.f32.mrf.mxu0
        %v6432 = vadd.f32 %v6358, %v6431
        %v6433 = vpop.f32.mrf.mxu0
        %v6434 = vadd.f32 %v6360, %v6433
        %6435 = vmatmul.bf16.gmra.mxu0 %v4379
        %v6436 = vpop.f32.mrf.mxu0
        %v6437 = vadd.f32 %v6363, %v6436
        %v6438 = vpop.f32.mrf.mxu0
        %v6439 = vadd.f32 %v6365, %v6438
        %6440 = vmatmul.bf16.gmra.mxu0 %v4387
        %v6441 = vpop.f32.mrf.mxu0
        %v6442 = vadd.f32 %v6368, %v6441
        %v6443 = vpop.f32.mrf.mxu0
        %v6444 = vadd.f32 %v6370, %v6443
        %6445 = vmatmul.bf16.gmra.mxu0 %v4395
        %v6446 = vpop.f32.mrf.mxu0
        %v6447 = vadd.f32 %v6373, %v6446
        %v6448 = vpop.f32.mrf.mxu0
        %v6449 = vadd.f32 %v6375, %v6448
        %6450 = vdwg.mxu0
        %6451 = vmatpush.bf16.msra.mxu0 %v5673
        %6452 = vmatpush.bf16.msra.mxu0 %v5669
        %6453 = vmatpush.bf16.msra.mxu0 %v5665
        %6454 = vmatpush.bf16.msra.mxu0 %v5661
        %6455 = vmatpush.bf16.msra.mxu0 %v5657
        %6456 = vmatpush.bf16.msra.mxu0 %v5653
        %6457 = vmatpush.bf16.msra.mxu0 %v5649
        %6458 = vmatpush.bf16.msra.mxu0 %v5645
        %6459 = vmatmul.bf16.gmra.mxu0 %v4300
        %v6460 = vpop.f32.mrf.mxu0
        %v6461 = vadd.f32 %v6387, %v6460
        %v6462 = vpop.f32.mrf.mxu0
        %v6463 = vadd.f32 %v6389, %v6462
        %6464 = vmatmul.bf16.gmra.mxu0 %v4308
        %v6465 = vpop.f32.mrf.mxu0
        %v6466 = vadd.f32 %v6392, %v6465
        %v6467 = vpop.f32.mrf.mxu0
        %v6468 = vadd.f32 %v6394, %v6467
        %6469 = vmatmul.bf16.gmra.mxu0 %v4316
        %v6470 = vpop.f32.mrf.mxu0
        %v6471 = vadd.f32 %v6397, %v6470
        %v6472 = vpop.f32.mrf.mxu0
        %v6473 = vadd.f32 %v6399, %v6472
        %6474 = vmatmul.bf16.gmra.mxu0 %v4324
        %v6475 = vpop.f32.mrf.mxu0
        %v6476 = vadd.f32 %v6402, %v6475
        %v6477 = vpop.f32.mrf.mxu0
        %v6478 = vadd.f32 %v6404, %v6477
        %6479 = vmatmul.bf16.gmra.mxu0 %v4332
        %v6480 = vpop.f32.mrf.mxu0
        %v6481 = vadd.f32 %v6407, %v6480
        %v6482 = vpop.f32.mrf.mxu0
        %v6483 = vadd.f32 %v6409, %v6482
        %6484 = vmatmul.bf16.gmra.mxu0 %v4340
        %v6485 = vpop.f32.mrf.mxu0
        %v6486 = vadd.f32 %v6412, %v6485
        %v6487 = vpop.f32.mrf.mxu0
        %v6488 = vadd.f32 %v6414, %v6487
        %6489 = vmatmul.bf16.gmra.mxu0 %v4348
        %v6490 = vpop.f32.mrf.mxu0
        %v6491 = vadd.f32 %v6417, %v6490
        %v6492 = vpop.f32.mrf.mxu0
        %v6493 = vadd.f32 %v6419, %v6492
        %6494 = vmatmul.bf16.gmra.mxu0 %v4356
        %v6495 = vpop.f32.mrf.mxu0
        %v6496 = vadd.f32 %v6422, %v6495
        %v6497 = vpop.f32.mrf.mxu0
        %v6498 = vadd.f32 %v6424, %v6497
        %6499 = vmatmul.bf16.gmra.mxu0 %v4364
        %v6500 = vpop.f32.mrf.mxu0
        %v6501 = vadd.f32 %v6427, %v6500
        %v6502 = vpop.f32.mrf.mxu0
        %v6503 = vadd.f32 %v6429, %v6502
        %6504 = vmatmul.bf16.gmra.mxu0 %v4372
        %v6505 = vpop.f32.mrf.mxu0
        %v6506 = vadd.f32 %v6432, %v6505
        %v6507 = vpop.f32.mrf.mxu0
        %v6508 = vadd.f32 %v6434, %v6507
        %6509 = vmatmul.bf16.gmra.mxu0 %v4380
        %v6510 = vpop.f32.mrf.mxu0
        %v6511 = vadd.f32 %v6437, %v6510
        %v6512 = vpop.f32.mrf.mxu0
        %v6513 = vadd.f32 %v6439, %v6512
        %6514 = vmatmul.bf16.gmra.mxu0 %v4388
        %v6515 = vpop.f32.mrf.mxu0
        %v6516 = vadd.f32 %v6442, %v6515
        %v6517 = vpop.f32.mrf.mxu0
        %v6518 = vadd.f32 %v6444, %v6517
        %6519 = vmatmul.bf16.gmra.mxu0 %v4396
        %v6520 = vpop.f32.mrf.mxu0
        %v6521 = vadd.f32 %v6447, %v6520
        %v6522 = vpop.f32.mrf.mxu0
        %v6523 = vadd.f32 %v6449, %v6522
        %6524 = vdwg.mxu0
        %6525 = vmatpush.bf16.msra.mxu0 %v5450
        %6526 = vmatpush.bf16.msra.mxu0 %v5446
        %6527 = vmatpush.bf16.msra.mxu0 %v5442
        %6528 = vmatpush.bf16.msra.mxu0 %v5438
        %6529 = vmatpush.bf16.msra.mxu0 %v5434
        %6530 = vmatpush.bf16.msra.mxu0 %v5430
        %6531 = vmatpush.bf16.msra.mxu0 %v5426
        %6532 = vmatpush.bf16.msra.mxu0 %v5422
        %6533 = vmatmul.bf16.gmra.mxu0 %v4293
        %v6534 = vpop.f32.mrf.mxu0
        %v6535 = vadd.f32 0.0, %v6534
        %v6536 = vpop.f32.mrf.mxu0
        %v6537 = vadd.f32 0.0, %v6536
        %6538 = vmatmul.bf16.gmra.mxu0 %v4301
        %v6539 = vpop.f32.mrf.mxu0
        %v6540 = vadd.f32 0.0, %v6539
        %v6541 = vpop.f32.mrf.mxu0
        %v6542 = vadd.f32 0.0, %v6541
        %6543 = vmatmul.bf16.gmra.mxu0 %v4309
        %v6544 = vpop.f32.mrf.mxu0
        %v6545 = vadd.f32 0.0, %v6544
        %v6546 = vpop.f32.mrf.mxu0
        %v6547 = vadd.f32 0.0, %v6546
        %6548 = vmatmul.bf16.gmra.mxu0 %v4317
        %v6549 = vpop.f32.mrf.mxu0
        %v6550 = vadd.f32 0.0, %v6549
        %v6551 = vpop.f32.mrf.mxu0
        %v6552 = vadd.f32 0.0, %v6551
        %6553 = vmatmul.bf16.gmra.mxu0 %v4325
        %v6554 = vpop.f32.mrf.mxu0
        %v6555 = vadd.f32 0.0, %v6554
        %v6556 = vpop.f32.mrf.mxu0
        %v6557 = vadd.f32 0.0, %v6556
        %6558 = vmatmul.bf16.gmra.mxu0 %v4333
        %v6559 = vpop.f32.mrf.mxu0
        %v6560 = vadd.f32 0.0, %v6559
        %v6561 = vpop.f32.mrf.mxu0
        %v6562 = vadd.f32 0.0, %v6561
        %6563 = vmatmul.bf16.gmra.mxu0 %v4341
        %v6564 = vpop.f32.mrf.mxu0
        %v6565 = vadd.f32 0.0, %v6564
        %v6566 = vpop.f32.mrf.mxu0
        %v6567 = vadd.f32 0.0, %v6566
        %6568 = vmatmul.bf16.gmra.mxu0 %v4349
        %v6569 = vpop.f32.mrf.mxu0
        %v6570 = vadd.f32 0.0, %v6569
        %v6571 = vpop.f32.mrf.mxu0
        %v6572 = vadd.f32 0.0, %v6571
        %6573 = vmatmul.bf16.gmra.mxu0 %v4357
        %v6574 = vpop.f32.mrf.mxu0
        %v6575 = vadd.f32 0.0, %v6574
        %v6576 = vpop.f32.mrf.mxu0
        %v6577 = vadd.f32 0.0, %v6576
        %6578 = vmatmul.bf16.gmra.mxu0 %v4365
        %v6579 = vpop.f32.mrf.mxu0
        %v6580 = vadd.f32 0.0, %v6579
        %v6581 = vpop.f32.mrf.mxu0
        %v6582 = vadd.f32 0.0, %v6581
        %6583 = vmatmul.bf16.gmra.mxu0 %v4373
        %v6584 = vpop.f32.mrf.mxu0
        %v6585 = vadd.f32 0.0, %v6584
        %v6586 = vpop.f32.mrf.mxu0
        %v6587 = vadd.f32 0.0, %v6586
        %6588 = vmatmul.bf16.gmra.mxu0 %v4381
        %v6589 = vpop.f32.mrf.mxu0
        %v6590 = vadd.f32 0.0, %v6589
        %v6591 = vpop.f32.mrf.mxu0
        %v6592 = vadd.f32 0.0, %v6591
        %6593 = vmatmul.bf16.gmra.mxu0 %v4389
        %v6594 = vpop.f32.mrf.mxu0
        %v6595 = vadd.f32 0.0, %v6594
        %v6596 = vpop.f32.mrf.mxu0
        %v6597 = vadd.f32 0.0, %v6596
        %6598 = vdwg.mxu0
        %6599 = vmatpush.bf16.msra.mxu0 %v5482
        %6600 = vmatpush.bf16.msra.mxu0 %v5478
        %6601 = vmatpush.bf16.msra.mxu0 %v5474
        %6602 = vmatpush.bf16.msra.mxu0 %v5470
        %6603 = vmatpush.bf16.msra.mxu0 %v5466
        %6604 = vmatpush.bf16.msra.mxu0 %v5462
        %6605 = vmatpush.bf16.msra.mxu0 %v5458
        %6606 = vmatpush.bf16.msra.mxu0 %v5454
        %6607 = vmatmul.bf16.gmra.mxu0 %v4294
        %v6608 = vpop.f32.mrf.mxu0
        %v6609 = vadd.f32 %v6535, %v6608
        %v6610 = vpop.f32.mrf.mxu0
        %v6611 = vadd.f32 %v6537, %v6610
        %6612 = vmatmul.bf16.gmra.mxu0 %v4302
        %v6613 = vpop.f32.mrf.mxu0
        %v6614 = vadd.f32 %v6540, %v6613
        %v6615 = vpop.f32.mrf.mxu0
        %v6616 = vadd.f32 %v6542, %v6615
        %6617 = vmatmul.bf16.gmra.mxu0 %v4310
        %v6618 = vpop.f32.mrf.mxu0
        %v6619 = vadd.f32 %v6545, %v6618
        %v6620 = vpop.f32.mrf.mxu0
        %v6621 = vadd.f32 %v6547, %v6620
        %6622 = vmatmul.bf16.gmra.mxu0 %v4318
        %v6623 = vpop.f32.mrf.mxu0
        %v6624 = vadd.f32 %v6550, %v6623
        %v6625 = vpop.f32.mrf.mxu0
        %v6626 = vadd.f32 %v6552, %v6625
        %6627 = vmatmul.bf16.gmra.mxu0 %v4326
        %v6628 = vpop.f32.mrf.mxu0
        %v6629 = vadd.f32 %v6555, %v6628
        %v6630 = vpop.f32.mrf.mxu0
        %v6631 = vadd.f32 %v6557, %v6630
        %6632 = vmatmul.bf16.gmra.mxu0 %v4334
        %v6633 = vpop.f32.mrf.mxu0
        %v6634 = vadd.f32 %v6560, %v6633
        %v6635 = vpop.f32.mrf.mxu0
        %v6636 = vadd.f32 %v6562, %v6635
        %6637 = vmatmul.bf16.gmra.mxu0 %v4342
        %v6638 = vpop.f32.mrf.mxu0
        %v6639 = vadd.f32 %v6565, %v6638
        %v6640 = vpop.f32.mrf.mxu0
        %v6641 = vadd.f32 %v6567, %v6640
        %6642 = vmatmul.bf16.gmra.mxu0 %v4350
        %v6643 = vpop.f32.mrf.mxu0
        %v6644 = vadd.f32 %v6570, %v6643
        %v6645 = vpop.f32.mrf.mxu0
        %v6646 = vadd.f32 %v6572, %v6645
        %6647 = vmatmul.bf16.gmra.mxu0 %v4358
        %v6648 = vpop.f32.mrf.mxu0
        %v6649 = vadd.f32 %v6575, %v6648
        %v6650 = vpop.f32.mrf.mxu0
        %v6651 = vadd.f32 %v6577, %v6650
        %6652 = vmatmul.bf16.gmra.mxu0 %v4366
        %v6653 = vpop.f32.mrf.mxu0
        %v6654 = vadd.f32 %v6580, %v6653
        %v6655 = vpop.f32.mrf.mxu0
        %v6656 = vadd.f32 %v6582, %v6655
        %6657 = vmatmul.bf16.gmra.mxu0 %v4374
        %v6658 = vpop.f32.mrf.mxu0
        %v6659 = vadd.f32 %v6585, %v6658
        %v6660 = vpop.f32.mrf.mxu0
        %v6661 = vadd.f32 %v6587, %v6660
        %6662 = vmatmul.bf16.gmra.mxu0 %v4382
        %v6663 = vpop.f32.mrf.mxu0
        %v6664 = vadd.f32 %v6590, %v6663
        %v6665 = vpop.f32.mrf.mxu0
        %v6666 = vadd.f32 %v6592, %v6665
        %6667 = vmatmul.bf16.gmra.mxu0 %v4390
        %v6668 = vpop.f32.mrf.mxu0
        %v6669 = vadd.f32 %v6595, %v6668
        %v6670 = vpop.f32.mrf.mxu0
        %v6671 = vadd.f32 %v6597, %v6670
        %6672 = vdwg.mxu0
        %6673 = vmatpush.bf16.msra.mxu0 %v5514
        %6674 = vmatpush.bf16.msra.mxu0 %v5510
        %6675 = vmatpush.bf16.msra.mxu0 %v5506
        %6676 = vmatpush.bf16.msra.mxu0 %v5502
        %6677 = vmatpush.bf16.msra.mxu0 %v5498
        %6678 = vmatpush.bf16.msra.mxu0 %v5494
        %6679 = vmatpush.bf16.msra.mxu0 %v5490
        %6680 = vmatpush.bf16.msra.mxu0 %v5486
        %6681 = vmatmul.bf16.gmra.mxu0 %v4295
        %v6682 = vpop.f32.mrf.mxu0
        %v6683 = vadd.f32 %v6609, %v6682
        %v6684 = vpop.f32.mrf.mxu0
        %v6685 = vadd.f32 %v6611, %v6684
        %6686 = vmatmul.bf16.gmra.mxu0 %v4303
        %v6687 = vpop.f32.mrf.mxu0
        %v6688 = vadd.f32 %v6614, %v6687
        %v6689 = vpop.f32.mrf.mxu0
        %v6690 = vadd.f32 %v6616, %v6689
        %6691 = vmatmul.bf16.gmra.mxu0 %v4311
        %v6692 = vpop.f32.mrf.mxu0
        %v6693 = vadd.f32 %v6619, %v6692
        %v6694 = vpop.f32.mrf.mxu0
        %v6695 = vadd.f32 %v6621, %v6694
        %6696 = vmatmul.bf16.gmra.mxu0 %v4319
        %v6697 = vpop.f32.mrf.mxu0
        %v6698 = vadd.f32 %v6624, %v6697
        %v6699 = vpop.f32.mrf.mxu0
        %v6700 = vadd.f32 %v6626, %v6699
        %6701 = vmatmul.bf16.gmra.mxu0 %v4327
        %v6702 = vpop.f32.mrf.mxu0
        %v6703 = vadd.f32 %v6629, %v6702
        %v6704 = vpop.f32.mrf.mxu0
        %v6705 = vadd.f32 %v6631, %v6704
        %6706 = vmatmul.bf16.gmra.mxu0 %v4335
        %v6707 = vpop.f32.mrf.mxu0
        %v6708 = vadd.f32 %v6634, %v6707
        %v6709 = vpop.f32.mrf.mxu0
        %v6710 = vadd.f32 %v6636, %v6709
        %6711 = vmatmul.bf16.gmra.mxu0 %v4343
        %v6712 = vpop.f32.mrf.mxu0
        %v6713 = vadd.f32 %v6639, %v6712
        %v6714 = vpop.f32.mrf.mxu0
        %v6715 = vadd.f32 %v6641, %v6714
        %6716 = vmatmul.bf16.gmra.mxu0 %v4351
        %v6717 = vpop.f32.mrf.mxu0
        %v6718 = vadd.f32 %v6644, %v6717
        %v6719 = vpop.f32.mrf.mxu0
        %v6720 = vadd.f32 %v6646, %v6719
        %6721 = vmatmul.bf16.gmra.mxu0 %v4359
        %v6722 = vpop.f32.mrf.mxu0
        %v6723 = vadd.f32 %v6649, %v6722
        %v6724 = vpop.f32.mrf.mxu0
        %v6725 = vadd.f32 %v6651, %v6724
        %6726 = vmatmul.bf16.gmra.mxu0 %v4367
        %v6727 = vpop.f32.mrf.mxu0
        %v6728 = vadd.f32 %v6654, %v6727
        %v6729 = vpop.f32.mrf.mxu0
        %v6730 = vadd.f32 %v6656, %v6729
        %6731 = vmatmul.bf16.gmra.mxu0 %v4375
        %v6732 = vpop.f32.mrf.mxu0
        %v6733 = vadd.f32 %v6659, %v6732
        %v6734 = vpop.f32.mrf.mxu0
        %v6735 = vadd.f32 %v6661, %v6734
        %6736 = vmatmul.bf16.gmra.mxu0 %v4383
        %v6737 = vpop.f32.mrf.mxu0
        %v6738 = vadd.f32 %v6664, %v6737
        %v6739 = vpop.f32.mrf.mxu0
        %v6740 = vadd.f32 %v6666, %v6739
        %6741 = vmatmul.bf16.gmra.mxu0 %v4391
        %v6742 = vpop.f32.mrf.mxu0
        %v6743 = vadd.f32 %v6669, %v6742
        %v6744 = vpop.f32.mrf.mxu0
        %v6745 = vadd.f32 %v6671, %v6744
        %6746 = vdwg.mxu0
        %6747 = vmatpush.bf16.msra.mxu0 %v5546
        %6748 = vmatpush.bf16.msra.mxu0 %v5542
        %6749 = vmatpush.bf16.msra.mxu0 %v5538
        %6750 = vmatpush.bf16.msra.mxu0 %v5534
        %6751 = vmatpush.bf16.msra.mxu0 %v5530
        %6752 = vmatpush.bf16.msra.mxu0 %v5526
        %6753 = vmatpush.bf16.msra.mxu0 %v5522
        %6754 = vmatpush.bf16.msra.mxu0 %v5518
        %6755 = vmatmul.bf16.gmra.mxu0 %v4296
        %v6756 = vpop.f32.mrf.mxu0
        %v6757 = vadd.f32 %v6683, %v6756
        %v6758 = vpop.f32.mrf.mxu0
        %v6759 = vadd.f32 %v6685, %v6758
        %6760 = vmatmul.bf16.gmra.mxu0 %v4304
        %v6761 = vpop.f32.mrf.mxu0
        %v6762 = vadd.f32 %v6688, %v6761
        %v6763 = vpop.f32.mrf.mxu0
        %v6764 = vadd.f32 %v6690, %v6763
        %6765 = vmatmul.bf16.gmra.mxu0 %v4312
        %v6766 = vpop.f32.mrf.mxu0
        %v6767 = vadd.f32 %v6693, %v6766
        %v6768 = vpop.f32.mrf.mxu0
        %v6769 = vadd.f32 %v6695, %v6768
        %6770 = vmatmul.bf16.gmra.mxu0 %v4320
        %v6771 = vpop.f32.mrf.mxu0
        %v6772 = vadd.f32 %v6698, %v6771
        %v6773 = vpop.f32.mrf.mxu0
        %v6774 = vadd.f32 %v6700, %v6773
        %6775 = vmatmul.bf16.gmra.mxu0 %v4328
        %v6776 = vpop.f32.mrf.mxu0
        %v6777 = vadd.f32 %v6703, %v6776
        %v6778 = vpop.f32.mrf.mxu0
        %v6779 = vadd.f32 %v6705, %v6778
        %6780 = vmatmul.bf16.gmra.mxu0 %v4336
        %v6781 = vpop.f32.mrf.mxu0
        %v6782 = vadd.f32 %v6708, %v6781
        %v6783 = vpop.f32.mrf.mxu0
        %v6784 = vadd.f32 %v6710, %v6783
        %6785 = vmatmul.bf16.gmra.mxu0 %v4344
        %v6786 = vpop.f32.mrf.mxu0
        %v6787 = vadd.f32 %v6713, %v6786
        %v6788 = vpop.f32.mrf.mxu0
        %v6789 = vadd.f32 %v6715, %v6788
        %6790 = vmatmul.bf16.gmra.mxu0 %v4352
        %v6791 = vpop.f32.mrf.mxu0
        %v6792 = vadd.f32 %v6718, %v6791
        %v6793 = vpop.f32.mrf.mxu0
        %v6794 = vadd.f32 %v6720, %v6793
        %6795 = vmatmul.bf16.gmra.mxu0 %v4360
        %v6796 = vpop.f32.mrf.mxu0
        %v6797 = vadd.f32 %v6723, %v6796
        %v6798 = vpop.f32.mrf.mxu0
        %v6799 = vadd.f32 %v6725, %v6798
        %6800 = vmatmul.bf16.gmra.mxu0 %v4368
        %v6801 = vpop.f32.mrf.mxu0
        %v6802 = vadd.f32 %v6728, %v6801
        %v6803 = vpop.f32.mrf.mxu0
        %v6804 = vadd.f32 %v6730, %v6803
        %6805 = vmatmul.bf16.gmra.mxu0 %v4376
        %v6806 = vpop.f32.mrf.mxu0
        %v6807 = vadd.f32 %v6733, %v6806
        %v6808 = vpop.f32.mrf.mxu0
        %v6809 = vadd.f32 %v6735, %v6808
        %6810 = vmatmul.bf16.gmra.mxu0 %v4384
        %v6811 = vpop.f32.mrf.mxu0
        %v6812 = vadd.f32 %v6738, %v6811
        %v6813 = vpop.f32.mrf.mxu0
        %v6814 = vadd.f32 %v6740, %v6813
        %6815 = vmatmul.bf16.gmra.mxu0 %v4392
        %v6816 = vpop.f32.mrf.mxu0
        %v6817 = vadd.f32 %v6743, %v6816
        %v6818 = vpop.f32.mrf.mxu0
        %v6819 = vadd.f32 %v6745, %v6818
        %6820 = vdwg.mxu0
        %6821 = vmatpush.bf16.msra.mxu0 %v5578
        %6822 = vmatpush.bf16.msra.mxu0 %v5574
        %6823 = vmatpush.bf16.msra.mxu0 %v5570
        %6824 = vmatpush.bf16.msra.mxu0 %v5566
        %6825 = vmatpush.bf16.msra.mxu0 %v5562
        %6826 = vmatpush.bf16.msra.mxu0 %v5558
        %6827 = vmatpush.bf16.msra.mxu0 %v5554
        %6828 = vmatpush.bf16.msra.mxu0 %v5550
        %6829 = vmatmul.bf16.gmra.mxu0 %v4297
        %v6830 = vpop.f32.mrf.mxu0
        %v6831 = vadd.f32 %v6757, %v6830
        %v6832 = vpop.f32.mrf.mxu0
        %v6833 = vadd.f32 %v6759, %v6832
        %6834 = vmatmul.bf16.gmra.mxu0 %v4305
        %v6835 = vpop.f32.mrf.mxu0
        %v6836 = vadd.f32 %v6762, %v6835
        %v6837 = vpop.f32.mrf.mxu0
        %v6838 = vadd.f32 %v6764, %v6837
        %6839 = vmatmul.bf16.gmra.mxu0 %v4313
        %v6840 = vpop.f32.mrf.mxu0
        %v6841 = vadd.f32 %v6767, %v6840
        %v6842 = vpop.f32.mrf.mxu0
        %v6843 = vadd.f32 %v6769, %v6842
        %6844 = vmatmul.bf16.gmra.mxu0 %v4321
        %v6845 = vpop.f32.mrf.mxu0
        %v6846 = vadd.f32 %v6772, %v6845
        %v6847 = vpop.f32.mrf.mxu0
        %v6848 = vadd.f32 %v6774, %v6847
        %6849 = vmatmul.bf16.gmra.mxu0 %v4329
        %v6850 = vpop.f32.mrf.mxu0
        %v6851 = vadd.f32 %v6777, %v6850
        %v6852 = vpop.f32.mrf.mxu0
        %v6853 = vadd.f32 %v6779, %v6852
        %6854 = vmatmul.bf16.gmra.mxu0 %v4337
        %v6855 = vpop.f32.mrf.mxu0
        %v6856 = vadd.f32 %v6782, %v6855
        %v6857 = vpop.f32.mrf.mxu0
        %v6858 = vadd.f32 %v6784, %v6857
        %6859 = vmatmul.bf16.gmra.mxu0 %v4345
        %v6860 = vpop.f32.mrf.mxu0
        %v6861 = vadd.f32 %v6787, %v6860
        %v6862 = vpop.f32.mrf.mxu0
        %v6863 = vadd.f32 %v6789, %v6862
        %6864 = vmatmul.bf16.gmra.mxu0 %v4353
        %v6865 = vpop.f32.mrf.mxu0
        %v6866 = vadd.f32 %v6792, %v6865
        %v6867 = vpop.f32.mrf.mxu0
        %v6868 = vadd.f32 %v6794, %v6867
        %6869 = vmatmul.bf16.gmra.mxu0 %v4361
        %v6870 = vpop.f32.mrf.mxu0
        %v6871 = vadd.f32 %v6797, %v6870
        %v6872 = vpop.f32.mrf.mxu0
        %v6873 = vadd.f32 %v6799, %v6872
        %6874 = vmatmul.bf16.gmra.mxu0 %v4369
        %v6875 = vpop.f32.mrf.mxu0
        %v6876 = vadd.f32 %v6802, %v6875
        %v6877 = vpop.f32.mrf.mxu0
        %v6878 = vadd.f32 %v6804, %v6877
        %6879 = vmatmul.bf16.gmra.mxu0 %v4377
        %v6880 = vpop.f32.mrf.mxu0
        %v6881 = vadd.f32 %v6807, %v6880
        %v6882 = vpop.f32.mrf.mxu0
        %v6883 = vadd.f32 %v6809, %v6882
        %6884 = vmatmul.bf16.gmra.mxu0 %v4385
        %v6885 = vpop.f32.mrf.mxu0
        %v6886 = vadd.f32 %v6812, %v6885
        %v6887 = vpop.f32.mrf.mxu0
        %v6888 = vadd.f32 %v6814, %v6887
        %6889 = vmatmul.bf16.gmra.mxu0 %v4393
        %v6890 = vpop.f32.mrf.mxu0
        %v6891 = vadd.f32 %v6817, %v6890
        %v6892 = vpop.f32.mrf.mxu0
        %v6893 = vadd.f32 %v6819, %v6892
        %6894 = vdwg.mxu0
        %6895 = vmatpush.bf16.msra.mxu0 %v5610
        %6896 = vmatpush.bf16.msra.mxu0 %v5606
        %6897 = vmatpush.bf16.msra.mxu0 %v5602
        %6898 = vmatpush.bf16.msra.mxu0 %v5598
        %6899 = vmatpush.bf16.msra.mxu0 %v5594
        %6900 = vmatpush.bf16.msra.mxu0 %v5590
        %6901 = vmatpush.bf16.msra.mxu0 %v5586
        %6902 = vmatpush.bf16.msra.mxu0 %v5582
        %6903 = vmatmul.bf16.gmra.mxu0 %v4298
        %v6904 = vpop.f32.mrf.mxu0
        %v6905 = vadd.f32 %v6831, %v6904
        %v6906 = vpop.f32.mrf.mxu0
        %v6907 = vadd.f32 %v6833, %v6906
        %6908 = vmatmul.bf16.gmra.mxu0 %v4306
        %v6909 = vpop.f32.mrf.mxu0
        %v6910 = vadd.f32 %v6836, %v6909
        %v6911 = vpop.f32.mrf.mxu0
        %v6912 = vadd.f32 %v6838, %v6911
        %6913 = vmatmul.bf16.gmra.mxu0 %v4314
        %v6914 = vpop.f32.mrf.mxu0
        %v6915 = vadd.f32 %v6841, %v6914
        %v6916 = vpop.f32.mrf.mxu0
        %v6917 = vadd.f32 %v6843, %v6916
        %6918 = vmatmul.bf16.gmra.mxu0 %v4322
        %v6919 = vpop.f32.mrf.mxu0
        %v6920 = vadd.f32 %v6846, %v6919
        %v6921 = vpop.f32.mrf.mxu0
        %v6922 = vadd.f32 %v6848, %v6921
        %6923 = vmatmul.bf16.gmra.mxu0 %v4330
        %v6924 = vpop.f32.mrf.mxu0
        %v6925 = vadd.f32 %v6851, %v6924
        %v6926 = vpop.f32.mrf.mxu0
        %v6927 = vadd.f32 %v6853, %v6926
        %6928 = vmatmul.bf16.gmra.mxu0 %v4338
        %v6929 = vpop.f32.mrf.mxu0
        %v6930 = vadd.f32 %v6856, %v6929
        %v6931 = vpop.f32.mrf.mxu0
        %v6932 = vadd.f32 %v6858, %v6931
        %6933 = vmatmul.bf16.gmra.mxu0 %v4346
        %v6934 = vpop.f32.mrf.mxu0
        %v6935 = vadd.f32 %v6861, %v6934
        %v6936 = vpop.f32.mrf.mxu0
        %v6937 = vadd.f32 %v6863, %v6936
        %6938 = vmatmul.bf16.gmra.mxu0 %v4354
        %v6939 = vpop.f32.mrf.mxu0
        %v6940 = vadd.f32 %v6866, %v6939
        %v6941 = vpop.f32.mrf.mxu0
        %v6942 = vadd.f32 %v6868, %v6941
        %6943 = vmatmul.bf16.gmra.mxu0 %v4362
        %v6944 = vpop.f32.mrf.mxu0
        %v6945 = vadd.f32 %v6871, %v6944
        %v6946 = vpop.f32.mrf.mxu0
        %v6947 = vadd.f32 %v6873, %v6946
        %6948 = vmatmul.bf16.gmra.mxu0 %v4370
        %v6949 = vpop.f32.mrf.mxu0
        %v6950 = vadd.f32 %v6876, %v6949
        %v6951 = vpop.f32.mrf.mxu0
        %v6952 = vadd.f32 %v6878, %v6951
        %6953 = vmatmul.bf16.gmra.mxu0 %v4378
        %v6954 = vpop.f32.mrf.mxu0
        %v6955 = vadd.f32 %v6881, %v6954
        %v6956 = vpop.f32.mrf.mxu0
        %v6957 = vadd.f32 %v6883, %v6956
        %6958 = vmatmul.bf16.gmra.mxu0 %v4386
        %v6959 = vpop.f32.mrf.mxu0
        %v6960 = vadd.f32 %v6886, %v6959
        %v6961 = vpop.f32.mrf.mxu0
        %v6962 = vadd.f32 %v6888, %v6961
        %6963 = vmatmul.bf16.gmra.mxu0 %v4394
        %v6964 = vpop.f32.mrf.mxu0
        %v6965 = vadd.f32 %v6891, %v6964
        %v6966 = vpop.f32.mrf.mxu0
        %v6967 = vadd.f32 %v6893, %v6966
        %6968 = vdwg.mxu0
        %6969 = vmatpush.bf16.msra.mxu0 %v5642
        %6970 = vmatpush.bf16.msra.mxu0 %v5638
        %6971 = vmatpush.bf16.msra.mxu0 %v5634
        %6972 = vmatpush.bf16.msra.mxu0 %v5630
        %6973 = vmatpush.bf16.msra.mxu0 %v5626
        %6974 = vmatpush.bf16.msra.mxu0 %v5622
        %6975 = vmatpush.bf16.msra.mxu0 %v5618
        %6976 = vmatpush.bf16.msra.mxu0 %v5614
        %6977 = vmatmul.bf16.gmra.mxu0 %v4299
        %v6978 = vpop.f32.mrf.mxu0
        %v6979 = vadd.f32 %v6905, %v6978
        %v6980 = vpop.f32.mrf.mxu0
        %v6981 = vadd.f32 %v6907, %v6980
        %6982 = vmatmul.bf16.gmra.mxu0 %v4307
        %v6983 = vpop.f32.mrf.mxu0
        %v6984 = vadd.f32 %v6910, %v6983
        %v6985 = vpop.f32.mrf.mxu0
        %v6986 = vadd.f32 %v6912, %v6985
        %6987 = vmatmul.bf16.gmra.mxu0 %v4315
        %v6988 = vpop.f32.mrf.mxu0
        %v6989 = vadd.f32 %v6915, %v6988
        %v6990 = vpop.f32.mrf.mxu0
        %v6991 = vadd.f32 %v6917, %v6990
        %6992 = vmatmul.bf16.gmra.mxu0 %v4323
        %v6993 = vpop.f32.mrf.mxu0
        %v6994 = vadd.f32 %v6920, %v6993
        %v6995 = vpop.f32.mrf.mxu0
        %v6996 = vadd.f32 %v6922, %v6995
        %6997 = vmatmul.bf16.gmra.mxu0 %v4331
        %v6998 = vpop.f32.mrf.mxu0
        %v6999 = vadd.f32 %v6925, %v6998
        %v7000 = vpop.f32.mrf.mxu0
        %v7001 = vadd.f32 %v6927, %v7000
        %7002 = vmatmul.bf16.gmra.mxu0 %v4339
        %v7003 = vpop.f32.mrf.mxu0
        %v7004 = vadd.f32 %v6930, %v7003
        %v7005 = vpop.f32.mrf.mxu0
        %v7006 = vadd.f32 %v6932, %v7005
        %7007 = vmatmul.bf16.gmra.mxu0 %v4347
        %v7008 = vpop.f32.mrf.mxu0
        %v7009 = vadd.f32 %v6935, %v7008
        %v7010 = vpop.f32.mrf.mxu0
        %v7011 = vadd.f32 %v6937, %v7010
        %7012 = vmatmul.bf16.gmra.mxu0 %v4355
        %v7013 = vpop.f32.mrf.mxu0
        %v7014 = vadd.f32 %v6940, %v7013
        %v7015 = vpop.f32.mrf.mxu0
        %v7016 = vadd.f32 %v6942, %v7015
        %7017 = vmatmul.bf16.gmra.mxu0 %v4363
        %v7018 = vpop.f32.mrf.mxu0
        %v7019 = vadd.f32 %v6945, %v7018
        %v7020 = vpop.f32.mrf.mxu0
        %v7021 = vadd.f32 %v6947, %v7020
        %7022 = vmatmul.bf16.gmra.mxu0 %v4371
        %v7023 = vpop.f32.mrf.mxu0
        %v7024 = vadd.f32 %v6950, %v7023
        %v7025 = vpop.f32.mrf.mxu0
        %v7026 = vadd.f32 %v6952, %v7025
        %7027 = vmatmul.bf16.gmra.mxu0 %v4379
        %v7028 = vpop.f32.mrf.mxu0
        %v7029 = vadd.f32 %v6955, %v7028
        %v7030 = vpop.f32.mrf.mxu0
        %v7031 = vadd.f32 %v6957, %v7030
        %7032 = vmatmul.bf16.gmra.mxu0 %v4387
        %v7033 = vpop.f32.mrf.mxu0
        %v7034 = vadd.f32 %v6960, %v7033
        %v7035 = vpop.f32.mrf.mxu0
        %v7036 = vadd.f32 %v6962, %v7035
        %7037 = vmatmul.bf16.gmra.mxu0 %v4395
        %v7038 = vpop.f32.mrf.mxu0
        %v7039 = vadd.f32 %v6965, %v7038
        %v7040 = vpop.f32.mrf.mxu0
        %v7041 = vadd.f32 %v6967, %v7040
        %7042 = vdwg.mxu0
        %7043 = vmatpush.bf16.msra.mxu0 %v5674
        %7044 = vmatpush.bf16.msra.mxu0 %v5670
        %7045 = vmatpush.bf16.msra.mxu0 %v5666
        %7046 = vmatpush.bf16.msra.mxu0 %v5662
        %7047 = vmatpush.bf16.msra.mxu0 %v5658
        %7048 = vmatpush.bf16.msra.mxu0 %v5654
        %7049 = vmatpush.bf16.msra.mxu0 %v5650
        %7050 = vmatpush.bf16.msra.mxu0 %v5646
        %7051 = vmatmul.bf16.gmra.mxu0 %v4300
        %v7052 = vpop.f32.mrf.mxu0
        %v7053 = vadd.f32 %v6979, %v7052
        %v7054 = vpop.f32.mrf.mxu0
        %v7055 = vadd.f32 %v6981, %v7054
        %7056 = vmatmul.bf16.gmra.mxu0 %v4308
        %v7057 = vpop.f32.mrf.mxu0
        %v7058 = vadd.f32 %v6984, %v7057
        %v7059 = vpop.f32.mrf.mxu0
        %v7060 = vadd.f32 %v6986, %v7059
        %7061 = vmatmul.bf16.gmra.mxu0 %v4316
        %v7062 = vpop.f32.mrf.mxu0
        %v7063 = vadd.f32 %v6989, %v7062
        %v7064 = vpop.f32.mrf.mxu0
        %v7065 = vadd.f32 %v6991, %v7064
        %7066 = vmatmul.bf16.gmra.mxu0 %v4324
        %v7067 = vpop.f32.mrf.mxu0
        %v7068 = vadd.f32 %v6994, %v7067
        %v7069 = vpop.f32.mrf.mxu0
        %v7070 = vadd.f32 %v6996, %v7069
        %7071 = vmatmul.bf16.gmra.mxu0 %v4332
        %v7072 = vpop.f32.mrf.mxu0
        %v7073 = vadd.f32 %v6999, %v7072
        %v7074 = vpop.f32.mrf.mxu0
        %v7075 = vadd.f32 %v7001, %v7074
        %7076 = vmatmul.bf16.gmra.mxu0 %v4340
        %v7077 = vpop.f32.mrf.mxu0
        %v7078 = vadd.f32 %v7004, %v7077
        %v7079 = vpop.f32.mrf.mxu0
        %v7080 = vadd.f32 %v7006, %v7079
        %7081 = vmatmul.bf16.gmra.mxu0 %v4348
        %v7082 = vpop.f32.mrf.mxu0
        %v7083 = vadd.f32 %v7009, %v7082
        %v7084 = vpop.f32.mrf.mxu0
        %v7085 = vadd.f32 %v7011, %v7084
        %7086 = vmatmul.bf16.gmra.mxu0 %v4356
        %v7087 = vpop.f32.mrf.mxu0
        %v7088 = vadd.f32 %v7014, %v7087
        %v7089 = vpop.f32.mrf.mxu0
        %v7090 = vadd.f32 %v7016, %v7089
        %7091 = vmatmul.bf16.gmra.mxu0 %v4364
        %v7092 = vpop.f32.mrf.mxu0
        %v7093 = vadd.f32 %v7019, %v7092
        %v7094 = vpop.f32.mrf.mxu0
        %v7095 = vadd.f32 %v7021, %v7094
        %7096 = vmatmul.bf16.gmra.mxu0 %v4372
        %v7097 = vpop.f32.mrf.mxu0
        %v7098 = vadd.f32 %v7024, %v7097
        %v7099 = vpop.f32.mrf.mxu0
        %v7100 = vadd.f32 %v7026, %v7099
        %7101 = vmatmul.bf16.gmra.mxu0 %v4380
        %v7102 = vpop.f32.mrf.mxu0
        %v7103 = vadd.f32 %v7029, %v7102
        %v7104 = vpop.f32.mrf.mxu0
        %v7105 = vadd.f32 %v7031, %v7104
        %7106 = vmatmul.bf16.gmra.mxu0 %v4388
        %v7107 = vpop.f32.mrf.mxu0
        %v7108 = vadd.f32 %v7034, %v7107
        %v7109 = vpop.f32.mrf.mxu0
        %v7110 = vadd.f32 %v7036, %v7109
        %7111 = vmatmul.bf16.gmra.mxu0 %v4396
        %v7112 = vpop.f32.mrf.mxu0
        %v7113 = vadd.f32 %v7039, %v7112
        %v7114 = vpop.f32.mrf.mxu0
        %v7115 = vadd.f32 %v7041, %v7114
        %7116 = vdwg.mxu0
        %7117 = vmatpush.bf16.msra.mxu0 %v5451
        %7118 = vmatpush.bf16.msra.mxu0 %v5447
        %7119 = vmatpush.bf16.msra.mxu0 %v5443
        %7120 = vmatpush.bf16.msra.mxu0 %v5439
        %7121 = vmatpush.bf16.msra.mxu0 %v5435
        %7122 = vmatpush.bf16.msra.mxu0 %v5431
        %7123 = vmatpush.bf16.msra.mxu0 %v5427
        %7124 = vmatpush.bf16.msra.mxu0 %v5423
        %7125 = vmatmul.bf16.gmra.mxu0 %v4293
        %v7126 = vpop.f32.mrf.mxu0
        %v7127 = vadd.f32 0.0, %v7126
        %v7128 = vpop.f32.mrf.mxu0
        %v7129 = vadd.f32 0.0, %v7128
        %7130 = vmatmul.bf16.gmra.mxu0 %v4301
        %v7131 = vpop.f32.mrf.mxu0
        %v7132 = vadd.f32 0.0, %v7131
        %v7133 = vpop.f32.mrf.mxu0
        %v7134 = vadd.f32 0.0, %v7133
        %7135 = vmatmul.bf16.gmra.mxu0 %v4309
        %v7136 = vpop.f32.mrf.mxu0
        %v7137 = vadd.f32 0.0, %v7136
        %v7138 = vpop.f32.mrf.mxu0
        %v7139 = vadd.f32 0.0, %v7138
        %7140 = vmatmul.bf16.gmra.mxu0 %v4317
        %v7141 = vpop.f32.mrf.mxu0
        %v7142 = vadd.f32 0.0, %v7141
        %v7143 = vpop.f32.mrf.mxu0
        %v7144 = vadd.f32 0.0, %v7143
        %7145 = vmatmul.bf16.gmra.mxu0 %v4325
        %v7146 = vpop.f32.mrf.mxu0
        %v7147 = vadd.f32 0.0, %v7146
        %v7148 = vpop.f32.mrf.mxu0
        %v7149 = vadd.f32 0.0, %v7148
        %7150 = vmatmul.bf16.gmra.mxu0 %v4333
        %v7151 = vpop.f32.mrf.mxu0
        %v7152 = vadd.f32 0.0, %v7151
        %v7153 = vpop.f32.mrf.mxu0
        %v7154 = vadd.f32 0.0, %v7153
        %7155 = vmatmul.bf16.gmra.mxu0 %v4341
        %v7156 = vpop.f32.mrf.mxu0
        %v7157 = vadd.f32 0.0, %v7156
        %v7158 = vpop.f32.mrf.mxu0
        %v7159 = vadd.f32 0.0, %v7158
        %7160 = vmatmul.bf16.gmra.mxu0 %v4349
        %v7161 = vpop.f32.mrf.mxu0
        %v7162 = vadd.f32 0.0, %v7161
        %v7163 = vpop.f32.mrf.mxu0
        %v7164 = vadd.f32 0.0, %v7163
        %7165 = vmatmul.bf16.gmra.mxu0 %v4357
        %v7166 = vpop.f32.mrf.mxu0
        %v7167 = vadd.f32 0.0, %v7166
        %v7168 = vpop.f32.mrf.mxu0
        %v7169 = vadd.f32 0.0, %v7168
        %7170 = vmatmul.bf16.gmra.mxu0 %v4365
        %v7171 = vpop.f32.mrf.mxu0
        %v7172 = vadd.f32 0.0, %v7171
        %v7173 = vpop.f32.mrf.mxu0
        %v7174 = vadd.f32 0.0, %v7173
        %7175 = vmatmul.bf16.gmra.mxu0 %v4373
        %v7176 = vpop.f32.mrf.mxu0
        %v7177 = vadd.f32 0.0, %v7176
        %v7178 = vpop.f32.mrf.mxu0
        %v7179 = vadd.f32 0.0, %v7178
        %7180 = vmatmul.bf16.gmra.mxu0 %v4381
        %v7181 = vpop.f32.mrf.mxu0
        %v7182 = vadd.f32 0.0, %v7181
        %v7183 = vpop.f32.mrf.mxu0
        %v7184 = vadd.f32 0.0, %v7183
        %7185 = vmatmul.bf16.gmra.mxu0 %v4389
        %v7186 = vpop.f32.mrf.mxu0
        %v7187 = vadd.f32 0.0, %v7186
        %v7188 = vpop.f32.mrf.mxu0
        %v7189 = vadd.f32 0.0, %v7188
        %7190 = vdwg.mxu0
        %7191 = vmatpush.bf16.msra.mxu0 %v5483
        %7192 = vmatpush.bf16.msra.mxu0 %v5479
        %7193 = vmatpush.bf16.msra.mxu0 %v5475
        %7194 = vmatpush.bf16.msra.mxu0 %v5471
        %7195 = vmatpush.bf16.msra.mxu0 %v5467
        %7196 = vmatpush.bf16.msra.mxu0 %v5463
        %7197 = vmatpush.bf16.msra.mxu0 %v5459
        %7198 = vmatpush.bf16.msra.mxu0 %v5455
        %7199 = vmatmul.bf16.gmra.mxu0 %v4294
        %v7200 = vpop.f32.mrf.mxu0
        %v7201 = vadd.f32 %v7127, %v7200
        %v7202 = vpop.f32.mrf.mxu0
        %v7203 = vadd.f32 %v7129, %v7202
        %7204 = vmatmul.bf16.gmra.mxu0 %v4302
        %v7205 = vpop.f32.mrf.mxu0
        %v7206 = vadd.f32 %v7132, %v7205
        %v7207 = vpop.f32.mrf.mxu0
        %v7208 = vadd.f32 %v7134, %v7207
        %7209 = vmatmul.bf16.gmra.mxu0 %v4310
        %v7210 = vpop.f32.mrf.mxu0
        %v7211 = vadd.f32 %v7137, %v7210
        %v7212 = vpop.f32.mrf.mxu0
        %v7213 = vadd.f32 %v7139, %v7212
        %7214 = vmatmul.bf16.gmra.mxu0 %v4318
        %v7215 = vpop.f32.mrf.mxu0
        %v7216 = vadd.f32 %v7142, %v7215
        %v7217 = vpop.f32.mrf.mxu0
        %v7218 = vadd.f32 %v7144, %v7217
        %7219 = vmatmul.bf16.gmra.mxu0 %v4326
        %v7220 = vpop.f32.mrf.mxu0
        %v7221 = vadd.f32 %v7147, %v7220
        %v7222 = vpop.f32.mrf.mxu0
        %v7223 = vadd.f32 %v7149, %v7222
        %7224 = vmatmul.bf16.gmra.mxu0 %v4334
        %v7225 = vpop.f32.mrf.mxu0
        %v7226 = vadd.f32 %v7152, %v7225
        %v7227 = vpop.f32.mrf.mxu0
        %v7228 = vadd.f32 %v7154, %v7227
        %7229 = vmatmul.bf16.gmra.mxu0 %v4342
        %v7230 = vpop.f32.mrf.mxu0
        %v7231 = vadd.f32 %v7157, %v7230
        %v7232 = vpop.f32.mrf.mxu0
        %v7233 = vadd.f32 %v7159, %v7232
        %7234 = vmatmul.bf16.gmra.mxu0 %v4350
        %v7235 = vpop.f32.mrf.mxu0
        %v7236 = vadd.f32 %v7162, %v7235
        %v7237 = vpop.f32.mrf.mxu0
        %v7238 = vadd.f32 %v7164, %v7237
        %7239 = vmatmul.bf16.gmra.mxu0 %v4358
        %v7240 = vpop.f32.mrf.mxu0
        %v7241 = vadd.f32 %v7167, %v7240
        %v7242 = vpop.f32.mrf.mxu0
        %v7243 = vadd.f32 %v7169, %v7242
        %7244 = vmatmul.bf16.gmra.mxu0 %v4366
        %v7245 = vpop.f32.mrf.mxu0
        %v7246 = vadd.f32 %v7172, %v7245
        %v7247 = vpop.f32.mrf.mxu0
        %v7248 = vadd.f32 %v7174, %v7247
        %7249 = vmatmul.bf16.gmra.mxu0 %v4374
        %v7250 = vpop.f32.mrf.mxu0
        %v7251 = vadd.f32 %v7177, %v7250
        %v7252 = vpop.f32.mrf.mxu0
        %v7253 = vadd.f32 %v7179, %v7252
        %7254 = vmatmul.bf16.gmra.mxu0 %v4382
        %v7255 = vpop.f32.mrf.mxu0
        %v7256 = vadd.f32 %v7182, %v7255
        %v7257 = vpop.f32.mrf.mxu0
        %v7258 = vadd.f32 %v7184, %v7257
        %7259 = vmatmul.bf16.gmra.mxu0 %v4390
        %v7260 = vpop.f32.mrf.mxu0
        %v7261 = vadd.f32 %v7187, %v7260
        %v7262 = vpop.f32.mrf.mxu0
        %v7263 = vadd.f32 %v7189, %v7262
        %7264 = vdwg.mxu0
        %7265 = vmatpush.bf16.msra.mxu0 %v5515
        %7266 = vmatpush.bf16.msra.mxu0 %v5511
        %7267 = vmatpush.bf16.msra.mxu0 %v5507
        %7268 = vmatpush.bf16.msra.mxu0 %v5503
        %7269 = vmatpush.bf16.msra.mxu0 %v5499
        %7270 = vmatpush.bf16.msra.mxu0 %v5495
        %7271 = vmatpush.bf16.msra.mxu0 %v5491
        %7272 = vmatpush.bf16.msra.mxu0 %v5487
        %7273 = vmatmul.bf16.gmra.mxu0 %v4295
        %v7274 = vpop.f32.mrf.mxu0
        %v7275 = vadd.f32 %v7201, %v7274
        %v7276 = vpop.f32.mrf.mxu0
        %v7277 = vadd.f32 %v7203, %v7276
        %7278 = vmatmul.bf16.gmra.mxu0 %v4303
        %v7279 = vpop.f32.mrf.mxu0
        %v7280 = vadd.f32 %v7206, %v7279
        %v7281 = vpop.f32.mrf.mxu0
        %v7282 = vadd.f32 %v7208, %v7281
        %7283 = vmatmul.bf16.gmra.mxu0 %v4311
        %v7284 = vpop.f32.mrf.mxu0
        %v7285 = vadd.f32 %v7211, %v7284
        %v7286 = vpop.f32.mrf.mxu0
        %v7287 = vadd.f32 %v7213, %v7286
        %7288 = vmatmul.bf16.gmra.mxu0 %v4319
        %v7289 = vpop.f32.mrf.mxu0
        %v7290 = vadd.f32 %v7216, %v7289
        %v7291 = vpop.f32.mrf.mxu0
        %v7292 = vadd.f32 %v7218, %v7291
        %7293 = vmatmul.bf16.gmra.mxu0 %v4327
        %v7294 = vpop.f32.mrf.mxu0
        %v7295 = vadd.f32 %v7221, %v7294
        %v7296 = vpop.f32.mrf.mxu0
        %v7297 = vadd.f32 %v7223, %v7296
        %7298 = vmatmul.bf16.gmra.mxu0 %v4335
        %v7299 = vpop.f32.mrf.mxu0
        %v7300 = vadd.f32 %v7226, %v7299
        %v7301 = vpop.f32.mrf.mxu0
        %v7302 = vadd.f32 %v7228, %v7301
        %7303 = vmatmul.bf16.gmra.mxu0 %v4343
        %v7304 = vpop.f32.mrf.mxu0
        %v7305 = vadd.f32 %v7231, %v7304
        %v7306 = vpop.f32.mrf.mxu0
        %v7307 = vadd.f32 %v7233, %v7306
        %7308 = vmatmul.bf16.gmra.mxu0 %v4351
        %v7309 = vpop.f32.mrf.mxu0
        %v7310 = vadd.f32 %v7236, %v7309
        %v7311 = vpop.f32.mrf.mxu0
        %v7312 = vadd.f32 %v7238, %v7311
        %7313 = vmatmul.bf16.gmra.mxu0 %v4359
        %v7314 = vpop.f32.mrf.mxu0
        %v7315 = vadd.f32 %v7241, %v7314
        %v7316 = vpop.f32.mrf.mxu0
        %v7317 = vadd.f32 %v7243, %v7316
        %7318 = vmatmul.bf16.gmra.mxu0 %v4367
        %v7319 = vpop.f32.mrf.mxu0
        %v7320 = vadd.f32 %v7246, %v7319
        %v7321 = vpop.f32.mrf.mxu0
        %v7322 = vadd.f32 %v7248, %v7321
        %7323 = vmatmul.bf16.gmra.mxu0 %v4375
        %v7324 = vpop.f32.mrf.mxu0
        %v7325 = vadd.f32 %v7251, %v7324
        %v7326 = vpop.f32.mrf.mxu0
        %v7327 = vadd.f32 %v7253, %v7326
        %7328 = vmatmul.bf16.gmra.mxu0 %v4383
        %v7329 = vpop.f32.mrf.mxu0
        %v7330 = vadd.f32 %v7256, %v7329
        %v7331 = vpop.f32.mrf.mxu0
        %v7332 = vadd.f32 %v7258, %v7331
        %7333 = vmatmul.bf16.gmra.mxu0 %v4391
        %v7334 = vpop.f32.mrf.mxu0
        %v7335 = vadd.f32 %v7261, %v7334
        %v7336 = vpop.f32.mrf.mxu0
        %v7337 = vadd.f32 %v7263, %v7336
        %7338 = vdwg.mxu0
        %7339 = vmatpush.bf16.msra.mxu0 %v5547
        %7340 = vmatpush.bf16.msra.mxu0 %v5543
        %7341 = vmatpush.bf16.msra.mxu0 %v5539
        %7342 = vmatpush.bf16.msra.mxu0 %v5535
        %7343 = vmatpush.bf16.msra.mxu0 %v5531
        %7344 = vmatpush.bf16.msra.mxu0 %v5527
        %7345 = vmatpush.bf16.msra.mxu0 %v5523
        %7346 = vmatpush.bf16.msra.mxu0 %v5519
        %7347 = vmatmul.bf16.gmra.mxu0 %v4296
        %v7348 = vpop.f32.mrf.mxu0
        %v7349 = vadd.f32 %v7275, %v7348
        %v7350 = vpop.f32.mrf.mxu0
        %v7351 = vadd.f32 %v7277, %v7350
        %7352 = vmatmul.bf16.gmra.mxu0 %v4304
        %v7353 = vpop.f32.mrf.mxu0
        %v7354 = vadd.f32 %v7280, %v7353
        %v7355 = vpop.f32.mrf.mxu0
        %v7356 = vadd.f32 %v7282, %v7355
        %7357 = vmatmul.bf16.gmra.mxu0 %v4312
        %v7358 = vpop.f32.mrf.mxu0
        %v7359 = vadd.f32 %v7285, %v7358
        %v7360 = vpop.f32.mrf.mxu0
        %v7361 = vadd.f32 %v7287, %v7360
        %7362 = vmatmul.bf16.gmra.mxu0 %v4320
        %v7363 = vpop.f32.mrf.mxu0
        %v7364 = vadd.f32 %v7290, %v7363
        %v7365 = vpop.f32.mrf.mxu0
        %v7366 = vadd.f32 %v7292, %v7365
        %7367 = vmatmul.bf16.gmra.mxu0 %v4328
        %v7368 = vpop.f32.mrf.mxu0
        %v7369 = vadd.f32 %v7295, %v7368
        %v7370 = vpop.f32.mrf.mxu0
        %v7371 = vadd.f32 %v7297, %v7370
        %7372 = vmatmul.bf16.gmra.mxu0 %v4336
        %v7373 = vpop.f32.mrf.mxu0
        %v7374 = vadd.f32 %v7300, %v7373
        %v7375 = vpop.f32.mrf.mxu0
        %v7376 = vadd.f32 %v7302, %v7375
        %7377 = vmatmul.bf16.gmra.mxu0 %v4344
        %v7378 = vpop.f32.mrf.mxu0
        %v7379 = vadd.f32 %v7305, %v7378
        %v7380 = vpop.f32.mrf.mxu0
        %v7381 = vadd.f32 %v7307, %v7380
        %7382 = vmatmul.bf16.gmra.mxu0 %v4352
        %v7383 = vpop.f32.mrf.mxu0
        %v7384 = vadd.f32 %v7310, %v7383
        %v7385 = vpop.f32.mrf.mxu0
        %v7386 = vadd.f32 %v7312, %v7385
        %7387 = vmatmul.bf16.gmra.mxu0 %v4360
        %v7388 = vpop.f32.mrf.mxu0
        %v7389 = vadd.f32 %v7315, %v7388
        %v7390 = vpop.f32.mrf.mxu0
        %v7391 = vadd.f32 %v7317, %v7390
        %7392 = vmatmul.bf16.gmra.mxu0 %v4368
        %v7393 = vpop.f32.mrf.mxu0
        %v7394 = vadd.f32 %v7320, %v7393
        %v7395 = vpop.f32.mrf.mxu0
        %v7396 = vadd.f32 %v7322, %v7395
        %7397 = vmatmul.bf16.gmra.mxu0 %v4376
        %v7398 = vpop.f32.mrf.mxu0
        %v7399 = vadd.f32 %v7325, %v7398
        %v7400 = vpop.f32.mrf.mxu0
        %v7401 = vadd.f32 %v7327, %v7400
        %7402 = vmatmul.bf16.gmra.mxu0 %v4384
        %v7403 = vpop.f32.mrf.mxu0
        %v7404 = vadd.f32 %v7330, %v7403
        %v7405 = vpop.f32.mrf.mxu0
        %v7406 = vadd.f32 %v7332, %v7405
        %7407 = vmatmul.bf16.gmra.mxu0 %v4392
        %v7408 = vpop.f32.mrf.mxu0
        %v7409 = vadd.f32 %v7335, %v7408
        %v7410 = vpop.f32.mrf.mxu0
        %v7411 = vadd.f32 %v7337, %v7410
        %7412 = vdwg.mxu0
        %7413 = vmatpush.bf16.msra.mxu0 %v5579
        %7414 = vmatpush.bf16.msra.mxu0 %v5575
        %7415 = vmatpush.bf16.msra.mxu0 %v5571
        %7416 = vmatpush.bf16.msra.mxu0 %v5567
        %7417 = vmatpush.bf16.msra.mxu0 %v5563
        %7418 = vmatpush.bf16.msra.mxu0 %v5559
        %7419 = vmatpush.bf16.msra.mxu0 %v5555
        %7420 = vmatpush.bf16.msra.mxu0 %v5551
        %7421 = vmatmul.bf16.gmra.mxu0 %v4297
        %v7422 = vpop.f32.mrf.mxu0
        %v7423 = vadd.f32 %v7349, %v7422
        %v7424 = vpop.f32.mrf.mxu0
        %v7425 = vadd.f32 %v7351, %v7424
        %7426 = vmatmul.bf16.gmra.mxu0 %v4305
        %v7427 = vpop.f32.mrf.mxu0
        %v7428 = vadd.f32 %v7354, %v7427
        %v7429 = vpop.f32.mrf.mxu0
        %v7430 = vadd.f32 %v7356, %v7429
        %7431 = vmatmul.bf16.gmra.mxu0 %v4313
        %v7432 = vpop.f32.mrf.mxu0
        %v7433 = vadd.f32 %v7359, %v7432
        %v7434 = vpop.f32.mrf.mxu0
        %v7435 = vadd.f32 %v7361, %v7434
        %7436 = vmatmul.bf16.gmra.mxu0 %v4321
        %v7437 = vpop.f32.mrf.mxu0
        %v7438 = vadd.f32 %v7364, %v7437
        %v7439 = vpop.f32.mrf.mxu0
        %v7440 = vadd.f32 %v7366, %v7439
        %7441 = vmatmul.bf16.gmra.mxu0 %v4329
        %v7442 = vpop.f32.mrf.mxu0
        %v7443 = vadd.f32 %v7369, %v7442
        %v7444 = vpop.f32.mrf.mxu0
        %v7445 = vadd.f32 %v7371, %v7444
        %7446 = vmatmul.bf16.gmra.mxu0 %v4337
        %v7447 = vpop.f32.mrf.mxu0
        %v7448 = vadd.f32 %v7374, %v7447
        %v7449 = vpop.f32.mrf.mxu0
        %v7450 = vadd.f32 %v7376, %v7449
        %7451 = vmatmul.bf16.gmra.mxu0 %v4345
        %v7452 = vpop.f32.mrf.mxu0
        %v7453 = vadd.f32 %v7379, %v7452
        %v7454 = vpop.f32.mrf.mxu0
        %v7455 = vadd.f32 %v7381, %v7454
        %7456 = vmatmul.bf16.gmra.mxu0 %v4353
        %v7457 = vpop.f32.mrf.mxu0
        %v7458 = vadd.f32 %v7384, %v7457
        %v7459 = vpop.f32.mrf.mxu0
        %v7460 = vadd.f32 %v7386, %v7459
        %7461 = vmatmul.bf16.gmra.mxu0 %v4361
        %v7462 = vpop.f32.mrf.mxu0
        %v7463 = vadd.f32 %v7389, %v7462
        %v7464 = vpop.f32.mrf.mxu0
        %v7465 = vadd.f32 %v7391, %v7464
        %7466 = vmatmul.bf16.gmra.mxu0 %v4369
        %v7467 = vpop.f32.mrf.mxu0
        %v7468 = vadd.f32 %v7394, %v7467
        %v7469 = vpop.f32.mrf.mxu0
        %v7470 = vadd.f32 %v7396, %v7469
        %7471 = vmatmul.bf16.gmra.mxu0 %v4377
        %v7472 = vpop.f32.mrf.mxu0
        %v7473 = vadd.f32 %v7399, %v7472
        %v7474 = vpop.f32.mrf.mxu0
        %v7475 = vadd.f32 %v7401, %v7474
        %7476 = vmatmul.bf16.gmra.mxu0 %v4385
        %v7477 = vpop.f32.mrf.mxu0
        %v7478 = vadd.f32 %v7404, %v7477
        %v7479 = vpop.f32.mrf.mxu0
        %v7480 = vadd.f32 %v7406, %v7479
        %7481 = vmatmul.bf16.gmra.mxu0 %v4393
        %v7482 = vpop.f32.mrf.mxu0
        %v7483 = vadd.f32 %v7409, %v7482
        %v7484 = vpop.f32.mrf.mxu0
        %v7485 = vadd.f32 %v7411, %v7484
        %7486 = vdwg.mxu0
        %7487 = vmatpush.bf16.msra.mxu0 %v5611
        %7488 = vmatpush.bf16.msra.mxu0 %v5607
        %7489 = vmatpush.bf16.msra.mxu0 %v5603
        %7490 = vmatpush.bf16.msra.mxu0 %v5599
        %7491 = vmatpush.bf16.msra.mxu0 %v5595
        %7492 = vmatpush.bf16.msra.mxu0 %v5591
        %7493 = vmatpush.bf16.msra.mxu0 %v5587
        %7494 = vmatpush.bf16.msra.mxu0 %v5583
        %7495 = vmatmul.bf16.gmra.mxu0 %v4298
        %v7496 = vpop.f32.mrf.mxu0
        %v7497 = vadd.f32 %v7423, %v7496
        %v7498 = vpop.f32.mrf.mxu0
        %v7499 = vadd.f32 %v7425, %v7498
        %7500 = vmatmul.bf16.gmra.mxu0 %v4306
        %v7501 = vpop.f32.mrf.mxu0
        %v7502 = vadd.f32 %v7428, %v7501
        %v7503 = vpop.f32.mrf.mxu0
        %v7504 = vadd.f32 %v7430, %v7503
        %7505 = vmatmul.bf16.gmra.mxu0 %v4314
        %v7506 = vpop.f32.mrf.mxu0
        %v7507 = vadd.f32 %v7433, %v7506
        %v7508 = vpop.f32.mrf.mxu0
        %v7509 = vadd.f32 %v7435, %v7508
        %7510 = vmatmul.bf16.gmra.mxu0 %v4322
        %v7511 = vpop.f32.mrf.mxu0
        %v7512 = vadd.f32 %v7438, %v7511
        %v7513 = vpop.f32.mrf.mxu0
        %v7514 = vadd.f32 %v7440, %v7513
        %7515 = vmatmul.bf16.gmra.mxu0 %v4330
        %v7516 = vpop.f32.mrf.mxu0
        %v7517 = vadd.f32 %v7443, %v7516
        %v7518 = vpop.f32.mrf.mxu0
        %v7519 = vadd.f32 %v7445, %v7518
        %7520 = vmatmul.bf16.gmra.mxu0 %v4338
        %v7521 = vpop.f32.mrf.mxu0
        %v7522 = vadd.f32 %v7448, %v7521
        %v7523 = vpop.f32.mrf.mxu0
        %v7524 = vadd.f32 %v7450, %v7523
        %7525 = vmatmul.bf16.gmra.mxu0 %v4346
        %v7526 = vpop.f32.mrf.mxu0
        %v7527 = vadd.f32 %v7453, %v7526
        %v7528 = vpop.f32.mrf.mxu0
        %v7529 = vadd.f32 %v7455, %v7528
        %7530 = vmatmul.bf16.gmra.mxu0 %v4354
        %v7531 = vpop.f32.mrf.mxu0
        %v7532 = vadd.f32 %v7458, %v7531
        %v7533 = vpop.f32.mrf.mxu0
        %v7534 = vadd.f32 %v7460, %v7533
        %7535 = vmatmul.bf16.gmra.mxu0 %v4362
        %v7536 = vpop.f32.mrf.mxu0
        %v7537 = vadd.f32 %v7463, %v7536
        %v7538 = vpop.f32.mrf.mxu0
        %v7539 = vadd.f32 %v7465, %v7538
        %7540 = vmatmul.bf16.gmra.mxu0 %v4370
        %v7541 = vpop.f32.mrf.mxu0
        %v7542 = vadd.f32 %v7468, %v7541
        %v7543 = vpop.f32.mrf.mxu0
        %v7544 = vadd.f32 %v7470, %v7543
        %7545 = vmatmul.bf16.gmra.mxu0 %v4378
        %v7546 = vpop.f32.mrf.mxu0
        %v7547 = vadd.f32 %v7473, %v7546
        %v7548 = vpop.f32.mrf.mxu0
        %v7549 = vadd.f32 %v7475, %v7548
        %7550 = vmatmul.bf16.gmra.mxu0 %v4386
        %v7551 = vpop.f32.mrf.mxu0
        %v7552 = vadd.f32 %v7478, %v7551
        %v7553 = vpop.f32.mrf.mxu0
        %v7554 = vadd.f32 %v7480, %v7553
        %7555 = vmatmul.bf16.gmra.mxu0 %v4394
        %v7556 = vpop.f32.mrf.mxu0
        %v7557 = vadd.f32 %v7483, %v7556
        %v7558 = vpop.f32.mrf.mxu0
        %v7559 = vadd.f32 %v7485, %v7558
        %7560 = vdwg.mxu0
        %7561 = vmatpush.bf16.msra.mxu0 %v5643
        %7562 = vmatpush.bf16.msra.mxu0 %v5639
        %7563 = vmatpush.bf16.msra.mxu0 %v5635
        %7564 = vmatpush.bf16.msra.mxu0 %v5631
        %7565 = vmatpush.bf16.msra.mxu0 %v5627
        %7566 = vmatpush.bf16.msra.mxu0 %v5623
        %7567 = vmatpush.bf16.msra.mxu0 %v5619
        %7568 = vmatpush.bf16.msra.mxu0 %v5615
        %7569 = vmatmul.bf16.gmra.mxu0 %v4299
        %v7570 = vpop.f32.mrf.mxu0
        %v7571 = vadd.f32 %v7497, %v7570
        %v7572 = vpop.f32.mrf.mxu0
        %v7573 = vadd.f32 %v7499, %v7572
        %7574 = vmatmul.bf16.gmra.mxu0 %v4307
        %v7575 = vpop.f32.mrf.mxu0
        %v7576 = vadd.f32 %v7502, %v7575
        %v7577 = vpop.f32.mrf.mxu0
        %v7578 = vadd.f32 %v7504, %v7577
        %7579 = vmatmul.bf16.gmra.mxu0 %v4315
        %v7580 = vpop.f32.mrf.mxu0
        %v7581 = vadd.f32 %v7507, %v7580
        %v7582 = vpop.f32.mrf.mxu0
        %v7583 = vadd.f32 %v7509, %v7582
        %7584 = vmatmul.bf16.gmra.mxu0 %v4323
        %v7585 = vpop.f32.mrf.mxu0
        %v7586 = vadd.f32 %v7512, %v7585
        %v7587 = vpop.f32.mrf.mxu0
        %v7588 = vadd.f32 %v7514, %v7587
        %7589 = vmatmul.bf16.gmra.mxu0 %v4331
        %v7590 = vpop.f32.mrf.mxu0
        %v7591 = vadd.f32 %v7517, %v7590
        %v7592 = vpop.f32.mrf.mxu0
        %v7593 = vadd.f32 %v7519, %v7592
        %7594 = vmatmul.bf16.gmra.mxu0 %v4339
        %v7595 = vpop.f32.mrf.mxu0
        %v7596 = vadd.f32 %v7522, %v7595
        %v7597 = vpop.f32.mrf.mxu0
        %v7598 = vadd.f32 %v7524, %v7597
        %7599 = vmatmul.bf16.gmra.mxu0 %v4347
        %v7600 = vpop.f32.mrf.mxu0
        %v7601 = vadd.f32 %v7527, %v7600
        %v7602 = vpop.f32.mrf.mxu0
        %v7603 = vadd.f32 %v7529, %v7602
        %7604 = vmatmul.bf16.gmra.mxu0 %v4355
        %v7605 = vpop.f32.mrf.mxu0
        %v7606 = vadd.f32 %v7532, %v7605
        %v7607 = vpop.f32.mrf.mxu0
        %v7608 = vadd.f32 %v7534, %v7607
        %7609 = vmatmul.bf16.gmra.mxu0 %v4363
        %v7610 = vpop.f32.mrf.mxu0
        %v7611 = vadd.f32 %v7537, %v7610
        %v7612 = vpop.f32.mrf.mxu0
        %v7613 = vadd.f32 %v7539, %v7612
        %7614 = vmatmul.bf16.gmra.mxu0 %v4371
        %v7615 = vpop.f32.mrf.mxu0
        %v7616 = vadd.f32 %v7542, %v7615
        %v7617 = vpop.f32.mrf.mxu0
        %v7618 = vadd.f32 %v7544, %v7617
        %7619 = vmatmul.bf16.gmra.mxu0 %v4379
        %v7620 = vpop.f32.mrf.mxu0
        %v7621 = vadd.f32 %v7547, %v7620
        %v7622 = vpop.f32.mrf.mxu0
        %v7623 = vadd.f32 %v7549, %v7622
        %7624 = vmatmul.bf16.gmra.mxu0 %v4387
        %v7625 = vpop.f32.mrf.mxu0
        %v7626 = vadd.f32 %v7552, %v7625
        %v7627 = vpop.f32.mrf.mxu0
        %v7628 = vadd.f32 %v7554, %v7627
        %7629 = vmatmul.bf16.gmra.mxu0 %v4395
        %v7630 = vpop.f32.mrf.mxu0
        %v7631 = vadd.f32 %v7557, %v7630
        %v7632 = vpop.f32.mrf.mxu0
        %v7633 = vadd.f32 %v7559, %v7632
        %7634 = vdwg.mxu0
        %7635 = vmatpush.bf16.msra.mxu0 %v5675
        %7636 = vmatpush.bf16.msra.mxu0 %v5671
        %7637 = vmatpush.bf16.msra.mxu0 %v5667
        %7638 = vmatpush.bf16.msra.mxu0 %v5663
        %7639 = vmatpush.bf16.msra.mxu0 %v5659
        %7640 = vmatpush.bf16.msra.mxu0 %v5655
        %7641 = vmatpush.bf16.msra.mxu0 %v5651
        %7642 = vmatpush.bf16.msra.mxu0 %v5647
        %7643 = vmatmul.bf16.gmra.mxu0 %v4300
        %v7644 = vpop.f32.mrf.mxu0
        %v7645 = vadd.f32 %v7571, %v7644
        %v7646 = vpop.f32.mrf.mxu0
        %v7647 = vadd.f32 %v7573, %v7646
        %7648 = vmatmul.bf16.gmra.mxu0 %v4308
        %v7649 = vpop.f32.mrf.mxu0
        %v7650 = vadd.f32 %v7576, %v7649
        %v7651 = vpop.f32.mrf.mxu0
        %v7652 = vadd.f32 %v7578, %v7651
        %7653 = vmatmul.bf16.gmra.mxu0 %v4316
        %v7654 = vpop.f32.mrf.mxu0
        %v7655 = vadd.f32 %v7581, %v7654
        %v7656 = vpop.f32.mrf.mxu0
        %v7657 = vadd.f32 %v7583, %v7656
        %7658 = vmatmul.bf16.gmra.mxu0 %v4324
        %v7659 = vpop.f32.mrf.mxu0
        %v7660 = vadd.f32 %v7586, %v7659
        %v7661 = vpop.f32.mrf.mxu0
        %v7662 = vadd.f32 %v7588, %v7661
        %7663 = vmatmul.bf16.gmra.mxu0 %v4332
        %v7664 = vpop.f32.mrf.mxu0
        %v7665 = vadd.f32 %v7591, %v7664
        %v7666 = vpop.f32.mrf.mxu0
        %v7667 = vadd.f32 %v7593, %v7666
        %7668 = vmatmul.bf16.gmra.mxu0 %v4340
        %v7669 = vpop.f32.mrf.mxu0
        %v7670 = vadd.f32 %v7596, %v7669
        %v7671 = vpop.f32.mrf.mxu0
        %v7672 = vadd.f32 %v7598, %v7671
        %7673 = vmatmul.bf16.gmra.mxu0 %v4348
        %v7674 = vpop.f32.mrf.mxu0
        %v7675 = vadd.f32 %v7601, %v7674
        %v7676 = vpop.f32.mrf.mxu0
        %v7677 = vadd.f32 %v7603, %v7676
        %7678 = vmatmul.bf16.gmra.mxu0 %v4356
        %v7679 = vpop.f32.mrf.mxu0
        %v7680 = vadd.f32 %v7606, %v7679
        %v7681 = vpop.f32.mrf.mxu0
        %v7682 = vadd.f32 %v7608, %v7681
        %7683 = vmatmul.bf16.gmra.mxu0 %v4364
        %v7684 = vpop.f32.mrf.mxu0
        %v7685 = vadd.f32 %v7611, %v7684
        %v7686 = vpop.f32.mrf.mxu0
        %v7687 = vadd.f32 %v7613, %v7686
        %7688 = vmatmul.bf16.gmra.mxu0 %v4372
        %v7689 = vpop.f32.mrf.mxu0
        %v7690 = vadd.f32 %v7616, %v7689
        %v7691 = vpop.f32.mrf.mxu0
        %v7692 = vadd.f32 %v7618, %v7691
        %7693 = vmatmul.bf16.gmra.mxu0 %v4380
        %v7694 = vpop.f32.mrf.mxu0
        %v7695 = vadd.f32 %v7621, %v7694
        %v7696 = vpop.f32.mrf.mxu0
        %v7697 = vadd.f32 %v7623, %v7696
        %7698 = vmatmul.bf16.gmra.mxu0 %v4388
        %v7699 = vpop.f32.mrf.mxu0
        %v7700 = vadd.f32 %v7626, %v7699
        %v7701 = vpop.f32.mrf.mxu0
        %v7702 = vadd.f32 %v7628, %v7701
        %7703 = vmatmul.bf16.gmra.mxu0 %v4396
        %v7704 = vpop.f32.mrf.mxu0
        %v7705 = vadd.f32 %v7631, %v7704
        %v7706 = vpop.f32.mrf.mxu0
        %v7707 = vadd.f32 %v7633, %v7706
        %7708 = vdwg.mxu0
        %7709 = vmatpush.bf16.msra.mxu0 %v5452
        %7710 = vmatpush.bf16.msra.mxu0 %v5448
        %7711 = vmatpush.bf16.msra.mxu0 %v5444
        %7712 = vmatpush.bf16.msra.mxu0 %v5440
        %7713 = vmatpush.bf16.msra.mxu0 %v5436
        %7714 = vmatpush.bf16.msra.mxu0 %v5432
        %7715 = vmatpush.bf16.msra.mxu0 %v5428
        %7716 = vmatpush.bf16.msra.mxu0 %v5424
        %7717 = vmatmul.bf16.gmra.mxu0 %v4293
        %v7718 = vpop.f32.mrf.mxu0
        %v7719 = vadd.f32 0.0, %v7718
        %v7720 = vpop.f32.mrf.mxu0
        %v7721 = vadd.f32 0.0, %v7720
        %7722 = vmatmul.bf16.gmra.mxu0 %v4301
        %v7723 = vpop.f32.mrf.mxu0
        %v7724 = vadd.f32 0.0, %v7723
        %v7725 = vpop.f32.mrf.mxu0
        %v7726 = vadd.f32 0.0, %v7725
        %7727 = vmatmul.bf16.gmra.mxu0 %v4309
        %v7728 = vpop.f32.mrf.mxu0
        %v7729 = vadd.f32 0.0, %v7728
        %v7730 = vpop.f32.mrf.mxu0
        %v7731 = vadd.f32 0.0, %v7730
        %7732 = vmatmul.bf16.gmra.mxu0 %v4317
        %v7733 = vpop.f32.mrf.mxu0
        %v7734 = vadd.f32 0.0, %v7733
        %v7735 = vpop.f32.mrf.mxu0
        %v7736 = vadd.f32 0.0, %v7735
        %7737 = vmatmul.bf16.gmra.mxu0 %v4325
        %v7738 = vpop.f32.mrf.mxu0
        %v7739 = vadd.f32 0.0, %v7738
        %v7740 = vpop.f32.mrf.mxu0
        %v7741 = vadd.f32 0.0, %v7740
        %7742 = vmatmul.bf16.gmra.mxu0 %v4333
        %v7743 = vpop.f32.mrf.mxu0
        %v7744 = vadd.f32 0.0, %v7743
        %v7745 = vpop.f32.mrf.mxu0
        %v7746 = vadd.f32 0.0, %v7745
        %7747 = vmatmul.bf16.gmra.mxu0 %v4341
        %v7748 = vpop.f32.mrf.mxu0
        %v7749 = vadd.f32 0.0, %v7748
        %v7750 = vpop.f32.mrf.mxu0
        %v7751 = vadd.f32 0.0, %v7750
        %7752 = vmatmul.bf16.gmra.mxu0 %v4349
        %v7753 = vpop.f32.mrf.mxu0
        %v7754 = vadd.f32 0.0, %v7753
        %v7755 = vpop.f32.mrf.mxu0
        %v7756 = vadd.f32 0.0, %v7755
        %7757 = vmatmul.bf16.gmra.mxu0 %v4357
        %v7758 = vpop.f32.mrf.mxu0
        %v7759 = vadd.f32 0.0, %v7758
        %v7760 = vpop.f32.mrf.mxu0
        %v7761 = vadd.f32 0.0, %v7760
        %7762 = vmatmul.bf16.gmra.mxu0 %v4365
        %v7763 = vpop.f32.mrf.mxu0
        %v7764 = vadd.f32 0.0, %v7763
        %v7765 = vpop.f32.mrf.mxu0
        %v7766 = vadd.f32 0.0, %v7765
        %7767 = vmatmul.bf16.gmra.mxu0 %v4373
        %v7768 = vpop.f32.mrf.mxu0
        %v7769 = vadd.f32 0.0, %v7768
        %v7770 = vpop.f32.mrf.mxu0
        %v7771 = vadd.f32 0.0, %v7770
        %7772 = vmatmul.bf16.gmra.mxu0 %v4381
        %v7773 = vpop.f32.mrf.mxu0
        %v7774 = vadd.f32 0.0, %v7773
        %v7775 = vpop.f32.mrf.mxu0
        %v7776 = vadd.f32 0.0, %v7775
        %7777 = vmatmul.bf16.gmra.mxu0 %v4389
        %v7778 = vpop.f32.mrf.mxu0
        %v7779 = vadd.f32 0.0, %v7778
        %v7780 = vpop.f32.mrf.mxu0
        %v7781 = vadd.f32 0.0, %v7780
        %7782 = vdwg.mxu0
        %7783 = vmatpush.bf16.msra.mxu0 %v5484
        %7784 = vmatpush.bf16.msra.mxu0 %v5480
        %7785 = vmatpush.bf16.msra.mxu0 %v5476
        %7786 = vmatpush.bf16.msra.mxu0 %v5472
        %7787 = vmatpush.bf16.msra.mxu0 %v5468
        %7788 = vmatpush.bf16.msra.mxu0 %v5464
        %7789 = vmatpush.bf16.msra.mxu0 %v5460
        %7790 = vmatpush.bf16.msra.mxu0 %v5456
        %7791 = vmatmul.bf16.gmra.mxu0 %v4294
        %v7792 = vpop.f32.mrf.mxu0
        %v7793 = vadd.f32 %v7719, %v7792
        %v7794 = vpop.f32.mrf.mxu0
        %v7795 = vadd.f32 %v7721, %v7794
        %7796 = vmatmul.bf16.gmra.mxu0 %v4302
        %v7797 = vpop.f32.mrf.mxu0
        %v7798 = vadd.f32 %v7724, %v7797
        %v7799 = vpop.f32.mrf.mxu0
        %v7800 = vadd.f32 %v7726, %v7799
        %7801 = vmatmul.bf16.gmra.mxu0 %v4310
        %v7802 = vpop.f32.mrf.mxu0
        %v7803 = vadd.f32 %v7729, %v7802
        %v7804 = vpop.f32.mrf.mxu0
        %v7805 = vadd.f32 %v7731, %v7804
        %7806 = vmatmul.bf16.gmra.mxu0 %v4318
        %v7807 = vpop.f32.mrf.mxu0
        %v7808 = vadd.f32 %v7734, %v7807
        %v7809 = vpop.f32.mrf.mxu0
        %v7810 = vadd.f32 %v7736, %v7809
        %7811 = vmatmul.bf16.gmra.mxu0 %v4326
        %v7812 = vpop.f32.mrf.mxu0
        %v7813 = vadd.f32 %v7739, %v7812
        %v7814 = vpop.f32.mrf.mxu0
        %v7815 = vadd.f32 %v7741, %v7814
        %7816 = vmatmul.bf16.gmra.mxu0 %v4334
        %v7817 = vpop.f32.mrf.mxu0
        %v7818 = vadd.f32 %v7744, %v7817
        %v7819 = vpop.f32.mrf.mxu0
        %v7820 = vadd.f32 %v7746, %v7819
        %7821 = vmatmul.bf16.gmra.mxu0 %v4342
        %v7822 = vpop.f32.mrf.mxu0
        %v7823 = vadd.f32 %v7749, %v7822
        %v7824 = vpop.f32.mrf.mxu0
        %v7825 = vadd.f32 %v7751, %v7824
        %7826 = vmatmul.bf16.gmra.mxu0 %v4350
        %v7827 = vpop.f32.mrf.mxu0
        %v7828 = vadd.f32 %v7754, %v7827
        %v7829 = vpop.f32.mrf.mxu0
        %v7830 = vadd.f32 %v7756, %v7829
        %7831 = vmatmul.bf16.gmra.mxu0 %v4358
        %v7832 = vpop.f32.mrf.mxu0
        %v7833 = vadd.f32 %v7759, %v7832
        %v7834 = vpop.f32.mrf.mxu0
        %v7835 = vadd.f32 %v7761, %v7834
        %7836 = vmatmul.bf16.gmra.mxu0 %v4366
        %v7837 = vpop.f32.mrf.mxu0
        %v7838 = vadd.f32 %v7764, %v7837
        %v7839 = vpop.f32.mrf.mxu0
        %v7840 = vadd.f32 %v7766, %v7839
        %7841 = vmatmul.bf16.gmra.mxu0 %v4374
        %v7842 = vpop.f32.mrf.mxu0
        %v7843 = vadd.f32 %v7769, %v7842
        %v7844 = vpop.f32.mrf.mxu0
        %v7845 = vadd.f32 %v7771, %v7844
        %7846 = vmatmul.bf16.gmra.mxu0 %v4382
        %v7847 = vpop.f32.mrf.mxu0
        %v7848 = vadd.f32 %v7774, %v7847
        %v7849 = vpop.f32.mrf.mxu0
        %v7850 = vadd.f32 %v7776, %v7849
        %7851 = vmatmul.bf16.gmra.mxu0 %v4390
        %v7852 = vpop.f32.mrf.mxu0
        %v7853 = vadd.f32 %v7779, %v7852
        %v7854 = vpop.f32.mrf.mxu0
        %v7855 = vadd.f32 %v7781, %v7854
        %7856 = vdwg.mxu0
        %7857 = vmatpush.bf16.msra.mxu0 %v5516
        %7858 = vmatpush.bf16.msra.mxu0 %v5512
        %7859 = vmatpush.bf16.msra.mxu0 %v5508
        %7860 = vmatpush.bf16.msra.mxu0 %v5504
        %7861 = vmatpush.bf16.msra.mxu0 %v5500
        %7862 = vmatpush.bf16.msra.mxu0 %v5496
        %7863 = vmatpush.bf16.msra.mxu0 %v5492
        %7864 = vmatpush.bf16.msra.mxu0 %v5488
        %7865 = vmatmul.bf16.gmra.mxu0 %v4295
        %v7866 = vpop.f32.mrf.mxu0
        %v7867 = vadd.f32 %v7793, %v7866
        %v7868 = vpop.f32.mrf.mxu0
        %v7869 = vadd.f32 %v7795, %v7868
        %7870 = vmatmul.bf16.gmra.mxu0 %v4303
        %v7871 = vpop.f32.mrf.mxu0
        %v7872 = vadd.f32 %v7798, %v7871
        %v7873 = vpop.f32.mrf.mxu0
        %v7874 = vadd.f32 %v7800, %v7873
        %7875 = vmatmul.bf16.gmra.mxu0 %v4311
        %v7876 = vpop.f32.mrf.mxu0
        %v7877 = vadd.f32 %v7803, %v7876
        %v7878 = vpop.f32.mrf.mxu0
        %v7879 = vadd.f32 %v7805, %v7878
        %7880 = vmatmul.bf16.gmra.mxu0 %v4319
        %v7881 = vpop.f32.mrf.mxu0
        %v7882 = vadd.f32 %v7808, %v7881
        %v7883 = vpop.f32.mrf.mxu0
        %v7884 = vadd.f32 %v7810, %v7883
        %7885 = vmatmul.bf16.gmra.mxu0 %v4327
        %v7886 = vpop.f32.mrf.mxu0
        %v7887 = vadd.f32 %v7813, %v7886
        %v7888 = vpop.f32.mrf.mxu0
        %v7889 = vadd.f32 %v7815, %v7888
        %7890 = vmatmul.bf16.gmra.mxu0 %v4335
        %v7891 = vpop.f32.mrf.mxu0
        %v7892 = vadd.f32 %v7818, %v7891
        %v7893 = vpop.f32.mrf.mxu0
        %v7894 = vadd.f32 %v7820, %v7893
        %7895 = vmatmul.bf16.gmra.mxu0 %v4343
        %v7896 = vpop.f32.mrf.mxu0
        %v7897 = vadd.f32 %v7823, %v7896
        %v7898 = vpop.f32.mrf.mxu0
        %v7899 = vadd.f32 %v7825, %v7898
        %7900 = vmatmul.bf16.gmra.mxu0 %v4351
        %v7901 = vpop.f32.mrf.mxu0
        %v7902 = vadd.f32 %v7828, %v7901
        %v7903 = vpop.f32.mrf.mxu0
        %v7904 = vadd.f32 %v7830, %v7903
        %7905 = vmatmul.bf16.gmra.mxu0 %v4359
        %v7906 = vpop.f32.mrf.mxu0
        %v7907 = vadd.f32 %v7833, %v7906
        %v7908 = vpop.f32.mrf.mxu0
        %v7909 = vadd.f32 %v7835, %v7908
        %7910 = vmatmul.bf16.gmra.mxu0 %v4367
        %v7911 = vpop.f32.mrf.mxu0
        %v7912 = vadd.f32 %v7838, %v7911
        %v7913 = vpop.f32.mrf.mxu0
        %v7914 = vadd.f32 %v7840, %v7913
        %7915 = vmatmul.bf16.gmra.mxu0 %v4375
        %v7916 = vpop.f32.mrf.mxu0
        %v7917 = vadd.f32 %v7843, %v7916
        %v7918 = vpop.f32.mrf.mxu0
        %v7919 = vadd.f32 %v7845, %v7918
        %7920 = vmatmul.bf16.gmra.mxu0 %v4383
        %v7921 = vpop.f32.mrf.mxu0
        %v7922 = vadd.f32 %v7848, %v7921
        %v7923 = vpop.f32.mrf.mxu0
        %v7924 = vadd.f32 %v7850, %v7923
        %7925 = vmatmul.bf16.gmra.mxu0 %v4391
        %v7926 = vpop.f32.mrf.mxu0
        %v7927 = vadd.f32 %v7853, %v7926
        %v7928 = vpop.f32.mrf.mxu0
        %v7929 = vadd.f32 %v7855, %v7928
        %7930 = vdwg.mxu0
        %7931 = vmatpush.bf16.msra.mxu0 %v5548
        %7932 = vmatpush.bf16.msra.mxu0 %v5544
        %7933 = vmatpush.bf16.msra.mxu0 %v5540
        %7934 = vmatpush.bf16.msra.mxu0 %v5536
        %7935 = vmatpush.bf16.msra.mxu0 %v5532
        %7936 = vmatpush.bf16.msra.mxu0 %v5528
        %7937 = vmatpush.bf16.msra.mxu0 %v5524
        %7938 = vmatpush.bf16.msra.mxu0 %v5520
        %7939 = vmatmul.bf16.gmra.mxu0 %v4296
        %v7940 = vpop.f32.mrf.mxu0
        %v7941 = vadd.f32 %v7867, %v7940
        %v7942 = vpop.f32.mrf.mxu0
        %v7943 = vadd.f32 %v7869, %v7942
        %7944 = vmatmul.bf16.gmra.mxu0 %v4304
        %v7945 = vpop.f32.mrf.mxu0
        %v7946 = vadd.f32 %v7872, %v7945
        %v7947 = vpop.f32.mrf.mxu0
        %v7948 = vadd.f32 %v7874, %v7947
        %7949 = vmatmul.bf16.gmra.mxu0 %v4312
        %v7950 = vpop.f32.mrf.mxu0
        %v7951 = vadd.f32 %v7877, %v7950
        %v7952 = vpop.f32.mrf.mxu0
        %v7953 = vadd.f32 %v7879, %v7952
        %7954 = vmatmul.bf16.gmra.mxu0 %v4320
        %v7955 = vpop.f32.mrf.mxu0
        %v7956 = vadd.f32 %v7882, %v7955
        %v7957 = vpop.f32.mrf.mxu0
        %v7958 = vadd.f32 %v7884, %v7957
        %7959 = vmatmul.bf16.gmra.mxu0 %v4328
        %v7960 = vpop.f32.mrf.mxu0
        %v7961 = vadd.f32 %v7887, %v7960
        %v7962 = vpop.f32.mrf.mxu0
        %v7963 = vadd.f32 %v7889, %v7962
        %7964 = vmatmul.bf16.gmra.mxu0 %v4336
        %v7965 = vpop.f32.mrf.mxu0
        %v7966 = vadd.f32 %v7892, %v7965
        %v7967 = vpop.f32.mrf.mxu0
        %v7968 = vadd.f32 %v7894, %v7967
        %7969 = vmatmul.bf16.gmra.mxu0 %v4344
        %v7970 = vpop.f32.mrf.mxu0
        %v7971 = vadd.f32 %v7897, %v7970
        %v7972 = vpop.f32.mrf.mxu0
        %v7973 = vadd.f32 %v7899, %v7972
        %7974 = vmatmul.bf16.gmra.mxu0 %v4352
        %v7975 = vpop.f32.mrf.mxu0
        %v7976 = vadd.f32 %v7902, %v7975
        %v7977 = vpop.f32.mrf.mxu0
        %v7978 = vadd.f32 %v7904, %v7977
        %7979 = vmatmul.bf16.gmra.mxu0 %v4360
        %v7980 = vpop.f32.mrf.mxu0
        %v7981 = vadd.f32 %v7907, %v7980
        %v7982 = vpop.f32.mrf.mxu0
        %v7983 = vadd.f32 %v7909, %v7982
        %7984 = vmatmul.bf16.gmra.mxu0 %v4368
        %v7985 = vpop.f32.mrf.mxu0
        %v7986 = vadd.f32 %v7912, %v7985
        %v7987 = vpop.f32.mrf.mxu0
        %v7988 = vadd.f32 %v7914, %v7987
        %7989 = vmatmul.bf16.gmra.mxu0 %v4376
        %v7990 = vpop.f32.mrf.mxu0
        %v7991 = vadd.f32 %v7917, %v7990
        %v7992 = vpop.f32.mrf.mxu0
        %v7993 = vadd.f32 %v7919, %v7992
        %7994 = vmatmul.bf16.gmra.mxu0 %v4384
        %v7995 = vpop.f32.mrf.mxu0
        %v7996 = vadd.f32 %v7922, %v7995
        %v7997 = vpop.f32.mrf.mxu0
        %v7998 = vadd.f32 %v7924, %v7997
        %7999 = vmatmul.bf16.gmra.mxu0 %v4392
        %v8000 = vpop.f32.mrf.mxu0
        %v8001 = vadd.f32 %v7927, %v8000
        %v8002 = vpop.f32.mrf.mxu0
        %v8003 = vadd.f32 %v7929, %v8002
        %8004 = vdwg.mxu0
        %8005 = vmatpush.bf16.msra.mxu0 %v5580
        %8006 = vmatpush.bf16.msra.mxu0 %v5576
        %8007 = vmatpush.bf16.msra.mxu0 %v5572
        %8008 = vmatpush.bf16.msra.mxu0 %v5568
        %8009 = vmatpush.bf16.msra.mxu0 %v5564
        %8010 = vmatpush.bf16.msra.mxu0 %v5560
        %8011 = vmatpush.bf16.msra.mxu0 %v5556
        %8012 = vmatpush.bf16.msra.mxu0 %v5552
        %8013 = vmatmul.bf16.gmra.mxu0 %v4297
        %v8014 = vpop.f32.mrf.mxu0
        %v8015 = vadd.f32 %v7941, %v8014
        %v8016 = vpop.f32.mrf.mxu0
        %v8017 = vadd.f32 %v7943, %v8016
        %8018 = vmatmul.bf16.gmra.mxu0 %v4305
        %v8019 = vpop.f32.mrf.mxu0
        %v8020 = vadd.f32 %v7946, %v8019
        %v8021 = vpop.f32.mrf.mxu0
        %v8022 = vadd.f32 %v7948, %v8021
        %8023 = vmatmul.bf16.gmra.mxu0 %v4313
        %v8024 = vpop.f32.mrf.mxu0
        %v8025 = vadd.f32 %v7951, %v8024
        %v8026 = vpop.f32.mrf.mxu0
        %v8027 = vadd.f32 %v7953, %v8026
        %8028 = vmatmul.bf16.gmra.mxu0 %v4321
        %v8029 = vpop.f32.mrf.mxu0
        %v8030 = vadd.f32 %v7956, %v8029
        %v8031 = vpop.f32.mrf.mxu0
        %v8032 = vadd.f32 %v7958, %v8031
        %8033 = vmatmul.bf16.gmra.mxu0 %v4329
        %v8034 = vpop.f32.mrf.mxu0
        %v8035 = vadd.f32 %v7961, %v8034
        %v8036 = vpop.f32.mrf.mxu0
        %v8037 = vadd.f32 %v7963, %v8036
        %8038 = vmatmul.bf16.gmra.mxu0 %v4337
        %v8039 = vpop.f32.mrf.mxu0
        %v8040 = vadd.f32 %v7966, %v8039
        %v8041 = vpop.f32.mrf.mxu0
        %v8042 = vadd.f32 %v7968, %v8041
        %8043 = vmatmul.bf16.gmra.mxu0 %v4345
        %v8044 = vpop.f32.mrf.mxu0
        %v8045 = vadd.f32 %v7971, %v8044
        %v8046 = vpop.f32.mrf.mxu0
        %v8047 = vadd.f32 %v7973, %v8046
        %8048 = vmatmul.bf16.gmra.mxu0 %v4353
        %v8049 = vpop.f32.mrf.mxu0
        %v8050 = vadd.f32 %v7976, %v8049
        %v8051 = vpop.f32.mrf.mxu0
        %v8052 = vadd.f32 %v7978, %v8051
        %8053 = vmatmul.bf16.gmra.mxu0 %v4361
        %v8054 = vpop.f32.mrf.mxu0
        %v8055 = vadd.f32 %v7981, %v8054
        %v8056 = vpop.f32.mrf.mxu0
        %v8057 = vadd.f32 %v7983, %v8056
        %8058 = vmatmul.bf16.gmra.mxu0 %v4369
        %v8059 = vpop.f32.mrf.mxu0
        %v8060 = vadd.f32 %v7986, %v8059
        %v8061 = vpop.f32.mrf.mxu0
        %v8062 = vadd.f32 %v7988, %v8061
        %8063 = vmatmul.bf16.gmra.mxu0 %v4377
        %v8064 = vpop.f32.mrf.mxu0
        %v8065 = vadd.f32 %v7991, %v8064
        %v8066 = vpop.f32.mrf.mxu0
        %v8067 = vadd.f32 %v7993, %v8066
        %8068 = vmatmul.bf16.gmra.mxu0 %v4385
        %v8069 = vpop.f32.mrf.mxu0
        %v8070 = vadd.f32 %v7996, %v8069
        %v8071 = vpop.f32.mrf.mxu0
        %v8072 = vadd.f32 %v7998, %v8071
        %8073 = vmatmul.bf16.gmra.mxu0 %v4393
        %v8074 = vpop.f32.mrf.mxu0
        %v8075 = vadd.f32 %v8001, %v8074
        %v8076 = vpop.f32.mrf.mxu0
        %v8077 = vadd.f32 %v8003, %v8076
        %8078 = vdwg.mxu0
        %8079 = vmatpush.bf16.msra.mxu0 %v5612
        %8080 = vmatpush.bf16.msra.mxu0 %v5608
        %8081 = vmatpush.bf16.msra.mxu0 %v5604
        %8082 = vmatpush.bf16.msra.mxu0 %v5600
        %8083 = vmatpush.bf16.msra.mxu0 %v5596
        %8084 = vmatpush.bf16.msra.mxu0 %v5592
        %8085 = vmatpush.bf16.msra.mxu0 %v5588
        %8086 = vmatpush.bf16.msra.mxu0 %v5584
        %8087 = vmatmul.bf16.gmra.mxu0 %v4298
        %v8088 = vpop.f32.mrf.mxu0
        %v8089 = vadd.f32 %v8015, %v8088
        %v8090 = vpop.f32.mrf.mxu0
        %v8091 = vadd.f32 %v8017, %v8090
        %8092 = vmatmul.bf16.gmra.mxu0 %v4306
        %v8093 = vpop.f32.mrf.mxu0
        %v8094 = vadd.f32 %v8020, %v8093
        %v8095 = vpop.f32.mrf.mxu0
        %v8096 = vadd.f32 %v8022, %v8095
        %8097 = vmatmul.bf16.gmra.mxu0 %v4314
        %v8098 = vpop.f32.mrf.mxu0
        %v8099 = vadd.f32 %v8025, %v8098
        %v8100 = vpop.f32.mrf.mxu0
        %v8101 = vadd.f32 %v8027, %v8100
        %8102 = vmatmul.bf16.gmra.mxu0 %v4322
        %v8103 = vpop.f32.mrf.mxu0
        %v8104 = vadd.f32 %v8030, %v8103
        %v8105 = vpop.f32.mrf.mxu0
        %v8106 = vadd.f32 %v8032, %v8105
        %8107 = vmatmul.bf16.gmra.mxu0 %v4330
        %v8108 = vpop.f32.mrf.mxu0
        %v8109 = vadd.f32 %v8035, %v8108
        %v8110 = vpop.f32.mrf.mxu0
        %v8111 = vadd.f32 %v8037, %v8110
        %8112 = vmatmul.bf16.gmra.mxu0 %v4338
        %v8113 = vpop.f32.mrf.mxu0
        %v8114 = vadd.f32 %v8040, %v8113
        %v8115 = vpop.f32.mrf.mxu0
        %v8116 = vadd.f32 %v8042, %v8115
        %8117 = vmatmul.bf16.gmra.mxu0 %v4346
        %v8118 = vpop.f32.mrf.mxu0
        %v8119 = vadd.f32 %v8045, %v8118
        %v8120 = vpop.f32.mrf.mxu0
        %v8121 = vadd.f32 %v8047, %v8120
        %8122 = vmatmul.bf16.gmra.mxu0 %v4354
        %v8123 = vpop.f32.mrf.mxu0
        %v8124 = vadd.f32 %v8050, %v8123
        %v8125 = vpop.f32.mrf.mxu0
        %v8126 = vadd.f32 %v8052, %v8125
        %8127 = vmatmul.bf16.gmra.mxu0 %v4362
        %v8128 = vpop.f32.mrf.mxu0
        %v8129 = vadd.f32 %v8055, %v8128
        %v8130 = vpop.f32.mrf.mxu0
        %v8131 = vadd.f32 %v8057, %v8130
        %8132 = vmatmul.bf16.gmra.mxu0 %v4370
        %v8133 = vpop.f32.mrf.mxu0
        %v8134 = vadd.f32 %v8060, %v8133
        %v8135 = vpop.f32.mrf.mxu0
        %v8136 = vadd.f32 %v8062, %v8135
        %8137 = vmatmul.bf16.gmra.mxu0 %v4378
        %v8138 = vpop.f32.mrf.mxu0
        %v8139 = vadd.f32 %v8065, %v8138
        %v8140 = vpop.f32.mrf.mxu0
        %v8141 = vadd.f32 %v8067, %v8140
        %8142 = vmatmul.bf16.gmra.mxu0 %v4386
        %v8143 = vpop.f32.mrf.mxu0
        %v8144 = vadd.f32 %v8070, %v8143
        %v8145 = vpop.f32.mrf.mxu0
        %v8146 = vadd.f32 %v8072, %v8145
        %8147 = vmatmul.bf16.gmra.mxu0 %v4394
        %v8148 = vpop.f32.mrf.mxu0
        %v8149 = vadd.f32 %v8075, %v8148
        %v8150 = vpop.f32.mrf.mxu0
        %v8151 = vadd.f32 %v8077, %v8150
        %8152 = vdwg.mxu0
        %8153 = vmatpush.bf16.msra.mxu0 %v5644
        %8154 = vmatpush.bf16.msra.mxu0 %v5640
        %8155 = vmatpush.bf16.msra.mxu0 %v5636
        %8156 = vmatpush.bf16.msra.mxu0 %v5632
        %8157 = vmatpush.bf16.msra.mxu0 %v5628
        %8158 = vmatpush.bf16.msra.mxu0 %v5624
        %8159 = vmatpush.bf16.msra.mxu0 %v5620
        %8160 = vmatpush.bf16.msra.mxu0 %v5616
        %8161 = vmatmul.bf16.gmra.mxu0 %v4299
        %v8162 = vpop.f32.mrf.mxu0
        %v8163 = vadd.f32 %v8089, %v8162
        %v8164 = vpop.f32.mrf.mxu0
        %v8165 = vadd.f32 %v8091, %v8164
        %8166 = vmatmul.bf16.gmra.mxu0 %v4307
        %v8167 = vpop.f32.mrf.mxu0
        %v8168 = vadd.f32 %v8094, %v8167
        %v8169 = vpop.f32.mrf.mxu0
        %v8170 = vadd.f32 %v8096, %v8169
        %8171 = vmatmul.bf16.gmra.mxu0 %v4315
        %v8172 = vpop.f32.mrf.mxu0
        %v8173 = vadd.f32 %v8099, %v8172
        %v8174 = vpop.f32.mrf.mxu0
        %v8175 = vadd.f32 %v8101, %v8174
        %8176 = vmatmul.bf16.gmra.mxu0 %v4323
        %v8177 = vpop.f32.mrf.mxu0
        %v8178 = vadd.f32 %v8104, %v8177
        %v8179 = vpop.f32.mrf.mxu0
        %v8180 = vadd.f32 %v8106, %v8179
        %8181 = vmatmul.bf16.gmra.mxu0 %v4331
        %v8182 = vpop.f32.mrf.mxu0
        %v8183 = vadd.f32 %v8109, %v8182
        %v8184 = vpop.f32.mrf.mxu0
        %v8185 = vadd.f32 %v8111, %v8184
        %8186 = vmatmul.bf16.gmra.mxu0 %v4339
        %v8187 = vpop.f32.mrf.mxu0
        %v8188 = vadd.f32 %v8114, %v8187
        %v8189 = vpop.f32.mrf.mxu0
        %v8190 = vadd.f32 %v8116, %v8189
        %8191 = vmatmul.bf16.gmra.mxu0 %v4347
        %v8192 = vpop.f32.mrf.mxu0
        %v8193 = vadd.f32 %v8119, %v8192
        %v8194 = vpop.f32.mrf.mxu0
        %v8195 = vadd.f32 %v8121, %v8194
        %8196 = vmatmul.bf16.gmra.mxu0 %v4355
        %v8197 = vpop.f32.mrf.mxu0
        %v8198 = vadd.f32 %v8124, %v8197
        %v8199 = vpop.f32.mrf.mxu0
        %v8200 = vadd.f32 %v8126, %v8199
        %8201 = vmatmul.bf16.gmra.mxu0 %v4363
        %v8202 = vpop.f32.mrf.mxu0
        %v8203 = vadd.f32 %v8129, %v8202
        %v8204 = vpop.f32.mrf.mxu0
        %v8205 = vadd.f32 %v8131, %v8204
        %8206 = vmatmul.bf16.gmra.mxu0 %v4371
        %v8207 = vpop.f32.mrf.mxu0
        %v8208 = vadd.f32 %v8134, %v8207
        %v8209 = vpop.f32.mrf.mxu0
        %v8210 = vadd.f32 %v8136, %v8209
        %8211 = vmatmul.bf16.gmra.mxu0 %v4379
        %v8212 = vpop.f32.mrf.mxu0
        %v8213 = vadd.f32 %v8139, %v8212
        %v8214 = vpop.f32.mrf.mxu0
        %v8215 = vadd.f32 %v8141, %v8214
        %8216 = vmatmul.bf16.gmra.mxu0 %v4387
        %v8217 = vpop.f32.mrf.mxu0
        %v8218 = vadd.f32 %v8144, %v8217
        %v8219 = vpop.f32.mrf.mxu0
        %v8220 = vadd.f32 %v8146, %v8219
        %8221 = vmatmul.bf16.gmra.mxu0 %v4395
        %v8222 = vpop.f32.mrf.mxu0
        %v8223 = vadd.f32 %v8149, %v8222
        %v8224 = vpop.f32.mrf.mxu0
        %v8225 = vadd.f32 %v8151, %v8224
        %8226 = vdwg.mxu0
        %8227 = vmatpush.bf16.msra.mxu0 %v5676
        %8228 = vmatpush.bf16.msra.mxu0 %v5672
        %8229 = vmatpush.bf16.msra.mxu0 %v5668
        %8230 = vmatpush.bf16.msra.mxu0 %v5664
        %8231 = vmatpush.bf16.msra.mxu0 %v5660
        %8232 = vmatpush.bf16.msra.mxu0 %v5656
        %8233 = vmatpush.bf16.msra.mxu0 %v5652
        %8234 = vmatpush.bf16.msra.mxu0 %v5648
        %8235 = vmatmul.bf16.gmra.mxu0 %v4300
        %v8236 = vpop.f32.mrf.mxu0
        %v8237 = vadd.f32 %v8163, %v8236
        %v8238 = vpop.f32.mrf.mxu0
        %v8239 = vadd.f32 %v8165, %v8238
        %8240 = vmatmul.bf16.gmra.mxu0 %v4308
        %v8241 = vpop.f32.mrf.mxu0
        %v8242 = vadd.f32 %v8168, %v8241
        %v8243 = vpop.f32.mrf.mxu0
        %v8244 = vadd.f32 %v8170, %v8243
        %8245 = vmatmul.bf16.gmra.mxu0 %v4316
        %v8246 = vpop.f32.mrf.mxu0
        %v8247 = vadd.f32 %v8173, %v8246
        %v8248 = vpop.f32.mrf.mxu0
        %v8249 = vadd.f32 %v8175, %v8248
        %8250 = vmatmul.bf16.gmra.mxu0 %v4324
        %v8251 = vpop.f32.mrf.mxu0
        %v8252 = vadd.f32 %v8178, %v8251
        %v8253 = vpop.f32.mrf.mxu0
        %v8254 = vadd.f32 %v8180, %v8253
        %8255 = vmatmul.bf16.gmra.mxu0 %v4332
        %v8256 = vpop.f32.mrf.mxu0
        %v8257 = vadd.f32 %v8183, %v8256
        %v8258 = vpop.f32.mrf.mxu0
        %v8259 = vadd.f32 %v8185, %v8258
        %8260 = vmatmul.bf16.gmra.mxu0 %v4340
        %v8261 = vpop.f32.mrf.mxu0
        %v8262 = vadd.f32 %v8188, %v8261
        %v8263 = vpop.f32.mrf.mxu0
        %v8264 = vadd.f32 %v8190, %v8263
        %8265 = vmatmul.bf16.gmra.mxu0 %v4348
        %v8266 = vpop.f32.mrf.mxu0
        %v8267 = vadd.f32 %v8193, %v8266
        %v8268 = vpop.f32.mrf.mxu0
        %v8269 = vadd.f32 %v8195, %v8268
        %8270 = vmatmul.bf16.gmra.mxu0 %v4356
        %v8271 = vpop.f32.mrf.mxu0
        %v8272 = vadd.f32 %v8198, %v8271
        %v8273 = vpop.f32.mrf.mxu0
        %v8274 = vadd.f32 %v8200, %v8273
        %8275 = vmatmul.bf16.gmra.mxu0 %v4364
        %v8276 = vpop.f32.mrf.mxu0
        %v8277 = vadd.f32 %v8203, %v8276
        %v8278 = vpop.f32.mrf.mxu0
        %v8279 = vadd.f32 %v8205, %v8278
        %8280 = vmatmul.bf16.gmra.mxu0 %v4372
        %v8281 = vpop.f32.mrf.mxu0
        %v8282 = vadd.f32 %v8208, %v8281
        %v8283 = vpop.f32.mrf.mxu0
        %v8284 = vadd.f32 %v8210, %v8283
        %8285 = vmatmul.bf16.gmra.mxu0 %v4380
        %v8286 = vpop.f32.mrf.mxu0
        %v8287 = vadd.f32 %v8213, %v8286
        %v8288 = vpop.f32.mrf.mxu0
        %v8289 = vadd.f32 %v8215, %v8288
        %8290 = vmatmul.bf16.gmra.mxu0 %v4388
        %v8291 = vpop.f32.mrf.mxu0
        %v8292 = vadd.f32 %v8218, %v8291
        %v8293 = vpop.f32.mrf.mxu0
        %v8294 = vadd.f32 %v8220, %v8293
        %8295 = vmatmul.bf16.gmra.mxu0 %v4396
        %v8296 = vpop.f32.mrf.mxu0
        %v8297 = vadd.f32 %v8223, %v8296
        %v8298 = vpop.f32.mrf.mxu0
        %v8299 = vadd.f32 %v8225, %v8298
        %8300 = vdwg.mxu0
        %v8301 = vld [vmem:[%s11] ss:$2 sm:$0xf]
        %s8302 = scalar_lea.vmem %s11, 1
        %v8303 = vld [vmem:[%s8302] ss:$2 sm:$0xf]
        %8304 = vmatpush.msra.mxu0 %v6498
        %8305 = vmatpush.msra.mxu0 %v6496
        %8306 = vmatpush.msra.mxu0 %v6493
        %8307 = vmatpush.msra.mxu0 %v6491
        %8308 = vmatpush.msra.mxu0 %v6488
        %8309 = vmatpush.msra.mxu0 %v6486
        %8310 = vmatpush.msra.mxu0 %v6483
        %8311 = vmatpush.msra.mxu0 %v6481
        %8312 = vmatpush.msra.mxu0 %v6478
        %8313 = vmatpush.msra.mxu0 %v6476
        %8314 = vmatpush.msra.mxu0 %v6473
        %8315 = vmatpush.msra.mxu0 %v6471
        %8316 = vmatpush.msra.mxu0 %v6468
        %8317 = vmatpush.msra.mxu0 %v6466
        %8318 = vmatpush.msra.mxu0 %v6463
        %8319 = vmatpush.msra.mxu0 %v6461
        %8320 = vmatmul.f32.gmra.mxu0 %v1004
        %v8321 = vpop.f32.mrf.mxu0
        %v8322 = vadd.f32 0.0, %v8321
        %8323 = vdwg.mxu0
        %8324 = vmatpush.msra.mxu0 0.0
        %8325 = vmatpush.msra.mxu0 0.0
        %8326 = vmatpush.msra.mxu0 0.0
        %8327 = vmatpush.msra.mxu0 0.0
        %8328 = vmatpush.msra.mxu0 0.0
        %8329 = vmatpush.msra.mxu0 0.0
        %8330 = vmatpush.msra.mxu0 %v6523
        %8331 = vmatpush.msra.mxu0 %v6521
        %8332 = vmatpush.msra.mxu0 %v6518
        %8333 = vmatpush.msra.mxu0 %v6516
        %8334 = vmatpush.msra.mxu0 %v6513
        %8335 = vmatpush.msra.mxu0 %v6511
        %8336 = vmatpush.msra.mxu0 %v6508
        %8337 = vmatpush.msra.mxu0 %v6506
        %8338 = vmatpush.msra.mxu0 %v6503
        %8339 = vmatpush.msra.mxu0 %v6501
        %8340 = vmatmul.f32.gmra.mxu0 %v1008
        %v8341 = vpop.f32.mrf.mxu0
        %v8342 = vadd.f32 %v8322, %v8341
        %8343 = vdwg.mxu0
        %8344 = vmatpush.msra.mxu0 %v7090
        %8345 = vmatpush.msra.mxu0 %v7088
        %8346 = vmatpush.msra.mxu0 %v7085
        %8347 = vmatpush.msra.mxu0 %v7083
        %8348 = vmatpush.msra.mxu0 %v7080
        %8349 = vmatpush.msra.mxu0 %v7078
        %8350 = vmatpush.msra.mxu0 %v7075
        %8351 = vmatpush.msra.mxu0 %v7073
        %8352 = vmatpush.msra.mxu0 %v7070
        %8353 = vmatpush.msra.mxu0 %v7068
        %8354 = vmatpush.msra.mxu0 %v7065
        %8355 = vmatpush.msra.mxu0 %v7063
        %8356 = vmatpush.msra.mxu0 %v7060
        %8357 = vmatpush.msra.mxu0 %v7058
        %8358 = vmatpush.msra.mxu0 %v7055
        %8359 = vmatpush.msra.mxu0 %v7053
        %8360 = vmatmul.f32.gmra.mxu0 %v1004
        %v8361 = vpop.f32.mrf.mxu0
        %v8362 = vadd.f32 0.0, %v8361
        %8363 = vdwg.mxu0
        %8364 = vmatpush.msra.mxu0 0.0
        %8365 = vmatpush.msra.mxu0 0.0
        %8366 = vmatpush.msra.mxu0 0.0
        %8367 = vmatpush.msra.mxu0 0.0
        %8368 = vmatpush.msra.mxu0 0.0
        %8369 = vmatpush.msra.mxu0 0.0
        %8370 = vmatpush.msra.mxu0 %v7115
        %8371 = vmatpush.msra.mxu0 %v7113
        %8372 = vmatpush.msra.mxu0 %v7110
        %8373 = vmatpush.msra.mxu0 %v7108
        %8374 = vmatpush.msra.mxu0 %v7105
        %8375 = vmatpush.msra.mxu0 %v7103
        %8376 = vmatpush.msra.mxu0 %v7100
        %8377 = vmatpush.msra.mxu0 %v7098
        %8378 = vmatpush.msra.mxu0 %v7095
        %8379 = vmatpush.msra.mxu0 %v7093
        %8380 = vmatmul.f32.gmra.mxu0 %v1008
        %v8381 = vpop.f32.mrf.mxu0
        %v8382 = vadd.f32 %v8362, %v8381
        %8383 = vdwg.mxu0
        %8384 = vmatpush.msra.mxu0 %v7682
        %8385 = vmatpush.msra.mxu0 %v7680
        %8386 = vmatpush.msra.mxu0 %v7677
        %8387 = vmatpush.msra.mxu0 %v7675
        %8388 = vmatpush.msra.mxu0 %v7672
        %8389 = vmatpush.msra.mxu0 %v7670
        %8390 = vmatpush.msra.mxu0 %v7667
        %8391 = vmatpush.msra.mxu0 %v7665
        %8392 = vmatpush.msra.mxu0 %v7662
        %8393 = vmatpush.msra.mxu0 %v7660
        %8394 = vmatpush.msra.mxu0 %v7657
        %8395 = vmatpush.msra.mxu0 %v7655
        %8396 = vmatpush.msra.mxu0 %v7652
        %8397 = vmatpush.msra.mxu0 %v7650
        %8398 = vmatpush.msra.mxu0 %v7647
        %8399 = vmatpush.msra.mxu0 %v7645
        %8400 = vmatmul.f32.gmra.mxu0 %v1004
        %v8401 = vpop.f32.mrf.mxu0
        %v8402 = vadd.f32 0.0, %v8401
        %8403 = vdwg.mxu0
        %8404 = vmatpush.msra.mxu0 0.0
        %8405 = vmatpush.msra.mxu0 0.0
        %8406 = vmatpush.msra.mxu0 0.0
        %8407 = vmatpush.msra.mxu0 0.0
        %8408 = vmatpush.msra.mxu0 0.0
        %8409 = vmatpush.msra.mxu0 0.0
        %8410 = vmatpush.msra.mxu0 %v7707
        %8411 = vmatpush.msra.mxu0 %v7705
        %8412 = vmatpush.msra.mxu0 %v7702
        %8413 = vmatpush.msra.mxu0 %v7700
        %8414 = vmatpush.msra.mxu0 %v7697
        %8415 = vmatpush.msra.mxu0 %v7695
        %8416 = vmatpush.msra.mxu0 %v7692
        %8417 = vmatpush.msra.mxu0 %v7690
        %8418 = vmatpush.msra.mxu0 %v7687
        %8419 = vmatpush.msra.mxu0 %v7685
        %8420 = vmatmul.f32.gmra.mxu0 %v1008
        %v8421 = vpop.f32.mrf.mxu0
        %v8422 = vadd.f32 %v8402, %v8421
        %8423 = vdwg.mxu0
        %8424 = vmatpush.msra.mxu0 %v8274
        %8425 = vmatpush.msra.mxu0 %v8272
        %8426 = vmatpush.msra.mxu0 %v8269
        %8427 = vmatpush.msra.mxu0 %v8267
        %8428 = vmatpush.msra.mxu0 %v8264
        %8429 = vmatpush.msra.mxu0 %v8262
        %8430 = vmatpush.msra.mxu0 %v8259
        %8431 = vmatpush.msra.mxu0 %v8257
        %8432 = vmatpush.msra.mxu0 %v8254
        %8433 = vmatpush.msra.mxu0 %v8252
        %8434 = vmatpush.msra.mxu0 %v8249
        %8435 = vmatpush.msra.mxu0 %v8247
        %8436 = vmatpush.msra.mxu0 %v8244
        %8437 = vmatpush.msra.mxu0 %v8242
        %8438 = vmatpush.msra.mxu0 %v8239
        %8439 = vmatpush.msra.mxu0 %v8237
        %8440 = vmatmul.f32.gmra.mxu0 %v1004
        %v8441 = vpop.f32.mrf.mxu0
        %v8442 = vadd.f32 0.0, %v8441
        %8443 = vdwg.mxu0
        %8444 = vmatpush.msra.mxu0 0.0
        %8445 = vmatpush.msra.mxu0 0.0
        %8446 = vmatpush.msra.mxu0 0.0
        %8447 = vmatpush.msra.mxu0 0.0
        %8448 = vmatpush.msra.mxu0 0.0
        %8449 = vmatpush.msra.mxu0 0.0
        %8450 = vmatpush.msra.mxu0 %v8299
        %8451 = vmatpush.msra.mxu0 %v8297
        %8452 = vmatpush.msra.mxu0 %v8294
        %8453 = vmatpush.msra.mxu0 %v8292
        %8454 = vmatpush.msra.mxu0 %v8289
        %8455 = vmatpush.msra.mxu0 %v8287
        %8456 = vmatpush.msra.mxu0 %v8284
        %8457 = vmatpush.msra.mxu0 %v8282
        %8458 = vmatpush.msra.mxu0 %v8279
        %8459 = vmatpush.msra.mxu0 %v8277
        %8460 = vmatmul.f32.gmra.mxu0 %v1008
        %v8461 = vpop.f32.mrf.mxu0
        %v8462 = vadd.f32 %v8442, %v8461
        %8463 = vdwg.mxu0
        %v8464 = vmul.f32 %v6461, %v6461
        %v8465 = vmul.f32 %v7053, %v7053
        %v8466 = vmul.f32 %v7645, %v7645
        %v8467 = vmul.f32 %v8237, %v8237
        %v8468 = vmul.f32 %v6463, %v6463
        %v8469 = vmul.f32 %v7055, %v7055
        %v8470 = vmul.f32 %v7647, %v7647
        %v8471 = vmul.f32 %v8239, %v8239
        %v8472 = vmul.f32 %v6466, %v6466
        %v8473 = vmul.f32 %v7058, %v7058
        %v8474 = vmul.f32 %v7650, %v7650
        %v8475 = vmul.f32 %v8242, %v8242
        %v8476 = vmul.f32 %v6468, %v6468
        %v8477 = vmul.f32 %v7060, %v7060
        %v8478 = vmul.f32 %v7652, %v7652
        %v8479 = vmul.f32 %v8244, %v8244
        %v8480 = vmul.f32 %v6471, %v6471
        %v8481 = vmul.f32 %v7063, %v7063
        %v8482 = vmul.f32 %v7655, %v7655
        %v8483 = vmul.f32 %v8247, %v8247
        %v8484 = vmul.f32 %v6473, %v6473
        %v8485 = vmul.f32 %v7065, %v7065
        %v8486 = vmul.f32 %v7657, %v7657
        %v8487 = vmul.f32 %v8249, %v8249
        %v8488 = vmul.f32 %v6476, %v6476
        %v8489 = vmul.f32 %v7068, %v7068
        %v8490 = vmul.f32 %v7660, %v7660
        %v8491 = vmul.f32 %v8252, %v8252
        %v8492 = vmul.f32 %v6478, %v6478
        %v8493 = vmul.f32 %v7070, %v7070
        %v8494 = vmul.f32 %v7662, %v7662
        %v8495 = vmul.f32 %v8254, %v8254
        %v8496 = vmul.f32 %v6481, %v6481
        %v8497 = vmul.f32 %v7073, %v7073
        %v8498 = vmul.f32 %v7665, %v7665
        %v8499 = vmul.f32 %v8257, %v8257
        %v8500 = vmul.f32 %v6483, %v6483
        %v8501 = vmul.f32 %v7075, %v7075
        %v8502 = vmul.f32 %v7667, %v7667
        %v8503 = vmul.f32 %v8259, %v8259
        %v8504 = vmul.f32 %v6486, %v6486
        %v8505 = vmul.f32 %v7078, %v7078
        %v8506 = vmul.f32 %v7670, %v7670
        %v8507 = vmul.f32 %v8262, %v8262
        %v8508 = vmul.f32 %v6488, %v6488
        %v8509 = vmul.f32 %v7080, %v7080
        %v8510 = vmul.f32 %v7672, %v7672
        %v8511 = vmul.f32 %v8264, %v8264
        %v8512 = vmul.f32 %v6491, %v6491
        %v8513 = vmul.f32 %v7083, %v7083
        %v8514 = vmul.f32 %v7675, %v7675
        %v8515 = vmul.f32 %v8267, %v8267
        %v8516 = vmul.f32 %v6493, %v6493
        %v8517 = vmul.f32 %v7085, %v7085
        %v8518 = vmul.f32 %v7677, %v7677
        %v8519 = vmul.f32 %v8269, %v8269
        %v8520 = vmul.f32 %v6496, %v6496
        %v8521 = vmul.f32 %v7088, %v7088
        %v8522 = vmul.f32 %v7680, %v7680
        %v8523 = vmul.f32 %v8272, %v8272
        %v8524 = vmul.f32 %v6498, %v6498
        %v8525 = vmul.f32 %v7090, %v7090
        %v8526 = vmul.f32 %v7682, %v7682
        %v8527 = vmul.f32 %v8274, %v8274
        %v8528 = vmul.f32 %v6501, %v6501
        %v8529 = vmul.f32 %v7093, %v7093
        %v8530 = vmul.f32 %v7685, %v7685
        %v8531 = vmul.f32 %v8277, %v8277
        %v8532 = vmul.f32 %v6503, %v6503
        %v8533 = vmul.f32 %v7095, %v7095
        %v8534 = vmul.f32 %v7687, %v7687
        %v8535 = vmul.f32 %v8279, %v8279
        %v8536 = vmul.f32 %v6506, %v6506
        %v8537 = vmul.f32 %v7098, %v7098
        %v8538 = vmul.f32 %v7690, %v7690
        %v8539 = vmul.f32 %v8282, %v8282
        %v8540 = vmul.f32 %v6508, %v6508
        %v8541 = vmul.f32 %v7100, %v7100
        %v8542 = vmul.f32 %v7692, %v7692
        %v8543 = vmul.f32 %v8284, %v8284
        %v8544 = vmul.f32 %v6511, %v6511
        %v8545 = vmul.f32 %v7103, %v7103
        %v8546 = vmul.f32 %v7695, %v7695
        %v8547 = vmul.f32 %v8287, %v8287
        %v8548 = vmul.f32 %v6513, %v6513
        %v8549 = vmul.f32 %v7105, %v7105
        %v8550 = vmul.f32 %v7697, %v7697
        %v8551 = vmul.f32 %v8289, %v8289
        %v8552 = vmul.f32 %v6516, %v6516
        %v8553 = vmul.f32 %v7108, %v7108
        %v8554 = vmul.f32 %v7700, %v7700
        %v8555 = vmul.f32 %v8292, %v8292
        %v8556 = vmul.f32 %v6518, %v6518
        %v8557 = vmul.f32 %v7110, %v7110
        %v8558 = vmul.f32 %v7702, %v7702
        %v8559 = vmul.f32 %v8294, %v8294
        %v8560 = vmul.f32 %v6521, %v6521
        %v8561 = vmul.f32 %v7113, %v7113
        %v8562 = vmul.f32 %v7705, %v7705
        %v8563 = vmul.f32 %v8297, %v8297
        %v8564 = vmul.f32 %v6523, %v6523
        %v8565 = vmul.f32 %v7115, %v7115
        %v8566 = vmul.f32 %v7707, %v7707
        %v8567 = vmul.f32 %v8299, %v8299
        %8568 = vmatpush.msra.mxu0 %v8524
        %8569 = vmatpush.msra.mxu0 %v8520
        %8570 = vmatpush.msra.mxu0 %v8516
        %8571 = vmatpush.msra.mxu0 %v8512
        %8572 = vmatpush.msra.mxu0 %v8508
        %8573 = vmatpush.msra.mxu0 %v8504
        %8574 = vmatpush.msra.mxu0 %v8500
        %8575 = vmatpush.msra.mxu0 %v8496
        %8576 = vmatpush.msra.mxu0 %v8492
        %8577 = vmatpush.msra.mxu0 %v8488
        %8578 = vmatpush.msra.mxu0 %v8484
        %8579 = vmatpush.msra.mxu0 %v8480
        %8580 = vmatpush.msra.mxu0 %v8476
        %8581 = vmatpush.msra.mxu0 %v8472
        %8582 = vmatpush.msra.mxu0 %v8468
        %8583 = vmatpush.msra.mxu0 %v8464
        %8584 = vmatmul.f32.gmra.mxu0 %v1004
        %v8585 = vpop.f32.mrf.mxu0
        %v8586 = vadd.f32 0.0, %v8585
        %8587 = vdwg.mxu0
        %8588 = vmatpush.msra.mxu0 0.0
        %8589 = vmatpush.msra.mxu0 0.0
        %8590 = vmatpush.msra.mxu0 0.0
        %8591 = vmatpush.msra.mxu0 0.0
        %8592 = vmatpush.msra.mxu0 0.0
        %8593 = vmatpush.msra.mxu0 0.0
        %8594 = vmatpush.msra.mxu0 %v8564
        %8595 = vmatpush.msra.mxu0 %v8560
        %8596 = vmatpush.msra.mxu0 %v8556
        %8597 = vmatpush.msra.mxu0 %v8552
        %8598 = vmatpush.msra.mxu0 %v8548
        %8599 = vmatpush.msra.mxu0 %v8544
        %8600 = vmatpush.msra.mxu0 %v8540
        %8601 = vmatpush.msra.mxu0 %v8536
        %8602 = vmatpush.msra.mxu0 %v8532
        %8603 = vmatpush.msra.mxu0 %v8528
        %8604 = vmatmul.f32.gmra.mxu0 %v1008
        %v8605 = vpop.f32.mrf.mxu0
        %v8606 = vadd.f32 %v8586, %v8605
        %8607 = vdwg.mxu0
        %8608 = vmatpush.msra.mxu0 %v8525
        %8609 = vmatpush.msra.mxu0 %v8521
        %8610 = vmatpush.msra.mxu0 %v8517
        %8611 = vmatpush.msra.mxu0 %v8513
        %8612 = vmatpush.msra.mxu0 %v8509
        %8613 = vmatpush.msra.mxu0 %v8505
        %8614 = vmatpush.msra.mxu0 %v8501
        %8615 = vmatpush.msra.mxu0 %v8497
        %8616 = vmatpush.msra.mxu0 %v8493
        %8617 = vmatpush.msra.mxu0 %v8489
        %8618 = vmatpush.msra.mxu0 %v8485
        %8619 = vmatpush.msra.mxu0 %v8481
        %8620 = vmatpush.msra.mxu0 %v8477
        %8621 = vmatpush.msra.mxu0 %v8473
        %8622 = vmatpush.msra.mxu0 %v8469
        %8623 = vmatpush.msra.mxu0 %v8465
        %8624 = vmatmul.f32.gmra.mxu0 %v1004
        %v8625 = vpop.f32.mrf.mxu0
        %v8626 = vadd.f32 0.0, %v8625
        %8627 = vdwg.mxu0
        %8628 = vmatpush.msra.mxu0 0.0
        %8629 = vmatpush.msra.mxu0 0.0
        %8630 = vmatpush.msra.mxu0 0.0
        %8631 = vmatpush.msra.mxu0 0.0
        %8632 = vmatpush.msra.mxu0 0.0
        %8633 = vmatpush.msra.mxu0 0.0
        %8634 = vmatpush.msra.mxu0 %v8565
        %8635 = vmatpush.msra.mxu0 %v8561
        %8636 = vmatpush.msra.mxu0 %v8557
        %8637 = vmatpush.msra.mxu0 %v8553
        %8638 = vmatpush.msra.mxu0 %v8549
        %8639 = vmatpush.msra.mxu0 %v8545
        %8640 = vmatpush.msra.mxu0 %v8541
        %8641 = vmatpush.msra.mxu0 %v8537
        %8642 = vmatpush.msra.mxu0 %v8533
        %8643 = vmatpush.msra.mxu0 %v8529
        %8644 = vmatmul.f32.gmra.mxu0 %v1008
        %v8645 = vpop.f32.mrf.mxu0
        %v8646 = vadd.f32 %v8626, %v8645
        %8647 = vdwg.mxu0
        %8648 = vmatpush.msra.mxu0 %v8526
        %8649 = vmatpush.msra.mxu0 %v8522
        %8650 = vmatpush.msra.mxu0 %v8518
        %8651 = vmatpush.msra.mxu0 %v8514
        %8652 = vmatpush.msra.mxu0 %v8510
        %8653 = vmatpush.msra.mxu0 %v8506
        %8654 = vmatpush.msra.mxu0 %v8502
        %8655 = vmatpush.msra.mxu0 %v8498
        %8656 = vmatpush.msra.mxu0 %v8494
        %8657 = vmatpush.msra.mxu0 %v8490
        %8658 = vmatpush.msra.mxu0 %v8486
        %8659 = vmatpush.msra.mxu0 %v8482
        %8660 = vmatpush.msra.mxu0 %v8478
        %8661 = vmatpush.msra.mxu0 %v8474
        %8662 = vmatpush.msra.mxu0 %v8470
        %8663 = vmatpush.msra.mxu0 %v8466
        %8664 = vmatmul.f32.gmra.mxu0 %v1004
        %v8665 = vpop.f32.mrf.mxu0
        %v8666 = vadd.f32 0.0, %v8665
        %8667 = vdwg.mxu0
        %8668 = vmatpush.msra.mxu0 0.0
        %8669 = vmatpush.msra.mxu0 0.0
        %8670 = vmatpush.msra.mxu0 0.0
        %8671 = vmatpush.msra.mxu0 0.0
        %8672 = vmatpush.msra.mxu0 0.0
        %8673 = vmatpush.msra.mxu0 0.0
        %8674 = vmatpush.msra.mxu0 %v8566
        %8675 = vmatpush.msra.mxu0 %v8562
        %8676 = vmatpush.msra.mxu0 %v8558
        %8677 = vmatpush.msra.mxu0 %v8554
        %8678 = vmatpush.msra.mxu0 %v8550
        %8679 = vmatpush.msra.mxu0 %v8546
        %8680 = vmatpush.msra.mxu0 %v8542
        %8681 = vmatpush.msra.mxu0 %v8538
        %8682 = vmatpush.msra.mxu0 %v8534
        %8683 = vmatpush.msra.mxu0 %v8530
        %8684 = vmatmul.f32.gmra.mxu0 %v1008
        %v8685 = vpop.f32.mrf.mxu0
        %v8686 = vadd.f32 %v8666, %v8685
        %8687 = vdwg.mxu0
        %8688 = vmatpush.msra.mxu0 %v8527
        %8689 = vmatpush.msra.mxu0 %v8523
        %8690 = vmatpush.msra.mxu0 %v8519
        %8691 = vmatpush.msra.mxu0 %v8515
        %8692 = vmatpush.msra.mxu0 %v8511
        %8693 = vmatpush.msra.mxu0 %v8507
        %8694 = vmatpush.msra.mxu0 %v8503
        %8695 = vmatpush.msra.mxu0 %v8499
        %8696 = vmatpush.msra.mxu0 %v8495
        %8697 = vmatpush.msra.mxu0 %v8491
        %8698 = vmatpush.msra.mxu0 %v8487
        %8699 = vmatpush.msra.mxu0 %v8483
        %8700 = vmatpush.msra.mxu0 %v8479
        %8701 = vmatpush.msra.mxu0 %v8475
        %8702 = vmatpush.msra.mxu0 %v8471
        %8703 = vmatpush.msra.mxu0 %v8467
        %8704 = vmatmul.f32.gmra.mxu0 %v1004
        %v8705 = vpop.f32.mrf.mxu0
        %v8706 = vadd.f32 0.0, %v8705
        %8707 = vdwg.mxu0
        %8708 = vmatpush.msra.mxu0 0.0
        %8709 = vmatpush.msra.mxu0 0.0
        %8710 = vmatpush.msra.mxu0 0.0
        %8711 = vmatpush.msra.mxu0 0.0
        %8712 = vmatpush.msra.mxu0 0.0
        %8713 = vmatpush.msra.mxu0 0.0
        %8714 = vmatpush.msra.mxu0 %v8567
        %8715 = vmatpush.msra.mxu0 %v8563
        %8716 = vmatpush.msra.mxu0 %v8559
        %8717 = vmatpush.msra.mxu0 %v8555
        %8718 = vmatpush.msra.mxu0 %v8551
        %8719 = vmatpush.msra.mxu0 %v8547
        %8720 = vmatpush.msra.mxu0 %v8543
        %8721 = vmatpush.msra.mxu0 %v8539
        %8722 = vmatpush.msra.mxu0 %v8535
        %8723 = vmatpush.msra.mxu0 %v8531
        %8724 = vmatmul.f32.gmra.mxu0 %v1008
        %v8725 = vpop.f32.mrf.mxu0
        %v8726 = vadd.f32 %v8706, %v8725
        %8727 = vdwg.mxu0
        %v8728 = vmul.f32 %v8342, 0.005
        %v8729 = vmul.f32 %v8382, 0.005
        %v8730 = vmul.f32 %v8422, 0.005
        %v8731 = vmul.f32 %v8462, 0.005
        %v8732 = vmul.f32 %v8606, 0.005
        %v8733 = vmul.f32 %v8646, 0.005
        %v8734 = vmul.f32 %v8686, 0.005
        %v8735 = vmul.f32 %v8726, 0.005
        %v8736 = vmul.f32 %v8728, %v8728
        %v8737 = vmul.f32 %v8729, %v8729
        %v8738 = vmul.f32 %v8730, %v8730
        %v8739 = vmul.f32 %v8731, %v8731
        %v8740 = vsub.f32 %v8732, %v8736
        %v8741 = vsub.f32 %v8733, %v8737
        %v8742 = vsub.f32 %v8734, %v8738
        %v8743 = vsub.f32 %v8735, %v8739
        %v8744 = vmax.f32 %v8740, 0.0
        %v8745 = vmax.f32 %v8741, 0.0
        %v8746 = vmax.f32 %v8742, 0.0
        %v8747 = vmax.f32 %v8743, 0.0
        %v8748 = vadd.f32 %v8744, 1e-05
        %v8749 = vadd.f32 %v8745, 1e-05
        %v8750 = vadd.f32 %v8746, 1e-05
        %v8751 = vadd.f32 %v8747, 1e-05
        %v8752 = vrsqrt.pop %v8748
        %v8753 = vmul.f32 %v8752, %v8748
        %v8754 = vmul.f32 %v8753, %v8752
        %v8755 = vmul.f32 0.5, %v8754
        %v8756 = vsub.f32 1.5, %v8755
        %v8757 = vmul.f32 %v8752, %v8756
        %vm8758 = vweird.f32 %v8748
        %vm8759 = vweird.f32 %v8752
        %vm8760 = vmor %vm8758, %vm8759
        %v8761 = vsel %vm8760, %v8752, %v8757
        %v8762 = vrsqrt.pop %v8749
        %v8763 = vmul.f32 %v8762, %v8749
        %v8764 = vmul.f32 %v8763, %v8762
        %v8765 = vmul.f32 0.5, %v8764
        %v8766 = vsub.f32 1.5, %v8765
        %v8767 = vmul.f32 %v8762, %v8766
        %vm8768 = vweird.f32 %v8749
        %vm8769 = vweird.f32 %v8762
        %vm8770 = vmor %vm8768, %vm8769
        %v8771 = vsel %vm8770, %v8762, %v8767
        %v8772 = vrsqrt.pop %v8750
        %v8773 = vmul.f32 %v8772, %v8750
        %v8774 = vmul.f32 %v8773, %v8772
        %v8775 = vmul.f32 0.5, %v8774
        %v8776 = vsub.f32 1.5, %v8775
        %v8777 = vmul.f32 %v8772, %v8776
        %vm8778 = vweird.f32 %v8750
        %vm8779 = vweird.f32 %v8772
        %vm8780 = vmor %vm8778, %vm8779
        %v8781 = vsel %vm8780, %v8772, %v8777
        %v8782 = vrsqrt.pop %v8751
        %v8783 = vmul.f32 %v8782, %v8751
        %v8784 = vmul.f32 %v8783, %v8782
        %v8785 = vmul.f32 0.5, %v8784
        %v8786 = vsub.f32 1.5, %v8785
        %v8787 = vmul.f32 %v8782, %v8786
        %vm8788 = vweird.f32 %v8751
        %vm8789 = vweird.f32 %v8782
        %vm8790 = vmor %vm8788, %vm8789
        %v8791 = vsel %vm8790, %v8782, %v8787
        %v8796 = vrot.slane %v8771, 7
        %v8797 = vrot.slane %v8781, 6
        %v8798 = vrot.slane %v8791, 5
        %v8799 = vsel %vm3587, %v8761, %v8796
        %v8800 = vsel %vm3589, %v8797, %v8798
        %v8801 = vsel %vm3591, %v8799, %v8800
        %v8803 = vmul.f32 %v8301, %v8801
        %v8805 = vperm.slane %v8803, 0
        %v8806 = vperm.slane %v8803, 1
        %v8807 = vperm.slane %v8803, 2
        %v8808 = vperm.slane %v8803, 3
        %v8813 = vmul.f32 %v8728, %v8805
        %v8814 = vmul.f32 %v8729, %v8806
        %v8815 = vmul.f32 %v8730, %v8807
        %v8816 = vmul.f32 %v8731, %v8808
        %v8821 = vrot.slane %v8814, 7
        %v8822 = vrot.slane %v8815, 6
        %v8823 = vrot.slane %v8816, 5
        %v8824 = vsel %vm3587, %v8813, %v8821
        %v8825 = vsel %vm3589, %v8822, %v8823
        %v8826 = vsel %vm3591, %v8824, %v8825
        %v8828 = vsub.f32 %v8303, %v8826
        %v8829 = vmul.f32 %v6461, %v8805
        %v8830 = vmul.f32 %v7053, %v8806
        %v8831 = vmul.f32 %v7645, %v8807
        %v8832 = vmul.f32 %v8237, %v8808
        %v8833 = vmul.f32 %v6463, %v8805
        %v8834 = vmul.f32 %v7055, %v8806
        %v8835 = vmul.f32 %v7647, %v8807
        %v8836 = vmul.f32 %v8239, %v8808
        %v8837 = vmul.f32 %v6466, %v8805
        %v8838 = vmul.f32 %v7058, %v8806
        %v8839 = vmul.f32 %v7650, %v8807
        %v8840 = vmul.f32 %v8242, %v8808
        %v8841 = vmul.f32 %v6468, %v8805
        %v8842 = vmul.f32 %v7060, %v8806
        %v8843 = vmul.f32 %v7652, %v8807
        %v8844 = vmul.f32 %v8244, %v8808
        %v8845 = vmul.f32 %v6471, %v8805
        %v8846 = vmul.f32 %v7063, %v8806
        %v8847 = vmul.f32 %v7655, %v8807
        %v8848 = vmul.f32 %v8247, %v8808
        %v8849 = vmul.f32 %v6473, %v8805
        %v8850 = vmul.f32 %v7065, %v8806
        %v8851 = vmul.f32 %v7657, %v8807
        %v8852 = vmul.f32 %v8249, %v8808
        %v8853 = vmul.f32 %v6476, %v8805
        %v8854 = vmul.f32 %v7068, %v8806
        %v8855 = vmul.f32 %v7660, %v8807
        %v8856 = vmul.f32 %v8252, %v8808
        %v8857 = vmul.f32 %v6478, %v8805
        %v8858 = vmul.f32 %v7070, %v8806
        %v8859 = vmul.f32 %v7662, %v8807
        %v8860 = vmul.f32 %v8254, %v8808
        %v8861 = vmul.f32 %v6481, %v8805
        %v8862 = vmul.f32 %v7073, %v8806
        %v8863 = vmul.f32 %v7665, %v8807
        %v8864 = vmul.f32 %v8257, %v8808
        %v8865 = vmul.f32 %v6483, %v8805
        %v8866 = vmul.f32 %v7075, %v8806
        %v8867 = vmul.f32 %v7667, %v8807
        %v8868 = vmul.f32 %v8259, %v8808
        %v8869 = vmul.f32 %v6486, %v8805
        %v8870 = vmul.f32 %v7078, %v8806
        %v8871 = vmul.f32 %v7670, %v8807
        %v8872 = vmul.f32 %v8262, %v8808
        %v8873 = vmul.f32 %v6488, %v8805
        %v8874 = vmul.f32 %v7080, %v8806
        %v8875 = vmul.f32 %v7672, %v8807
        %v8876 = vmul.f32 %v8264, %v8808
        %v8877 = vmul.f32 %v6491, %v8805
        %v8878 = vmul.f32 %v7083, %v8806
        %v8879 = vmul.f32 %v7675, %v8807
        %v8880 = vmul.f32 %v8267, %v8808
        %v8881 = vmul.f32 %v6493, %v8805
        %v8882 = vmul.f32 %v7085, %v8806
        %v8883 = vmul.f32 %v7677, %v8807
        %v8884 = vmul.f32 %v8269, %v8808
        %v8885 = vmul.f32 %v6496, %v8805
        %v8886 = vmul.f32 %v7088, %v8806
        %v8887 = vmul.f32 %v7680, %v8807
        %v8888 = vmul.f32 %v8272, %v8808
        %v8889 = vmul.f32 %v6498, %v8805
        %v8890 = vmul.f32 %v7090, %v8806
        %v8891 = vmul.f32 %v7682, %v8807
        %v8892 = vmul.f32 %v8274, %v8808
        %v8893 = vmul.f32 %v6501, %v8805
        %v8894 = vmul.f32 %v7093, %v8806
        %v8895 = vmul.f32 %v7685, %v8807
        %v8896 = vmul.f32 %v8277, %v8808
        %v8897 = vmul.f32 %v6503, %v8805
        %v8898 = vmul.f32 %v7095, %v8806
        %v8899 = vmul.f32 %v7687, %v8807
        %v8900 = vmul.f32 %v8279, %v8808
        %v8901 = vmul.f32 %v6506, %v8805
        %v8902 = vmul.f32 %v7098, %v8806
        %v8903 = vmul.f32 %v7690, %v8807
        %v8904 = vmul.f32 %v8282, %v8808
        %v8905 = vmul.f32 %v6508, %v8805
        %v8906 = vmul.f32 %v7100, %v8806
        %v8907 = vmul.f32 %v7692, %v8807
        %v8908 = vmul.f32 %v8284, %v8808
        %v8909 = vmul.f32 %v6511, %v8805
        %v8910 = vmul.f32 %v7103, %v8806
        %v8911 = vmul.f32 %v7695, %v8807
        %v8912 = vmul.f32 %v8287, %v8808
        %v8913 = vmul.f32 %v6513, %v8805
        %v8914 = vmul.f32 %v7105, %v8806
        %v8915 = vmul.f32 %v7697, %v8807
        %v8916 = vmul.f32 %v8289, %v8808
        %v8917 = vmul.f32 %v6516, %v8805
        %v8918 = vmul.f32 %v7108, %v8806
        %v8919 = vmul.f32 %v7700, %v8807
        %v8920 = vmul.f32 %v8292, %v8808
        %v8921 = vmul.f32 %v6518, %v8805
        %v8922 = vmul.f32 %v7110, %v8806
        %v8923 = vmul.f32 %v7702, %v8807
        %v8924 = vmul.f32 %v8294, %v8808
        %v8925 = vmul.f32 %v6521, %v8805
        %v8926 = vmul.f32 %v7113, %v8806
        %v8927 = vmul.f32 %v7705, %v8807
        %v8928 = vmul.f32 %v8297, %v8808
        %v8929 = vmul.f32 %v6523, %v8805
        %v8930 = vmul.f32 %v7115, %v8806
        %v8931 = vmul.f32 %v7707, %v8807
        %v8932 = vmul.f32 %v8299, %v8808
        %v8934 = vperm.slane %v8828, 0
        %v8935 = vperm.slane %v8828, 1
        %v8936 = vperm.slane %v8828, 2
        %v8937 = vperm.slane %v8828, 3
        %v8942 = vadd.f32 %v8829, %v8934
        %v8943 = vadd.f32 %v8830, %v8935
        %v8944 = vadd.f32 %v8831, %v8936
        %v8945 = vadd.f32 %v8832, %v8937
        %v8946 = vadd.f32 %v8833, %v8934
        %v8947 = vadd.f32 %v8834, %v8935
        %v8948 = vadd.f32 %v8835, %v8936
        %v8949 = vadd.f32 %v8836, %v8937
        %v8950 = vadd.f32 %v8837, %v8934
        %v8951 = vadd.f32 %v8838, %v8935
        %v8952 = vadd.f32 %v8839, %v8936
        %v8953 = vadd.f32 %v8840, %v8937
        %v8954 = vadd.f32 %v8841, %v8934
        %v8955 = vadd.f32 %v8842, %v8935
        %v8956 = vadd.f32 %v8843, %v8936
        %v8957 = vadd.f32 %v8844, %v8937
        %v8958 = vadd.f32 %v8845, %v8934
        %v8959 = vadd.f32 %v8846, %v8935
        %v8960 = vadd.f32 %v8847, %v8936
        %v8961 = vadd.f32 %v8848, %v8937
        %v8962 = vadd.f32 %v8849, %v8934
        %v8963 = vadd.f32 %v8850, %v8935
        %v8964 = vadd.f32 %v8851, %v8936
        %v8965 = vadd.f32 %v8852, %v8937
        %v8966 = vadd.f32 %v8853, %v8934
        %v8967 = vadd.f32 %v8854, %v8935
        %v8968 = vadd.f32 %v8855, %v8936
        %v8969 = vadd.f32 %v8856, %v8937
        %v8970 = vadd.f32 %v8857, %v8934
        %v8971 = vadd.f32 %v8858, %v8935
        %v8972 = vadd.f32 %v8859, %v8936
        %v8973 = vadd.f32 %v8860, %v8937
        %v8974 = vadd.f32 %v8861, %v8934
        %v8975 = vadd.f32 %v8862, %v8935
        %v8976 = vadd.f32 %v8863, %v8936
        %v8977 = vadd.f32 %v8864, %v8937
        %v8978 = vadd.f32 %v8865, %v8934
        %v8979 = vadd.f32 %v8866, %v8935
        %v8980 = vadd.f32 %v8867, %v8936
        %v8981 = vadd.f32 %v8868, %v8937
        %v8982 = vadd.f32 %v8869, %v8934
        %v8983 = vadd.f32 %v8870, %v8935
        %v8984 = vadd.f32 %v8871, %v8936
        %v8985 = vadd.f32 %v8872, %v8937
        %v8986 = vadd.f32 %v8873, %v8934
        %v8987 = vadd.f32 %v8874, %v8935
        %v8988 = vadd.f32 %v8875, %v8936
        %v8989 = vadd.f32 %v8876, %v8937
        %v8990 = vadd.f32 %v8877, %v8934
        %v8991 = vadd.f32 %v8878, %v8935
        %v8992 = vadd.f32 %v8879, %v8936
        %v8993 = vadd.f32 %v8880, %v8937
        %v8994 = vadd.f32 %v8881, %v8934
        %v8995 = vadd.f32 %v8882, %v8935
        %v8996 = vadd.f32 %v8883, %v8936
        %v8997 = vadd.f32 %v8884, %v8937
        %v8998 = vadd.f32 %v8885, %v8934
        %v8999 = vadd.f32 %v8886, %v8935
        %v9000 = vadd.f32 %v8887, %v8936
        %v9001 = vadd.f32 %v8888, %v8937
        %v9002 = vadd.f32 %v8889, %v8934
        %v9003 = vadd.f32 %v8890, %v8935
        %v9004 = vadd.f32 %v8891, %v8936
        %v9005 = vadd.f32 %v8892, %v8937
        %v9006 = vadd.f32 %v8893, %v8934
        %v9007 = vadd.f32 %v8894, %v8935
        %v9008 = vadd.f32 %v8895, %v8936
        %v9009 = vadd.f32 %v8896, %v8937
        %v9010 = vadd.f32 %v8897, %v8934
        %v9011 = vadd.f32 %v8898, %v8935
        %v9012 = vadd.f32 %v8899, %v8936
        %v9013 = vadd.f32 %v8900, %v8937
        %v9014 = vadd.f32 %v8901, %v8934
        %v9015 = vadd.f32 %v8902, %v8935
        %v9016 = vadd.f32 %v8903, %v8936
        %v9017 = vadd.f32 %v8904, %v8937
        %v9018 = vadd.f32 %v8905, %v8934
        %v9019 = vadd.f32 %v8906, %v8935
        %v9020 = vadd.f32 %v8907, %v8936
        %v9021 = vadd.f32 %v8908, %v8937
        %v9022 = vadd.f32 %v8909, %v8934
        %v9023 = vadd.f32 %v8910, %v8935
        %v9024 = vadd.f32 %v8911, %v8936
        %v9025 = vadd.f32 %v8912, %v8937
        %v9026 = vadd.f32 %v8913, %v8934
        %v9027 = vadd.f32 %v8914, %v8935
        %v9028 = vadd.f32 %v8915, %v8936
        %v9029 = vadd.f32 %v8916, %v8937
        %v9030 = vadd.f32 %v8917, %v8934
        %v9031 = vadd.f32 %v8918, %v8935
        %v9032 = vadd.f32 %v8919, %v8936
        %v9033 = vadd.f32 %v8920, %v8937
        %v9034 = vadd.f32 %v8921, %v8934
        %v9035 = vadd.f32 %v8922, %v8935
        %v9036 = vadd.f32 %v8923, %v8936
        %v9037 = vadd.f32 %v8924, %v8937
        %v9038 = vadd.f32 %v8925, %v8934
        %v9039 = vadd.f32 %v8926, %v8935
        %v9040 = vadd.f32 %v8927, %v8936
        %v9041 = vadd.f32 %v8928, %v8937
        %v9042 = vadd.f32 %v8929, %v8934
        %v9043 = vadd.f32 %v8930, %v8935
        %v9044 = vadd.f32 %v8931, %v8936
        %v9045 = vadd.f32 %v8932, %v8937
        %v9046 = vmax.f32 %v8942, 0.0
        %v9047 = vmax.f32 %v8943, 0.0
        %v9048 = vmax.f32 %v8944, 0.0
        %v9049 = vmax.f32 %v8945, 0.0
        %v9050 = vmax.f32 %v8946, 0.0
        %v9051 = vmax.f32 %v8947, 0.0
        %v9052 = vmax.f32 %v8948, 0.0
        %v9053 = vmax.f32 %v8949, 0.0
        %v9054 = vmax.f32 %v8950, 0.0
        %v9055 = vmax.f32 %v8951, 0.0
        %v9056 = vmax.f32 %v8952, 0.0
        %v9057 = vmax.f32 %v8953, 0.0
        %v9058 = vmax.f32 %v8954, 0.0
        %v9059 = vmax.f32 %v8955, 0.0
        %v9060 = vmax.f32 %v8956, 0.0
        %v9061 = vmax.f32 %v8957, 0.0
        %v9062 = vmax.f32 %v8958, 0.0
        %v9063 = vmax.f32 %v8959, 0.0
        %v9064 = vmax.f32 %v8960, 0.0
        %v9065 = vmax.f32 %v8961, 0.0
        %v9066 = vmax.f32 %v8962, 0.0
        %v9067 = vmax.f32 %v8963, 0.0
        %v9068 = vmax.f32 %v8964, 0.0
        %v9069 = vmax.f32 %v8965, 0.0
        %v9070 = vmax.f32 %v8966, 0.0
        %v9071 = vmax.f32 %v8967, 0.0
        %v9072 = vmax.f32 %v8968, 0.0
        %v9073 = vmax.f32 %v8969, 0.0
        %v9074 = vmax.f32 %v8970, 0.0
        %v9075 = vmax.f32 %v8971, 0.0
        %v9076 = vmax.f32 %v8972, 0.0
        %v9077 = vmax.f32 %v8973, 0.0
        %v9078 = vmax.f32 %v8974, 0.0
        %v9079 = vmax.f32 %v8975, 0.0
        %v9080 = vmax.f32 %v8976, 0.0
        %v9081 = vmax.f32 %v8977, 0.0
        %v9082 = vmax.f32 %v8978, 0.0
        %v9083 = vmax.f32 %v8979, 0.0
        %v9084 = vmax.f32 %v8980, 0.0
        %v9085 = vmax.f32 %v8981, 0.0
        %v9086 = vmax.f32 %v8982, 0.0
        %v9087 = vmax.f32 %v8983, 0.0
        %v9088 = vmax.f32 %v8984, 0.0
        %v9089 = vmax.f32 %v8985, 0.0
        %v9090 = vmax.f32 %v8986, 0.0
        %v9091 = vmax.f32 %v8987, 0.0
        %v9092 = vmax.f32 %v8988, 0.0
        %v9093 = vmax.f32 %v8989, 0.0
        %v9094 = vmax.f32 %v8990, 0.0
        %v9095 = vmax.f32 %v8991, 0.0
        %v9096 = vmax.f32 %v8992, 0.0
        %v9097 = vmax.f32 %v8993, 0.0
        %v9098 = vmax.f32 %v8994, 0.0
        %v9099 = vmax.f32 %v8995, 0.0
        %v9100 = vmax.f32 %v8996, 0.0
        %v9101 = vmax.f32 %v8997, 0.0
        %v9102 = vmax.f32 %v8998, 0.0
        %v9103 = vmax.f32 %v8999, 0.0
        %v9104 = vmax.f32 %v9000, 0.0
        %v9105 = vmax.f32 %v9001, 0.0
        %v9106 = vmax.f32 %v9002, 0.0
        %v9107 = vmax.f32 %v9003, 0.0
        %v9108 = vmax.f32 %v9004, 0.0
        %v9109 = vmax.f32 %v9005, 0.0
        %v9110 = vmax.f32 %v9006, 0.0
        %v9111 = vmax.f32 %v9007, 0.0
        %v9112 = vmax.f32 %v9008, 0.0
        %v9113 = vmax.f32 %v9009, 0.0
        %v9114 = vmax.f32 %v9010, 0.0
        %v9115 = vmax.f32 %v9011, 0.0
        %v9116 = vmax.f32 %v9012, 0.0
        %v9117 = vmax.f32 %v9013, 0.0
        %v9118 = vmax.f32 %v9014, 0.0
        %v9119 = vmax.f32 %v9015, 0.0
        %v9120 = vmax.f32 %v9016, 0.0
        %v9121 = vmax.f32 %v9017, 0.0
        %v9122 = vmax.f32 %v9018, 0.0
        %v9123 = vmax.f32 %v9019, 0.0
        %v9124 = vmax.f32 %v9020, 0.0
        %v9125 = vmax.f32 %v9021, 0.0
        %v9126 = vmax.f32 %v9022, 0.0
        %v9127 = vmax.f32 %v9023, 0.0
        %v9128 = vmax.f32 %v9024, 0.0
        %v9129 = vmax.f32 %v9025, 0.0
        %v9130 = vmax.f32 %v9026, 0.0
        %v9131 = vmax.f32 %v9027, 0.0
        %v9132 = vmax.f32 %v9028, 0.0
        %v9133 = vmax.f32 %v9029, 0.0
        %v9134 = vmax.f32 %v9030, 0.0
        %v9135 = vmax.f32 %v9031, 0.0
        %v9136 = vmax.f32 %v9032, 0.0
        %v9137 = vmax.f32 %v9033, 0.0
        %v9138 = vmax.f32 %v9034, 0.0
        %v9139 = vmax.f32 %v9035, 0.0
        %v9140 = vmax.f32 %v9036, 0.0
        %v9141 = vmax.f32 %v9037, 0.0
        %v9142 = vmax.f32 %v9038, 0.0
        %v9143 = vmax.f32 %v9039, 0.0
        %v9144 = vmax.f32 %v9040, 0.0
        %v9145 = vmax.f32 %v9041, 0.0
        %v9146 = vmax.f32 %v9042, 0.0
        %v9147 = vmax.f32 %v9043, 0.0
        %v9148 = vmax.f32 %v9044, 0.0
        %v9149 = vmax.f32 %v9045, 0.0
        %v9150 = vpack.c.bf16 %v9050, %v9046
        %v9151 = vpack.c.bf16 %v9051, %v9047
        %v9152 = vpack.c.bf16 %v9052, %v9048
        %v9153 = vpack.c.bf16 %v9053, %v9049
        %v9154 = vpack.c.bf16 %v9058, %v9054
        %v9155 = vpack.c.bf16 %v9059, %v9055
        %v9156 = vpack.c.bf16 %v9060, %v9056
        %v9157 = vpack.c.bf16 %v9061, %v9057
        %v9158 = vpack.c.bf16 %v9066, %v9062
        %v9159 = vpack.c.bf16 %v9067, %v9063
        %v9160 = vpack.c.bf16 %v9068, %v9064
        %v9161 = vpack.c.bf16 %v9069, %v9065
        %v9162 = vpack.c.bf16 %v9074, %v9070
        %v9163 = vpack.c.bf16 %v9075, %v9071
        %v9164 = vpack.c.bf16 %v9076, %v9072
        %v9165 = vpack.c.bf16 %v9077, %v9073
        %v9166 = vpack.c.bf16 %v9082, %v9078
        %v9167 = vpack.c.bf16 %v9083, %v9079
        %v9168 = vpack.c.bf16 %v9084, %v9080
        %v9169 = vpack.c.bf16 %v9085, %v9081
        %v9170 = vpack.c.bf16 %v9090, %v9086
        %v9171 = vpack.c.bf16 %v9091, %v9087
        %v9172 = vpack.c.bf16 %v9092, %v9088
        %v9173 = vpack.c.bf16 %v9093, %v9089
        %v9174 = vpack.c.bf16 %v9098, %v9094
        %v9175 = vpack.c.bf16 %v9099, %v9095
        %v9176 = vpack.c.bf16 %v9100, %v9096
        %v9177 = vpack.c.bf16 %v9101, %v9097
        %v9178 = vpack.c.bf16 %v9106, %v9102
        %v9179 = vpack.c.bf16 %v9107, %v9103
        %v9180 = vpack.c.bf16 %v9108, %v9104
        %v9181 = vpack.c.bf16 %v9109, %v9105
        %v9182 = vpack.c.bf16 %v9114, %v9110
        %v9183 = vpack.c.bf16 %v9115, %v9111
        %v9184 = vpack.c.bf16 %v9116, %v9112
        %v9185 = vpack.c.bf16 %v9117, %v9113
        %v9186 = vpack.c.bf16 %v9122, %v9118
        %v9187 = vpack.c.bf16 %v9123, %v9119
        %v9188 = vpack.c.bf16 %v9124, %v9120
        %v9189 = vpack.c.bf16 %v9125, %v9121
        %v9190 = vpack.c.bf16 %v9130, %v9126
        %v9191 = vpack.c.bf16 %v9131, %v9127
        %v9192 = vpack.c.bf16 %v9132, %v9128
        %v9193 = vpack.c.bf16 %v9133, %v9129
        %v9194 = vpack.c.bf16 %v9138, %v9134
        %v9195 = vpack.c.bf16 %v9139, %v9135
        %v9196 = vpack.c.bf16 %v9140, %v9136
        %v9197 = vpack.c.bf16 %v9141, %v9137
        %v9198 = vpack.c.bf16 %v9146, %v9142
        %v9199 = vpack.c.bf16 %v9147, %v9143
        %v9200 = vpack.c.bf16 %v9148, %v9144
        %v9201 = vpack.c.bf16 %v9149, %v9145
        %v9202 = vld [vmem:[#allocation4] sm:$0xff]
        %v9203 = vld [vmem:[#allocation4 + $0x8] sm:$0xff]
        %v9204 = vld [vmem:[#allocation4 + $0x10] sm:$0xff]
        %v9205 = vld [vmem:[#allocation4 + $0x18] sm:$0xff]
        %v9206 = vld [vmem:[#allocation4 + $0x20] sm:$0xff]
        %v9207 = vld [vmem:[#allocation4 + $0x28] sm:$0xff]
        %v9208 = vld [vmem:[#allocation4 + $0x30] sm:$0xff]
        %v9209 = vld [vmem:[#allocation4 + $0x38] sm:$0xff]
        %v9210 = vld [vmem:[#allocation4 + $0x40] sm:$0xff]
        %v9211 = vld [vmem:[#allocation4 + $0x48] sm:$0xff]
        %v9212 = vld [vmem:[#allocation4 + $0x50] sm:$0xff]
        %v9213 = vld [vmem:[#allocation4 + $0x58] sm:$0xff]
        %v9214 = vld [vmem:[#allocation4 + $0x60] sm:$0xff]
        %v9215 = vld [vmem:[#allocation4 + $0x68] sm:$0xff]
        %v9216 = vld [vmem:[#allocation4 + $0x70] sm:$0xff]
        %v9217 = vld [vmem:[#allocation4 + $0x78] sm:$0xff]
        %v9218 = vld [vmem:[#allocation4 + $0x80] sm:$0xff]
        %v9219 = vld [vmem:[#allocation4 + $0x88] sm:$0xff]
        %v9220 = vld [vmem:[#allocation4 + $0x90] sm:$0xff]
        %v9221 = vld [vmem:[#allocation4 + $0x98] sm:$0xff]
        %v9222 = vld [vmem:[#allocation4 + $0xa0] sm:$0xff]
        %v9223 = vld [vmem:[#allocation4 + $0xa8] sm:$0xff]
        %v9224 = vld [vmem:[#allocation4 + $0xb0] sm:$0xff]
        %v9225 = vld [vmem:[#allocation4 + $0xb8] sm:$0xff]
        %v9226 = vld [vmem:[#allocation4 + $0xc0] sm:$0xff]
        %v9227 = vld [vmem:[#allocation4 + $0xc8] sm:$0xff]
        %v9228 = vld [vmem:[#allocation4 + $0xd0] sm:$0xff]
        %v9229 = vld [vmem:[#allocation4 + $0xd8] sm:$0xff]
        %v9230 = vld [vmem:[#allocation4 + $0xe0] sm:$0xff]
        %v9231 = vld [vmem:[#allocation4 + $0xe8] sm:$0xff]
        %v9232 = vld [vmem:[#allocation4 + $0xf0] sm:$0xff]
        %v9233 = vld [vmem:[#allocation4 + $0xf8] sm:$0xff]
        %v9234 = vld [vmem:[#allocation4 + $0x100] sm:$0xff]
        %v9235 = vld [vmem:[#allocation4 + $0x108] sm:$0xff]
        %v9236 = vld [vmem:[#allocation4 + $0x110] sm:$0xff]
        %v9237 = vld [vmem:[#allocation4 + $0x118] sm:$0xff]
        %v9238 = vld [vmem:[#allocation4 + $0x120] sm:$0xff]
        %v9239 = vld [vmem:[#allocation4 + $0x128] sm:$0xff]
        %v9240 = vld [vmem:[#allocation4 + $0x130] sm:$0xff]
        %v9241 = vld [vmem:[#allocation4 + $0x138] sm:$0xff]
        %v9242 = vld [vmem:[#allocation4 + $0x140] sm:$0xff]
        %v9243 = vld [vmem:[#allocation4 + $0x148] sm:$0xff]
        %v9244 = vld [vmem:[#allocation4 + $0x150] sm:$0xff]
        %v9245 = vld [vmem:[#allocation4 + $0x158] sm:$0xff]
        %v9246 = vld [vmem:[#allocation4 + $0x160] sm:$0xff]
        %v9247 = vld [vmem:[#allocation4 + $0x168] sm:$0xff]
        %v9248 = vld [vmem:[#allocation4 + $0x170] sm:$0xff]
        %v9249 = vld [vmem:[#allocation4 + $0x178] sm:$0xff]
        %v9250 = vld [vmem:[#allocation4 + $0x180] sm:$0xff]
        %v9251 = vld [vmem:[#allocation4 + $0x188] sm:$0xff]
        %v9252 = vld [vmem:[#allocation4 + $0x190] sm:$0xff]
        %v9253 = vld [vmem:[#allocation4 + $0x198] sm:$0xff]
        %v9254 = vld [vmem:[#allocation4 + $0x1a0] sm:$0xff]
        %v9255 = vld [vmem:[#allocation4 + $0x1a8] sm:$0xff]
        %v9256 = vld [vmem:[#allocation4 + $0x1b0] sm:$0xff]
        %v9257 = vld [vmem:[#allocation4 + $0x1b8] sm:$0xff]
        %v9258 = vld [vmem:[#allocation4 + $0x1c0] sm:$0xff]
        %v9259 = vld [vmem:[#allocation4 + $0x1c8] sm:$0xff]
        %v9260 = vld [vmem:[#allocation4 + $0x1d0] sm:$0xff]
        %v9261 = vld [vmem:[#allocation4 + $0x1d8] sm:$0xff]
        %v9262 = vld [vmem:[#allocation4 + $0x1e0] sm:$0xff]
        %v9263 = vld [vmem:[#allocation4 + $0x1e8] sm:$0xff]
        %v9264 = vld [vmem:[#allocation4 + $0x1f0] sm:$0xff]
        %v9265 = vld [vmem:[#allocation4 + $0x1f8] sm:$0xff]
        %v9330 = vunpack.c.l.b16 %v9202
        %v9331 = vunpack.c.h.b16 %v9202
        %v9332 = vunpack.c.l.b16 %v9203
        %v9333 = vunpack.c.h.b16 %v9203
        %v9334 = vunpack.c.l.b16 %v9204
        %v9335 = vunpack.c.h.b16 %v9204
        %v9336 = vunpack.c.l.b16 %v9205
        %v9337 = vunpack.c.h.b16 %v9205
        %v9338 = vunpack.c.l.b16 %v9206
        %v9339 = vunpack.c.h.b16 %v9206
        %v9340 = vunpack.c.l.b16 %v9207
        %v9341 = vunpack.c.h.b16 %v9207
        %v9342 = vunpack.c.l.b16 %v9208
        %v9343 = vunpack.c.h.b16 %v9208
        %v9344 = vunpack.c.l.b16 %v9209
        %v9345 = vunpack.c.h.b16 %v9209
        %v9346 = vunpack.c.l.b16 %v9210
        %v9347 = vunpack.c.h.b16 %v9210
        %v9348 = vunpack.c.l.b16 %v9211
        %v9349 = vunpack.c.h.b16 %v9211
        %v9350 = vunpack.c.l.b16 %v9212
        %v9351 = vunpack.c.h.b16 %v9212
        %v9352 = vunpack.c.l.b16 %v9213
        %v9353 = vunpack.c.h.b16 %v9213
        %v9354 = vunpack.c.l.b16 %v9214
        %v9355 = vunpack.c.h.b16 %v9214
        %v9356 = vunpack.c.l.b16 %v9215
        %v9357 = vunpack.c.h.b16 %v9215
        %v9358 = vunpack.c.l.b16 %v9216
        %v9359 = vunpack.c.h.b16 %v9216
        %v9360 = vunpack.c.l.b16 %v9217
        %v9361 = vunpack.c.h.b16 %v9217
        %v9362 = vunpack.c.l.b16 %v9218
        %v9363 = vunpack.c.h.b16 %v9218
        %v9364 = vunpack.c.l.b16 %v9219
        %v9365 = vunpack.c.h.b16 %v9219
        %v9366 = vunpack.c.l.b16 %v9220
        %v9367 = vunpack.c.h.b16 %v9220
        %v9368 = vunpack.c.l.b16 %v9221
        %v9369 = vunpack.c.h.b16 %v9221
        %v9370 = vunpack.c.l.b16 %v9222
        %v9371 = vunpack.c.h.b16 %v9222
        %v9372 = vunpack.c.l.b16 %v9223
        %v9373 = vunpack.c.h.b16 %v9223
        %v9374 = vunpack.c.l.b16 %v9224
        %v9375 = vunpack.c.h.b16 %v9224
        %v9376 = vunpack.c.l.b16 %v9225
        %v9377 = vunpack.c.h.b16 %v9225
        %v9378 = vunpack.c.l.b16 %v9226
        %v9379 = vunpack.c.h.b16 %v9226
        %v9380 = vunpack.c.l.b16 %v9227
        %v9381 = vunpack.c.h.b16 %v9227
        %v9382 = vunpack.c.l.b16 %v9228
        %v9383 = vunpack.c.h.b16 %v9228
        %v9384 = vunpack.c.l.b16 %v9229
        %v9385 = vunpack.c.h.b16 %v9229
        %v9386 = vunpack.c.l.b16 %v9230
        %v9387 = vunpack.c.h.b16 %v9230
        %v9388 = vunpack.c.l.b16 %v9231
        %v9389 = vunpack.c.h.b16 %v9231
        %v9390 = vunpack.c.l.b16 %v9232
        %v9391 = vunpack.c.h.b16 %v9232
        %v9392 = vunpack.c.l.b16 %v9233
        %v9393 = vunpack.c.h.b16 %v9233
        %v9394 = vunpack.c.l.b16 %v9234
        %v9395 = vunpack.c.h.b16 %v9234
        %v9396 = vunpack.c.l.b16 %v9235
        %v9397 = vunpack.c.h.b16 %v9235
        %v9398 = vunpack.c.l.b16 %v9236
        %v9399 = vunpack.c.h.b16 %v9236
        %v9400 = vunpack.c.l.b16 %v9237
        %v9401 = vunpack.c.h.b16 %v9237
        %v9402 = vunpack.c.l.b16 %v9238
        %v9403 = vunpack.c.h.b16 %v9238
        %v9404 = vunpack.c.l.b16 %v9239
        %v9405 = vunpack.c.h.b16 %v9239
        %v9406 = vunpack.c.l.b16 %v9240
        %v9407 = vunpack.c.h.b16 %v9240
        %v9408 = vunpack.c.l.b16 %v9241
        %v9409 = vunpack.c.h.b16 %v9241
        %v9410 = vunpack.c.l.b16 %v9242
        %v9411 = vunpack.c.h.b16 %v9242
        %v9412 = vunpack.c.l.b16 %v9243
        %v9413 = vunpack.c.h.b16 %v9243
        %v9414 = vunpack.c.l.b16 %v9244
        %v9415 = vunpack.c.h.b16 %v9244
        %v9416 = vunpack.c.l.b16 %v9245
        %v9417 = vunpack.c.h.b16 %v9245
        %v9418 = vunpack.c.l.b16 %v9246
        %v9419 = vunpack.c.h.b16 %v9246
        %v9420 = vunpack.c.l.b16 %v9247
        %v9421 = vunpack.c.h.b16 %v9247
        %v9422 = vunpack.c.l.b16 %v9248
        %v9423 = vunpack.c.h.b16 %v9248
        %v9424 = vunpack.c.l.b16 %v9249
        %v9425 = vunpack.c.h.b16 %v9249
        %v9426 = vunpack.c.l.b16 %v9250
        %v9427 = vunpack.c.h.b16 %v9250
        %v9428 = vunpack.c.l.b16 %v9251
        %v9429 = vunpack.c.h.b16 %v9251
        %v9430 = vunpack.c.l.b16 %v9252
        %v9431 = vunpack.c.h.b16 %v9252
        %v9432 = vunpack.c.l.b16 %v9253
        %v9433 = vunpack.c.h.b16 %v9253
        %v9434 = vunpack.c.l.b16 %v9254
        %v9435 = vunpack.c.h.b16 %v9254
        %v9436 = vunpack.c.l.b16 %v9255
        %v9437 = vunpack.c.h.b16 %v9255
        %v9438 = vunpack.c.l.b16 %v9256
        %v9439 = vunpack.c.h.b16 %v9256
        %v9440 = vunpack.c.l.b16 %v9257
        %v9441 = vunpack.c.h.b16 %v9257
        %v9442 = vunpack.c.l.b16 %v9258
        %v9443 = vunpack.c.h.b16 %v9258
        %v9444 = vunpack.c.l.b16 %v9259
        %v9445 = vunpack.c.h.b16 %v9259
        %v9446 = vunpack.c.l.b16 %v9260
        %v9447 = vunpack.c.h.b16 %v9260
        %v9448 = vunpack.c.l.b16 %v9261
        %v9449 = vunpack.c.h.b16 %v9261
        %v9450 = vunpack.c.l.b16 %v9262
        %v9451 = vunpack.c.h.b16 %v9262
        %v9452 = vunpack.c.l.b16 %v9263
        %v9453 = vunpack.c.h.b16 %v9263
        %v9454 = vunpack.c.l.b16 %v9264
        %v9455 = vunpack.c.h.b16 %v9264
        %v9456 = vunpack.c.l.b16 %v9265
        %v9457 = vunpack.c.h.b16 %v9265
        %v9458 = vpack.c.b16 %v9332, %v9330
        %v9459 = vpack.c.b16 %v9333, %v9331
        %v9460 = vpack.c.b16 %v9336, %v9334
        %v9461 = vpack.c.b16 %v9337, %v9335
        %v9462 = vpack.c.b16 %v9340, %v9338
        %v9463 = vpack.c.b16 %v9341, %v9339
        %v9464 = vpack.c.b16 %v9344, %v9342
        %v9465 = vpack.c.b16 %v9345, %v9343
        %v9466 = vpack.c.b16 %v9348, %v9346
        %v9467 = vpack.c.b16 %v9349, %v9347
        %v9468 = vpack.c.b16 %v9352, %v9350
        %v9469 = vpack.c.b16 %v9353, %v9351
        %v9470 = vpack.c.b16 %v9356, %v9354
        %v9471 = vpack.c.b16 %v9357, %v9355
        %v9472 = vpack.c.b16 %v9360, %v9358
        %v9473 = vpack.c.b16 %v9361, %v9359
        %v9474 = vpack.c.b16 %v9364, %v9362
        %v9475 = vpack.c.b16 %v9365, %v9363
        %v9476 = vpack.c.b16 %v9368, %v9366
        %v9477 = vpack.c.b16 %v9369, %v9367
        %v9478 = vpack.c.b16 %v9372, %v9370
        %v9479 = vpack.c.b16 %v9373, %v9371
        %v9480 = vpack.c.b16 %v9376, %v9374
        %v9481 = vpack.c.b16 %v9377, %v9375
        %v9482 = vpack.c.b16 %v9380, %v9378
        %v9483 = vpack.c.b16 %v9381, %v9379
        %v9484 = vpack.c.b16 %v9384, %v9382
        %v9485 = vpack.c.b16 %v9385, %v9383
        %v9486 = vpack.c.b16 %v9388, %v9386
        %v9487 = vpack.c.b16 %v9389, %v9387
        %v9488 = vpack.c.b16 %v9392, %v9390
        %v9489 = vpack.c.b16 %v9393, %v9391
        %v9490 = vpack.c.b16 %v9396, %v9394
        %v9491 = vpack.c.b16 %v9397, %v9395
        %v9492 = vpack.c.b16 %v9400, %v9398
        %v9493 = vpack.c.b16 %v9401, %v9399
        %v9494 = vpack.c.b16 %v9404, %v9402
        %v9495 = vpack.c.b16 %v9405, %v9403
        %v9496 = vpack.c.b16 %v9408, %v9406
        %v9497 = vpack.c.b16 %v9409, %v9407
        %v9498 = vpack.c.b16 %v9412, %v9410
        %v9499 = vpack.c.b16 %v9413, %v9411
        %v9500 = vpack.c.b16 %v9416, %v9414
        %v9501 = vpack.c.b16 %v9417, %v9415
        %v9502 = vpack.c.b16 %v9420, %v9418
        %v9503 = vpack.c.b16 %v9421, %v9419
        %v9504 = vpack.c.b16 %v9424, %v9422
        %v9505 = vpack.c.b16 %v9425, %v9423
        %v9506 = vpack.c.b16 %v9428, %v9426
        %v9507 = vpack.c.b16 %v9429, %v9427
        %v9508 = vpack.c.b16 %v9432, %v9430
        %v9509 = vpack.c.b16 %v9433, %v9431
        %v9510 = vpack.c.b16 %v9436, %v9434
        %v9511 = vpack.c.b16 %v9437, %v9435
        %v9512 = vpack.c.b16 %v9440, %v9438
        %v9513 = vpack.c.b16 %v9441, %v9439
        %v9514 = vpack.c.b16 %v9444, %v9442
        %v9515 = vpack.c.b16 %v9445, %v9443
        %v9516 = vpack.c.b16 %v9448, %v9446
        %v9517 = vpack.c.b16 %v9449, %v9447
        %v9518 = vpack.c.b16 %v9452, %v9450
        %v9519 = vpack.c.b16 %v9453, %v9451
        %v9520 = vpack.c.b16 %v9456, %v9454
        %v9521 = vpack.c.b16 %v9457, %v9455
        %9586 = vmatpush.bf16.msra.mxu0 %v9472
        %9587 = vmatpush.bf16.msra.mxu0 %v9470
        %9588 = vmatpush.bf16.msra.mxu0 %v9468
        %9589 = vmatpush.bf16.msra.mxu0 %v9466
        %9590 = vmatpush.bf16.msra.mxu0 %v9464
        %9591 = vmatpush.bf16.msra.mxu0 %v9462
        %9592 = vmatpush.bf16.msra.mxu0 %v9460
        %9593 = vmatpush.bf16.msra.mxu0 %v9458
        %9594 = vmatmul.bf16.gmra.mxu0 %v9150
        %v9595 = vpop.f32.mrf.mxu0
        %v9596 = vadd.f32 0.0, %v9595
        %v9597 = vpop.f32.mrf.mxu0
        %v9598 = vadd.f32 0.0, %v9597
        %9599 = vmatmul.bf16.gmra.mxu0 %v9154
        %v9600 = vpop.f32.mrf.mxu0
        %v9601 = vadd.f32 0.0, %v9600
        %v9602 = vpop.f32.mrf.mxu0
        %v9603 = vadd.f32 0.0, %v9602
        %9604 = vmatmul.bf16.gmra.mxu0 %v9158
        %v9605 = vpop.f32.mrf.mxu0
        %v9606 = vadd.f32 0.0, %v9605
        %v9607 = vpop.f32.mrf.mxu0
        %v9608 = vadd.f32 0.0, %v9607
        %9609 = vmatmul.bf16.gmra.mxu0 %v9162
        %v9610 = vpop.f32.mrf.mxu0
        %v9611 = vadd.f32 0.0, %v9610
        %v9612 = vpop.f32.mrf.mxu0
        %v9613 = vadd.f32 0.0, %v9612
        %9614 = vmatmul.bf16.gmra.mxu0 %v9166
        %v9615 = vpop.f32.mrf.mxu0
        %v9616 = vadd.f32 0.0, %v9615
        %v9617 = vpop.f32.mrf.mxu0
        %v9618 = vadd.f32 0.0, %v9617
        %9619 = vmatmul.bf16.gmra.mxu0 %v9170
        %v9620 = vpop.f32.mrf.mxu0
        %v9621 = vadd.f32 0.0, %v9620
        %v9622 = vpop.f32.mrf.mxu0
        %v9623 = vadd.f32 0.0, %v9622
        %9624 = vmatmul.bf16.gmra.mxu0 %v9174
        %v9625 = vpop.f32.mrf.mxu0
        %v9626 = vadd.f32 0.0, %v9625
        %v9627 = vpop.f32.mrf.mxu0
        %v9628 = vadd.f32 0.0, %v9627
        %9629 = vmatmul.bf16.gmra.mxu0 %v9178
        %v9630 = vpop.f32.mrf.mxu0
        %v9631 = vadd.f32 0.0, %v9630
        %v9632 = vpop.f32.mrf.mxu0
        %v9633 = vadd.f32 0.0, %v9632
        %9634 = vmatmul.bf16.gmra.mxu0 %v9182
        %v9635 = vpop.f32.mrf.mxu0
        %v9636 = vadd.f32 0.0, %v9635
        %v9637 = vpop.f32.mrf.mxu0
        %v9638 = vadd.f32 0.0, %v9637
        %9639 = vmatmul.bf16.gmra.mxu0 %v9186
        %v9640 = vpop.f32.mrf.mxu0
        %v9641 = vadd.f32 0.0, %v9640
        %v9642 = vpop.f32.mrf.mxu0
        %v9643 = vadd.f32 0.0, %v9642
        %9644 = vmatmul.bf16.gmra.mxu0 %v9190
        %v9645 = vpop.f32.mrf.mxu0
        %v9646 = vadd.f32 0.0, %v9645
        %v9647 = vpop.f32.mrf.mxu0
        %v9648 = vadd.f32 0.0, %v9647
        %9649 = vmatmul.bf16.gmra.mxu0 %v9194
        %v9650 = vpop.f32.mrf.mxu0
        %v9651 = vadd.f32 0.0, %v9650
        %v9652 = vpop.f32.mrf.mxu0
        %v9653 = vadd.f32 0.0, %v9652
        %9654 = vmatmul.bf16.gmra.mxu0 %v9198
        %v9655 = vpop.f32.mrf.mxu0
        %v9656 = vadd.f32 0.0, %v9655
        %v9657 = vpop.f32.mrf.mxu0
        %v9658 = vadd.f32 0.0, %v9657
        %9659 = vdwg.mxu0
        %9660 = vmatpush.bf16.msra.mxu0 %v9488
        %9661 = vmatpush.bf16.msra.mxu0 %v9486
        %9662 = vmatpush.bf16.msra.mxu0 %v9484
        %9663 = vmatpush.bf16.msra.mxu0 %v9482
        %9664 = vmatpush.bf16.msra.mxu0 %v9480
        %9665 = vmatpush.bf16.msra.mxu0 %v9478
        %9666 = vmatpush.bf16.msra.mxu0 %v9476
        %9667 = vmatpush.bf16.msra.mxu0 %v9474
        %9668 = vmatmul.bf16.gmra.mxu0 %v9151
        %v9669 = vpop.f32.mrf.mxu0
        %v9670 = vadd.f32 %v9596, %v9669
        %v9671 = vpop.f32.mrf.mxu0
        %v9672 = vadd.f32 %v9598, %v9671
        %9673 = vmatmul.bf16.gmra.mxu0 %v9155
        %v9674 = vpop.f32.mrf.mxu0
        %v9675 = vadd.f32 %v9601, %v9674
        %v9676 = vpop.f32.mrf.mxu0
        %v9677 = vadd.f32 %v9603, %v9676
        %9678 = vmatmul.bf16.gmra.mxu0 %v9159
        %v9679 = vpop.f32.mrf.mxu0
        %v9680 = vadd.f32 %v9606, %v9679
        %v9681 = vpop.f32.mrf.mxu0
        %v9682 = vadd.f32 %v9608, %v9681
        %9683 = vmatmul.bf16.gmra.mxu0 %v9163
        %v9684 = vpop.f32.mrf.mxu0
        %v9685 = vadd.f32 %v9611, %v9684
        %v9686 = vpop.f32.mrf.mxu0
        %v9687 = vadd.f32 %v9613, %v9686
        %9688 = vmatmul.bf16.gmra.mxu0 %v9167
        %v9689 = vpop.f32.mrf.mxu0
        %v9690 = vadd.f32 %v9616, %v9689
        %v9691 = vpop.f32.mrf.mxu0
        %v9692 = vadd.f32 %v9618, %v9691
        %9693 = vmatmul.bf16.gmra.mxu0 %v9171
        %v9694 = vpop.f32.mrf.mxu0
        %v9695 = vadd.f32 %v9621, %v9694
        %v9696 = vpop.f32.mrf.mxu0
        %v9697 = vadd.f32 %v9623, %v9696
        %9698 = vmatmul.bf16.gmra.mxu0 %v9175
        %v9699 = vpop.f32.mrf.mxu0
        %v9700 = vadd.f32 %v9626, %v9699
        %v9701 = vpop.f32.mrf.mxu0
        %v9702 = vadd.f32 %v9628, %v9701
        %9703 = vmatmul.bf16.gmra.mxu0 %v9179
        %v9704 = vpop.f32.mrf.mxu0
        %v9705 = vadd.f32 %v9631, %v9704
        %v9706 = vpop.f32.mrf.mxu0
        %v9707 = vadd.f32 %v9633, %v9706
        %9708 = vmatmul.bf16.gmra.mxu0 %v9183
        %v9709 = vpop.f32.mrf.mxu0
        %v9710 = vadd.f32 %v9636, %v9709
        %v9711 = vpop.f32.mrf.mxu0
        %v9712 = vadd.f32 %v9638, %v9711
        %9713 = vmatmul.bf16.gmra.mxu0 %v9187
        %v9714 = vpop.f32.mrf.mxu0
        %v9715 = vadd.f32 %v9641, %v9714
        %v9716 = vpop.f32.mrf.mxu0
        %v9717 = vadd.f32 %v9643, %v9716
        %9718 = vmatmul.bf16.gmra.mxu0 %v9191
        %v9719 = vpop.f32.mrf.mxu0
        %v9720 = vadd.f32 %v9646, %v9719
        %v9721 = vpop.f32.mrf.mxu0
        %v9722 = vadd.f32 %v9648, %v9721
        %9723 = vmatmul.bf16.gmra.mxu0 %v9195
        %v9724 = vpop.f32.mrf.mxu0
        %v9725 = vadd.f32 %v9651, %v9724
        %v9726 = vpop.f32.mrf.mxu0
        %v9727 = vadd.f32 %v9653, %v9726
        %9728 = vmatmul.bf16.gmra.mxu0 %v9199
        %v9729 = vpop.f32.mrf.mxu0
        %v9730 = vadd.f32 %v9656, %v9729
        %v9731 = vpop.f32.mrf.mxu0
        %v9732 = vadd.f32 %v9658, %v9731
        %9733 = vdwg.mxu0
        %9734 = vmatpush.bf16.msra.mxu0 %v9504
        %9735 = vmatpush.bf16.msra.mxu0 %v9502
        %9736 = vmatpush.bf16.msra.mxu0 %v9500
        %9737 = vmatpush.bf16.msra.mxu0 %v9498
        %9738 = vmatpush.bf16.msra.mxu0 %v9496
        %9739 = vmatpush.bf16.msra.mxu0 %v9494
        %9740 = vmatpush.bf16.msra.mxu0 %v9492
        %9741 = vmatpush.bf16.msra.mxu0 %v9490
        %9742 = vmatmul.bf16.gmra.mxu0 %v9152
        %v9743 = vpop.f32.mrf.mxu0
        %v9744 = vadd.f32 %v9670, %v9743
        %v9745 = vpop.f32.mrf.mxu0
        %v9746 = vadd.f32 %v9672, %v9745
        %9747 = vmatmul.bf16.gmra.mxu0 %v9156
        %v9748 = vpop.f32.mrf.mxu0
        %v9749 = vadd.f32 %v9675, %v9748
        %v9750 = vpop.f32.mrf.mxu0
        %v9751 = vadd.f32 %v9677, %v9750
        %9752 = vmatmul.bf16.gmra.mxu0 %v9160
        %v9753 = vpop.f32.mrf.mxu0
        %v9754 = vadd.f32 %v9680, %v9753
        %v9755 = vpop.f32.mrf.mxu0
        %v9756 = vadd.f32 %v9682, %v9755
        %9757 = vmatmul.bf16.gmra.mxu0 %v9164
        %v9758 = vpop.f32.mrf.mxu0
        %v9759 = vadd.f32 %v9685, %v9758
        %v9760 = vpop.f32.mrf.mxu0
        %v9761 = vadd.f32 %v9687, %v9760
        %9762 = vmatmul.bf16.gmra.mxu0 %v9168
        %v9763 = vpop.f32.mrf.mxu0
        %v9764 = vadd.f32 %v9690, %v9763
        %v9765 = vpop.f32.mrf.mxu0
        %v9766 = vadd.f32 %v9692, %v9765
        %9767 = vmatmul.bf16.gmra.mxu0 %v9172
        %v9768 = vpop.f32.mrf.mxu0
        %v9769 = vadd.f32 %v9695, %v9768
        %v9770 = vpop.f32.mrf.mxu0
        %v9771 = vadd.f32 %v9697, %v9770
        %9772 = vmatmul.bf16.gmra.mxu0 %v9176
        %v9773 = vpop.f32.mrf.mxu0
        %v9774 = vadd.f32 %v9700, %v9773
        %v9775 = vpop.f32.mrf.mxu0
        %v9776 = vadd.f32 %v9702, %v9775
        %9777 = vmatmul.bf16.gmra.mxu0 %v9180
        %v9778 = vpop.f32.mrf.mxu0
        %v9779 = vadd.f32 %v9705, %v9778
        %v9780 = vpop.f32.mrf.mxu0
        %v9781 = vadd.f32 %v9707, %v9780
        %9782 = vmatmul.bf16.gmra.mxu0 %v9184
        %v9783 = vpop.f32.mrf.mxu0
        %v9784 = vadd.f32 %v9710, %v9783
        %v9785 = vpop.f32.mrf.mxu0
        %v9786 = vadd.f32 %v9712, %v9785
        %9787 = vmatmul.bf16.gmra.mxu0 %v9188
        %v9788 = vpop.f32.mrf.mxu0
        %v9789 = vadd.f32 %v9715, %v9788
        %v9790 = vpop.f32.mrf.mxu0
        %v9791 = vadd.f32 %v9717, %v9790
        %9792 = vmatmul.bf16.gmra.mxu0 %v9192
        %v9793 = vpop.f32.mrf.mxu0
        %v9794 = vadd.f32 %v9720, %v9793
        %v9795 = vpop.f32.mrf.mxu0
        %v9796 = vadd.f32 %v9722, %v9795
        %9797 = vmatmul.bf16.gmra.mxu0 %v9196
        %v9798 = vpop.f32.mrf.mxu0
        %v9799 = vadd.f32 %v9725, %v9798
        %v9800 = vpop.f32.mrf.mxu0
        %v9801 = vadd.f32 %v9727, %v9800
        %9802 = vmatmul.bf16.gmra.mxu0 %v9200
        %v9803 = vpop.f32.mrf.mxu0
        %v9804 = vadd.f32 %v9730, %v9803
        %v9805 = vpop.f32.mrf.mxu0
        %v9806 = vadd.f32 %v9732, %v9805
        %9807 = vdwg.mxu0
        %9808 = vmatpush.bf16.msra.mxu0 %v9520
        %9809 = vmatpush.bf16.msra.mxu0 %v9518
        %9810 = vmatpush.bf16.msra.mxu0 %v9516
        %9811 = vmatpush.bf16.msra.mxu0 %v9514
        %9812 = vmatpush.bf16.msra.mxu0 %v9512
        %9813 = vmatpush.bf16.msra.mxu0 %v9510
        %9814 = vmatpush.bf16.msra.mxu0 %v9508
        %9815 = vmatpush.bf16.msra.mxu0 %v9506
        %9816 = vmatmul.bf16.gmra.mxu0 %v9153
        %v9817 = vpop.f32.mrf.mxu0
        %v9818 = vadd.f32 %v9744, %v9817
        %v9819 = vpop.f32.mrf.mxu0
        %v9820 = vadd.f32 %v9746, %v9819
        %9821 = vmatmul.bf16.gmra.mxu0 %v9157
        %v9822 = vpop.f32.mrf.mxu0
        %v9823 = vadd.f32 %v9749, %v9822
        %v9824 = vpop.f32.mrf.mxu0
        %v9825 = vadd.f32 %v9751, %v9824
        %9826 = vmatmul.bf16.gmra.mxu0 %v9161
        %v9827 = vpop.f32.mrf.mxu0
        %v9828 = vadd.f32 %v9754, %v9827
        %v9829 = vpop.f32.mrf.mxu0
        %v9830 = vadd.f32 %v9756, %v9829
        %9831 = vmatmul.bf16.gmra.mxu0 %v9165
        %v9832 = vpop.f32.mrf.mxu0
        %v9833 = vadd.f32 %v9759, %v9832
        %v9834 = vpop.f32.mrf.mxu0
        %v9835 = vadd.f32 %v9761, %v9834
        %9836 = vmatmul.bf16.gmra.mxu0 %v9169
        %v9837 = vpop.f32.mrf.mxu0
        %v9838 = vadd.f32 %v9764, %v9837
        %v9839 = vpop.f32.mrf.mxu0
        %v9840 = vadd.f32 %v9766, %v9839
        %9841 = vmatmul.bf16.gmra.mxu0 %v9173
        %v9842 = vpop.f32.mrf.mxu0
        %v9843 = vadd.f32 %v9769, %v9842
        %v9844 = vpop.f32.mrf.mxu0
        %v9845 = vadd.f32 %v9771, %v9844
        %9846 = vmatmul.bf16.gmra.mxu0 %v9177
        %v9847 = vpop.f32.mrf.mxu0
        %v9848 = vadd.f32 %v9774, %v9847
        %v9849 = vpop.f32.mrf.mxu0
        %v9850 = vadd.f32 %v9776, %v9849
        %9851 = vmatmul.bf16.gmra.mxu0 %v9181
        %v9852 = vpop.f32.mrf.mxu0
        %v9853 = vadd.f32 %v9779, %v9852
        %v9854 = vpop.f32.mrf.mxu0
        %v9855 = vadd.f32 %v9781, %v9854
        %9856 = vmatmul.bf16.gmra.mxu0 %v9185
        %v9857 = vpop.f32.mrf.mxu0
        %v9858 = vadd.f32 %v9784, %v9857
        %v9859 = vpop.f32.mrf.mxu0
        %v9860 = vadd.f32 %v9786, %v9859
        %9861 = vmatmul.bf16.gmra.mxu0 %v9189
        %v9862 = vpop.f32.mrf.mxu0
        %v9863 = vadd.f32 %v9789, %v9862
        %v9864 = vpop.f32.mrf.mxu0
        %v9865 = vadd.f32 %v9791, %v9864
        %9866 = vmatmul.bf16.gmra.mxu0 %v9193
        %v9867 = vpop.f32.mrf.mxu0
        %v9868 = vadd.f32 %v9794, %v9867
        %v9869 = vpop.f32.mrf.mxu0
        %v9870 = vadd.f32 %v9796, %v9869
        %9871 = vmatmul.bf16.gmra.mxu0 %v9197
        %v9872 = vpop.f32.mrf.mxu0
        %v9873 = vadd.f32 %v9799, %v9872
        %v9874 = vpop.f32.mrf.mxu0
        %v9875 = vadd.f32 %v9801, %v9874
        %9876 = vmatmul.bf16.gmra.mxu0 %v9201
        %v9877 = vpop.f32.mrf.mxu0
        %v9878 = vadd.f32 %v9804, %v9877
        %v9879 = vpop.f32.mrf.mxu0
        %v9880 = vadd.f32 %v9806, %v9879
        %9881 = vdwg.mxu0
        %9882 = vmatpush.bf16.msra.mxu0 %v9473
        %9883 = vmatpush.bf16.msra.mxu0 %v9471
        %9884 = vmatpush.bf16.msra.mxu0 %v9469
        %9885 = vmatpush.bf16.msra.mxu0 %v9467
        %9886 = vmatpush.bf16.msra.mxu0 %v9465
        %9887 = vmatpush.bf16.msra.mxu0 %v9463
        %9888 = vmatpush.bf16.msra.mxu0 %v9461
        %9889 = vmatpush.bf16.msra.mxu0 %v9459
        %9890 = vmatmul.bf16.gmra.mxu0 %v9150
        %v9891 = vpop.f32.mrf.mxu0
        %v9892 = vadd.f32 0.0, %v9891
        %v9893 = vpop.f32.mrf.mxu0
        %v9894 = vadd.f32 0.0, %v9893
        %9895 = vmatmul.bf16.gmra.mxu0 %v9154
        %v9896 = vpop.f32.mrf.mxu0
        %v9897 = vadd.f32 0.0, %v9896
        %v9898 = vpop.f32.mrf.mxu0
        %v9899 = vadd.f32 0.0, %v9898
        %9900 = vmatmul.bf16.gmra.mxu0 %v9158
        %v9901 = vpop.f32.mrf.mxu0
        %v9902 = vadd.f32 0.0, %v9901
        %v9903 = vpop.f32.mrf.mxu0
        %v9904 = vadd.f32 0.0, %v9903
        %9905 = vmatmul.bf16.gmra.mxu0 %v9162
        %v9906 = vpop.f32.mrf.mxu0
        %v9907 = vadd.f32 0.0, %v9906
        %v9908 = vpop.f32.mrf.mxu0
        %v9909 = vadd.f32 0.0, %v9908
        %9910 = vmatmul.bf16.gmra.mxu0 %v9166
        %v9911 = vpop.f32.mrf.mxu0
        %v9912 = vadd.f32 0.0, %v9911
        %v9913 = vpop.f32.mrf.mxu0
        %v9914 = vadd.f32 0.0, %v9913
        %9915 = vmatmul.bf16.gmra.mxu0 %v9170
        %v9916 = vpop.f32.mrf.mxu0
        %v9917 = vadd.f32 0.0, %v9916
        %v9918 = vpop.f32.mrf.mxu0
        %v9919 = vadd.f32 0.0, %v9918
        %9920 = vmatmul.bf16.gmra.mxu0 %v9174
        %v9921 = vpop.f32.mrf.mxu0
        %v9922 = vadd.f32 0.0, %v9921
        %v9923 = vpop.f32.mrf.mxu0
        %v9924 = vadd.f32 0.0, %v9923
        %9925 = vmatmul.bf16.gmra.mxu0 %v9178
        %v9926 = vpop.f32.mrf.mxu0
        %v9927 = vadd.f32 0.0, %v9926
        %v9928 = vpop.f32.mrf.mxu0
        %v9929 = vadd.f32 0.0, %v9928
        %9930 = vmatmul.bf16.gmra.mxu0 %v9182
        %v9931 = vpop.f32.mrf.mxu0
        %v9932 = vadd.f32 0.0, %v9931
        %v9933 = vpop.f32.mrf.mxu0
        %v9934 = vadd.f32 0.0, %v9933
        %9935 = vmatmul.bf16.gmra.mxu0 %v9186
        %v9936 = vpop.f32.mrf.mxu0
        %v9937 = vadd.f32 0.0, %v9936
        %v9938 = vpop.f32.mrf.mxu0
        %v9939 = vadd.f32 0.0, %v9938
        %9940 = vmatmul.bf16.gmra.mxu0 %v9190
        %v9941 = vpop.f32.mrf.mxu0
        %v9942 = vadd.f32 0.0, %v9941
        %v9943 = vpop.f32.mrf.mxu0
        %v9944 = vadd.f32 0.0, %v9943
        %9945 = vmatmul.bf16.gmra.mxu0 %v9194
        %v9946 = vpop.f32.mrf.mxu0
        %v9947 = vadd.f32 0.0, %v9946
        %v9948 = vpop.f32.mrf.mxu0
        %v9949 = vadd.f32 0.0, %v9948
        %9950 = vmatmul.bf16.gmra.mxu0 %v9198
        %v9951 = vpop.f32.mrf.mxu0
        %v9952 = vadd.f32 0.0, %v9951
        %v9953 = vpop.f32.mrf.mxu0
        %v9954 = vadd.f32 0.0, %v9953
        %9955 = vdwg.mxu0
        %9956 = vmatpush.bf16.msra.mxu0 %v9489
        %9957 = vmatpush.bf16.msra.mxu0 %v9487
        %9958 = vmatpush.bf16.msra.mxu0 %v9485
        %9959 = vmatpush.bf16.msra.mxu0 %v9483
        %9960 = vmatpush.bf16.msra.mxu0 %v9481
        %9961 = vmatpush.bf16.msra.mxu0 %v9479
        %9962 = vmatpush.bf16.msra.mxu0 %v9477
        %9963 = vmatpush.bf16.msra.mxu0 %v9475
        %9964 = vmatmul.bf16.gmra.mxu0 %v9151
        %v9965 = vpop.f32.mrf.mxu0
        %v9966 = vadd.f32 %v9892, %v9965
        %v9967 = vpop.f32.mrf.mxu0
        %v9968 = vadd.f32 %v9894, %v9967
        %9969 = vmatmul.bf16.gmra.mxu0 %v9155
        %v9970 = vpop.f32.mrf.mxu0
        %v9971 = vadd.f32 %v9897, %v9970
        %v9972 = vpop.f32.mrf.mxu0
        %v9973 = vadd.f32 %v9899, %v9972
        %9974 = vmatmul.bf16.gmra.mxu0 %v9159
        %v9975 = vpop.f32.mrf.mxu0
        %v9976 = vadd.f32 %v9902, %v9975
        %v9977 = vpop.f32.mrf.mxu0
        %v9978 = vadd.f32 %v9904, %v9977
        %9979 = vmatmul.bf16.gmra.mxu0 %v9163
        %v9980 = vpop.f32.mrf.mxu0
        %v9981 = vadd.f32 %v9907, %v9980
        %v9982 = vpop.f32.mrf.mxu0
        %v9983 = vadd.f32 %v9909, %v9982
        %9984 = vmatmul.bf16.gmra.mxu0 %v9167
        %v9985 = vpop.f32.mrf.mxu0
        %v9986 = vadd.f32 %v9912, %v9985
        %v9987 = vpop.f32.mrf.mxu0
        %v9988 = vadd.f32 %v9914, %v9987
        %9989 = vmatmul.bf16.gmra.mxu0 %v9171
        %v9990 = vpop.f32.mrf.mxu0
        %v9991 = vadd.f32 %v9917, %v9990
        %v9992 = vpop.f32.mrf.mxu0
        %v9993 = vadd.f32 %v9919, %v9992
        %9994 = vmatmul.bf16.gmra.mxu0 %v9175
        %v9995 = vpop.f32.mrf.mxu0
        %v9996 = vadd.f32 %v9922, %v9995
        %v9997 = vpop.f32.mrf.mxu0
        %v9998 = vadd.f32 %v9924, %v9997
        %9999 = vmatmul.bf16.gmra.mxu0 %v9179
        %v10000 = vpop.f32.mrf.mxu0
        %v10001 = vadd.f32 %v9927, %v10000
        %v10002 = vpop.f32.mrf.mxu0
        %v10003 = vadd.f32 %v9929, %v10002
        %10004 = vmatmul.bf16.gmra.mxu0 %v9183
        %v10005 = vpop.f32.mrf.mxu0
        %v10006 = vadd.f32 %v9932, %v10005
        %v10007 = vpop.f32.mrf.mxu0
        %v10008 = vadd.f32 %v9934, %v10007
        %10009 = vmatmul.bf16.gmra.mxu0 %v9187
        %v10010 = vpop.f32.mrf.mxu0
        %v10011 = vadd.f32 %v9937, %v10010
        %v10012 = vpop.f32.mrf.mxu0
        %v10013 = vadd.f32 %v9939, %v10012
        %10014 = vmatmul.bf16.gmra.mxu0 %v9191
        %v10015 = vpop.f32.mrf.mxu0
        %v10016 = vadd.f32 %v9942, %v10015
        %v10017 = vpop.f32.mrf.mxu0
        %v10018 = vadd.f32 %v9944, %v10017
        %10019 = vmatmul.bf16.gmra.mxu0 %v9195
        %v10020 = vpop.f32.mrf.mxu0
        %v10021 = vadd.f32 %v9947, %v10020
        %v10022 = vpop.f32.mrf.mxu0
        %v10023 = vadd.f32 %v9949, %v10022
        %10024 = vmatmul.bf16.gmra.mxu0 %v9199
        %v10025 = vpop.f32.mrf.mxu0
        %v10026 = vadd.f32 %v9952, %v10025
        %v10027 = vpop.f32.mrf.mxu0
        %v10028 = vadd.f32 %v9954, %v10027
        %10029 = vdwg.mxu0
        %10030 = vmatpush.bf16.msra.mxu0 %v9505
        %10031 = vmatpush.bf16.msra.mxu0 %v9503
        %10032 = vmatpush.bf16.msra.mxu0 %v9501
        %10033 = vmatpush.bf16.msra.mxu0 %v9499
        %10034 = vmatpush.bf16.msra.mxu0 %v9497
        %10035 = vmatpush.bf16.msra.mxu0 %v9495
        %10036 = vmatpush.bf16.msra.mxu0 %v9493
        %10037 = vmatpush.bf16.msra.mxu0 %v9491
        %10038 = vmatmul.bf16.gmra.mxu0 %v9152
        %v10039 = vpop.f32.mrf.mxu0
        %v10040 = vadd.f32 %v9966, %v10039
        %v10041 = vpop.f32.mrf.mxu0
        %v10042 = vadd.f32 %v9968, %v10041
        %10043 = vmatmul.bf16.gmra.mxu0 %v9156
        %v10044 = vpop.f32.mrf.mxu0
        %v10045 = vadd.f32 %v9971, %v10044
        %v10046 = vpop.f32.mrf.mxu0
        %v10047 = vadd.f32 %v9973, %v10046
        %10048 = vmatmul.bf16.gmra.mxu0 %v9160
        %v10049 = vpop.f32.mrf.mxu0
        %v10050 = vadd.f32 %v9976, %v10049
        %v10051 = vpop.f32.mrf.mxu0
        %v10052 = vadd.f32 %v9978, %v10051
        %10053 = vmatmul.bf16.gmra.mxu0 %v9164
        %v10054 = vpop.f32.mrf.mxu0
        %v10055 = vadd.f32 %v9981, %v10054
        %v10056 = vpop.f32.mrf.mxu0
        %v10057 = vadd.f32 %v9983, %v10056
        %10058 = vmatmul.bf16.gmra.mxu0 %v9168
        %v10059 = vpop.f32.mrf.mxu0
        %v10060 = vadd.f32 %v9986, %v10059
        %v10061 = vpop.f32.mrf.mxu0
        %v10062 = vadd.f32 %v9988, %v10061
        %10063 = vmatmul.bf16.gmra.mxu0 %v9172
        %v10064 = vpop.f32.mrf.mxu0
        %v10065 = vadd.f32 %v9991, %v10064
        %v10066 = vpop.f32.mrf.mxu0
        %v10067 = vadd.f32 %v9993, %v10066
        %10068 = vmatmul.bf16.gmra.mxu0 %v9176
        %v10069 = vpop.f32.mrf.mxu0
        %v10070 = vadd.f32 %v9996, %v10069
        %v10071 = vpop.f32.mrf.mxu0
        %v10072 = vadd.f32 %v9998, %v10071
        %10073 = vmatmul.bf16.gmra.mxu0 %v9180
        %v10074 = vpop.f32.mrf.mxu0
        %v10075 = vadd.f32 %v10001, %v10074
        %v10076 = vpop.f32.mrf.mxu0
        %v10077 = vadd.f32 %v10003, %v10076
        %10078 = vmatmul.bf16.gmra.mxu0 %v9184
        %v10079 = vpop.f32.mrf.mxu0
        %v10080 = vadd.f32 %v10006, %v10079
        %v10081 = vpop.f32.mrf.mxu0
        %v10082 = vadd.f32 %v10008, %v10081
        %10083 = vmatmul.bf16.gmra.mxu0 %v9188
        %v10084 = vpop.f32.mrf.mxu0
        %v10085 = vadd.f32 %v10011, %v10084
        %v10086 = vpop.f32.mrf.mxu0
        %v10087 = vadd.f32 %v10013, %v10086
        %10088 = vmatmul.bf16.gmra.mxu0 %v9192
        %v10089 = vpop.f32.mrf.mxu0
        %v10090 = vadd.f32 %v10016, %v10089
        %v10091 = vpop.f32.mrf.mxu0
        %v10092 = vadd.f32 %v10018, %v10091
        %10093 = vmatmul.bf16.gmra.mxu0 %v9196
        %v10094 = vpop.f32.mrf.mxu0
        %v10095 = vadd.f32 %v10021, %v10094
        %v10096 = vpop.f32.mrf.mxu0
        %v10097 = vadd.f32 %v10023, %v10096
        %10098 = vmatmul.bf16.gmra.mxu0 %v9200
        %v10099 = vpop.f32.mrf.mxu0
        %v10100 = vadd.f32 %v10026, %v10099
        %v10101 = vpop.f32.mrf.mxu0
        %v10102 = vadd.f32 %v10028, %v10101
        %10103 = vdwg.mxu0
        %10104 = vmatpush.bf16.msra.mxu0 %v9521
        %10105 = vmatpush.bf16.msra.mxu0 %v9519
        %10106 = vmatpush.bf16.msra.mxu0 %v9517
        %10107 = vmatpush.bf16.msra.mxu0 %v9515
        %10108 = vmatpush.bf16.msra.mxu0 %v9513
        %10109 = vmatpush.bf16.msra.mxu0 %v9511
        %10110 = vmatpush.bf16.msra.mxu0 %v9509
        %10111 = vmatpush.bf16.msra.mxu0 %v9507
        %10112 = vmatmul.bf16.gmra.mxu0 %v9153
        %v10113 = vpop.f32.mrf.mxu0
        %v10114 = vadd.f32 %v10040, %v10113
        %v10115 = vpop.f32.mrf.mxu0
        %v10116 = vadd.f32 %v10042, %v10115
        %10117 = vmatmul.bf16.gmra.mxu0 %v9157
        %v10118 = vpop.f32.mrf.mxu0
        %v10119 = vadd.f32 %v10045, %v10118
        %v10120 = vpop.f32.mrf.mxu0
        %v10121 = vadd.f32 %v10047, %v10120
        %10122 = vmatmul.bf16.gmra.mxu0 %v9161
        %v10123 = vpop.f32.mrf.mxu0
        %v10124 = vadd.f32 %v10050, %v10123
        %v10125 = vpop.f32.mrf.mxu0
        %v10126 = vadd.f32 %v10052, %v10125
        %10127 = vmatmul.bf16.gmra.mxu0 %v9165
        %v10128 = vpop.f32.mrf.mxu0
        %v10129 = vadd.f32 %v10055, %v10128
        %v10130 = vpop.f32.mrf.mxu0
        %v10131 = vadd.f32 %v10057, %v10130
        %10132 = vmatmul.bf16.gmra.mxu0 %v9169
        %v10133 = vpop.f32.mrf.mxu0
        %v10134 = vadd.f32 %v10060, %v10133
        %v10135 = vpop.f32.mrf.mxu0
        %v10136 = vadd.f32 %v10062, %v10135
        %10137 = vmatmul.bf16.gmra.mxu0 %v9173
        %v10138 = vpop.f32.mrf.mxu0
        %v10139 = vadd.f32 %v10065, %v10138
        %v10140 = vpop.f32.mrf.mxu0
        %v10141 = vadd.f32 %v10067, %v10140
        %10142 = vmatmul.bf16.gmra.mxu0 %v9177
        %v10143 = vpop.f32.mrf.mxu0
        %v10144 = vadd.f32 %v10070, %v10143
        %v10145 = vpop.f32.mrf.mxu0
        %v10146 = vadd.f32 %v10072, %v10145
        %10147 = vmatmul.bf16.gmra.mxu0 %v9181
        %v10148 = vpop.f32.mrf.mxu0
        %v10149 = vadd.f32 %v10075, %v10148
        %v10150 = vpop.f32.mrf.mxu0
        %v10151 = vadd.f32 %v10077, %v10150
        %10152 = vmatmul.bf16.gmra.mxu0 %v9185
        %v10153 = vpop.f32.mrf.mxu0
        %v10154 = vadd.f32 %v10080, %v10153
        %v10155 = vpop.f32.mrf.mxu0
        %v10156 = vadd.f32 %v10082, %v10155
        %10157 = vmatmul.bf16.gmra.mxu0 %v9189
        %v10158 = vpop.f32.mrf.mxu0
        %v10159 = vadd.f32 %v10085, %v10158
        %v10160 = vpop.f32.mrf.mxu0
        %v10161 = vadd.f32 %v10087, %v10160
        %10162 = vmatmul.bf16.gmra.mxu0 %v9193
        %v10163 = vpop.f32.mrf.mxu0
        %v10164 = vadd.f32 %v10090, %v10163
        %v10165 = vpop.f32.mrf.mxu0
        %v10166 = vadd.f32 %v10092, %v10165
        %10167 = vmatmul.bf16.gmra.mxu0 %v9197
        %v10168 = vpop.f32.mrf.mxu0
        %v10169 = vadd.f32 %v10095, %v10168
        %v10170 = vpop.f32.mrf.mxu0
        %v10171 = vadd.f32 %v10097, %v10170
        %10172 = vmatmul.bf16.gmra.mxu0 %v9201
        %v10173 = vpop.f32.mrf.mxu0
        %v10174 = vadd.f32 %v10100, %v10173
        %v10175 = vpop.f32.mrf.mxu0
        %v10176 = vadd.f32 %v10102, %v10175
        %10177 = vdwg.mxu0
        %v10178 = vld [vmem:[%s12] ss:$2 sm:$0x3]
        %s10179 = scalar_lea.vmem %s12, 1
        %v10180 = vld [vmem:[%s10179] ss:$2 sm:$0x3]
        %10181 = vmatpush.msra.mxu0 %v9855
        %10182 = vmatpush.msra.mxu0 %v9853
        %10183 = vmatpush.msra.mxu0 %v9850
        %10184 = vmatpush.msra.mxu0 %v9848
        %10185 = vmatpush.msra.mxu0 %v9845
        %10186 = vmatpush.msra.mxu0 %v9843
        %10187 = vmatpush.msra.mxu0 %v9840
        %10188 = vmatpush.msra.mxu0 %v9838
        %10189 = vmatpush.msra.mxu0 %v9835
        %10190 = vmatpush.msra.mxu0 %v9833
        %10191 = vmatpush.msra.mxu0 %v9830
        %10192 = vmatpush.msra.mxu0 %v9828
        %10193 = vmatpush.msra.mxu0 %v9825
        %10194 = vmatpush.msra.mxu0 %v9823
        %10195 = vmatpush.msra.mxu0 %v9820
        %10196 = vmatpush.msra.mxu0 %v9818
        %10197 = vmatmul.f32.gmra.mxu0 %v1004
        %v10198 = vpop.f32.mrf.mxu0
        %v10199 = vadd.f32 0.0, %v10198
        %10200 = vdwg.mxu0
        %10201 = vmatpush.msra.mxu0 0.0
        %10202 = vmatpush.msra.mxu0 0.0
        %10203 = vmatpush.msra.mxu0 0.0
        %10204 = vmatpush.msra.mxu0 0.0
        %10205 = vmatpush.msra.mxu0 0.0
        %10206 = vmatpush.msra.mxu0 0.0
        %10207 = vmatpush.msra.mxu0 %v9880
        %10208 = vmatpush.msra.mxu0 %v9878
        %10209 = vmatpush.msra.mxu0 %v9875
        %10210 = vmatpush.msra.mxu0 %v9873
        %10211 = vmatpush.msra.mxu0 %v9870
        %10212 = vmatpush.msra.mxu0 %v9868
        %10213 = vmatpush.msra.mxu0 %v9865
        %10214 = vmatpush.msra.mxu0 %v9863
        %10215 = vmatpush.msra.mxu0 %v9860
        %10216 = vmatpush.msra.mxu0 %v9858
        %10217 = vmatmul.f32.gmra.mxu0 %v1008
        %v10218 = vpop.f32.mrf.mxu0
        %v10219 = vadd.f32 %v10199, %v10218
        %10220 = vdwg.mxu0
        %10221 = vmatpush.msra.mxu0 %v10151
        %10222 = vmatpush.msra.mxu0 %v10149
        %10223 = vmatpush.msra.mxu0 %v10146
        %10224 = vmatpush.msra.mxu0 %v10144
        %10225 = vmatpush.msra.mxu0 %v10141
        %10226 = vmatpush.msra.mxu0 %v10139
        %10227 = vmatpush.msra.mxu0 %v10136
        %10228 = vmatpush.msra.mxu0 %v10134
        %10229 = vmatpush.msra.mxu0 %v10131
        %10230 = vmatpush.msra.mxu0 %v10129
        %10231 = vmatpush.msra.mxu0 %v10126
        %10232 = vmatpush.msra.mxu0 %v10124
        %10233 = vmatpush.msra.mxu0 %v10121
        %10234 = vmatpush.msra.mxu0 %v10119
        %10235 = vmatpush.msra.mxu0 %v10116
        %10236 = vmatpush.msra.mxu0 %v10114
        %10237 = vmatmul.f32.gmra.mxu0 %v1004
        %v10238 = vpop.f32.mrf.mxu0
        %v10239 = vadd.f32 0.0, %v10238
        %10240 = vdwg.mxu0
        %10241 = vmatpush.msra.mxu0 0.0
        %10242 = vmatpush.msra.mxu0 0.0
        %10243 = vmatpush.msra.mxu0 0.0
        %10244 = vmatpush.msra.mxu0 0.0
        %10245 = vmatpush.msra.mxu0 0.0
        %10246 = vmatpush.msra.mxu0 0.0
        %10247 = vmatpush.msra.mxu0 %v10176
        %10248 = vmatpush.msra.mxu0 %v10174
        %10249 = vmatpush.msra.mxu0 %v10171
        %10250 = vmatpush.msra.mxu0 %v10169
        %10251 = vmatpush.msra.mxu0 %v10166
        %10252 = vmatpush.msra.mxu0 %v10164
        %10253 = vmatpush.msra.mxu0 %v10161
        %10254 = vmatpush.msra.mxu0 %v10159
        %10255 = vmatpush.msra.mxu0 %v10156
        %10256 = vmatpush.msra.mxu0 %v10154
        %10257 = vmatmul.f32.gmra.mxu0 %v1008
        %v10258 = vpop.f32.mrf.mxu0
        %v10259 = vadd.f32 %v10239, %v10258
        %10260 = vdwg.mxu0
        %v10261 = vmul.f32 %v9818, %v9818
        %v10262 = vmul.f32 %v10114, %v10114
        %v10263 = vmul.f32 %v9820, %v9820
        %v10264 = vmul.f32 %v10116, %v10116
        %v10265 = vmul.f32 %v9823, %v9823
        %v10266 = vmul.f32 %v10119, %v10119
        %v10267 = vmul.f32 %v9825, %v9825
        %v10268 = vmul.f32 %v10121, %v10121
        %v10269 = vmul.f32 %v9828, %v9828
        %v10270 = vmul.f32 %v10124, %v10124
        %v10271 = vmul.f32 %v9830, %v9830
        %v10272 = vmul.f32 %v10126, %v10126
        %v10273 = vmul.f32 %v9833, %v9833
        %v10274 = vmul.f32 %v10129, %v10129
        %v10275 = vmul.f32 %v9835, %v9835
        %v10276 = vmul.f32 %v10131, %v10131
        %v10277 = vmul.f32 %v9838, %v9838
        %v10278 = vmul.f32 %v10134, %v10134
        %v10279 = vmul.f32 %v9840, %v9840
        %v10280 = vmul.f32 %v10136, %v10136
        %v10281 = vmul.f32 %v9843, %v9843
        %v10282 = vmul.f32 %v10139, %v10139
        %v10283 = vmul.f32 %v9845, %v9845
        %v10284 = vmul.f32 %v10141, %v10141
        %v10285 = vmul.f32 %v9848, %v9848
        %v10286 = vmul.f32 %v10144, %v10144
        %v10287 = vmul.f32 %v9850, %v9850
        %v10288 = vmul.f32 %v10146, %v10146
        %v10289 = vmul.f32 %v9853, %v9853
        %v10290 = vmul.f32 %v10149, %v10149
        %v10291 = vmul.f32 %v9855, %v9855
        %v10292 = vmul.f32 %v10151, %v10151
        %v10293 = vmul.f32 %v9858, %v9858
        %v10294 = vmul.f32 %v10154, %v10154
        %v10295 = vmul.f32 %v9860, %v9860
        %v10296 = vmul.f32 %v10156, %v10156
        %v10297 = vmul.f32 %v9863, %v9863
        %v10298 = vmul.f32 %v10159, %v10159
        %v10299 = vmul.f32 %v9865, %v9865
        %v10300 = vmul.f32 %v10161, %v10161
        %v10301 = vmul.f32 %v9868, %v9868
        %v10302 = vmul.f32 %v10164, %v10164
        %v10303 = vmul.f32 %v9870, %v9870
        %v10304 = vmul.f32 %v10166, %v10166
        %v10305 = vmul.f32 %v9873, %v9873
        %v10306 = vmul.f32 %v10169, %v10169
        %v10307 = vmul.f32 %v9875, %v9875
        %v10308 = vmul.f32 %v10171, %v10171
        %v10309 = vmul.f32 %v9878, %v9878
        %v10310 = vmul.f32 %v10174, %v10174
        %v10311 = vmul.f32 %v9880, %v9880
        %v10312 = vmul.f32 %v10176, %v10176
        %10313 = vmatpush.msra.mxu0 %v10291
        %10314 = vmatpush.msra.mxu0 %v10289
        %10315 = vmatpush.msra.mxu0 %v10287
        %10316 = vmatpush.msra.mxu0 %v10285
        %10317 = vmatpush.msra.mxu0 %v10283
        %10318 = vmatpush.msra.mxu0 %v10281
        %10319 = vmatpush.msra.mxu0 %v10279
        %10320 = vmatpush.msra.mxu0 %v10277
        %10321 = vmatpush.msra.mxu0 %v10275
        %10322 = vmatpush.msra.mxu0 %v10273
        %10323 = vmatpush.msra.mxu0 %v10271
        %10324 = vmatpush.msra.mxu0 %v10269
        %10325 = vmatpush.msra.mxu0 %v10267
        %10326 = vmatpush.msra.mxu0 %v10265
        %10327 = vmatpush.msra.mxu0 %v10263
        %10328 = vmatpush.msra.mxu0 %v10261
        %10329 = vmatmul.f32.gmra.mxu0 %v1004
        %v10330 = vpop.f32.mrf.mxu0
        %v10331 = vadd.f32 0.0, %v10330
        %10332 = vdwg.mxu0
        %10333 = vmatpush.msra.mxu0 0.0
        %10334 = vmatpush.msra.mxu0 0.0
        %10335 = vmatpush.msra.mxu0 0.0
        %10336 = vmatpush.msra.mxu0 0.0
        %10337 = vmatpush.msra.mxu0 0.0
        %10338 = vmatpush.msra.mxu0 0.0
        %10339 = vmatpush.msra.mxu0 %v10311
        %10340 = vmatpush.msra.mxu0 %v10309
        %10341 = vmatpush.msra.mxu0 %v10307
        %10342 = vmatpush.msra.mxu0 %v10305
        %10343 = vmatpush.msra.mxu0 %v10303
        %10344 = vmatpush.msra.mxu0 %v10301
        %10345 = vmatpush.msra.mxu0 %v10299
        %10346 = vmatpush.msra.mxu0 %v10297
        %10347 = vmatpush.msra.mxu0 %v10295
        %10348 = vmatpush.msra.mxu0 %v10293
        %10349 = vmatmul.f32.gmra.mxu0 %v1008
        %v10350 = vpop.f32.mrf.mxu0
        %v10351 = vadd.f32 %v10331, %v10350
        %10352 = vdwg.mxu0
        %10353 = vmatpush.msra.mxu0 %v10292
        %10354 = vmatpush.msra.mxu0 %v10290
        %10355 = vmatpush.msra.mxu0 %v10288
        %10356 = vmatpush.msra.mxu0 %v10286
        %10357 = vmatpush.msra.mxu0 %v10284
        %10358 = vmatpush.msra.mxu0 %v10282
        %10359 = vmatpush.msra.mxu0 %v10280
        %10360 = vmatpush.msra.mxu0 %v10278
        %10361 = vmatpush.msra.mxu0 %v10276
        %10362 = vmatpush.msra.mxu0 %v10274
        %10363 = vmatpush.msra.mxu0 %v10272
        %10364 = vmatpush.msra.mxu0 %v10270
        %10365 = vmatpush.msra.mxu0 %v10268
        %10366 = vmatpush.msra.mxu0 %v10266
        %10367 = vmatpush.msra.mxu0 %v10264
        %10368 = vmatpush.msra.mxu0 %v10262
        %10369 = vmatmul.f32.gmra.mxu0 %v1004
        %v10370 = vpop.f32.mrf.mxu0
        %v10371 = vadd.f32 0.0, %v10370
        %10372 = vdwg.mxu0
        %10373 = vmatpush.msra.mxu0 0.0
        %10374 = vmatpush.msra.mxu0 0.0
        %10375 = vmatpush.msra.mxu0 0.0
        %10376 = vmatpush.msra.mxu0 0.0
        %10377 = vmatpush.msra.mxu0 0.0
        %10378 = vmatpush.msra.mxu0 0.0
        %10379 = vmatpush.msra.mxu0 %v10312
        %10380 = vmatpush.msra.mxu0 %v10310
        %10381 = vmatpush.msra.mxu0 %v10308
        %10382 = vmatpush.msra.mxu0 %v10306
        %10383 = vmatpush.msra.mxu0 %v10304
        %10384 = vmatpush.msra.mxu0 %v10302
        %10385 = vmatpush.msra.mxu0 %v10300
        %10386 = vmatpush.msra.mxu0 %v10298
        %10387 = vmatpush.msra.mxu0 %v10296
        %10388 = vmatpush.msra.mxu0 %v10294
        %10389 = vmatmul.f32.gmra.mxu0 %v1008
        %v10390 = vpop.f32.mrf.mxu0
        %v10391 = vadd.f32 %v10371, %v10390
        %10392 = vdwg.mxu0
        %v10393 = vmul.f32 %v10219, 0.005
        %v10394 = vmul.f32 %v10259, 0.005
        %v10395 = vmul.f32 %v10351, 0.005
        %v10396 = vmul.f32 %v10391, 0.005
        %v10397 = vmul.f32 %v10393, %v10393
        %v10398 = vmul.f32 %v10394, %v10394
        %v10399 = vsub.f32 %v10395, %v10397
        %v10400 = vsub.f32 %v10396, %v10398
        %v10401 = vmax.f32 %v10399, 0.0
        %v10402 = vmax.f32 %v10400, 0.0
        %v10403 = vadd.f32 %v10401, 1e-05
        %v10404 = vadd.f32 %v10402, 1e-05
        %v10405 = vrsqrt.pop %v10403
        %v10406 = vmul.f32 %v10405, %v10403
        %v10407 = vmul.f32 %v10406, %v10405
        %v10408 = vmul.f32 0.5, %v10407
        %v10409 = vsub.f32 1.5, %v10408
        %v10410 = vmul.f32 %v10405, %v10409
        %vm10411 = vweird.f32 %v10403
        %vm10412 = vweird.f32 %v10405
        %vm10413 = vmor %vm10411, %vm10412
        %v10414 = vsel %vm10413, %v10405, %v10410
        %v10415 = vrsqrt.pop %v10404
        %v10416 = vmul.f32 %v10415, %v10404
        %v10417 = vmul.f32 %v10416, %v10415
        %v10418 = vmul.f32 0.5, %v10417
        %v10419 = vsub.f32 1.5, %v10418
        %v10420 = vmul.f32 %v10415, %v10419
        %vm10421 = vweird.f32 %v10404
        %vm10422 = vweird.f32 %v10415
        %vm10423 = vmor %vm10421, %vm10422
        %v10424 = vsel %vm10423, %v10415, %v10420
        %v10427 = vrot.slane %v10424, 7
        %v10428 = vsel %vm3587, %v10414, %v10427
        %v10430 = vmul.f32 %v10178, %v10428
        %v10432 = vperm.slane %v10430, 0
        %v10433 = vperm.slane %v10430, 1
        %v10436 = vmul.f32 %v10393, %v10432
        %v10437 = vmul.f32 %v10394, %v10433
        %v10440 = vrot.slane %v10437, 7
        %v10441 = vsel %vm3587, %v10436, %v10440
        %v10443 = vsub.f32 %v10180, %v10441
        %v10444 = vmul.f32 %v9818, %v10432
        %v10445 = vmul.f32 %v10114, %v10433
        %v10446 = vmul.f32 %v9820, %v10432
        %v10447 = vmul.f32 %v10116, %v10433
        %v10448 = vmul.f32 %v9823, %v10432
        %v10449 = vmul.f32 %v10119, %v10433
        %v10450 = vmul.f32 %v9825, %v10432
        %v10451 = vmul.f32 %v10121, %v10433
        %v10452 = vmul.f32 %v9828, %v10432
        %v10453 = vmul.f32 %v10124, %v10433
        %v10454 = vmul.f32 %v9830, %v10432
        %v10455 = vmul.f32 %v10126, %v10433
        %v10456 = vmul.f32 %v9833, %v10432
        %v10457 = vmul.f32 %v10129, %v10433
        %v10458 = vmul.f32 %v9835, %v10432
        %v10459 = vmul.f32 %v10131, %v10433
        %v10460 = vmul.f32 %v9838, %v10432
        %v10461 = vmul.f32 %v10134, %v10433
        %v10462 = vmul.f32 %v9840, %v10432
        %v10463 = vmul.f32 %v10136, %v10433
        %v10464 = vmul.f32 %v9843, %v10432
        %v10465 = vmul.f32 %v10139, %v10433
        %v10466 = vmul.f32 %v9845, %v10432
        %v10467 = vmul.f32 %v10141, %v10433
        %v10468 = vmul.f32 %v9848, %v10432
        %v10469 = vmul.f32 %v10144, %v10433
        %v10470 = vmul.f32 %v9850, %v10432
        %v10471 = vmul.f32 %v10146, %v10433
        %v10472 = vmul.f32 %v9853, %v10432
        %v10473 = vmul.f32 %v10149, %v10433
        %v10474 = vmul.f32 %v9855, %v10432
        %v10475 = vmul.f32 %v10151, %v10433
        %v10476 = vmul.f32 %v9858, %v10432
        %v10477 = vmul.f32 %v10154, %v10433
        %v10478 = vmul.f32 %v9860, %v10432
        %v10479 = vmul.f32 %v10156, %v10433
        %v10480 = vmul.f32 %v9863, %v10432
        %v10481 = vmul.f32 %v10159, %v10433
        %v10482 = vmul.f32 %v9865, %v10432
        %v10483 = vmul.f32 %v10161, %v10433
        %v10484 = vmul.f32 %v9868, %v10432
        %v10485 = vmul.f32 %v10164, %v10433
        %v10486 = vmul.f32 %v9870, %v10432
        %v10487 = vmul.f32 %v10166, %v10433
        %v10488 = vmul.f32 %v9873, %v10432
        %v10489 = vmul.f32 %v10169, %v10433
        %v10490 = vmul.f32 %v9875, %v10432
        %v10491 = vmul.f32 %v10171, %v10433
        %v10492 = vmul.f32 %v9878, %v10432
        %v10493 = vmul.f32 %v10174, %v10433
        %v10494 = vmul.f32 %v9880, %v10432
        %v10495 = vmul.f32 %v10176, %v10433
        %v10497 = vperm.slane %v10443, 0
        %v10498 = vperm.slane %v10443, 1
        %v10501 = vadd.f32 %v10444, %v10497
        %v10502 = vadd.f32 %v10445, %v10498
        %v10503 = vadd.f32 %v10446, %v10497
        %v10504 = vadd.f32 %v10447, %v10498
        %v10505 = vadd.f32 %v10448, %v10497
        %v10506 = vadd.f32 %v10449, %v10498
        %v10507 = vadd.f32 %v10450, %v10497
        %v10508 = vadd.f32 %v10451, %v10498
        %v10509 = vadd.f32 %v10452, %v10497
        %v10510 = vadd.f32 %v10453, %v10498
        %v10511 = vadd.f32 %v10454, %v10497
        %v10512 = vadd.f32 %v10455, %v10498
        %v10513 = vadd.f32 %v10456, %v10497
        %v10514 = vadd.f32 %v10457, %v10498
        %v10515 = vadd.f32 %v10458, %v10497
        %v10516 = vadd.f32 %v10459, %v10498
        %v10517 = vadd.f32 %v10460, %v10497
        %v10518 = vadd.f32 %v10461, %v10498
        %v10519 = vadd.f32 %v10462, %v10497
        %v10520 = vadd.f32 %v10463, %v10498
        %v10521 = vadd.f32 %v10464, %v10497
        %v10522 = vadd.f32 %v10465, %v10498
        %v10523 = vadd.f32 %v10466, %v10497
        %v10524 = vadd.f32 %v10467, %v10498
        %v10525 = vadd.f32 %v10468, %v10497
        %v10526 = vadd.f32 %v10469, %v10498
        %v10527 = vadd.f32 %v10470, %v10497
        %v10528 = vadd.f32 %v10471, %v10498
        %v10529 = vadd.f32 %v10472, %v10497
        %v10530 = vadd.f32 %v10473, %v10498
        %v10531 = vadd.f32 %v10474, %v10497
        %v10532 = vadd.f32 %v10475, %v10498
        %v10533 = vadd.f32 %v10476, %v10497
        %v10534 = vadd.f32 %v10477, %v10498
        %v10535 = vadd.f32 %v10478, %v10497
        %v10536 = vadd.f32 %v10479, %v10498
        %v10537 = vadd.f32 %v10480, %v10497
        %v10538 = vadd.f32 %v10481, %v10498
        %v10539 = vadd.f32 %v10482, %v10497
        %v10540 = vadd.f32 %v10483, %v10498
        %v10541 = vadd.f32 %v10484, %v10497
        %v10542 = vadd.f32 %v10485, %v10498
        %v10543 = vadd.f32 %v10486, %v10497
        %v10544 = vadd.f32 %v10487, %v10498
        %v10545 = vadd.f32 %v10488, %v10497
        %v10546 = vadd.f32 %v10489, %v10498
        %v10547 = vadd.f32 %v10490, %v10497
        %v10548 = vadd.f32 %v10491, %v10498
        %v10549 = vadd.f32 %v10492, %v10497
        %v10550 = vadd.f32 %v10493, %v10498
        %v10551 = vadd.f32 %v10494, %v10497
        %v10552 = vadd.f32 %v10495, %v10498
        %v10553 = vmax.f32 %v10501, 0.0
        %v10554 = vmax.f32 %v10502, 0.0
        %v10555 = vmax.f32 %v10503, 0.0
        %v10556 = vmax.f32 %v10504, 0.0
        %v10557 = vmax.f32 %v10505, 0.0
        %v10558 = vmax.f32 %v10506, 0.0
        %v10559 = vmax.f32 %v10507, 0.0
        %v10560 = vmax.f32 %v10508, 0.0
        %v10561 = vmax.f32 %v10509, 0.0
        %v10562 = vmax.f32 %v10510, 0.0
        %v10563 = vmax.f32 %v10511, 0.0
        %v10564 = vmax.f32 %v10512, 0.0
        %v10565 = vmax.f32 %v10513, 0.0
        %v10566 = vmax.f32 %v10514, 0.0
        %v10567 = vmax.f32 %v10515, 0.0
        %v10568 = vmax.f32 %v10516, 0.0
        %v10569 = vmax.f32 %v10517, 0.0
        %v10570 = vmax.f32 %v10518, 0.0
        %v10571 = vmax.f32 %v10519, 0.0
        %v10572 = vmax.f32 %v10520, 0.0
        %v10573 = vmax.f32 %v10521, 0.0
        %v10574 = vmax.f32 %v10522, 0.0
        %v10575 = vmax.f32 %v10523, 0.0
        %v10576 = vmax.f32 %v10524, 0.0
        %v10577 = vmax.f32 %v10525, 0.0
        %v10578 = vmax.f32 %v10526, 0.0
        %v10579 = vmax.f32 %v10527, 0.0
        %v10580 = vmax.f32 %v10528, 0.0
        %v10581 = vmax.f32 %v10529, 0.0
        %v10582 = vmax.f32 %v10530, 0.0
        %v10583 = vmax.f32 %v10531, 0.0
        %v10584 = vmax.f32 %v10532, 0.0
        %v10585 = vmax.f32 %v10533, 0.0
        %v10586 = vmax.f32 %v10534, 0.0
        %v10587 = vmax.f32 %v10535, 0.0
        %v10588 = vmax.f32 %v10536, 0.0
        %v10589 = vmax.f32 %v10537, 0.0
        %v10590 = vmax.f32 %v10538, 0.0
        %v10591 = vmax.f32 %v10539, 0.0
        %v10592 = vmax.f32 %v10540, 0.0
        %v10593 = vmax.f32 %v10541, 0.0
        %v10594 = vmax.f32 %v10542, 0.0
        %v10595 = vmax.f32 %v10543, 0.0
        %v10596 = vmax.f32 %v10544, 0.0
        %v10597 = vmax.f32 %v10545, 0.0
        %v10598 = vmax.f32 %v10546, 0.0
        %v10599 = vmax.f32 %v10547, 0.0
        %v10600 = vmax.f32 %v10548, 0.0
        %v10601 = vmax.f32 %v10549, 0.0
        %v10602 = vmax.f32 %v10550, 0.0
        %v10603 = vmax.f32 %v10551, 0.0
        %v10604 = vmax.f32 %v10552, 0.0
        %v10605 = vld [vmem:[%s7] sm:$0xff]
        %v10606 = vld [vmem:[%s7 + $0x8] sm:$0xff]
        %v10607 = vld [vmem:[%s7 + $0x10] sm:$0xff]
        %v10608 = vld [vmem:[%s7 + $0x18] sm:$0xff]
        %v10609 = vld [vmem:[%s7 + $0x20] sm:$0xff]
        %v10610 = vld [vmem:[%s7 + $0x28] sm:$0xff]
        %v10611 = vld [vmem:[%s7 + $0x30] sm:$0xff]
        %v10612 = vld [vmem:[%s7 + $0x38] sm:$0xff]
        %v10613 = vld [vmem:[%s7 + $0x40] sm:$0xff]
        %v10614 = vld [vmem:[%s7 + $0x48] sm:$0xff]
        %v10615 = vld [vmem:[%s7 + $0x50] sm:$0xff]
        %v10616 = vld [vmem:[%s7 + $0x58] sm:$0xff]
        %v10617 = vld [vmem:[%s7 + $0x60] sm:$0xff]
        %v10618 = vld [vmem:[%s7 + $0x68] sm:$0xff]
        %v10619 = vld [vmem:[%s7 + $0x70] sm:$0xff]
        %v10620 = vld [vmem:[%s7 + $0x78] sm:$0xff]
        %v10621 = vld [vmem:[%s7 + $0x80] sm:$0xff]
        %v10622 = vld [vmem:[%s7 + $0x88] sm:$0xff]
        %v10623 = vld [vmem:[%s7 + $0x90] sm:$0xff]
        %v10624 = vld [vmem:[%s7 + $0x98] sm:$0xff]
        %v10625 = vld [vmem:[%s7 + $0xa0] sm:$0xff]
        %v10626 = vld [vmem:[%s7 + $0xa8] sm:$0xff]
        %v10627 = vld [vmem:[%s7 + $0xb0] sm:$0xff]
        %v10628 = vld [vmem:[%s7 + $0xb8] sm:$0xff]
        %v10629 = vld [vmem:[%s7 + $0xc0] sm:$0xff]
        %v10630 = vld [vmem:[%s7 + $0xc8] sm:$0xff]
        %v10631 = vld [vmem:[%s7 + $0xd0] sm:$0xff]
        %v10632 = vld [vmem:[%s7 + $0xd8] sm:$0xff]
        %v10633 = vld [vmem:[%s7 + $0xe0] sm:$0xff]
        %v10634 = vld [vmem:[%s7 + $0xe8] sm:$0xff]
        %v10635 = vld [vmem:[%s7 + $0xf0] sm:$0xff]
        %v10636 = vld [vmem:[%s7 + $0xf8] sm:$0xff]
        %v10637 = vld [vmem:[%s13] sm:$0x1]
        %v10639 = vperm.slane %v10637, 0
        %10641 = vmatpush.msra.mxu0 %v10620
        %10642 = vmatpush.msra.mxu0 %v10619
        %10643 = vmatpush.msra.mxu0 %v10618
        %10644 = vmatpush.msra.mxu0 %v10617
        %10645 = vmatpush.msra.mxu0 %v10616
        %10646 = vmatpush.msra.mxu0 %v10615
        %10647 = vmatpush.msra.mxu0 %v10614
        %10648 = vmatpush.msra.mxu0 %v10613
        %10649 = vmatpush.msra.mxu0 %v10612
        %10650 = vmatpush.msra.mxu0 %v10611
        %10651 = vmatpush.msra.mxu0 %v10610
        %10652 = vmatpush.msra.mxu0 %v10609
        %10653 = vmatpush.msra.mxu0 %v10608
        %10654 = vmatpush.msra.mxu0 %v10607
        %10655 = vmatpush.msra.mxu0 %v10606
        %10656 = vmatpush.msra.mxu0 %v10605
        %10657 = vmatmul.f32.gmra.mxu0 %v10553
        %v10658 = vpop.f32.mrf.mxu0
        %v10659 = vadd.f32 %v10639, %v10658
        %10660 = vmatmul.f32.gmra.mxu0 %v10555
        %v10661 = vpop.f32.mrf.mxu0
        %v10662 = vadd.f32 %v10639, %v10661
        %10663 = vmatmul.f32.gmra.mxu0 %v10557
        %v10664 = vpop.f32.mrf.mxu0
        %v10665 = vadd.f32 %v10639, %v10664
        %10666 = vmatmul.f32.gmra.mxu0 %v10559
        %v10667 = vpop.f32.mrf.mxu0
        %v10668 = vadd.f32 %v10639, %v10667
        %10669 = vmatmul.f32.gmra.mxu0 %v10561
        %v10670 = vpop.f32.mrf.mxu0
        %v10671 = vadd.f32 %v10639, %v10670
        %10672 = vmatmul.f32.gmra.mxu0 %v10563
        %v10673 = vpop.f32.mrf.mxu0
        %v10674 = vadd.f32 %v10639, %v10673
        %10675 = vmatmul.f32.gmra.mxu0 %v10565
        %v10676 = vpop.f32.mrf.mxu0
        %v10677 = vadd.f32 %v10639, %v10676
        %10678 = vmatmul.f32.gmra.mxu0 %v10567
        %v10679 = vpop.f32.mrf.mxu0
        %v10680 = vadd.f32 %v10639, %v10679
        %10681 = vmatmul.f32.gmra.mxu0 %v10569
        %v10682 = vpop.f32.mrf.mxu0
        %v10683 = vadd.f32 %v10639, %v10682
        %10684 = vmatmul.f32.gmra.mxu0 %v10571
        %v10685 = vpop.f32.mrf.mxu0
        %v10686 = vadd.f32 %v10639, %v10685
        %10687 = vmatmul.f32.gmra.mxu0 %v10573
        %v10688 = vpop.f32.mrf.mxu0
        %v10689 = vadd.f32 %v10639, %v10688
        %10690 = vmatmul.f32.gmra.mxu0 %v10575
        %v10691 = vpop.f32.mrf.mxu0
        %v10692 = vadd.f32 %v10639, %v10691
        %10693 = vmatmul.f32.gmra.mxu0 %v10577
        %v10694 = vpop.f32.mrf.mxu0
        %v10695 = vadd.f32 %v10639, %v10694
        %10696 = vmatmul.f32.gmra.mxu0 %v10579
        %v10697 = vpop.f32.mrf.mxu0
        %v10698 = vadd.f32 %v10639, %v10697
        %10699 = vmatmul.f32.gmra.mxu0 %v10581
        %v10700 = vpop.f32.mrf.mxu0
        %v10701 = vadd.f32 %v10639, %v10700
        %10702 = vmatmul.f32.gmra.mxu0 %v10583
        %v10703 = vpop.f32.mrf.mxu0
        %v10704 = vadd.f32 %v10639, %v10703
        %10705 = vmatmul.f32.gmra.mxu0 %v10585
        %v10706 = vpop.f32.mrf.mxu0
        %v10707 = vadd.f32 %v10639, %v10706
        %10708 = vmatmul.f32.gmra.mxu0 %v10587
        %v10709 = vpop.f32.mrf.mxu0
        %v10710 = vadd.f32 %v10639, %v10709
        %10711 = vmatmul.f32.gmra.mxu0 %v10589
        %v10712 = vpop.f32.mrf.mxu0
        %v10713 = vadd.f32 %v10639, %v10712
        %10714 = vmatmul.f32.gmra.mxu0 %v10591
        %v10715 = vpop.f32.mrf.mxu0
        %v10716 = vadd.f32 %v10639, %v10715
        %10717 = vmatmul.f32.gmra.mxu0 %v10593
        %v10718 = vpop.f32.mrf.mxu0
        %v10719 = vadd.f32 %v10639, %v10718
        %10720 = vmatmul.f32.gmra.mxu0 %v10595
        %v10721 = vpop.f32.mrf.mxu0
        %v10722 = vadd.f32 %v10639, %v10721
        %10723 = vmatmul.f32.gmra.mxu0 %v10597
        %v10724 = vpop.f32.mrf.mxu0
        %v10725 = vadd.f32 %v10639, %v10724
        %10726 = vmatmul.f32.gmra.mxu0 %v10599
        %v10727 = vpop.f32.mrf.mxu0
        %v10728 = vadd.f32 %v10639, %v10727
        %10729 = vmatmul.f32.gmra.mxu0 %v10601
        %v10730 = vpop.f32.mrf.mxu0
        %v10731 = vadd.f32 %v10639, %v10730
        %10732 = vmatmul.f32.gmra.mxu0 %v10603
        %v10733 = vpop.f32.mrf.mxu0
        %v10734 = vadd.f32 %v10639, %v10733
        %10735 = vdwg.mxu0
        %10736 = vmatpush.msra.mxu0 %v10636
        %10737 = vmatpush.msra.mxu0 %v10635
        %10738 = vmatpush.msra.mxu0 %v10634
        %10739 = vmatpush.msra.mxu0 %v10633
        %10740 = vmatpush.msra.mxu0 %v10632
        %10741 = vmatpush.msra.mxu0 %v10631
        %10742 = vmatpush.msra.mxu0 %v10630
        %10743 = vmatpush.msra.mxu0 %v10629
        %10744 = vmatpush.msra.mxu0 %v10628
        %10745 = vmatpush.msra.mxu0 %v10627
        %10746 = vmatpush.msra.mxu0 %v10626
        %10747 = vmatpush.msra.mxu0 %v10625
        %10748 = vmatpush.msra.mxu0 %v10624
        %10749 = vmatpush.msra.mxu0 %v10623
        %10750 = vmatpush.msra.mxu0 %v10622
        %10751 = vmatpush.msra.mxu0 %v10621
        %10752 = vmatmul.f32.gmra.mxu0 %v10554
        %v10753 = vpop.f32.mrf.mxu0
        %v10754 = vadd.f32 %v10659, %v10753
        %10755 = vmatmul.f32.gmra.mxu0 %v10556
        %v10756 = vpop.f32.mrf.mxu0
        %v10757 = vadd.f32 %v10662, %v10756
        %10758 = vmatmul.f32.gmra.mxu0 %v10558
        %v10759 = vpop.f32.mrf.mxu0
        %v10760 = vadd.f32 %v10665, %v10759
        %10761 = vmatmul.f32.gmra.mxu0 %v10560
        %v10762 = vpop.f32.mrf.mxu0
        %v10763 = vadd.f32 %v10668, %v10762
        %10764 = vmatmul.f32.gmra.mxu0 %v10562
        %v10765 = vpop.f32.mrf.mxu0
        %v10766 = vadd.f32 %v10671, %v10765
        %10767 = vmatmul.f32.gmra.mxu0 %v10564
        %v10768 = vpop.f32.mrf.mxu0
        %v10769 = vadd.f32 %v10674, %v10768
        %10770 = vmatmul.f32.gmra.mxu0 %v10566
        %v10771 = vpop.f32.mrf.mxu0
        %v10772 = vadd.f32 %v10677, %v10771
        %10773 = vmatmul.f32.gmra.mxu0 %v10568
        %v10774 = vpop.f32.mrf.mxu0
        %v10775 = vadd.f32 %v10680, %v10774
        %10776 = vmatmul.f32.gmra.mxu0 %v10570
        %v10777 = vpop.f32.mrf.mxu0
        %v10778 = vadd.f32 %v10683, %v10777
        %10779 = vmatmul.f32.gmra.mxu0 %v10572
        %v10780 = vpop.f32.mrf.mxu0
        %v10781 = vadd.f32 %v10686, %v10780
        %10782 = vmatmul.f32.gmra.mxu0 %v10574
        %v10783 = vpop.f32.mrf.mxu0
        %v10784 = vadd.f32 %v10689, %v10783
        %10785 = vmatmul.f32.gmra.mxu0 %v10576
        %v10786 = vpop.f32.mrf.mxu0
        %v10787 = vadd.f32 %v10692, %v10786
        %10788 = vmatmul.f32.gmra.mxu0 %v10578
        %v10789 = vpop.f32.mrf.mxu0
        %v10790 = vadd.f32 %v10695, %v10789
        %10791 = vmatmul.f32.gmra.mxu0 %v10580
        %v10792 = vpop.f32.mrf.mxu0
        %v10793 = vadd.f32 %v10698, %v10792
        %10794 = vmatmul.f32.gmra.mxu0 %v10582
        %v10795 = vpop.f32.mrf.mxu0
        %v10796 = vadd.f32 %v10701, %v10795
        %10797 = vmatmul.f32.gmra.mxu0 %v10584
        %v10798 = vpop.f32.mrf.mxu0
        %v10799 = vadd.f32 %v10704, %v10798
        %10800 = vmatmul.f32.gmra.mxu0 %v10586
        %v10801 = vpop.f32.mrf.mxu0
        %v10802 = vadd.f32 %v10707, %v10801
        %10803 = vmatmul.f32.gmra.mxu0 %v10588
        %v10804 = vpop.f32.mrf.mxu0
        %v10805 = vadd.f32 %v10710, %v10804
        %10806 = vmatmul.f32.gmra.mxu0 %v10590
        %v10807 = vpop.f32.mrf.mxu0
        %v10808 = vadd.f32 %v10713, %v10807
        %10809 = vmatmul.f32.gmra.mxu0 %v10592
        %v10810 = vpop.f32.mrf.mxu0
        %v10811 = vadd.f32 %v10716, %v10810
        %10812 = vmatmul.f32.gmra.mxu0 %v10594
        %v10813 = vpop.f32.mrf.mxu0
        %v10814 = vadd.f32 %v10719, %v10813
        %10815 = vmatmul.f32.gmra.mxu0 %v10596
        %v10816 = vpop.f32.mrf.mxu0
        %v10817 = vadd.f32 %v10722, %v10816
        %10818 = vmatmul.f32.gmra.mxu0 %v10598
        %v10819 = vpop.f32.mrf.mxu0
        %v10820 = vadd.f32 %v10725, %v10819
        %10821 = vmatmul.f32.gmra.mxu0 %v10600
        %v10822 = vpop.f32.mrf.mxu0
        %v10823 = vadd.f32 %v10728, %v10822
        %10824 = vmatmul.f32.gmra.mxu0 %v10602
        %v10825 = vpop.f32.mrf.mxu0
        %v10826 = vadd.f32 %v10731, %v10825
        %10827 = vmatmul.f32.gmra.mxu0 %v10604
        %v10828 = vpop.f32.mrf.mxu0
        %v10829 = vadd.f32 %v10734, %v10828
        %10830 = vdwg.mxu0
        %v10831 = vmul.f32 %v533, %v10754
        %v10832 = vmul.f32 %v538, %v10757
        %v10833 = vmul.f32 %v543, %v10760
        %v10834 = vmul.f32 %v548, %v10763
        %v10835 = vmul.f32 %v553, %v10766
        %v10836 = vmul.f32 %v558, %v10769
        %v10837 = vmul.f32 %v563, %v10772
        %v10838 = vmul.f32 %v568, %v10775
        %v10839 = vmul.f32 %v573, %v10778
        %v10840 = vmul.f32 %v578, %v10781
        %v10841 = vmul.f32 %v583, %v10784
        %v10842 = vmul.f32 %v588, %v10787
        %v10843 = vmul.f32 %v593, %v10790
        %v10844 = vmul.f32 %v598, %v10793
        %v10845 = vmul.f32 %v603, %v10796
        %v10846 = vmul.f32 %v608, %v10799
        %v10847 = vmul.f32 %v613, %v10802
        %v10848 = vmul.f32 %v618, %v10805
        %v10849 = vmul.f32 %v623, %v10808
        %v10850 = vmul.f32 %v628, %v10811
        %v10851 = vmul.f32 %v633, %v10814
        %v10852 = vmul.f32 %v638, %v10817
        %v10853 = vmul.f32 %v643, %v10820
        %v10854 = vmul.f32 %v648, %v10823
        %v10855 = vmul.f32 %v653, %v10826
        %v10856 = vmul.f32 %v658, %v10829
        %v10857 = vmul.f32 %v689, %v10754
        %v10858 = vmul.f32 %v693, %v10757
        %v10859 = vmul.f32 %v697, %v10760
        %v10860 = vmul.f32 %v701, %v10763
        %v10861 = vmul.f32 %v705, %v10766
        %v10862 = vmul.f32 %v709, %v10769
        %v10863 = vmul.f32 %v713, %v10772
        %v10864 = vmul.f32 %v717, %v10775
        %v10865 = vmul.f32 %v721, %v10778
        %v10866 = vmul.f32 %v725, %v10781
        %v10867 = vmul.f32 %v729, %v10784
        %v10868 = vmul.f32 %v733, %v10787
        %v10869 = vmul.f32 %v737, %v10790
        %v10870 = vmul.f32 %v741, %v10793
        %v10871 = vmul.f32 %v745, %v10796
        %v10872 = vmul.f32 %v749, %v10799
        %v10873 = vmul.f32 %v753, %v10802
        %v10874 = vmul.f32 %v757, %v10805
        %v10875 = vmul.f32 %v761, %v10808
        %v10876 = vmul.f32 %v765, %v10811
        %v10877 = vmul.f32 %v769, %v10814
        %v10878 = vmul.f32 %v773, %v10817
        %v10879 = vmul.f32 %v777, %v10820
        %v10880 = vmul.f32 %v781, %v10823
        %v10881 = vmul.f32 %v785, %v10826
        %v10882 = vmul.f32 %v789, %v10829
        %10909 = vrot.lane.b32.xlu0 %v10857, 125
        %v10910 = vpop.permute.xlu0 %10909
        %10911 = vrot.lane.b32.xlu0 %v10858, 125
        %v10912 = vpop.permute.xlu0 %10911
        %10913 = vrot.lane.b32.xlu0 %v10859, 125
        %v10914 = vpop.permute.xlu0 %10913
        %10915 = vrot.lane.b32.xlu0 %v10860, 125
        %v10916 = vpop.permute.xlu0 %10915
        %10917 = vrot.lane.b32.xlu0 %v10861, 125
        %v10918 = vpop.permute.xlu0 %10917
        %10919 = vrot.lane.b32.xlu0 %v10862, 125
        %v10920 = vpop.permute.xlu0 %10919
        %10921 = vrot.lane.b32.xlu0 %v10863, 125
        %v10922 = vpop.permute.xlu0 %10921
        %10923 = vrot.lane.b32.xlu0 %v10864, 125
        %v10924 = vpop.permute.xlu0 %10923
        %10925 = vrot.lane.b32.xlu0 %v10865, 125
        %v10926 = vpop.permute.xlu0 %10925
        %10927 = vrot.lane.b32.xlu0 %v10866, 125
        %v10928 = vpop.permute.xlu0 %10927
        %10929 = vrot.lane.b32.xlu0 %v10867, 125
        %v10930 = vpop.permute.xlu0 %10929
        %10931 = vrot.lane.b32.xlu0 %v10868, 125
        %v10932 = vpop.permute.xlu0 %10931
        %10933 = vrot.lane.b32.xlu0 %v10869, 125
        %v10934 = vpop.permute.xlu0 %10933
        %10935 = vrot.lane.b32.xlu0 %v10870, 125
        %v10936 = vpop.permute.xlu0 %10935
        %10937 = vrot.lane.b32.xlu0 %v10871, 125
        %v10938 = vpop.permute.xlu0 %10937
        %10939 = vrot.lane.b32.xlu0 %v10872, 125
        %v10940 = vpop.permute.xlu0 %10939
        %10941 = vrot.lane.b32.xlu0 %v10873, 125
        %v10942 = vpop.permute.xlu0 %10941
        %10943 = vrot.lane.b32.xlu0 %v10874, 125
        %v10944 = vpop.permute.xlu0 %10943
        %10945 = vrot.lane.b32.xlu0 %v10875, 125
        %v10946 = vpop.permute.xlu0 %10945
        %10947 = vrot.lane.b32.xlu0 %v10876, 125
        %v10948 = vpop.permute.xlu0 %10947
        %10949 = vrot.lane.b32.xlu0 %v10877, 125
        %v10950 = vpop.permute.xlu0 %10949
        %10951 = vrot.lane.b32.xlu0 %v10878, 125
        %v10952 = vpop.permute.xlu0 %10951
        %10953 = vrot.lane.b32.xlu0 %v10879, 125
        %v10954 = vpop.permute.xlu0 %10953
        %10955 = vrot.lane.b32.xlu0 %v10880, 125
        %v10956 = vpop.permute.xlu0 %10955
        %10957 = vrot.lane.b32.xlu0 %v10881, 125
        %v10958 = vpop.permute.xlu0 %10957
        %10959 = vrot.lane.b32.xlu0 %v10882, 125
        %v10960 = vpop.permute.xlu0 %10959
        %v10987 = vadd.f32 %v10831, %v10910
        %v10988 = vadd.f32 %v10832, %v10912
        %v10989 = vadd.f32 %v10833, %v10914
        %v10990 = vadd.f32 %v10834, %v10916
        %v10991 = vadd.f32 %v10835, %v10918
        %v10992 = vadd.f32 %v10836, %v10920
        %v10993 = vadd.f32 %v10837, %v10922
        %v10994 = vadd.f32 %v10838, %v10924
        %v10995 = vadd.f32 %v10839, %v10926
        %v10996 = vadd.f32 %v10840, %v10928
        %v10997 = vadd.f32 %v10841, %v10930
        %v10998 = vadd.f32 %v10842, %v10932
        %v10999 = vadd.f32 %v10843, %v10934
        %v11000 = vadd.f32 %v10844, %v10936
        %v11001 = vadd.f32 %v10845, %v10938
        %v11002 = vadd.f32 %v10846, %v10940
        %v11003 = vadd.f32 %v10847, %v10942
        %v11004 = vadd.f32 %v10848, %v10944
        %v11005 = vadd.f32 %v10849, %v10946
        %v11006 = vadd.f32 %v10850, %v10948
        %v11007 = vadd.f32 %v10851, %v10950
        %v11008 = vadd.f32 %v10852, %v10952
        %v11009 = vadd.f32 %v10853, %v10954
        %v11010 = vadd.f32 %v10854, %v10956
        %v11011 = vadd.f32 %v10855, %v10958
        %v11012 = vadd.f32 %v10856, %v10960
        %v11013 = vmul.f32 %v846, %v10754
        %v11014 = vmul.f32 %v850, %v10757
        %v11015 = vmul.f32 %v854, %v10760
        %v11016 = vmul.f32 %v858, %v10763
        %v11017 = vmul.f32 %v862, %v10766
        %v11018 = vmul.f32 %v866, %v10769
        %v11019 = vmul.f32 %v870, %v10772
        %v11020 = vmul.f32 %v874, %v10775
        %v11021 = vmul.f32 %v878, %v10778
        %v11022 = vmul.f32 %v882, %v10781
        %v11023 = vmul.f32 %v886, %v10784
        %v11024 = vmul.f32 %v890, %v10787
        %v11025 = vmul.f32 %v894, %v10790
        %v11026 = vmul.f32 %v898, %v10793
        %v11027 = vmul.f32 %v902, %v10796
        %v11028 = vmul.f32 %v906, %v10799
        %v11029 = vmul.f32 %v910, %v10802
        %v11030 = vmul.f32 %v914, %v10805
        %v11031 = vmul.f32 %v918, %v10808
        %v11032 = vmul.f32 %v922, %v10811
        %v11033 = vmul.f32 %v926, %v10814
        %v11034 = vmul.f32 %v930, %v10817
        %v11035 = vmul.f32 %v934, %v10820
        %v11036 = vmul.f32 %v938, %v10823
        %v11037 = vmul.f32 %v942, %v10826
        %v11038 = vmul.f32 %v946, %v10829
        %11065 = vrot.lane.b32.xlu0 %v11013, 122
        %v11066 = vpop.permute.xlu0 %11065
        %11067 = vrot.lane.b32.xlu0 %v11014, 122
        %v11068 = vpop.permute.xlu0 %11067
        %11069 = vrot.lane.b32.xlu0 %v11015, 122
        %v11070 = vpop.permute.xlu0 %11069
        %11071 = vrot.lane.b32.xlu0 %v11016, 122
        %v11072 = vpop.permute.xlu0 %11071
        %11073 = vrot.lane.b32.xlu0 %v11017, 122
        %v11074 = vpop.permute.xlu0 %11073
        %11075 = vrot.lane.b32.xlu0 %v11018, 122
        %v11076 = vpop.permute.xlu0 %11075
        %11077 = vrot.lane.b32.xlu0 %v11019, 122
        %v11078 = vpop.permute.xlu0 %11077
        %11079 = vrot.lane.b32.xlu0 %v11020, 122
        %v11080 = vpop.permute.xlu0 %11079
        %11081 = vrot.lane.b32.xlu0 %v11021, 122
        %v11082 = vpop.permute.xlu0 %11081
        %11083 = vrot.lane.b32.xlu0 %v11022, 122
        %v11084 = vpop.permute.xlu0 %11083
        %11085 = vrot.lane.b32.xlu0 %v11023, 122
        %v11086 = vpop.permute.xlu0 %11085
        %11087 = vrot.lane.b32.xlu0 %v11024, 122
        %v11088 = vpop.permute.xlu0 %11087
        %11089 = vrot.lane.b32.xlu0 %v11025, 122
        %v11090 = vpop.permute.xlu0 %11089
        %11091 = vrot.lane.b32.xlu0 %v11026, 122
        %v11092 = vpop.permute.xlu0 %11091
        %11093 = vrot.lane.b32.xlu0 %v11027, 122
        %v11094 = vpop.permute.xlu0 %11093
        %11095 = vrot.lane.b32.xlu0 %v11028, 122
        %v11096 = vpop.permute.xlu0 %11095
        %11097 = vrot.lane.b32.xlu0 %v11029, 122
        %v11098 = vpop.permute.xlu0 %11097
        %11099 = vrot.lane.b32.xlu0 %v11030, 122
        %v11100 = vpop.permute.xlu0 %11099
        %11101 = vrot.lane.b32.xlu0 %v11031, 122
        %v11102 = vpop.permute.xlu0 %11101
        %11103 = vrot.lane.b32.xlu0 %v11032, 122
        %v11104 = vpop.permute.xlu0 %11103
        %11105 = vrot.lane.b32.xlu0 %v11033, 122
        %v11106 = vpop.permute.xlu0 %11105
        %11107 = vrot.lane.b32.xlu0 %v11034, 122
        %v11108 = vpop.permute.xlu0 %11107
        %11109 = vrot.lane.b32.xlu0 %v11035, 122
        %v11110 = vpop.permute.xlu0 %11109
        %11111 = vrot.lane.b32.xlu0 %v11036, 122
        %v11112 = vpop.permute.xlu0 %11111
        %11113 = vrot.lane.b32.xlu0 %v11037, 122
        %v11114 = vpop.permute.xlu0 %11113
        %11115 = vrot.lane.b32.xlu0 %v11038, 122
        %v11116 = vpop.permute.xlu0 %11115
        %v11143 = vadd.f32 %v10987, %v11066
        %v11144 = vadd.f32 %v10988, %v11068
        %v11145 = vadd.f32 %v10989, %v11070
        %v11146 = vadd.f32 %v10990, %v11072
        %v11147 = vadd.f32 %v10991, %v11074
        %v11148 = vadd.f32 %v10992, %v11076
        %v11149 = vadd.f32 %v10993, %v11078
        %v11150 = vadd.f32 %v10994, %v11080
        %v11151 = vadd.f32 %v10995, %v11082
        %v11152 = vadd.f32 %v10996, %v11084
        %v11153 = vadd.f32 %v10997, %v11086
        %v11154 = vadd.f32 %v10998, %v11088
        %v11155 = vadd.f32 %v10999, %v11090
        %v11156 = vadd.f32 %v11000, %v11092
        %v11157 = vadd.f32 %v11001, %v11094
        %v11158 = vadd.f32 %v11002, %v11096
        %v11159 = vadd.f32 %v11003, %v11098
        %v11160 = vadd.f32 %v11004, %v11100
        %v11161 = vadd.f32 %v11005, %v11102
        %v11162 = vadd.f32 %v11006, %v11104
        %v11163 = vadd.f32 %v11007, %v11106
        %v11164 = vadd.f32 %v11008, %v11108
        %v11165 = vadd.f32 %v11009, %v11110
        %v11166 = vadd.f32 %v11010, %v11112
        %v11167 = vadd.f32 %v11011, %v11114
        %v11168 = vadd.f32 %v11012, %v11116
        %vm11169 = vcmask 23552
        %11170 = vst.msk [vmem:[%s501] sm:$0xff] %vm11169, %v11143
        %11171 = vst.msk [vmem:[%s501 + $0x8] sm:$0xff] %vm11169, %v11144
        %11172 = vst.msk [vmem:[%s501 + $0x10] sm:$0xff] %vm11169, %v11145
        %11173 = vst.msk [vmem:[%s501 + $0x18] sm:$0xff] %vm11169, %v11146
        %11174 = vst.msk [vmem:[%s501 + $0x20] sm:$0xff] %vm11169, %v11147
        %11175 = vst.msk [vmem:[%s501 + $0x28] sm:$0xff] %vm11169, %v11148
        %11176 = vst.msk [vmem:[%s501 + $0x30] sm:$0xff] %vm11169, %v11149
        %11177 = vst.msk [vmem:[%s501 + $0x38] sm:$0xff] %vm11169, %v11150
        %11178 = vst.msk [vmem:[%s501 + $0x40] sm:$0xff] %vm11169, %v11151
        %11179 = vst.msk [vmem:[%s501 + $0x48] sm:$0xff] %vm11169, %v11152
        %11180 = vst.msk [vmem:[%s501 + $0x50] sm:$0xff] %vm11169, %v11153
        %11181 = vst.msk [vmem:[%s501 + $0x58] sm:$0xff] %vm11169, %v11154
        %11182 = vst.msk [vmem:[%s501 + $0x60] sm:$0xff] %vm11169, %v11155
        %11183 = vst.msk [vmem:[%s501 + $0x68] sm:$0xff] %vm11169, %v11156
        %11184 = vst.msk [vmem:[%s501 + $0x70] sm:$0xff] %vm11169, %v11157
        %11185 = vst.msk [vmem:[%s501 + $0x78] sm:$0xff] %vm11169, %v11158
        %11186 = vst.msk [vmem:[%s501 + $0x80] sm:$0xff] %vm11169, %v11159
        %11187 = vst.msk [vmem:[%s501 + $0x88] sm:$0xff] %vm11169, %v11160
        %11188 = vst.msk [vmem:[%s501 + $0x90] sm:$0xff] %vm11169, %v11161
        %11189 = vst.msk [vmem:[%s501 + $0x98] sm:$0xff] %vm11169, %v11162
        %11190 = vst.msk [vmem:[%s501 + $0xa0] sm:$0xff] %vm11169, %v11163
        %11191 = vst.msk [vmem:[%s501 + $0xa8] sm:$0xff] %vm11169, %v11164
        %11192 = vst.msk [vmem:[%s501 + $0xb0] sm:$0xff] %vm11169, %v11165
        %11193 = vst.msk [vmem:[%s501 + $0xb8] sm:$0xff] %vm11169, %v11166
        %11194 = vst.msk [vmem:[%s501 + $0xc0] sm:$0xff] %vm11169, %v11167
        %11195 = vst.msk [vmem:[%s501 + $0xc8] sm:$0xff] %vm11169, %v11168
        %p11196 = scmp.lt.s32.totalorder %s27, 1
        %s11197 = scalar_select %p11196, %s27, 1
        %s11198 = smul.addr %s11197, 26
        %s11199 = smul.addr %s11198, 8
        %s11200 = scalar_lea.vmem %s14, %s11199
        // Predicated region
        $region85: #{tpu_custom_call.1} parent=75 // pred_check
          %p11201 = pneg %p344
        $region86: #{tpu_custom_call.1} parent=75 // pred_check_branch
          %11203 = sbr.rel (%p11201) target = $region88
        $region87: #{tpu_custom_call.1} parent=75 // pred_region
          _
        $region88: #{tpu_custom_call.1} parent=75 // pred_fallthru
          _
      $region76: #{tpu_custom_call.1} parent=5 // pred_fallthru
        _
      %p11204 = scmp.le.s32.totalorder 2, %s22
      // Predicated region
      $region89: #{tpu_custom_call.1} parent=5 // pred_check
        %p11205 = pneg %p11204
      $region90: #{tpu_custom_call.1} parent=5 // pred_check_branch
        %11207 = sbr.rel (%p11205) target = $region92
      $region91: #{tpu_custom_call.1} parent=5 // pred_region
        %s11208 = ssub.s32 %s22, 2
        // Predicated region
        $region93: #{tpu_custom_call.1} parent=91 // pred_check
          %p11209 = pneg %p350
        $region94: #{tpu_custom_call.1} parent=91 // pred_check_branch
          %11211 = sbr.rel (%p11209) target = $region96
        $region95: #{tpu_custom_call.1} parent=91 // pred_region
          %p11212 = scmp.lt.s32.totalorder %s28, 1
          %s11213 = scalar_select %p11212, %s28, 1
          %s11214 = smul.addr %s11213, 26
          %s11215 = smul.addr %s11214, 8
          %s11216 = scalar_lea.vmem %s14, %s11215
        $region96: #{tpu_custom_call.1} parent=91 // pred_fallthru
          _
      $region92: #{tpu_custom_call.1} parent=5 // pred_fallthru
        _
    $region6: #{tpu_custom_call.1} parent=1 // loop_footer
      %s26 = sadd.s32 1, %s22
    $region7: #{tpu_custom_call.1} parent=1 // loop_footer_branch
      %21 = sbr.rel target = $region3
    $region8: #{tpu_custom_call.1} parent=1 // loop_exit
      _
    %11217 = vsyncpa [#allocation3], 1
    %s11218 = scalar_lea.sflag [#allocation3], 1
    %11219 = vsyncpa %s11218, 1
    %11220 = vsyncpa [#allocation5], 1

</llo_original>
